<compile_context>
chip_gen: v5e
topology: v5e:2x2
jax: 0.10.0
libtpu: 0.0.40
codegen_flags: <defaults>
</compile_context>

<pallas_src>
import jax
import jax.numpy as jnp
from jax import lax
from jax.experimental import pallas as pl
from jax.experimental.pallas import tpu as pltpu

C_IN, C_MID, C_OUT = 192, 128, 32
EPS = 1e-5
CDT = jnp.bfloat16   # matmul operand dtype (accumulation stays float32)


def _largest_divisor(n, cap, mult=1):
    """Largest divisor of n that is a multiple of `mult` and <= cap (fallback n)."""
    best = None
    for t in range(mult, min(n, cap) + 1, mult):
        if n % t == 0:
            best = t
    return best if best is not None else n


# ---------------------------------------------------------------------------
# Kernel 1: 1x1 conv (tiled matmul over the flattened N*H*W axis) fused with
#           per-tile partial sum / sum-of-squares for the BN batch statistics.
# ---------------------------------------------------------------------------
def conv1x1_stats_kernel(x_ref, w_ref, y_ref, psum_ref, psq_ref):
    y = jnp.dot(x_ref[...], w_ref[...], preferred_element_type=jnp.float32)
    y_ref[...] = y
    # Per-tile partials (no cross-iteration accumulation -> "parallel"-safe);
    # the tiny reduction over tiles happens in plain JAX outside the kernel.
    psum_ref[0] = jnp.sum(y, axis=0, keepdims=True)
    psq_ref[0] = jnp.sum(y * y, axis=0, keepdims=True)


# ---------------------------------------------------------------------------
# Kernel 2: BN (precomputed scale/shift) + ReLU + 3x3 conv over a TH-row block.
# ---------------------------------------------------------------------------
def bn_relu_conv3x3_kernel(y_ref, top_ref, bot_ref, scale_ref, shift_ref,
                           w_ref, out_ref, apad_ref, col_ref):
    _, TH, W, C = y_ref.shape
    CO = out_ref.shape[-1]

    # BatchNorm + ReLU on this block's own rows (f32), cast to bf16 for the MXU.
    a = jnp.maximum(y_ref[0] * scale_ref[...] + shift_ref[...], 0.0).astype(CDT)

    # H-padded activation: rows [1, TH] = this block, rows 0 / TH+1 = halos
    # (already activated in the wrapper; zero rows at the image border).
    apad_ref[1:TH + 1] = a
    apad_ref[0] = top_ref[0, 0]
    apad_ref[TH + 1] = bot_ref[0, 0]

    # Assemble the im2col slab: lane block t = 3*kh + kw holds the activation
    # shifted by (kh-1, kw-1).  Every lane offset below is a multiple of 128,
    # so the stores are dense (unmasked); the W-shift is applied once per tap
    # on the whole block (no per-row unaligned slices, no (W+2)-wide scratch).
    zcol = jnp.zeros((TH, 1, C), CDT)
    for kh in range(3):
        seg = apad_ref[kh:kh + TH]                       # (TH, W, C) dense load
        t = 3 * kh
        # kw = 0 : column j takes a[..., j-1, :]
        col_ref[:, 1:W, t * C:(t + 1) * C] = seg[:, 0:W - 1]
        col_ref[:, 0:1, t * C:(t + 1) * C] = zcol
        # kw = 1 : no shift
        col_ref[:, :, (t + 1) * C:(t + 2) * C] = seg
        # kw = 2 : column j takes a[..., j+1, :]
        col_ref[:, 0:W - 1, (t + 2) * C:(t + 3) * C] = seg[:, 1:W]
        col_ref[:, W - 1:W, (t + 2) * C:(t + 3) * C] = zcol

    # One wide MXU matmul per block: (TH*W, 9*C) x (9*C, C_OUT), f32 accumulate.
    lhs = col_ref[...].reshape(TH * W, 9 * C)
    out = jnp.dot(lhs, w_ref[...], preferred_element_type=jnp.float32)
    # NOTE: the output tile keeps C_OUT=32 lanes; the extra masked stores are
    # hidden under the matmul / im2col work (a relayout to a W*C_OUT-lane slab
    # would cost about as much XLU work as it saves on the store path).
    out_ref[0] = out.reshape(TH, W, CO)


# ---------------------------------------------------------------------------
# Wrapper
# ---------------------------------------------------------------------------
def forward(x_nchw, w1, w2_hwio, gamma, beta):
    N, C, H, W = x_nchw.shape
    assert C == C_IN
    assert W % 8 == 0, "W must be a multiple of 8 for the chosen layouts"

    x_nhwc = jnp.transpose(x_nchw, (0, 2, 3, 1))
    M = N * H * W
    x_flat = x_nhwc.reshape(M, C_IN).astype(CDT)
    w1m = w1.astype(CDT)                                    # (C_IN, C_MID)

    # ---- kernel 1: 1x1 conv + batch-stat partials ---------------------------
    tm = _largest_divisor(M, cap=1024, mult=8)              # big but VMEM-bounded
    gm = M // tm

    y1, psum, psq = pl.pallas_call(
        conv1x1_stats_kernel,
        out_shape=(jax.ShapeDtypeStruct((M, C_MID), jnp.float32),
                   jax.ShapeDtypeStruct((gm, 1, C_MID), jnp.float32),
                   jax.ShapeDtypeStruct((gm, 1, C_MID), jnp.float32)),
        grid_spec=pltpu.PrefetchScalarGridSpec(
            num_scalar_prefetch=0,
            grid=(gm,),
            in_specs=[pl.BlockSpec((tm, C_IN), lambda i: (i, 0)),
                      pl.BlockSpec((C_IN, C_MID), lambda i: (0, 0))],
            out_specs=[pl.BlockSpec((tm, C_MID), lambda i: (i, 0)),
                       pl.BlockSpec((1, 1, C_MID), lambda i: (i, 0, 0)),
                       pl.BlockSpec((1, 1, C_MID), lambda i: (i, 0, 0))]),
        compiler_params=pltpu.CompilerParams(
            dimension_semantics=("parallel",)),
    )(x_flat, w1m)

    # ---- BatchNorm2d (training mode): batch statistics over (N, H, W) -------
    count = jnp.float32(M)
    mean = jnp.sum(psum[:, 0, :], axis=0) / count
    # One-pass variance (E[y^2] - mean^2); fine in f32 for these activations.
    var = jnp.sum(psq[:, 0, :], axis=0) / count - mean * mean
    inv = lax.rsqrt(var + EPS)
    scale = gamma.astype(jnp.float32) * inv                 # (C_MID,)
    shift = beta.astype(jnp.float32) - mean * scale
    # TODO(synk): running_mean/var momentum update (training-time side effect)
    # is not emitted; it does not affect the forward output.

    # ---- kernel 2: BN + ReLU + 3x3 conv --------------------------------------
    y1_img = y1.reshape(N, H, W, C_MID)

    TH = _largest_divisor(H, cap=max(8, H // 2))            # row-block height
    HB = H // TH

    # One-row halos per (image, row-block), activated in f32 then cast to bf16;
    # zero activation rows where the 3x3 conv pads outside the image.
    def gather_halo(src):
        rows = jnp.take(y1_img, jnp.clip(src, 0, H - 1), axis=1)   # (N, HB, W, C)
        act = jnp.maximum(rows * scale + shift, 0.0)
        valid = ((src >= 0) & (src < H))[None, :, None, None]
        return jnp.where(valid, act, 0.0).astype(CDT)

    halo_top = gather_halo(jnp.arange(HB) * TH - 1)
    halo_bot = gather_halo((jnp.arange(HB) + 1) * TH)

    scale2 = scale.reshape(1, C_MID)
    shift2 = shift.reshape(1, C_MID)
    w2m = w2_hwio.reshape(9 * C_MID, C_OUT).astype(CDT)     # rows ordered (kh, kw, c_in)

    out = pl.pallas_call(
        bn_relu_conv3x3_kernel,
        out_shape=jax.ShapeDtypeStruct((N, H, W, C_OUT), jnp.float32),
        grid_spec=pltpu.PrefetchScalarGridSpec(
            num_scalar_prefetch=0,
            grid=(N, HB),
            in_specs=[
                pl.BlockSpec((1, TH, W, C_MID), lambda n, b: (n, b, 0, 0)),
                pl.BlockSpec((1, 1, W, C_MID), lambda n, b: (n, b, 0, 0)),
                pl.BlockSpec((1, 1, W, C_MID), lambda n, b: (n, b, 0, 0)),
                pl.BlockSpec((1, C_MID), lambda n, b: (0, 0)),
                pl.BlockSpec((1, C_MID), lambda n, b: (0, 0)),
                pl.BlockSpec((9 * C_MID, C_OUT), lambda n, b: (0, 0)),
            ],
            out_specs=pl.BlockSpec((1, TH, W, C_OUT), lambda n, b: (n, b, 0, 0)),
            scratch_shapes=[pltpu.VMEM((TH + 2, W, C_MID), CDT),
                            pltpu.VMEM((TH, W, 9 * C_MID), CDT)]),
        compiler_params=pltpu.CompilerParams(
            dimension_semantics=("parallel", "parallel")),
    )(y1_img, halo_top, halo_bot, scale2, shift2, w2m)

    return jnp.transpose(out, (0, 3, 1, 2))                 # back to NCHW


# Pure-JAX reference (same semantics, f32 HIGHEST precision) for verification.
def reference(x_nchw, w1, w2_hwio, gamma, beta):
    x_nhwc = jnp.transpose(x_nchw, (0, 2, 3, 1)).astype(jnp.float32)
    y1 = lax.conv_general_dilated(
        x_nhwc, w1.reshape(1, 1, C_IN, C_MID), (1, 1), 'VALID',
        dimension_numbers=('NHWC', 'HWIO', 'NHWC'),
        precision=lax.Precision.HIGHEST)
    mean = jnp.mean(y1, axis=(0, 1, 2))
    var = jnp.mean(jnp.square(y1 - mean), axis=(0, 1, 2))
    a = jnp.maximum((y1 - mean) * lax.rsqrt(var + EPS) * gamma + beta, 0.0)
    y2 = lax.conv_general_dilated(
        a, w2_hwio, (1, 1), ((1, 1), (1, 1)),
        dimension_numbers=('NHWC', 'HWIO', 'NHWC'),
        precision=lax.Precision.HIGHEST)
    return jnp.transpose(y2, (0, 3, 1, 2))


if __name__ == "__main__":
    key = jax.random.PRNGKey(0)
    kx, kw1, kw2, kg, kb = jax.random.split(key, 5)

    # Small shapes consistent with the module: channels fixed by the weights
    # (192 -> 128 -> 32); spatial shrunk 56 -> 32, batch 1 -> 2 so that both
    # kernels get a multi-step grid (kernel 1: 2 tiles; kernel 2: (2, 2)).
    N, H, W = 2, 32, 32
    x = jax.random.normal(kx, (N, C_IN, H, W), dtype=jnp.float32)

    # Synthetic parameters (shapes match the PyTorch module; conv weights kept
    # in (I, O) / HWIO form, equivalent to PyTorch's OIHW up to a transpose).
    w1 = jax.random.normal(kw1, (C_IN, C_MID), dtype=jnp.float32) * 0.05
    w2 = jax.random.normal(kw2, (3, 3, C_MID, C_OUT), dtype=jnp.float32) * 0.05
    gamma = 1.0 + 0.1 * jax.random.normal(kg, (C_MID,), dtype=jnp.float32)
    beta = 0.1 * jax.random.normal(kb, (C_MID,), dtype=jnp.float32)

    out = jax.jit(forward)(x, w1, w2, gamma, beta)
    out = jax.block_until_ready(out)

    ref = reference(x, w1, w2, gamma, beta)
    assert out.shape == (N, C_OUT, H, W), out.shape
    max_diff = float(jnp.max(jnp.abs(out - ref)))
    # bf16 matmul operands (f32 accumulation) vs a float32 HIGHEST reference.
    assert max_diff < 5e-2, f"max abs diff {max_diff}"

    print("KERNEL_OK")
</pallas_src>

<mosaic_0001>
module attributes {stable_mosaic.version = 11 : i64} {
  func.func @conv1x1_stats_kernel(%arg0: i32, %arg1: memref<1024x192xbf16, #tpu.memory_space<vmem>>, %arg2: memref<192x128xbf16, #tpu.memory_space<vmem>>, %arg3: memref<1024x128xf32, #tpu.memory_space<vmem>>, %arg4: memref<1x1x128xf32, #tpu.memory_space<vmem>>, %arg5: memref<1x1x128xf32, #tpu.memory_space<vmem>>) attributes {dimension_semantics = [#tpu.dimension_semantics<parallel>], iteration_bounds = array<i64: 2>, scalar_prefetch = 0 : i64, scratch_operands = 0 : i64, tpu.core_type = #tpu.core_type<tc>, window_params = [{transform_indices = @transform_0, window_bounds = array<i64: 1024, 192>}, {pipeline_mode = #tpu.pipeline_mode<synchronous>, transform_indices = @transform_1, window_bounds = array<i64: 192, 128>}, {transform_indices = @transform_2, window_bounds = array<i64: 1024, 128>}, {transform_indices = @transform_3, window_bounds = array<i64: 1, 1, 128>}, {transform_indices = @transform_4, window_bounds = array<i64: 1, 1, 128>}]} {
    %c0 = arith.constant 0 : index
    %c0_0 = arith.constant 0 : index
    %0 = vector.load %arg1[%c0, %c0_0] : memref<1024x192xbf16, #tpu.memory_space<vmem>>, vector<1024x192xbf16>
    %c0_1 = arith.constant 0 : index
    %c0_2 = arith.constant 0 : index
    %1 = vector.load %arg2[%c0_1, %c0_2] : memref<192x128xbf16, #tpu.memory_space<vmem>>, vector<192x128xbf16>
    %cst = arith.constant dense<0.000000e+00> : vector<1024x128xf32>
    %2 = tpu.matmul %0, %1, %cst {dimension_numbers = #tpu.dot_dimension_numbers<[1], [0], [0], [1], [0, 0, 1, 1], [], []>} : vector<1024x192xbf16>, vector<192x128xbf16>, vector<1024x128xf32> -> vector<1024x128xf32>
    %c0_3 = arith.constant 0 : index
    %c0_4 = arith.constant 0 : index
    %3 = vector.load %arg3[%c0_3, %c0_4] : memref<1024x128xf32, #tpu.memory_space<vmem>>, vector<1024x128xf32>
    tpu.vector_store %arg3[%c0_3, %c0_4], %2 {strides = array<i32>} : memref<1024x128xf32, #tpu.memory_space<vmem>>, vector<1024x128xf32>,
    %cst_5 = arith.constant dense<0.000000e+00> : vector<128xf32>
    %4 = vector.multi_reduction <add>, %2, %cst_5 [0] : vector<1024x128xf32> to vector<128xf32>
    %5 = vector.shape_cast %4 : vector<128xf32> to vector<1x128xf32>
    %c0_6 = arith.constant 0 : index
    %c0_7 = arith.constant 0 : index
    %c0_8 = arith.constant 0 : index
    %6 = vector.load %arg4[%c0_6, %c0_7, %c0_8] : memref<1x1x128xf32, #tpu.memory_space<vmem>>, vector<1x1x128xf32>
    %7 = vector.shape_cast %6 : vector<1x1x128xf32> to vector<1x128xf32>
    %8 = vector.shape_cast %5 : vector<1x128xf32> to vector<1x1x128xf32>
    tpu.vector_store %arg4[%c0_6, %c0_7, %c0_8], %8 {strides = array<i32>} : memref<1x1x128xf32, #tpu.memory_space<vmem>>, vector<1x1x128xf32>,
    %9 = arith.mulf %2, %2 : vector<1024x128xf32>
    %cst_9 = arith.constant dense<0.000000e+00> : vector<128xf32>
    %10 = vector.multi_reduction <add>, %9, %cst_9 [0] : vector<1024x128xf32> to vector<128xf32>
    %11 = vector.shape_cast %10 : vector<128xf32> to vector<1x128xf32>
    %c0_10 = arith.constant 0 : index
    %c0_11 = arith.constant 0 : index
    %c0_12 = arith.constant 0 : index
    %12 = vector.load %arg5[%c0_10, %c0_11, %c0_12] : memref<1x1x128xf32, #tpu.memory_space<vmem>>, vector<1x1x128xf32>
    %13 = vector.shape_cast %12 : vector<1x1x128xf32> to vector<1x128xf32>
    %14 = vector.shape_cast %11 : vector<1x128xf32> to vector<1x1x128xf32>
    tpu.vector_store %arg5[%c0_10, %c0_11, %c0_12], %14 {strides = array<i32>} : memref<1x1x128xf32, #tpu.memory_space<vmem>>, vector<1x1x128xf32>,
    return
  }
  func.func @transform_0(%arg0: i32) -> (i32, i32) {
    %c0_i32 = arith.constant 0 : i32
    %c0_i32_0 = arith.constant 0 : i32
    return %arg0, %c0_i32 : i32, i32
  }
  func.func @transform_1(%arg0: i32) -> (i32, i32) {
    %c0_i32 = arith.constant 0 : i32
    %c0_i32_0 = arith.constant 0 : i32
    %c0_i32_1 = arith.constant 0 : i32
    return %c0_i32, %c0_i32_0 : i32, i32
  }
  func.func @transform_2(%arg0: i32) -> (i32, i32) {
    %c0_i32 = arith.constant 0 : i32
    %c0_i32_0 = arith.constant 0 : i32
    return %arg0, %c0_i32 : i32, i32
  }
  func.func @transform_3(%arg0: i32) -> (i32, i32, i32) {
    %c0_i32 = arith.constant 0 : i32
    %c0_i32_0 = arith.constant 0 : i32
    %c0_i32_1 = arith.constant 0 : i32
    return %arg0, %c0_i32, %c0_i32_0 : i32, i32, i32
  }
  func.func @transform_4(%arg0: i32) -> (i32, i32, i32) {
    %c0_i32 = arith.constant 0 : i32
    %c0_i32_0 = arith.constant 0 : i32
    %c0_i32_1 = arith.constant 0 : i32
    return %arg0, %c0_i32, %c0_i32_0 : i32, i32, i32
  }
}

module attributes {stable_mosaic.version = 11 : i64} {
  func.func @bn_relu_conv3x3_kernel(%arg0: i32, %arg1: i32, %arg2: memref<1x16x32x128xf32, #tpu.memory_space<vmem>>, %arg3: memref<1x1x32x128xbf16, #tpu.memory_space<vmem>>, %arg4: memref<1x1x32x128xbf16, #tpu.memory_space<vmem>>, %arg5: memref<1x128xf32, #tpu.memory_space<vmem>>, %arg6: memref<1x128xf32, #tpu.memory_space<vmem>>, %arg7: memref<1152x32xbf16, #tpu.memory_space<vmem>>, %arg8: memref<1x16x32x32xf32, #tpu.memory_space<vmem>>, %arg9: memref<18x32x128xbf16, #tpu.memory_space<vmem>>, %arg10: memref<16x32x1152xbf16, #tpu.memory_space<vmem>>) attributes {dimension_semantics = [#tpu.dimension_semantics<parallel>, #tpu.dimension_semantics<parallel>], iteration_bounds = array<i64: 2, 2>, scalar_prefetch = 0 : i64, scratch_operands = 2 : i64, tpu.core_type = #tpu.core_type<tc>, window_params = [{transform_indices = @transform_0, window_bounds = array<i64: 1, 16, 32, 128>}, {transform_indices = @transform_1, window_bounds = array<i64: 1, 1, 32, 128>}, {transform_indices = @transform_2, window_bounds = array<i64: 1, 1, 32, 128>}, {pipeline_mode = #tpu.pipeline_mode<synchronous>, transform_indices = @transform_3, window_bounds = array<i64: 1, 128>}, {pipeline_mode = #tpu.pipeline_mode<synchronous>, transform_indices = @transform_4, window_bounds = array<i64: 1, 128>}, {pipeline_mode = #tpu.pipeline_mode<synchronous>, transform_indices = @transform_5, window_bounds = array<i64: 1152, 32>}, {transform_indices = @transform_6, window_bounds = array<i64: 1, 16, 32, 32>}]} {
    %c0 = arith.constant 0 : index
    %c0_0 = arith.constant 0 : index
    %c0_1 = arith.constant 0 : index
    %c0_2 = arith.constant 0 : index
    %0 = vector.load %arg2[%c0, %c0_0, %c0_1, %c0_2] : memref<1x16x32x128xf32, #tpu.memory_space<vmem>>, vector<1x16x32x128xf32>
    %1 = vector.shape_cast %0 : vector<1x16x32x128xf32> to vector<16x32x128xf32>
    %c0_3 = arith.constant 0 : index
    %c0_4 = arith.constant 0 : index
    %2 = vector.load %arg5[%c0_3, %c0_4] : memref<1x128xf32, #tpu.memory_space<vmem>>, vector<1x128xf32>
    %3 = vector.shape_cast %2 : vector<1x128xf32> to vector<1x1x128xf32>
    %4 = vector.broadcast %3 : vector<1x1x128xf32> to vector<16x32x128xf32>
    %5 = arith.mulf %1, %4 : vector<16x32x128xf32>
    %c0_5 = arith.constant 0 : index
    %c0_6 = arith.constant 0 : index
    %6 = vector.load %arg6[%c0_5, %c0_6] : memref<1x128xf32, #tpu.memory_space<vmem>>, vector<1x128xf32>
    %7 = vector.shape_cast %6 : vector<1x128xf32> to vector<1x1x128xf32>
    %8 = vector.broadcast %7 : vector<1x1x128xf32> to vector<16x32x128xf32>
    %9 = arith.addf %5, %8 : vector<16x32x128xf32>
    %cst = arith.constant 0.000000e+00 : f32
    %10 = vector.broadcast %cst : f32 to vector<16x32x128xf32>
    %11 = arith.maximumf %9, %10 : vector<16x32x128xf32>
    %12 = arith.truncf %11 : vector<16x32x128xf32> to vector<16x32x128xbf16>
    %c1 = arith.constant 1 : index
    %c0_7 = arith.constant 0 : index
    %c0_8 = arith.constant 0 : index
    %13 = vector.load %arg9[%c1, %c0_7, %c0_8] : memref<18x32x128xbf16, #tpu.memory_space<vmem>>, vector<16x32x128xbf16>
    tpu.vector_store %arg9[%c1, %c0_7, %c0_8], %12 {strides = array<i32>} : memref<18x32x128xbf16, #tpu.memory_space<vmem>>, vector<16x32x128xbf16>,
    %c0_9 = arith.constant 0 : index
    %c0_10 = arith.constant 0 : index
    %c0_11 = arith.constant 0 : index
    %c0_12 = arith.constant 0 : index
    %14 = vector.load %arg3[%c0_9, %c0_10, %c0_11, %c0_12] : memref<1x1x32x128xbf16, #tpu.memory_space<vmem>>, vector<1x1x32x128xbf16>
    %15 = vector.shape_cast %14 : vector<1x1x32x128xbf16> to vector<32x128xbf16>
    %c0_13 = arith.constant 0 : index
    %c0_14 = arith.constant 0 : index
    %c0_15 = arith.constant 0 : index
    %16 = vector.load %arg9[%c0_13, %c0_14, %c0_15] : memref<18x32x128xbf16, #tpu.memory_space<vmem>>, vector<1x32x128xbf16>
    %17 = vector.shape_cast %16 : vector<1x32x128xbf16> to vector<32x128xbf16>
    %18 = vector.shape_cast %15 : vector<32x128xbf16> to vector<1x32x128xbf16>
    tpu.vector_store %arg9[%c0_13, %c0_14, %c0_15], %18 {strides = array<i32>} : memref<18x32x128xbf16, #tpu.memory_space<vmem>>, vector<1x32x128xbf16>,
    %c0_16 = arith.constant 0 : index
    %c0_17 = arith.constant 0 : index
    %c0_18 = arith.constant 0 : index
    %c0_19 = arith.constant 0 : index
    %19 = vector.load %arg4[%c0_16, %c0_17, %c0_18, %c0_19] : memref<1x1x32x128xbf16, #tpu.memory_space<vmem>>, vector<1x1x32x128xbf16>
    %20 = vector.shape_cast %19 : vector<1x1x32x128xbf16> to vector<32x128xbf16>
    %c17 = arith.constant 17 : index
    %c0_20 = arith.constant 0 : index
    %c0_21 = arith.constant 0 : index
    %21 = vector.load %arg9[%c17, %c0_20, %c0_21] : memref<18x32x128xbf16, #tpu.memory_space<vmem>>, vector<1x32x128xbf16>
    %22 = vector.shape_cast %21 : vector<1x32x128xbf16> to vector<32x128xbf16>
    %23 = vector.shape_cast %20 : vector<32x128xbf16> to vector<1x32x128xbf16>
    tpu.vector_store %arg9[%c17, %c0_20, %c0_21], %23 {strides = array<i32>} : memref<18x32x128xbf16, #tpu.memory_space<vmem>>, vector<1x32x128xbf16>,
    %cst_22 = arith.constant 0.000000e+00 : bf16
    %24 = vector.broadcast %cst_22 : bf16 to vector<16x1x128xbf16>
    %c0_23 = arith.constant 0 : index
    %c0_24 = arith.constant 0 : index
    %c0_25 = arith.constant 0 : index
    %25 = vector.load %arg9[%c0_23, %c0_24, %c0_25] : memref<18x32x128xbf16, #tpu.memory_space<vmem>>, vector<16x32x128xbf16>
    %26 = vector.extract_strided_slice %25 {offsets = [0, 0, 0], sizes = [16, 31, 128], strides = [1, 1, 1]} : vector<16x32x128xbf16> to vector<16x31x128xbf16>
    %c0_26 = arith.constant 0 : index
    %c1_27 = arith.constant 1 : index
    %c0_28 = arith.constant 0 : index
    %27 = vector.load %arg10[%c0_26, %c1_27, %c0_28] : memref<16x32x1152xbf16, #tpu.memory_space<vmem>>, vector<16x31x128xbf16>
    tpu.vector_store %arg10[%c0_26, %c1_27, %c0_28], %26 {strides = array<i32>} : memref<16x32x1152xbf16, #tpu.memory_space<vmem>>, vector<16x31x128xbf16>,
    %c0_29 = arith.constant 0 : index
    %c0_30 = arith.constant 0 : index
    %c0_31 = arith.constant 0 : index
    %28 = vector.load %arg10[%c0_29, %c0_30, %c0_31] : memref<16x32x1152xbf16, #tpu.memory_space<vmem>>, vector<16x1x128xbf16>
    tpu.vector_store %arg10[%c0_29, %c0_30, %c0_31], %24 {strides = array<i32>} : memref<16x32x1152xbf16, #tpu.memory_space<vmem>>, vector<16x1x128xbf16>,
    %c0_32 = arith.constant 0 : index
    %c0_33 = arith.constant 0 : index
    %c128 = arith.constant 128 : index
    %29 = vector.load %arg10[%c0_32, %c0_33, %c128] : memref<16x32x1152xbf16, #tpu.memory_space<vmem>>, vector<16x32x128xbf16>
    tpu.vector_store %arg10[%c0_32, %c0_33, %c128], %25 {strides = array<i32>} : memref<16x32x1152xbf16, #tpu.memory_space<vmem>>, vector<16x32x128xbf16>,
    %30 = vector.extract_strided_slice %25 {offsets = [0, 1, 0], sizes = [16, 31, 128], strides = [1, 1, 1]} : vector<16x32x128xbf16> to vector<16x31x128xbf16>
    %c0_34 = arith.constant 0 : index
    %c0_35 = arith.constant 0 : index
    %c256 = arith.constant 256 : index
    %31 = vector.load %arg10[%c0_34, %c0_35, %c256] : memref<16x32x1152xbf16, #tpu.memory_space<vmem>>, vector<16x31x128xbf16>
    tpu.vector_store %arg10[%c0_34, %c0_35, %c256], %30 {strides = array<i32>} : memref<16x32x1152xbf16, #tpu.memory_space<vmem>>, vector<16x31x128xbf16>,
    %c0_36 = arith.constant 0 : index
    %c31 = arith.constant 31 : index
    %c256_37 = arith.constant 256 : index
    %32 = vector.load %arg10[%c0_36, %c31, %c256_37] : memref<16x32x1152xbf16, #tpu.memory_space<vmem>>, vector<16x1x128xbf16>
    tpu.vector_store %arg10[%c0_36, %c31, %c256_37], %24 {strides = array<i32>} : memref<16x32x1152xbf16, #tpu.memory_space<vmem>>, vector<16x1x128xbf16>,
    %c1_38 = arith.constant 1 : index
    %c0_39 = arith.constant 0 : index
    %c0_40 = arith.constant 0 : index
    %33 = vector.load %arg9[%c1_38, %c0_39, %c0_40] : memref<18x32x128xbf16, #tpu.memory_space<vmem>>, vector<16x32x128xbf16>
    %34 = vector.extract_strided_slice %33 {offsets = [0, 0, 0], sizes = [16, 31, 128], strides = [1, 1, 1]} : vector<16x32x128xbf16> to vector<16x31x128xbf16>
    %c0_41 = arith.constant 0 : index
    %c1_42 = arith.constant 1 : index
    %c384 = arith.constant 384 : index
    %35 = vector.load %arg10[%c0_41, %c1_42, %c384] : memref<16x32x1152xbf16, #tpu.memory_space<vmem>>, vector<16x31x128xbf16>
    tpu.vector_store %arg10[%c0_41, %c1_42, %c384], %34 {strides = array<i32>} : memref<16x32x1152xbf16, #tpu.memory_space<vmem>>, vector<16x31x128xbf16>,
    %c0_43 = arith.constant 0 : index
    %c0_44 = arith.constant 0 : index
    %c384_45 = arith.constant 384 : index
    %36 = vector.load %arg10[%c0_43, %c0_44, %c384_45] : memref<16x32x1152xbf16, #tpu.memory_space<vmem>>, vector<16x1x128xbf16>
    tpu.vector_store %arg10[%c0_43, %c0_44, %c384_45], %24 {strides = array<i32>} : memref<16x32x1152xbf16, #tpu.memory_space<vmem>>, vector<16x1x128xbf16>,
    %c0_46 = arith.constant 0 : index
    %c0_47 = arith.constant 0 : index
    %c512 = arith.constant 512 : index
    %37 = vector.load %arg10[%c0_46, %c0_47, %c512] : memref<16x32x1152xbf16, #tpu.memory_space<vmem>>, vector<16x32x128xbf16>
    tpu.vector_store %arg10[%c0_46, %c0_47, %c512], %33 {strides = array<i32>} : memref<16x32x1152xbf16, #tpu.memory_space<vmem>>, vector<16x32x128xbf16>,
    %38 = vector.extract_strided_slice %33 {offsets = [0, 1, 0], sizes = [16, 31, 128], strides = [1, 1, 1]} : vector<16x32x128xbf16> to vector<16x31x128xbf16>
    %c0_48 = arith.constant 0 : index
    %c0_49 = arith.constant 0 : index
    %c640 = arith.constant 640 : index
    %39 = vector.load %arg10[%c0_48, %c0_49, %c640] : memref<16x32x1152xbf16, #tpu.memory_space<vmem>>, vector<16x31x128xbf16>
    tpu.vector_store %arg10[%c0_48, %c0_49, %c640], %38 {strides = array<i32>} : memref<16x32x1152xbf16, #tpu.memory_space<vmem>>, vector<16x31x128xbf16>,
    %c0_50 = arith.constant 0 : index
    %c31_51 = arith.constant 31 : index
    %c640_52 = arith.constant 640 : index
    %40 = vector.load %arg10[%c0_50, %c31_51, %c640_52] : memref<16x32x1152xbf16, #tpu.memory_space<vmem>>, vector<16x1x128xbf16>
    tpu.vector_store %arg10[%c0_50, %c31_51, %c640_52], %24 {strides = array<i32>} : memref<16x32x1152xbf16, #tpu.memory_space<vmem>>, vector<16x1x128xbf16>,
    %c2 = arith.constant 2 : index
    %c0_53 = arith.constant 0 : index
    %c0_54 = arith.constant 0 : index
    %41 = vector.load %arg9[%c2, %c0_53, %c0_54] : memref<18x32x128xbf16, #tpu.memory_space<vmem>>, vector<16x32x128xbf16>
    %42 = vector.extract_strided_slice %41 {offsets = [0, 0, 0], sizes = [16, 31, 128], strides = [1, 1, 1]} : vector<16x32x128xbf16> to vector<16x31x128xbf16>
    %c0_55 = arith.constant 0 : index
    %c1_56 = arith.constant 1 : index
    %c768 = arith.constant 768 : index
    %43 = vector.load %arg10[%c0_55, %c1_56, %c768] : memref<16x32x1152xbf16, #tpu.memory_space<vmem>>, vector<16x31x128xbf16>
    tpu.vector_store %arg10[%c0_55, %c1_56, %c768], %42 {strides = array<i32>} : memref<16x32x1152xbf16, #tpu.memory_space<vmem>>, vector<16x31x128xbf16>,
    %c0_57 = arith.constant 0 : index
    %c0_58 = arith.constant 0 : index
    %c768_59 = arith.constant 768 : index
    %44 = vector.load %arg10[%c0_57, %c0_58, %c768_59] : memref<16x32x1152xbf16, #tpu.memory_space<vmem>>, vector<16x1x128xbf16>
    tpu.vector_store %arg10[%c0_57, %c0_58, %c768_59], %24 {strides = array<i32>} : memref<16x32x1152xbf16, #tpu.memory_space<vmem>>, vector<16x1x128xbf16>,
    %c0_60 = arith.constant 0 : index
    %c0_61 = arith.constant 0 : index
    %c896 = arith.constant 896 : index
    %45 = vector.load %arg10[%c0_60, %c0_61, %c896] : memref<16x32x1152xbf16, #tpu.memory_space<vmem>>, vector<16x32x128xbf16>
    tpu.vector_store %arg10[%c0_60, %c0_61, %c896], %41 {strides = array<i32>} : memref<16x32x1152xbf16, #tpu.memory_space<vmem>>, vector<16x32x128xbf16>,
    %46 = vector.extract_strided_slice %41 {offsets = [0, 1, 0], sizes = [16, 31, 128], strides = [1, 1, 1]} : vector<16x32x128xbf16> to vector<16x31x128xbf16>
    %c0_62 = arith.constant 0 : index
    %c0_63 = arith.constant 0 : index
    %c1024 = arith.constant 1024 : index
    %47 = vector.load %arg10[%c0_62, %c0_63, %c1024] : memref<16x32x1152xbf16, #tpu.memory_space<vmem>>, vector<16x31x128xbf16>
    tpu.vector_store %arg10[%c0_62, %c0_63, %c1024], %46 {strides = array<i32>} : memref<16x32x1152xbf16, #tpu.memory_space<vmem>>, vector<16x31x128xbf16>,
    %c0_64 = arith.constant 0 : index
    %c31_65 = arith.constant 31 : index
    %c1024_66 = arith.constant 1024 : index
    %48 = vector.load %arg10[%c0_64, %c31_65, %c1024_66] : memref<16x32x1152xbf16, #tpu.memory_space<vmem>>, vector<16x1x128xbf16>
    tpu.vector_store %arg10[%c0_64, %c31_65, %c1024_66], %24 {strides = array<i32>} : memref<16x32x1152xbf16, #tpu.memory_space<vmem>>, vector<16x1x128xbf16>,
    %c0_67 = arith.constant 0 : index
    %c0_68 = arith.constant 0 : index
    %c0_69 = arith.constant 0 : index
    %49 = vector.load %arg10[%c0_67, %c0_68, %c0_69] : memref<16x32x1152xbf16, #tpu.memory_space<vmem>>, vector<16x32x1152xbf16>
    %50 = vector.shape_cast %49 : vector<16x32x1152xbf16> to vector<512x1152xbf16>
    %c0_70 = arith.constant 0 : index
    %c0_71 = arith.constant 0 : index
    %51 = vector.load %arg7[%c0_70, %c0_71] : memref<1152x32xbf16, #tpu.memory_space<vmem>>, vector<1152x32xbf16>
    %cst_72 = arith.constant dense<0.000000e+00> : vector<512x32xf32>
    %52 = tpu.matmul %50, %51, %cst_72 {dimension_numbers = #tpu.dot_dimension_numbers<[1], [0], [0], [1], [0, 0, 1, 1], [], []>} : vector<512x1152xbf16>, vector<1152x32xbf16>, vector<512x32xf32> -> vector<512x32xf32>
    %53 = vector.shape_cast %52 : vector<512x32xf32> to vector<16x32x32xf32>
    %c0_73 = arith.constant 0 : index
    %c0_74 = arith.constant 0 : index
    %c0_75 = arith.constant 0 : index
    %c0_76 = arith.constant 0 : index
    %54 = vector.load %arg8[%c0_73, %c0_74, %c0_75, %c0_76] : memref<1x16x32x32xf32, #tpu.memory_space<vmem>>, vector<1x16x32x32xf32>
    %55 = vector.shape_cast %54 : vector<1x16x32x32xf32> to vector<16x32x32xf32>
    %56 = vector.shape_cast %53 : vector<16x32x32xf32> to vector<1x16x32x32xf32>
    tpu.vector_store %arg8[%c0_73, %c0_74, %c0_75, %c0_76], %56 {strides = array<i32>} : memref<1x16x32x32xf32, #tpu.memory_space<vmem>>, vector<1x16x32x32xf32>,
    return
  }
  func.func @transform_0(%arg0: i32, %arg1: i32) -> (i32, i32, i32, i32) {
    %c0_i32 = arith.constant 0 : i32
    %c0_i32_0 = arith.constant 0 : i32
    %c0_i32_1 = arith.constant 0 : i32
    return %arg0, %arg1, %c0_i32, %c0_i32_0 : i32, i32, i32, i32
  }
  func.func @transform_1(%arg0: i32, %arg1: i32) -> (i32, i32, i32, i32) {
    %c0_i32 = arith.constant 0 : i32
    %c0_i32_0 = arith.constant 0 : i32
    %c0_i32_1 = arith.constant 0 : i32
    return %arg0, %arg1, %c0_i32, %c0_i32_0 : i32, i32, i32, i32
  }
  func.func @transform_2(%arg0: i32, %arg1: i32) -> (i32, i32, i32, i32) {
    %c0_i32 = arith.constant 0 : i32
    %c0_i32_0 = arith.constant 0 : i32
    %c0_i32_1 = arith.constant 0 : i32
    return %arg0, %arg1, %c0_i32, %c0_i32_0 : i32, i32, i32, i32
  }
  func.func @transform_3(%arg0: i32, %arg1: i32) -> (i32, i32) {
    %c0_i32 = arith.constant 0 : i32
    %c0_i32_0 = arith.constant 0 : i32
    %c0_i32_1 = arith.constant 0 : i32
    return %c0_i32, %c0_i32_0 : i32, i32
  }
  func.func @transform_4(%arg0: i32, %arg1: i32) -> (i32, i32) {
    %c0_i32 = arith.constant 0 : i32
    %c0_i32_0 = arith.constant 0 : i32
    %c0_i32_1 = arith.constant 0 : i32
    return %c0_i32, %c0_i32_0 : i32, i32
  }
  func.func @transform_5(%arg0: i32, %arg1: i32) -> (i32, i32) {
    %c0_i32 = arith.constant 0 : i32
    %c0_i32_0 = arith.constant 0 : i32
    %c0_i32_1 = arith.constant 0 : i32
    return %c0_i32, %c0_i32_0 : i32, i32
  }
  func.func @transform_6(%arg0: i32, %arg1: i32) -> (i32, i32, i32, i32) {
    %c0_i32 = arith.constant 0 : i32
    %c0_i32_0 = arith.constant 0 : i32
    %c0_i32_1 = arith.constant 0 : i32
    return %arg0, %arg1, %c0_i32, %c0_i32_0 : i32, i32, i32, i32
  }
}

</mosaic_0001>

<llo_original>
// kernel: forward.2
$region0: #{forward.2}
  #allocation0 [shape = 'u32[]', space=smem, size = 0x4, offset = 0x4, fixed_abs, tag = 'smem constant byte address 0x4 - core index']
  #allocation1 [shape = 'u32[72,128]{1,0:T(1,128)}', space=vmem, size = 0x9000, scoped, tag = 'internal scratch']
  %s0 = inlined_call_operand.vmem [shape: bf16[2048,192], index: 0, kind: input, shape index: {}]
  %s1 = inlined_call_operand.vmem [shape: bf16[192,128], index: 1, kind: input, shape index: {}]
  %s2 = inlined_call_operand.vmem [shape: f32[2048,128], index: 2, kind: output, shape index: {0}]
  %s3 = inlined_call_operand.vmem [shape: f32[2,1,128], index: 3, kind: output, shape index: {1}]
  %s4 = inlined_call_operand.vmem [shape: f32[2,1,128], index: 4, kind: output, shape index: {2}]
  %5 = xla_tuple %s2, %s3, %s4
  %s6 = sld [smem:[#allocation0]]
  $region57: #{forward.2} parent=0
    _
  %s8 = ssub.s32 1, %s6
  %s9 = scalar_select 0, %s8, %s6
  loop: start=0, step=1, limit=4
  $region2: #{forward.2} parent=0 // loop_pre_header
    _
  $region3: #{forward.2} parent=0 // loop_header
    %s11 = sphi 0, %s15
    %p12 = scmp.ge.s32.totalorder %s11, 4
    %s21 = sphi 0, %s23
    %s24 = sphi 0, %s21
    %s25 = sphi 0, %s24
    %s41 = sphi 0, %s25
    %s45 = sphi 0, %s45
    %s47 = sphi 0, %s45
    %s48 = sphi 0, %s47
    %s62 = sphi 0, %s48
    %s68 = sphi 0, %s70
    %s71 = sphi 0, %s68
    %s72 = sphi 0, %s71
    %s88 = sphi 0, %s72
    %s94 = sphi 0, %s96
    %s97 = sphi 0, %s94
    %s98 = sphi 0, %s97
    %s114 = sphi 0, %s98
    %s120 = sphi 0, %s122
    %s123 = sphi 0, %s120
    %s124 = sphi 0, %s123
    %s140 = sphi 0, %s124
  $region4: #{forward.2} parent=0 // loop_header_branch
    %14 = sbr.rel (%p12) target = $region8
  $region5: #{forward.2} parent=0 // loop_body
    %s16 = ssub.s32 %s11, 1
    %s17 = ssub.s32 %s11, 2
    %s18 = sadd.s32 %s11, 1
    %s19 = ssub.s32 %s11, %s18
    %p20 = scmp.eq.s32.totalorder %s19, 0
    %s22 = sadd.s32 %s21, 1
    %s23 = scalar_select %p20, %s21, %s22
    %p26 = pneg %p20
    %p27 = scmp.eq.s32.totalorder %s11, 1
    %p28 = por %p26, %p27
    %p29 = scmp.ne.s32.totalorder %s21, %s24
    %p30 = scmp.eq.s32.totalorder %s11, 0
    %p31 = por %p29, %p30
    %p32 = scmp.ne.s32.totalorder %s21, %s24
    %p33 = scmp.eq.s32.totalorder %s16, 1
    %p34 = por %p32, %p33
    %p35 = scmp.ne.s32.totalorder %s24, %s25
    %p36 = scmp.eq.s32.totalorder %s16, 0
    %p37 = por %p35, %p36
    %p38 = scmp.ne.s32.totalorder %s24, %s25
    %p39 = scmp.eq.s32.totalorder %s17, 1
    %p40 = por %p38, %p39
    %p42 = scmp.ne.s32.totalorder %s25, %s41
    %p43 = scmp.eq.s32.totalorder %s17, 0
    %p44 = por %p42, %p43
    %s46 = sadd.s32 %s45, 1
    %p49 = scmp.eq.s32.totalorder %s11, 1
    %p50 = scmp.ne.s32.totalorder %s45, %s47
    %p51 = scmp.eq.s32.totalorder %s11, 0
    %p52 = por %p50, %p51
    %p53 = scmp.ne.s32.totalorder %s45, %s47
    %p54 = scmp.eq.s32.totalorder %s16, 1
    %p55 = por %p53, %p54
    %p56 = scmp.ne.s32.totalorder %s47, %s48
    %p57 = scmp.eq.s32.totalorder %s16, 0
    %p58 = por %p56, %p57
    %p59 = scmp.ne.s32.totalorder %s47, %s48
    %p60 = scmp.eq.s32.totalorder %s17, 1
    %p61 = por %p59, %p60
    %p63 = scmp.ne.s32.totalorder %s48, %s62
    %p64 = scmp.eq.s32.totalorder %s17, 0
    %p65 = por %p63, %p64
    %s66 = ssub.s32 %s11, %s18
    %p67 = scmp.eq.s32.totalorder %s66, 0
    %s69 = sadd.s32 %s68, 1
    %s70 = scalar_select %p67, %s68, %s69
    %p73 = pneg %p67
    %p74 = scmp.eq.s32.totalorder %s11, 1
    %p75 = por %p73, %p74
    %p76 = scmp.ne.s32.totalorder %s68, %s71
    %p77 = scmp.eq.s32.totalorder %s11, 0
    %p78 = por %p76, %p77
    %p79 = scmp.ne.s32.totalorder %s68, %s71
    %p80 = scmp.eq.s32.totalorder %s16, 1
    %p81 = por %p79, %p80
    %p82 = scmp.ne.s32.totalorder %s71, %s72
    %p83 = scmp.eq.s32.totalorder %s16, 0
    %p84 = por %p82, %p83
    %p85 = scmp.ne.s32.totalorder %s71, %s72
    %p86 = scmp.eq.s32.totalorder %s17, 1
    %p87 = por %p85, %p86
    %p89 = scmp.ne.s32.totalorder %s72, %s88
    %p90 = scmp.eq.s32.totalorder %s17, 0
    %p91 = por %p89, %p90
    %s92 = ssub.s32 %s11, %s18
    %p93 = scmp.eq.s32.totalorder %s92, 0
    %s95 = sadd.s32 %s94, 1
    %s96 = scalar_select %p93, %s94, %s95
    %p99 = pneg %p93
    %p100 = scmp.eq.s32.totalorder %s11, 1
    %p101 = por %p99, %p100
    %p102 = scmp.ne.s32.totalorder %s94, %s97
    %p103 = scmp.eq.s32.totalorder %s11, 0
    %p104 = por %p102, %p103
    %p105 = scmp.ne.s32.totalorder %s94, %s97
    %p106 = scmp.eq.s32.totalorder %s16, 1
    %p107 = por %p105, %p106
    %p108 = scmp.ne.s32.totalorder %s97, %s98
    %p109 = scmp.eq.s32.totalorder %s16, 0
    %p110 = por %p108, %p109
    %p111 = scmp.ne.s32.totalorder %s97, %s98
    %p112 = scmp.eq.s32.totalorder %s17, 1
    %p113 = por %p111, %p112
    %p115 = scmp.ne.s32.totalorder %s98, %s114
    %p116 = scmp.eq.s32.totalorder %s17, 0
    %p117 = por %p115, %p116
    %s118 = ssub.s32 %s11, %s18
    %p119 = scmp.eq.s32.totalorder %s118, 0
    %s121 = sadd.s32 %s120, 1
    %s122 = scalar_select %p119, %s120, %s121
    %p125 = pneg %p119
    %p126 = scmp.eq.s32.totalorder %s11, 1
    %p127 = por %p125, %p126
    %p128 = scmp.ne.s32.totalorder %s120, %s123
    %p129 = scmp.eq.s32.totalorder %s11, 0
    %p130 = por %p128, %p129
    %p131 = scmp.ne.s32.totalorder %s120, %s123
    %p132 = scmp.eq.s32.totalorder %s16, 1
    %p133 = por %p131, %p132
    %p134 = scmp.ne.s32.totalorder %s123, %s124
    %p135 = scmp.eq.s32.totalorder %s16, 0
    %p136 = por %p134, %p135
    %p137 = scmp.ne.s32.totalorder %s123, %s124
    %p138 = scmp.eq.s32.totalorder %s17, 1
    %p139 = por %p137, %p138
    %p141 = scmp.ne.s32.totalorder %s124, %s140
    %p142 = scmp.eq.s32.totalorder %s17, 0
    %p143 = por %p141, %p142
    %p144 = scmp.le.s32.totalorder 1, %s11
    %p145 = scmp.lt.s32.totalorder %s11, 3
    %p146 = pnand %p144, %p145
    %p147 = pneg %p146
    // Predicated region
    $region9: #{forward.2} parent=5 // pred_check
      _
    $region10: #{forward.2} parent=5 // pred_check_branch
      %149 = sbr.rel (%p146) target = $region12
    $region11: #{forward.2} parent=5 // pred_region
      %s150 = ssub.s32 %s11, 1
      // Predicated region
      $region13: #{forward.2} parent=11 // pred_check
        %p151 = pneg %p58
      $region14: #{forward.2} parent=11 // pred_check_branch
        %153 = sbr.rel (%p151) target = $region16
      $region15: #{forward.2} parent=11 // pred_region
        _
      $region16: #{forward.2} parent=11 // pred_fallthru
        _
    $region12: #{forward.2} parent=5 // pred_fallthru
      _
    %p154 = scmp.lt.s32.totalorder %s11, 2
    // Predicated region
    $region17: #{forward.2} parent=5 // pred_check
      %p155 = pneg %p154
    $region18: #{forward.2} parent=5 // pred_check_branch
      %157 = sbr.rel (%p155) target = $region20
    $region19: #{forward.2} parent=5 // pred_region
      // Predicated region
      $region21: #{forward.2} parent=19 // pred_check
        %p158 = pneg %p31
      $region22: #{forward.2} parent=19 // pred_check_branch
        %160 = sbr.rel (%p158) target = $region24
      $region23: #{forward.2} parent=19 // pred_region
        %s161 = smul.u32 128, %s11
        %p162 = scmp.lt.s32.totalorder %s161, 255
        %s163 = scalar_select %p162, %s161, 255
        %s164 = smul.addr %s163, 2
        %s165 = smul.addr %s164, 4
        %s166 = scalar_lea.vmem %s0, %s165
        %s167 = smul.u32 128, %s11
      $region24: #{forward.2} parent=19 // pred_fallthru
        _
    $region20: #{forward.2} parent=5 // pred_fallthru
      _
    %p168 = scmp.le.s32.totalorder 1, %s11
    %p169 = scmp.lt.s32.totalorder %s11, 3
    %p170 = pnand %p168, %p169
    %p171 = pneg %p170
    // Predicated region
    $region25: #{forward.2} parent=5 // pred_check
      _
    $region26: #{forward.2} parent=5 // pred_check_branch
      %173 = sbr.rel (%p170) target = $region28
    $region27: #{forward.2} parent=5 // pred_region
      %s174 = ssub.s32 %s11, 1
      %s175 = smul.u32 128, %s16
      %p176 = scmp.lt.s32.totalorder %s175, 255
      %s177 = scalar_select %p176, %s175, 255
      %s178 = smul.addr %s177, 2
      %s179 = smul.addr %s178, 4
      %s180 = scalar_lea.vmem %s0, %s179
      %p181 = pneg %p37
      %p182 = pneg %p34
      %p183 = pneg %p58
      %p184 = pneg %p55
      %p185 = pneg %p84
      %p186 = pneg %p81
      %s187 = smul.u32 128, %s16
      %p188 = scmp.lt.s32.totalorder %s187, 255
      %s189 = scalar_select %p188, %s187, 255
      %s190 = smul.addr %s189, 8
      %s191 = scalar_lea.vmem %s2, %s190
      %p192 = pneg %p110
      %p193 = pneg %p107
      %p194 = scmp.lt.s32.totalorder %s16, 1
      %s195 = scalar_select %p194, %s16, 1
      %s196 = scalar_lea.vmem %s3, %s195
      %p197 = pneg %p136
      %p198 = pneg %p133
      %p199 = scmp.lt.s32.totalorder %s16, 1
      %s200 = scalar_select %p199, %s16, 1
      %s201 = scalar_lea.vmem %s4, %s200
      %s202 = smul.u32 128, %s16
      %p203 = scmp.lt.s32.totalorder %s202, 255
      %s204 = scalar_select %p203, %s202, 255
      %s205 = smul.addr %s204, 2
      %s206 = smul.addr %s205, 4
      %s207 = scalar_lea.vmem %s0, %s206
      %s208 = smul.u32 128, %s16
      %s209 = smul.u32 128, %s16
      %p210 = scmp.lt.s32.totalorder %s209, 255
      %s211 = scalar_select %p210, %s209, 255
      %s212 = smul.addr %s211, 8
      %s213 = scalar_lea.vmem %s2, %s212
      %s214 = smul.u32 128, %s16
      %p215 = scmp.lt.s32.totalorder %s16, 1
      %s216 = scalar_select %p215, %s16, 1
      %s217 = scalar_lea.vmem %s3, %s216
      %p218 = scmp.lt.s32.totalorder %s16, 1
      %s219 = scalar_select %p218, %s16, 1
      %s220 = scalar_lea.vmem %s4, %s219
      %v222 = vld [vmem:[%s207] sm:$0xff]
      %v223 = vld [vmem:[%s207 + $0x8] sm:$0xff]
      %v224 = vld [vmem:[%s207 + $0x10] sm:$0xff]
      %v225 = vld [vmem:[%s207 + $0x18] sm:$0xff]
      %v226 = vld [vmem:[%s207 + $0x20] sm:$0xff]
      %v227 = vld [vmem:[%s207 + $0x28] sm:$0xff]
      %v228 = vld [vmem:[%s207 + $0x30] sm:$0xff]
      %v229 = vld [vmem:[%s207 + $0x38] sm:$0xff]
      %v230 = vld [vmem:[%s207 + $0x40] sm:$0xff]
      %v231 = vld [vmem:[%s207 + $0x48] sm:$0xff]
      %v232 = vld [vmem:[%s207 + $0x50] sm:$0xff]
      %v233 = vld [vmem:[%s207 + $0x58] sm:$0xff]
      %v234 = vld [vmem:[%s207 + $0x60] sm:$0xff]
      %v235 = vld [vmem:[%s207 + $0x68] sm:$0xff]
      %v236 = vld [vmem:[%s207 + $0x70] sm:$0xff]
      %v237 = vld [vmem:[%s207 + $0x78] sm:$0xff]
      %v238 = vld [vmem:[%s207 + $0x80] sm:$0xff]
      %v239 = vld [vmem:[%s207 + $0x88] sm:$0xff]
      %v240 = vld [vmem:[%s207 + $0x90] sm:$0xff]
      %v241 = vld [vmem:[%s207 + $0x98] sm:$0xff]
      %v242 = vld [vmem:[%s207 + $0xa0] sm:$0xff]
      %v243 = vld [vmem:[%s207 + $0xa8] sm:$0xff]
      %v244 = vld [vmem:[%s207 + $0xb0] sm:$0xff]
      %v245 = vld [vmem:[%s207 + $0xb8] sm:$0xff]
      %v246 = vld [vmem:[%s207 + $0xc0] sm:$0xff]
      %v247 = vld [vmem:[%s207 + $0xc8] sm:$0xff]
      %v248 = vld [vmem:[%s207 + $0xd0] sm:$0xff]
      %v249 = vld [vmem:[%s207 + $0xd8] sm:$0xff]
      %v250 = vld [vmem:[%s207 + $0xe0] sm:$0xff]
      %v251 = vld [vmem:[%s207 + $0xe8] sm:$0xff]
      %v252 = vld [vmem:[%s207 + $0xf0] sm:$0xff]
      %v253 = vld [vmem:[%s207 + $0xf8] sm:$0xff]
      %v254 = vld [vmem:[%s207 + $0x100] sm:$0xff]
      %v255 = vld [vmem:[%s207 + $0x108] sm:$0xff]
      %v256 = vld [vmem:[%s207 + $0x110] sm:$0xff]
      %v257 = vld [vmem:[%s207 + $0x118] sm:$0xff]
      %v258 = vld [vmem:[%s207 + $0x120] sm:$0xff]
      %v259 = vld [vmem:[%s207 + $0x128] sm:$0xff]
      %v260 = vld [vmem:[%s207 + $0x130] sm:$0xff]
      %v261 = vld [vmem:[%s207 + $0x138] sm:$0xff]
      %v262 = vld [vmem:[%s207 + $0x140] sm:$0xff]
      %v263 = vld [vmem:[%s207 + $0x148] sm:$0xff]
      %v264 = vld [vmem:[%s207 + $0x150] sm:$0xff]
      %v265 = vld [vmem:[%s207 + $0x158] sm:$0xff]
      %v266 = vld [vmem:[%s207 + $0x160] sm:$0xff]
      %v267 = vld [vmem:[%s207 + $0x168] sm:$0xff]
      %v268 = vld [vmem:[%s207 + $0x170] sm:$0xff]
      %v269 = vld [vmem:[%s207 + $0x178] sm:$0xff]
      %v270 = vld [vmem:[%s207 + $0x180] sm:$0xff]
      %v271 = vld [vmem:[%s207 + $0x188] sm:$0xff]
      %v272 = vld [vmem:[%s207 + $0x190] sm:$0xff]
      %v273 = vld [vmem:[%s207 + $0x198] sm:$0xff]
      %v274 = vld [vmem:[%s207 + $0x1a0] sm:$0xff]
      %v275 = vld [vmem:[%s207 + $0x1a8] sm:$0xff]
      %v276 = vld [vmem:[%s207 + $0x1b0] sm:$0xff]
      %v277 = vld [vmem:[%s207 + $0x1b8] sm:$0xff]
      %v278 = vld [vmem:[%s207 + $0x1c0] sm:$0xff]
      %v279 = vld [vmem:[%s207 + $0x1c8] sm:$0xff]
      %v280 = vld [vmem:[%s207 + $0x1d0] sm:$0xff]
      %v281 = vld [vmem:[%s207 + $0x1d8] sm:$0xff]
      %v282 = vld [vmem:[%s207 + $0x1e0] sm:$0xff]
      %v283 = vld [vmem:[%s207 + $0x1e8] sm:$0xff]
      %v284 = vld [vmem:[%s207 + $0x1f0] sm:$0xff]
      %v285 = vld [vmem:[%s207 + $0x1f8] sm:$0xff]
      %v286 = vld [vmem:[%s207 + $0x200] sm:$0xff]
      %v287 = vld [vmem:[%s207 + $0x208] sm:$0xff]
      %v288 = vld [vmem:[%s207 + $0x210] sm:$0xff]
      %v289 = vld [vmem:[%s207 + $0x218] sm:$0xff]
      %v290 = vld [vmem:[%s207 + $0x220] sm:$0xff]
      %v291 = vld [vmem:[%s207 + $0x228] sm:$0xff]
      %v292 = vld [vmem:[%s207 + $0x230] sm:$0xff]
      %v293 = vld [vmem:[%s207 + $0x238] sm:$0xff]
      %v294 = vld [vmem:[%s207 + $0x240] sm:$0xff]
      %v295 = vld [vmem:[%s207 + $0x248] sm:$0xff]
      %v296 = vld [vmem:[%s207 + $0x250] sm:$0xff]
      %v297 = vld [vmem:[%s207 + $0x258] sm:$0xff]
      %v298 = vld [vmem:[%s207 + $0x260] sm:$0xff]
      %v299 = vld [vmem:[%s207 + $0x268] sm:$0xff]
      %v300 = vld [vmem:[%s207 + $0x270] sm:$0xff]
      %v301 = vld [vmem:[%s207 + $0x278] sm:$0xff]
      %v302 = vld [vmem:[%s207 + $0x280] sm:$0xff]
      %v303 = vld [vmem:[%s207 + $0x288] sm:$0xff]
      %v304 = vld [vmem:[%s207 + $0x290] sm:$0xff]
      %v305 = vld [vmem:[%s207 + $0x298] sm:$0xff]
      %v306 = vld [vmem:[%s207 + $0x2a0] sm:$0xff]
      %v307 = vld [vmem:[%s207 + $0x2a8] sm:$0xff]
      %v308 = vld [vmem:[%s207 + $0x2b0] sm:$0xff]
      %v309 = vld [vmem:[%s207 + $0x2b8] sm:$0xff]
      %v310 = vld [vmem:[%s207 + $0x2c0] sm:$0xff]
      %v311 = vld [vmem:[%s207 + $0x2c8] sm:$0xff]
      %v312 = vld [vmem:[%s207 + $0x2d0] sm:$0xff]
      %v313 = vld [vmem:[%s207 + $0x2d8] sm:$0xff]
      %v314 = vld [vmem:[%s207 + $0x2e0] sm:$0xff]
      %v315 = vld [vmem:[%s207 + $0x2e8] sm:$0xff]
      %v316 = vld [vmem:[%s207 + $0x2f0] sm:$0xff]
      %v317 = vld [vmem:[%s207 + $0x2f8] sm:$0xff]
      %v318 = vld [vmem:[%s207 + $0x300] sm:$0xff]
      %v319 = vld [vmem:[%s207 + $0x308] sm:$0xff]
      %v320 = vld [vmem:[%s207 + $0x310] sm:$0xff]
      %v321 = vld [vmem:[%s207 + $0x318] sm:$0xff]
      %v322 = vld [vmem:[%s207 + $0x320] sm:$0xff]
      %v323 = vld [vmem:[%s207 + $0x328] sm:$0xff]
      %v324 = vld [vmem:[%s207 + $0x330] sm:$0xff]
      %v325 = vld [vmem:[%s207 + $0x338] sm:$0xff]
      %v326 = vld [vmem:[%s207 + $0x340] sm:$0xff]
      %v327 = vld [vmem:[%s207 + $0x348] sm:$0xff]
      %v328 = vld [vmem:[%s207 + $0x350] sm:$0xff]
      %v329 = vld [vmem:[%s207 + $0x358] sm:$0xff]
      %v330 = vld [vmem:[%s207 + $0x360] sm:$0xff]
      %v331 = vld [vmem:[%s207 + $0x368] sm:$0xff]
      %v332 = vld [vmem:[%s207 + $0x370] sm:$0xff]
      %v333 = vld [vmem:[%s207 + $0x378] sm:$0xff]
      %v334 = vld [vmem:[%s207 + $0x380] sm:$0xff]
      %v335 = vld [vmem:[%s207 + $0x388] sm:$0xff]
      %v336 = vld [vmem:[%s207 + $0x390] sm:$0xff]
      %v337 = vld [vmem:[%s207 + $0x398] sm:$0xff]
      %v338 = vld [vmem:[%s207 + $0x3a0] sm:$0xff]
      %v339 = vld [vmem:[%s207 + $0x3a8] sm:$0xff]
      %v340 = vld [vmem:[%s207 + $0x3b0] sm:$0xff]
      %v341 = vld [vmem:[%s207 + $0x3b8] sm:$0xff]
      %v342 = vld [vmem:[%s207 + $0x3c0] sm:$0xff]
      %v343 = vld [vmem:[%s207 + $0x3c8] sm:$0xff]
      %v344 = vld [vmem:[%s207 + $0x3d0] sm:$0xff]
      %v345 = vld [vmem:[%s207 + $0x3d8] sm:$0xff]
      %v346 = vld [vmem:[%s207 + $0x3e0] sm:$0xff]
      %v347 = vld [vmem:[%s207 + $0x3e8] sm:$0xff]
      %v348 = vld [vmem:[%s207 + $0x3f0] sm:$0xff]
      %v349 = vld [vmem:[%s207 + $0x3f8] sm:$0xff]
      %v350 = vld [vmem:[%s1] sm:$0xf]
      %v351 = vld [vmem:[%s1 + $0x4] sm:$0xf]
      %v352 = vld [vmem:[%s1 + $0x8] sm:$0xf]
      %v353 = vld [vmem:[%s1 + $0xc] sm:$0xf]
      %v354 = vld [vmem:[%s1 + $0x10] sm:$0xf]
      %v355 = vld [vmem:[%s1 + $0x14] sm:$0xf]
      %v356 = vld [vmem:[%s1 + $0x18] sm:$0xf]
      %v357 = vld [vmem:[%s1 + $0x1c] sm:$0xf]
      %v358 = vld [vmem:[%s1 + $0x20] sm:$0xf]
      %v359 = vld [vmem:[%s1 + $0x24] sm:$0xf]
      %v360 = vld [vmem:[%s1 + $0x28] sm:$0xf]
      %v361 = vld [vmem:[%s1 + $0x2c] sm:$0xf]
      %v362 = vld [vmem:[%s1 + $0x30] sm:$0xf]
      %v363 = vld [vmem:[%s1 + $0x34] sm:$0xf]
      %v364 = vld [vmem:[%s1 + $0x38] sm:$0xf]
      %v365 = vld [vmem:[%s1 + $0x3c] sm:$0xf]
      %v366 = vld [vmem:[%s1 + $0x40] sm:$0xf]
      %v367 = vld [vmem:[%s1 + $0x44] sm:$0xf]
      %v368 = vld [vmem:[%s1 + $0x48] sm:$0xf]
      %v369 = vld [vmem:[%s1 + $0x4c] sm:$0xf]
      %v370 = vld [vmem:[%s1 + $0x50] sm:$0xf]
      %v371 = vld [vmem:[%s1 + $0x54] sm:$0xf]
      %v372 = vld [vmem:[%s1 + $0x58] sm:$0xf]
      %v373 = vld [vmem:[%s1 + $0x5c] sm:$0xf]
      %v502 = vunpack.c.l.b16 %v222
      %v503 = vunpack.c.h.b16 %v222
      %v504 = vunpack.c.l.b16 %v223
      %v505 = vunpack.c.h.b16 %v223
      %v506 = vunpack.c.l.b16 %v224
      %v507 = vunpack.c.h.b16 %v224
      %v508 = vunpack.c.l.b16 %v225
      %v509 = vunpack.c.h.b16 %v225
      %v510 = vunpack.c.l.b16 %v226
      %v511 = vunpack.c.h.b16 %v226
      %v512 = vunpack.c.l.b16 %v227
      %v513 = vunpack.c.h.b16 %v227
      %v514 = vunpack.c.l.b16 %v228
      %v515 = vunpack.c.h.b16 %v228
      %v516 = vunpack.c.l.b16 %v229
      %v517 = vunpack.c.h.b16 %v229
      %v518 = vunpack.c.l.b16 %v230
      %v519 = vunpack.c.h.b16 %v230
      %v520 = vunpack.c.l.b16 %v231
      %v521 = vunpack.c.h.b16 %v231
      %v522 = vunpack.c.l.b16 %v232
      %v523 = vunpack.c.h.b16 %v232
      %v524 = vunpack.c.l.b16 %v233
      %v525 = vunpack.c.h.b16 %v233
      %v526 = vunpack.c.l.b16 %v234
      %v527 = vunpack.c.h.b16 %v234
      %v528 = vunpack.c.l.b16 %v235
      %v529 = vunpack.c.h.b16 %v235
      %v530 = vunpack.c.l.b16 %v236
      %v531 = vunpack.c.h.b16 %v236
      %v532 = vunpack.c.l.b16 %v237
      %v533 = vunpack.c.h.b16 %v237
      %v534 = vunpack.c.l.b16 %v238
      %v535 = vunpack.c.h.b16 %v238
      %v536 = vunpack.c.l.b16 %v239
      %v537 = vunpack.c.h.b16 %v239
      %v538 = vunpack.c.l.b16 %v240
      %v539 = vunpack.c.h.b16 %v240
      %v540 = vunpack.c.l.b16 %v241
      %v541 = vunpack.c.h.b16 %v241
      %v542 = vunpack.c.l.b16 %v242
      %v543 = vunpack.c.h.b16 %v242
      %v544 = vunpack.c.l.b16 %v243
      %v545 = vunpack.c.h.b16 %v243
      %v546 = vunpack.c.l.b16 %v244
      %v547 = vunpack.c.h.b16 %v244
      %v548 = vunpack.c.l.b16 %v245
      %v549 = vunpack.c.h.b16 %v245
      %v550 = vunpack.c.l.b16 %v246
      %v551 = vunpack.c.h.b16 %v246
      %v552 = vunpack.c.l.b16 %v247
      %v553 = vunpack.c.h.b16 %v247
      %v554 = vunpack.c.l.b16 %v248
      %v555 = vunpack.c.h.b16 %v248
      %v556 = vunpack.c.l.b16 %v249
      %v557 = vunpack.c.h.b16 %v249
      %v558 = vunpack.c.l.b16 %v250
      %v559 = vunpack.c.h.b16 %v250
      %v560 = vunpack.c.l.b16 %v251
      %v561 = vunpack.c.h.b16 %v251
      %v562 = vunpack.c.l.b16 %v252
      %v563 = vunpack.c.h.b16 %v252
      %v564 = vunpack.c.l.b16 %v253
      %v565 = vunpack.c.h.b16 %v253
      %v566 = vunpack.c.l.b16 %v254
      %v567 = vunpack.c.h.b16 %v254
      %v568 = vunpack.c.l.b16 %v255
      %v569 = vunpack.c.h.b16 %v255
      %v570 = vunpack.c.l.b16 %v256
      %v571 = vunpack.c.h.b16 %v256
      %v572 = vunpack.c.l.b16 %v257
      %v573 = vunpack.c.h.b16 %v257
      %v574 = vunpack.c.l.b16 %v258
      %v575 = vunpack.c.h.b16 %v258
      %v576 = vunpack.c.l.b16 %v259
      %v577 = vunpack.c.h.b16 %v259
      %v578 = vunpack.c.l.b16 %v260
      %v579 = vunpack.c.h.b16 %v260
      %v580 = vunpack.c.l.b16 %v261
      %v581 = vunpack.c.h.b16 %v261
      %v582 = vunpack.c.l.b16 %v262
      %v583 = vunpack.c.h.b16 %v262
      %v584 = vunpack.c.l.b16 %v263
      %v585 = vunpack.c.h.b16 %v263
      %v586 = vunpack.c.l.b16 %v264
      %v587 = vunpack.c.h.b16 %v264
      %v588 = vunpack.c.l.b16 %v265
      %v589 = vunpack.c.h.b16 %v265
      %v590 = vunpack.c.l.b16 %v266
      %v591 = vunpack.c.h.b16 %v266
      %v592 = vunpack.c.l.b16 %v267
      %v593 = vunpack.c.h.b16 %v267
      %v594 = vunpack.c.l.b16 %v268
      %v595 = vunpack.c.h.b16 %v268
      %v596 = vunpack.c.l.b16 %v269
      %v597 = vunpack.c.h.b16 %v269
      %v598 = vunpack.c.l.b16 %v270
      %v599 = vunpack.c.h.b16 %v270
      %v600 = vunpack.c.l.b16 %v271
      %v601 = vunpack.c.h.b16 %v271
      %v602 = vunpack.c.l.b16 %v272
      %v603 = vunpack.c.h.b16 %v272
      %v604 = vunpack.c.l.b16 %v273
      %v605 = vunpack.c.h.b16 %v273
      %v606 = vunpack.c.l.b16 %v274
      %v607 = vunpack.c.h.b16 %v274
      %v608 = vunpack.c.l.b16 %v275
      %v609 = vunpack.c.h.b16 %v275
      %v610 = vunpack.c.l.b16 %v276
      %v611 = vunpack.c.h.b16 %v276
      %v612 = vunpack.c.l.b16 %v277
      %v613 = vunpack.c.h.b16 %v277
      %v614 = vunpack.c.l.b16 %v278
      %v615 = vunpack.c.h.b16 %v278
      %v616 = vunpack.c.l.b16 %v279
      %v617 = vunpack.c.h.b16 %v279
      %v618 = vunpack.c.l.b16 %v280
      %v619 = vunpack.c.h.b16 %v280
      %v620 = vunpack.c.l.b16 %v281
      %v621 = vunpack.c.h.b16 %v281
      %v622 = vunpack.c.l.b16 %v282
      %v623 = vunpack.c.h.b16 %v282
      %v624 = vunpack.c.l.b16 %v283
      %v625 = vunpack.c.h.b16 %v283
      %v626 = vunpack.c.l.b16 %v284
      %v627 = vunpack.c.h.b16 %v284
      %v628 = vunpack.c.l.b16 %v285
      %v629 = vunpack.c.h.b16 %v285
      %v630 = vunpack.c.l.b16 %v286
      %v631 = vunpack.c.h.b16 %v286
      %v632 = vunpack.c.l.b16 %v287
      %v633 = vunpack.c.h.b16 %v287
      %v634 = vunpack.c.l.b16 %v288
      %v635 = vunpack.c.h.b16 %v288
      %v636 = vunpack.c.l.b16 %v289
      %v637 = vunpack.c.h.b16 %v289
      %v638 = vunpack.c.l.b16 %v290
      %v639 = vunpack.c.h.b16 %v290
      %v640 = vunpack.c.l.b16 %v291
      %v641 = vunpack.c.h.b16 %v291
      %v642 = vunpack.c.l.b16 %v292
      %v643 = vunpack.c.h.b16 %v292
      %v644 = vunpack.c.l.b16 %v293
      %v645 = vunpack.c.h.b16 %v293
      %v646 = vunpack.c.l.b16 %v294
      %v647 = vunpack.c.h.b16 %v294
      %v648 = vunpack.c.l.b16 %v295
      %v649 = vunpack.c.h.b16 %v295
      %v650 = vunpack.c.l.b16 %v296
      %v651 = vunpack.c.h.b16 %v296
      %v652 = vunpack.c.l.b16 %v297
      %v653 = vunpack.c.h.b16 %v297
      %v654 = vunpack.c.l.b16 %v298
      %v655 = vunpack.c.h.b16 %v298
      %v656 = vunpack.c.l.b16 %v299
      %v657 = vunpack.c.h.b16 %v299
      %v658 = vunpack.c.l.b16 %v300
      %v659 = vunpack.c.h.b16 %v300
      %v660 = vunpack.c.l.b16 %v301
      %v661 = vunpack.c.h.b16 %v301
      %v662 = vunpack.c.l.b16 %v302
      %v663 = vunpack.c.h.b16 %v302
      %v664 = vunpack.c.l.b16 %v303
      %v665 = vunpack.c.h.b16 %v303
      %v666 = vunpack.c.l.b16 %v304
      %v667 = vunpack.c.h.b16 %v304
      %v668 = vunpack.c.l.b16 %v305
      %v669 = vunpack.c.h.b16 %v305
      %v670 = vunpack.c.l.b16 %v306
      %v671 = vunpack.c.h.b16 %v306
      %v672 = vunpack.c.l.b16 %v307
      %v673 = vunpack.c.h.b16 %v307
      %v674 = vunpack.c.l.b16 %v308
      %v675 = vunpack.c.h.b16 %v308
      %v676 = vunpack.c.l.b16 %v309
      %v677 = vunpack.c.h.b16 %v309
      %v678 = vunpack.c.l.b16 %v310
      %v679 = vunpack.c.h.b16 %v310
      %v680 = vunpack.c.l.b16 %v311
      %v681 = vunpack.c.h.b16 %v311
      %v682 = vunpack.c.l.b16 %v312
      %v683 = vunpack.c.h.b16 %v312
      %v684 = vunpack.c.l.b16 %v313
      %v685 = vunpack.c.h.b16 %v313
      %v686 = vunpack.c.l.b16 %v314
      %v687 = vunpack.c.h.b16 %v314
      %v688 = vunpack.c.l.b16 %v315
      %v689 = vunpack.c.h.b16 %v315
      %v690 = vunpack.c.l.b16 %v316
      %v691 = vunpack.c.h.b16 %v316
      %v692 = vunpack.c.l.b16 %v317
      %v693 = vunpack.c.h.b16 %v317
      %v694 = vunpack.c.l.b16 %v318
      %v695 = vunpack.c.h.b16 %v318
      %v696 = vunpack.c.l.b16 %v319
      %v697 = vunpack.c.h.b16 %v319
      %v698 = vunpack.c.l.b16 %v320
      %v699 = vunpack.c.h.b16 %v320
      %v700 = vunpack.c.l.b16 %v321
      %v701 = vunpack.c.h.b16 %v321
      %v702 = vunpack.c.l.b16 %v322
      %v703 = vunpack.c.h.b16 %v322
      %v704 = vunpack.c.l.b16 %v323
      %v705 = vunpack.c.h.b16 %v323
      %v706 = vunpack.c.l.b16 %v324
      %v707 = vunpack.c.h.b16 %v324
      %v708 = vunpack.c.l.b16 %v325
      %v709 = vunpack.c.h.b16 %v325
      %v710 = vunpack.c.l.b16 %v326
      %v711 = vunpack.c.h.b16 %v326
      %v712 = vunpack.c.l.b16 %v327
      %v713 = vunpack.c.h.b16 %v327
      %v714 = vunpack.c.l.b16 %v328
      %v715 = vunpack.c.h.b16 %v328
      %v716 = vunpack.c.l.b16 %v329
      %v717 = vunpack.c.h.b16 %v329
      %v718 = vunpack.c.l.b16 %v330
      %v719 = vunpack.c.h.b16 %v330
      %v720 = vunpack.c.l.b16 %v331
      %v721 = vunpack.c.h.b16 %v331
      %v722 = vunpack.c.l.b16 %v332
      %v723 = vunpack.c.h.b16 %v332
      %v724 = vunpack.c.l.b16 %v333
      %v725 = vunpack.c.h.b16 %v333
      %v726 = vunpack.c.l.b16 %v334
      %v727 = vunpack.c.h.b16 %v334
      %v728 = vunpack.c.l.b16 %v335
      %v729 = vunpack.c.h.b16 %v335
      %v730 = vunpack.c.l.b16 %v336
      %v731 = vunpack.c.h.b16 %v336
      %v732 = vunpack.c.l.b16 %v337
      %v733 = vunpack.c.h.b16 %v337
      %v734 = vunpack.c.l.b16 %v338
      %v735 = vunpack.c.h.b16 %v338
      %v736 = vunpack.c.l.b16 %v339
      %v737 = vunpack.c.h.b16 %v339
      %v738 = vunpack.c.l.b16 %v340
      %v739 = vunpack.c.h.b16 %v340
      %v740 = vunpack.c.l.b16 %v341
      %v741 = vunpack.c.h.b16 %v341
      %v742 = vunpack.c.l.b16 %v342
      %v743 = vunpack.c.h.b16 %v342
      %v744 = vunpack.c.l.b16 %v343
      %v745 = vunpack.c.h.b16 %v343
      %v746 = vunpack.c.l.b16 %v344
      %v747 = vunpack.c.h.b16 %v344
      %v748 = vunpack.c.l.b16 %v345
      %v749 = vunpack.c.h.b16 %v345
      %v750 = vunpack.c.l.b16 %v346
      %v751 = vunpack.c.h.b16 %v346
      %v752 = vunpack.c.l.b16 %v347
      %v753 = vunpack.c.h.b16 %v347
      %v754 = vunpack.c.l.b16 %v348
      %v755 = vunpack.c.h.b16 %v348
      %v756 = vunpack.c.l.b16 %v349
      %v757 = vunpack.c.h.b16 %v349
      %v758 = vpack.c.b16 %v504, %v502
      %v759 = vpack.c.b16 %v505, %v503
      %v760 = vpack.c.b16 %v508, %v506
      %v761 = vpack.c.b16 %v509, %v507
      %v762 = vpack.c.b16 %v512, %v510
      %v763 = vpack.c.b16 %v513, %v511
      %v764 = vpack.c.b16 %v516, %v514
      %v765 = vpack.c.b16 %v517, %v515
      %v766 = vpack.c.b16 %v520, %v518
      %v767 = vpack.c.b16 %v521, %v519
      %v768 = vpack.c.b16 %v524, %v522
      %v769 = vpack.c.b16 %v525, %v523
      %v770 = vpack.c.b16 %v528, %v526
      %v771 = vpack.c.b16 %v529, %v527
      %v772 = vpack.c.b16 %v532, %v530
      %v773 = vpack.c.b16 %v533, %v531
      %v774 = vpack.c.b16 %v536, %v534
      %v775 = vpack.c.b16 %v537, %v535
      %v776 = vpack.c.b16 %v540, %v538
      %v777 = vpack.c.b16 %v541, %v539
      %v778 = vpack.c.b16 %v544, %v542
      %v779 = vpack.c.b16 %v545, %v543
      %v780 = vpack.c.b16 %v548, %v546
      %v781 = vpack.c.b16 %v549, %v547
      %v782 = vpack.c.b16 %v552, %v550
      %v783 = vpack.c.b16 %v553, %v551
      %v784 = vpack.c.b16 %v556, %v554
      %v785 = vpack.c.b16 %v557, %v555
      %v786 = vpack.c.b16 %v560, %v558
      %v787 = vpack.c.b16 %v561, %v559
      %v788 = vpack.c.b16 %v564, %v562
      %v789 = vpack.c.b16 %v565, %v563
      %v790 = vpack.c.b16 %v568, %v566
      %v791 = vpack.c.b16 %v569, %v567
      %v792 = vpack.c.b16 %v572, %v570
      %v793 = vpack.c.b16 %v573, %v571
      %v794 = vpack.c.b16 %v576, %v574
      %v795 = vpack.c.b16 %v577, %v575
      %v796 = vpack.c.b16 %v580, %v578
      %v797 = vpack.c.b16 %v581, %v579
      %v798 = vpack.c.b16 %v584, %v582
      %v799 = vpack.c.b16 %v585, %v583
      %v800 = vpack.c.b16 %v588, %v586
      %v801 = vpack.c.b16 %v589, %v587
      %v802 = vpack.c.b16 %v592, %v590
      %v803 = vpack.c.b16 %v593, %v591
      %v804 = vpack.c.b16 %v596, %v594
      %v805 = vpack.c.b16 %v597, %v595
      %v806 = vpack.c.b16 %v600, %v598
      %v807 = vpack.c.b16 %v601, %v599
      %v808 = vpack.c.b16 %v604, %v602
      %v809 = vpack.c.b16 %v605, %v603
      %v810 = vpack.c.b16 %v608, %v606
      %v811 = vpack.c.b16 %v609, %v607
      %v812 = vpack.c.b16 %v612, %v610
      %v813 = vpack.c.b16 %v613, %v611
      %v814 = vpack.c.b16 %v616, %v614
      %v815 = vpack.c.b16 %v617, %v615
      %v816 = vpack.c.b16 %v620, %v618
      %v817 = vpack.c.b16 %v621, %v619
      %v818 = vpack.c.b16 %v624, %v622
      %v819 = vpack.c.b16 %v625, %v623
      %v820 = vpack.c.b16 %v628, %v626
      %v821 = vpack.c.b16 %v629, %v627
      %v822 = vpack.c.b16 %v632, %v630
      %v823 = vpack.c.b16 %v633, %v631
      %v824 = vpack.c.b16 %v636, %v634
      %v825 = vpack.c.b16 %v637, %v635
      %v826 = vpack.c.b16 %v640, %v638
      %v827 = vpack.c.b16 %v641, %v639
      %v828 = vpack.c.b16 %v644, %v642
      %v829 = vpack.c.b16 %v645, %v643
      %v830 = vpack.c.b16 %v648, %v646
      %v831 = vpack.c.b16 %v649, %v647
      %v832 = vpack.c.b16 %v652, %v650
      %v833 = vpack.c.b16 %v653, %v651
      %v834 = vpack.c.b16 %v656, %v654
      %v835 = vpack.c.b16 %v657, %v655
      %v836 = vpack.c.b16 %v660, %v658
      %v837 = vpack.c.b16 %v661, %v659
      %v838 = vpack.c.b16 %v664, %v662
      %v839 = vpack.c.b16 %v665, %v663
      %v840 = vpack.c.b16 %v668, %v666
      %v841 = vpack.c.b16 %v669, %v667
      %v842 = vpack.c.b16 %v672, %v670
      %v843 = vpack.c.b16 %v673, %v671
      %v844 = vpack.c.b16 %v676, %v674
      %v845 = vpack.c.b16 %v677, %v675
      %v846 = vpack.c.b16 %v680, %v678
      %v847 = vpack.c.b16 %v681, %v679
      %v848 = vpack.c.b16 %v684, %v682
      %v849 = vpack.c.b16 %v685, %v683
      %v850 = vpack.c.b16 %v688, %v686
      %v851 = vpack.c.b16 %v689, %v687
      %v852 = vpack.c.b16 %v692, %v690
      %v853 = vpack.c.b16 %v693, %v691
      %v854 = vpack.c.b16 %v696, %v694
      %v855 = vpack.c.b16 %v697, %v695
      %v856 = vpack.c.b16 %v700, %v698
      %v857 = vpack.c.b16 %v701, %v699
      %v858 = vpack.c.b16 %v704, %v702
      %v859 = vpack.c.b16 %v705, %v703
      %v860 = vpack.c.b16 %v708, %v706
      %v861 = vpack.c.b16 %v709, %v707
      %v862 = vpack.c.b16 %v712, %v710
      %v863 = vpack.c.b16 %v713, %v711
      %v864 = vpack.c.b16 %v716, %v714
      %v865 = vpack.c.b16 %v717, %v715
      %v866 = vpack.c.b16 %v720, %v718
      %v867 = vpack.c.b16 %v721, %v719
      %v868 = vpack.c.b16 %v724, %v722
      %v869 = vpack.c.b16 %v725, %v723
      %v870 = vpack.c.b16 %v728, %v726
      %v871 = vpack.c.b16 %v729, %v727
      %v872 = vpack.c.b16 %v732, %v730
      %v873 = vpack.c.b16 %v733, %v731
      %v874 = vpack.c.b16 %v736, %v734
      %v875 = vpack.c.b16 %v737, %v735
      %v876 = vpack.c.b16 %v740, %v738
      %v877 = vpack.c.b16 %v741, %v739
      %v878 = vpack.c.b16 %v744, %v742
      %v879 = vpack.c.b16 %v745, %v743
      %v880 = vpack.c.b16 %v748, %v746
      %v881 = vpack.c.b16 %v749, %v747
      %v882 = vpack.c.b16 %v752, %v750
      %v883 = vpack.c.b16 %v753, %v751
      %v884 = vpack.c.b16 %v756, %v754
      %v885 = vpack.c.b16 %v757, %v755
      %v974 = vunpack.c.l.b16 %v350
      %v975 = vunpack.c.l.b16 %v351
      %v976 = vunpack.c.l.b16 %v352
      %v977 = vunpack.c.l.b16 %v353
      %v978 = vunpack.c.l.b16 %v354
      %v979 = vunpack.c.l.b16 %v355
      %v980 = vunpack.c.l.b16 %v356
      %v981 = vunpack.c.l.b16 %v357
      %v982 = vunpack.c.l.b16 %v358
      %v983 = vunpack.c.l.b16 %v359
      %v984 = vunpack.c.l.b16 %v360
      %v985 = vunpack.c.l.b16 %v361
      %v986 = vunpack.c.l.b16 %v362
      %v987 = vunpack.c.l.b16 %v363
      %v988 = vunpack.c.l.b16 %v364
      %v989 = vunpack.c.l.b16 %v365
      %v990 = vunpack.c.l.b16 %v366
      %v991 = vunpack.c.l.b16 %v367
      %v992 = vunpack.c.l.b16 %v368
      %v993 = vunpack.c.l.b16 %v369
      %v994 = vunpack.c.l.b16 %v370
      %v995 = vunpack.c.l.b16 %v371
      %v996 = vunpack.c.l.b16 %v372
      %v997 = vunpack.c.l.b16 %v373
      %v998 = vpack.c.b16 %v975, %v974
      %v999 = vpack.c.b16 %v977, %v976
      %v1000 = vpack.c.b16 %v979, %v978
      %v1001 = vpack.c.b16 %v981, %v980
      %v1002 = vpack.c.b16 %v983, %v982
      %v1003 = vpack.c.b16 %v985, %v984
      %v1004 = vpack.c.b16 %v987, %v986
      %v1005 = vpack.c.b16 %v989, %v988
      %v1006 = vpack.c.b16 %v991, %v990
      %v1007 = vpack.c.b16 %v993, %v992
      %v1008 = vpack.c.b16 %v995, %v994
      %v1009 = vpack.c.b16 %v997, %v996
      %vm1022 = vcmask 523264
      %v1024 = vsel %vm1022, %v759, 0
      %v1027 = vsel %vm1022, %v761, 0
      %v1030 = vsel %vm1022, %v763, 0
      %v1033 = vsel %vm1022, %v765, 0
      %v1036 = vsel %vm1022, %v767, 0
      %v1039 = vsel %vm1022, %v769, 0
      %v1042 = vsel %vm1022, %v771, 0
      %v1045 = vsel %vm1022, %v773, 0
      %v1048 = vsel %vm1022, %v775, 0
      %v1051 = vsel %vm1022, %v777, 0
      %v1054 = vsel %vm1022, %v779, 0
      %v1057 = vsel %vm1022, %v781, 0
      %v1060 = vsel %vm1022, %v783, 0
      %v1063 = vsel %vm1022, %v785, 0
      %v1066 = vsel %vm1022, %v787, 0
      %v1069 = vsel %vm1022, %v789, 0
      %v1072 = vsel %vm1022, %v791, 0
      %v1075 = vsel %vm1022, %v793, 0
      %v1078 = vsel %vm1022, %v795, 0
      %v1081 = vsel %vm1022, %v797, 0
      %v1084 = vsel %vm1022, %v799, 0
      %v1087 = vsel %vm1022, %v801, 0
      %v1090 = vsel %vm1022, %v803, 0
      %v1093 = vsel %vm1022, %v805, 0
      %v1096 = vsel %vm1022, %v807, 0
      %v1099 = vsel %vm1022, %v809, 0
      %v1102 = vsel %vm1022, %v811, 0
      %v1105 = vsel %vm1022, %v813, 0
      %v1108 = vsel %vm1022, %v815, 0
      %v1111 = vsel %vm1022, %v817, 0
      %v1114 = vsel %vm1022, %v819, 0
      %v1117 = vsel %vm1022, %v821, 0
      %v1120 = vsel %vm1022, %v823, 0
      %v1123 = vsel %vm1022, %v825, 0
      %v1126 = vsel %vm1022, %v827, 0
      %v1129 = vsel %vm1022, %v829, 0
      %v1132 = vsel %vm1022, %v831, 0
      %v1135 = vsel %vm1022, %v833, 0
      %v1138 = vsel %vm1022, %v835, 0
      %v1141 = vsel %vm1022, %v837, 0
      %v1144 = vsel %vm1022, %v839, 0
      %v1147 = vsel %vm1022, %v841, 0
      %v1150 = vsel %vm1022, %v843, 0
      %v1153 = vsel %vm1022, %v845, 0
      %v1156 = vsel %vm1022, %v847, 0
      %v1159 = vsel %vm1022, %v849, 0
      %v1162 = vsel %vm1022, %v851, 0
      %v1165 = vsel %vm1022, %v853, 0
      %v1168 = vsel %vm1022, %v855, 0
      %v1171 = vsel %vm1022, %v857, 0
      %v1174 = vsel %vm1022, %v859, 0
      %v1177 = vsel %vm1022, %v861, 0
      %v1180 = vsel %vm1022, %v863, 0
      %v1183 = vsel %vm1022, %v865, 0
      %v1186 = vsel %vm1022, %v867, 0
      %v1189 = vsel %vm1022, %v869, 0
      %v1192 = vsel %vm1022, %v871, 0
      %v1195 = vsel %vm1022, %v873, 0
      %v1198 = vsel %vm1022, %v875, 0
      %v1201 = vsel %vm1022, %v877, 0
      %v1204 = vsel %vm1022, %v879, 0
      %v1207 = vsel %vm1022, %v881, 0
      %v1210 = vsel %vm1022, %v883, 0
      %v1213 = vsel %vm1022, %v885, 0
      %1215 = vmatpush.bf16.msra.mxu0 %v1005
      %1216 = vmatpush.bf16.msra.mxu0 %v1004
      %1217 = vmatpush.bf16.msra.mxu0 %v1003
      %1218 = vmatpush.bf16.msra.mxu0 %v1002
      %1219 = vmatpush.bf16.msra.mxu0 %v1001
      %1220 = vmatpush.bf16.msra.mxu0 %v1000
      %1221 = vmatpush.bf16.msra.mxu0 %v999
      %1222 = vmatpush.bf16.msra.mxu0 %v998
      %1223 = vmatmul.bf16.gmra.mxu0 %v758
      %v1224 = vpop.f32.mrf.mxu0
      %v1225 = vadd.f32 0.0, %v1224
      %v1226 = vpop.f32.mrf.mxu0
      %v1227 = vadd.f32 0.0, %v1226
      %1228 = vmatmul.bf16.gmra.mxu0 %v760
      %v1229 = vpop.f32.mrf.mxu0
      %v1230 = vadd.f32 0.0, %v1229
      %v1231 = vpop.f32.mrf.mxu0
      %v1232 = vadd.f32 0.0, %v1231
      %1233 = vmatmul.bf16.gmra.mxu0 %v762
      %v1234 = vpop.f32.mrf.mxu0
      %v1235 = vadd.f32 0.0, %v1234
      %v1236 = vpop.f32.mrf.mxu0
      %v1237 = vadd.f32 0.0, %v1236
      %1238 = vmatmul.bf16.gmra.mxu0 %v764
      %v1239 = vpop.f32.mrf.mxu0
      %v1240 = vadd.f32 0.0, %v1239
      %v1241 = vpop.f32.mrf.mxu0
      %v1242 = vadd.f32 0.0, %v1241
      %1243 = vmatmul.bf16.gmra.mxu0 %v766
      %v1244 = vpop.f32.mrf.mxu0
      %v1245 = vadd.f32 0.0, %v1244
      %v1246 = vpop.f32.mrf.mxu0
      %v1247 = vadd.f32 0.0, %v1246
      %1248 = vmatmul.bf16.gmra.mxu0 %v768
      %v1249 = vpop.f32.mrf.mxu0
      %v1250 = vadd.f32 0.0, %v1249
      %v1251 = vpop.f32.mrf.mxu0
      %v1252 = vadd.f32 0.0, %v1251
      %1253 = vmatmul.bf16.gmra.mxu0 %v770
      %v1254 = vpop.f32.mrf.mxu0
      %v1255 = vadd.f32 0.0, %v1254
      %v1256 = vpop.f32.mrf.mxu0
      %v1257 = vadd.f32 0.0, %v1256
      %1258 = vmatmul.bf16.gmra.mxu0 %v772
      %v1259 = vpop.f32.mrf.mxu0
      %v1260 = vadd.f32 0.0, %v1259
      %v1261 = vpop.f32.mrf.mxu0
      %v1262 = vadd.f32 0.0, %v1261
      %1263 = vmatmul.bf16.gmra.mxu0 %v774
      %v1264 = vpop.f32.mrf.mxu0
      %v1265 = vadd.f32 0.0, %v1264
      %v1266 = vpop.f32.mrf.mxu0
      %v1267 = vadd.f32 0.0, %v1266
      %1268 = vmatmul.bf16.gmra.mxu0 %v776
      %v1269 = vpop.f32.mrf.mxu0
      %v1270 = vadd.f32 0.0, %v1269
      %v1271 = vpop.f32.mrf.mxu0
      %v1272 = vadd.f32 0.0, %v1271
      %1273 = vmatmul.bf16.gmra.mxu0 %v778
      %v1274 = vpop.f32.mrf.mxu0
      %v1275 = vadd.f32 0.0, %v1274
      %v1276 = vpop.f32.mrf.mxu0
      %v1277 = vadd.f32 0.0, %v1276
      %1278 = vmatmul.bf16.gmra.mxu0 %v780
      %v1279 = vpop.f32.mrf.mxu0
      %v1280 = vadd.f32 0.0, %v1279
      %v1281 = vpop.f32.mrf.mxu0
      %v1282 = vadd.f32 0.0, %v1281
      %1283 = vmatmul.bf16.gmra.mxu0 %v782
      %v1284 = vpop.f32.mrf.mxu0
      %v1285 = vadd.f32 0.0, %v1284
      %v1286 = vpop.f32.mrf.mxu0
      %v1287 = vadd.f32 0.0, %v1286
      %1288 = vmatmul.bf16.gmra.mxu0 %v784
      %v1289 = vpop.f32.mrf.mxu0
      %v1290 = vadd.f32 0.0, %v1289
      %v1291 = vpop.f32.mrf.mxu0
      %v1292 = vadd.f32 0.0, %v1291
      %1293 = vmatmul.bf16.gmra.mxu0 %v786
      %v1294 = vpop.f32.mrf.mxu0
      %v1295 = vadd.f32 0.0, %v1294
      %v1296 = vpop.f32.mrf.mxu0
      %v1297 = vadd.f32 0.0, %v1296
      %1298 = vmatmul.bf16.gmra.mxu0 %v788
      %v1299 = vpop.f32.mrf.mxu0
      %v1300 = vadd.f32 0.0, %v1299
      %v1301 = vpop.f32.mrf.mxu0
      %v1302 = vadd.f32 0.0, %v1301
      %1303 = vmatmul.bf16.gmra.mxu0 %v790
      %v1304 = vpop.f32.mrf.mxu0
      %v1305 = vadd.f32 0.0, %v1304
      %v1306 = vpop.f32.mrf.mxu0
      %v1307 = vadd.f32 0.0, %v1306
      %1308 = vmatmul.bf16.gmra.mxu0 %v792
      %v1309 = vpop.f32.mrf.mxu0
      %v1310 = vadd.f32 0.0, %v1309
      %v1311 = vpop.f32.mrf.mxu0
      %v1312 = vadd.f32 0.0, %v1311
      %1313 = vmatmul.bf16.gmra.mxu0 %v794
      %v1314 = vpop.f32.mrf.mxu0
      %v1315 = vadd.f32 0.0, %v1314
      %v1316 = vpop.f32.mrf.mxu0
      %v1317 = vadd.f32 0.0, %v1316
      %1318 = vmatmul.bf16.gmra.mxu0 %v796
      %v1319 = vpop.f32.mrf.mxu0
      %v1320 = vadd.f32 0.0, %v1319
      %v1321 = vpop.f32.mrf.mxu0
      %v1322 = vadd.f32 0.0, %v1321
      %1323 = vmatmul.bf16.gmra.mxu0 %v798
      %v1324 = vpop.f32.mrf.mxu0
      %v1325 = vadd.f32 0.0, %v1324
      %v1326 = vpop.f32.mrf.mxu0
      %v1327 = vadd.f32 0.0, %v1326
      %1328 = vmatmul.bf16.gmra.mxu0 %v800
      %v1329 = vpop.f32.mrf.mxu0
      %v1330 = vadd.f32 0.0, %v1329
      %v1331 = vpop.f32.mrf.mxu0
      %v1332 = vadd.f32 0.0, %v1331
      %1333 = vmatmul.bf16.gmra.mxu0 %v802
      %v1334 = vpop.f32.mrf.mxu0
      %v1335 = vadd.f32 0.0, %v1334
      %v1336 = vpop.f32.mrf.mxu0
      %v1337 = vadd.f32 0.0, %v1336
      %1338 = vmatmul.bf16.gmra.mxu0 %v804
      %v1339 = vpop.f32.mrf.mxu0
      %v1340 = vadd.f32 0.0, %v1339
      %v1341 = vpop.f32.mrf.mxu0
      %v1342 = vadd.f32 0.0, %v1341
      %1343 = vmatmul.bf16.gmra.mxu0 %v806
      %v1344 = vpop.f32.mrf.mxu0
      %v1345 = vadd.f32 0.0, %v1344
      %v1346 = vpop.f32.mrf.mxu0
      %v1347 = vadd.f32 0.0, %v1346
      %1348 = vmatmul.bf16.gmra.mxu0 %v808
      %v1349 = vpop.f32.mrf.mxu0
      %v1350 = vadd.f32 0.0, %v1349
      %v1351 = vpop.f32.mrf.mxu0
      %v1352 = vadd.f32 0.0, %v1351
      %1353 = vmatmul.bf16.gmra.mxu0 %v810
      %v1354 = vpop.f32.mrf.mxu0
      %v1355 = vadd.f32 0.0, %v1354
      %v1356 = vpop.f32.mrf.mxu0
      %v1357 = vadd.f32 0.0, %v1356
      %1358 = vmatmul.bf16.gmra.mxu0 %v812
      %v1359 = vpop.f32.mrf.mxu0
      %v1360 = vadd.f32 0.0, %v1359
      %v1361 = vpop.f32.mrf.mxu0
      %v1362 = vadd.f32 0.0, %v1361
      %1363 = vmatmul.bf16.gmra.mxu0 %v814
      %v1364 = vpop.f32.mrf.mxu0
      %v1365 = vadd.f32 0.0, %v1364
      %v1366 = vpop.f32.mrf.mxu0
      %v1367 = vadd.f32 0.0, %v1366
      %1368 = vmatmul.bf16.gmra.mxu0 %v816
      %v1369 = vpop.f32.mrf.mxu0
      %v1370 = vadd.f32 0.0, %v1369
      %v1371 = vpop.f32.mrf.mxu0
      %v1372 = vadd.f32 0.0, %v1371
      %1373 = vmatmul.bf16.gmra.mxu0 %v818
      %v1374 = vpop.f32.mrf.mxu0
      %v1375 = vadd.f32 0.0, %v1374
      %v1376 = vpop.f32.mrf.mxu0
      %v1377 = vadd.f32 0.0, %v1376
      %1378 = vmatmul.bf16.gmra.mxu0 %v820
      %v1379 = vpop.f32.mrf.mxu0
      %v1380 = vadd.f32 0.0, %v1379
      %v1381 = vpop.f32.mrf.mxu0
      %v1382 = vadd.f32 0.0, %v1381
      %1383 = vmatmul.bf16.gmra.mxu0 %v822
      %v1384 = vpop.f32.mrf.mxu0
      %v1385 = vadd.f32 0.0, %v1384
      %v1386 = vpop.f32.mrf.mxu0
      %v1387 = vadd.f32 0.0, %v1386
      %1388 = vmatmul.bf16.gmra.mxu0 %v824
      %v1389 = vpop.f32.mrf.mxu0
      %v1390 = vadd.f32 0.0, %v1389
      %v1391 = vpop.f32.mrf.mxu0
      %v1392 = vadd.f32 0.0, %v1391
      %1393 = vmatmul.bf16.gmra.mxu0 %v826
      %v1394 = vpop.f32.mrf.mxu0
      %v1395 = vadd.f32 0.0, %v1394
      %v1396 = vpop.f32.mrf.mxu0
      %v1397 = vadd.f32 0.0, %v1396
      %1398 = vmatmul.bf16.gmra.mxu0 %v828
      %v1399 = vpop.f32.mrf.mxu0
      %v1400 = vadd.f32 0.0, %v1399
      %v1401 = vpop.f32.mrf.mxu0
      %v1402 = vadd.f32 0.0, %v1401
      %1403 = vmatmul.bf16.gmra.mxu0 %v830
      %v1404 = vpop.f32.mrf.mxu0
      %v1405 = vadd.f32 0.0, %v1404
      %v1406 = vpop.f32.mrf.mxu0
      %v1407 = vadd.f32 0.0, %v1406
      %1408 = vmatmul.bf16.gmra.mxu0 %v832
      %v1409 = vpop.f32.mrf.mxu0
      %v1410 = vadd.f32 0.0, %v1409
      %v1411 = vpop.f32.mrf.mxu0
      %v1412 = vadd.f32 0.0, %v1411
      %1413 = vmatmul.bf16.gmra.mxu0 %v834
      %v1414 = vpop.f32.mrf.mxu0
      %v1415 = vadd.f32 0.0, %v1414
      %v1416 = vpop.f32.mrf.mxu0
      %v1417 = vadd.f32 0.0, %v1416
      %1418 = vmatmul.bf16.gmra.mxu0 %v836
      %v1419 = vpop.f32.mrf.mxu0
      %v1420 = vadd.f32 0.0, %v1419
      %v1421 = vpop.f32.mrf.mxu0
      %v1422 = vadd.f32 0.0, %v1421
      %1423 = vmatmul.bf16.gmra.mxu0 %v838
      %v1424 = vpop.f32.mrf.mxu0
      %v1425 = vadd.f32 0.0, %v1424
      %v1426 = vpop.f32.mrf.mxu0
      %v1427 = vadd.f32 0.0, %v1426
      %1428 = vmatmul.bf16.gmra.mxu0 %v840
      %v1429 = vpop.f32.mrf.mxu0
      %v1430 = vadd.f32 0.0, %v1429
      %v1431 = vpop.f32.mrf.mxu0
      %v1432 = vadd.f32 0.0, %v1431
      %1433 = vmatmul.bf16.gmra.mxu0 %v842
      %v1434 = vpop.f32.mrf.mxu0
      %v1435 = vadd.f32 0.0, %v1434
      %v1436 = vpop.f32.mrf.mxu0
      %v1437 = vadd.f32 0.0, %v1436
      %1438 = vmatmul.bf16.gmra.mxu0 %v844
      %v1439 = vpop.f32.mrf.mxu0
      %v1440 = vadd.f32 0.0, %v1439
      %v1441 = vpop.f32.mrf.mxu0
      %v1442 = vadd.f32 0.0, %v1441
      %1443 = vmatmul.bf16.gmra.mxu0 %v846
      %v1444 = vpop.f32.mrf.mxu0
      %v1445 = vadd.f32 0.0, %v1444
      %v1446 = vpop.f32.mrf.mxu0
      %v1447 = vadd.f32 0.0, %v1446
      %1448 = vmatmul.bf16.gmra.mxu0 %v848
      %v1449 = vpop.f32.mrf.mxu0
      %v1450 = vadd.f32 0.0, %v1449
      %v1451 = vpop.f32.mrf.mxu0
      %v1452 = vadd.f32 0.0, %v1451
      %1453 = vmatmul.bf16.gmra.mxu0 %v850
      %v1454 = vpop.f32.mrf.mxu0
      %v1455 = vadd.f32 0.0, %v1454
      %v1456 = vpop.f32.mrf.mxu0
      %v1457 = vadd.f32 0.0, %v1456
      %1458 = vmatmul.bf16.gmra.mxu0 %v852
      %v1459 = vpop.f32.mrf.mxu0
      %v1460 = vadd.f32 0.0, %v1459
      %v1461 = vpop.f32.mrf.mxu0
      %v1462 = vadd.f32 0.0, %v1461
      %1463 = vmatmul.bf16.gmra.mxu0 %v854
      %v1464 = vpop.f32.mrf.mxu0
      %v1465 = vadd.f32 0.0, %v1464
      %v1466 = vpop.f32.mrf.mxu0
      %v1467 = vadd.f32 0.0, %v1466
      %1468 = vmatmul.bf16.gmra.mxu0 %v856
      %v1469 = vpop.f32.mrf.mxu0
      %v1470 = vadd.f32 0.0, %v1469
      %v1471 = vpop.f32.mrf.mxu0
      %v1472 = vadd.f32 0.0, %v1471
      %1473 = vmatmul.bf16.gmra.mxu0 %v858
      %v1474 = vpop.f32.mrf.mxu0
      %v1475 = vadd.f32 0.0, %v1474
      %v1476 = vpop.f32.mrf.mxu0
      %v1477 = vadd.f32 0.0, %v1476
      %1478 = vmatmul.bf16.gmra.mxu0 %v860
      %v1479 = vpop.f32.mrf.mxu0
      %v1480 = vadd.f32 0.0, %v1479
      %v1481 = vpop.f32.mrf.mxu0
      %v1482 = vadd.f32 0.0, %v1481
      %1483 = vmatmul.bf16.gmra.mxu0 %v862
      %v1484 = vpop.f32.mrf.mxu0
      %v1485 = vadd.f32 0.0, %v1484
      %v1486 = vpop.f32.mrf.mxu0
      %v1487 = vadd.f32 0.0, %v1486
      %1488 = vmatmul.bf16.gmra.mxu0 %v864
      %v1489 = vpop.f32.mrf.mxu0
      %v1490 = vadd.f32 0.0, %v1489
      %v1491 = vpop.f32.mrf.mxu0
      %v1492 = vadd.f32 0.0, %v1491
      %1493 = vmatmul.bf16.gmra.mxu0 %v866
      %v1494 = vpop.f32.mrf.mxu0
      %v1495 = vadd.f32 0.0, %v1494
      %v1496 = vpop.f32.mrf.mxu0
      %v1497 = vadd.f32 0.0, %v1496
      %1498 = vmatmul.bf16.gmra.mxu0 %v868
      %v1499 = vpop.f32.mrf.mxu0
      %v1500 = vadd.f32 0.0, %v1499
      %v1501 = vpop.f32.mrf.mxu0
      %v1502 = vadd.f32 0.0, %v1501
      %1503 = vmatmul.bf16.gmra.mxu0 %v870
      %v1504 = vpop.f32.mrf.mxu0
      %v1505 = vadd.f32 0.0, %v1504
      %v1506 = vpop.f32.mrf.mxu0
      %v1507 = vadd.f32 0.0, %v1506
      %1508 = vmatmul.bf16.gmra.mxu0 %v872
      %v1509 = vpop.f32.mrf.mxu0
      %v1510 = vadd.f32 0.0, %v1509
      %v1511 = vpop.f32.mrf.mxu0
      %v1512 = vadd.f32 0.0, %v1511
      %1513 = vmatmul.bf16.gmra.mxu0 %v874
      %v1514 = vpop.f32.mrf.mxu0
      %v1515 = vadd.f32 0.0, %v1514
      %v1516 = vpop.f32.mrf.mxu0
      %v1517 = vadd.f32 0.0, %v1516
      %1518 = vmatmul.bf16.gmra.mxu0 %v876
      %v1519 = vpop.f32.mrf.mxu0
      %v1520 = vadd.f32 0.0, %v1519
      %v1521 = vpop.f32.mrf.mxu0
      %v1522 = vadd.f32 0.0, %v1521
      %1523 = vmatmul.bf16.gmra.mxu0 %v878
      %v1524 = vpop.f32.mrf.mxu0
      %v1525 = vadd.f32 0.0, %v1524
      %v1526 = vpop.f32.mrf.mxu0
      %v1527 = vadd.f32 0.0, %v1526
      %1528 = vmatmul.bf16.gmra.mxu0 %v880
      %v1529 = vpop.f32.mrf.mxu0
      %v1530 = vadd.f32 0.0, %v1529
      %v1531 = vpop.f32.mrf.mxu0
      %v1532 = vadd.f32 0.0, %v1531
      %1533 = vmatmul.bf16.gmra.mxu0 %v882
      %v1534 = vpop.f32.mrf.mxu0
      %v1535 = vadd.f32 0.0, %v1534
      %v1536 = vpop.f32.mrf.mxu0
      %v1537 = vadd.f32 0.0, %v1536
      %1538 = vmatmul.bf16.gmra.mxu0 %v884
      %v1539 = vpop.f32.mrf.mxu0
      %v1540 = vadd.f32 0.0, %v1539
      %v1541 = vpop.f32.mrf.mxu0
      %v1542 = vadd.f32 0.0, %v1541
      %1543 = vdwg.mxu0
      %1544 = vmatpush.bf16.msra.mxu0 0
      %1545 = vmatpush.bf16.msra.mxu0 0
      %1546 = vmatpush.bf16.msra.mxu0 0
      %1547 = vmatpush.bf16.msra.mxu0 0
      %1548 = vmatpush.bf16.msra.mxu0 %v1009
      %1549 = vmatpush.bf16.msra.mxu0 %v1008
      %1550 = vmatpush.bf16.msra.mxu0 %v1007
      %1551 = vmatpush.bf16.msra.mxu0 %v1006
      %1552 = vmatmul.bf16.gmra.mxu0 %v1024
      %v1553 = vpop.f32.mrf.mxu0
      %v1554 = vadd.f32 %v1225, %v1553
      %v1555 = vpop.f32.mrf.mxu0
      %v1556 = vadd.f32 %v1227, %v1555
      %1557 = vmatmul.bf16.gmra.mxu0 %v1027
      %v1558 = vpop.f32.mrf.mxu0
      %v1559 = vadd.f32 %v1230, %v1558
      %v1560 = vpop.f32.mrf.mxu0
      %v1561 = vadd.f32 %v1232, %v1560
      %1562 = vmatmul.bf16.gmra.mxu0 %v1030
      %v1563 = vpop.f32.mrf.mxu0
      %v1564 = vadd.f32 %v1235, %v1563
      %v1565 = vpop.f32.mrf.mxu0
      %v1566 = vadd.f32 %v1237, %v1565
      %1567 = vmatmul.bf16.gmra.mxu0 %v1033
      %v1568 = vpop.f32.mrf.mxu0
      %v1569 = vadd.f32 %v1240, %v1568
      %v1570 = vpop.f32.mrf.mxu0
      %v1571 = vadd.f32 %v1242, %v1570
      %1572 = vmatmul.bf16.gmra.mxu0 %v1036
      %v1573 = vpop.f32.mrf.mxu0
      %v1574 = vadd.f32 %v1245, %v1573
      %v1575 = vpop.f32.mrf.mxu0
      %v1576 = vadd.f32 %v1247, %v1575
      %1577 = vmatmul.bf16.gmra.mxu0 %v1039
      %v1578 = vpop.f32.mrf.mxu0
      %v1579 = vadd.f32 %v1250, %v1578
      %v1580 = vpop.f32.mrf.mxu0
      %v1581 = vadd.f32 %v1252, %v1580
      %1582 = vmatmul.bf16.gmra.mxu0 %v1042
      %v1583 = vpop.f32.mrf.mxu0
      %v1584 = vadd.f32 %v1255, %v1583
      %v1585 = vpop.f32.mrf.mxu0
      %v1586 = vadd.f32 %v1257, %v1585
      %1587 = vmatmul.bf16.gmra.mxu0 %v1045
      %v1588 = vpop.f32.mrf.mxu0
      %v1589 = vadd.f32 %v1260, %v1588
      %v1590 = vpop.f32.mrf.mxu0
      %v1591 = vadd.f32 %v1262, %v1590
      %1592 = vmatmul.bf16.gmra.mxu0 %v1048
      %v1593 = vpop.f32.mrf.mxu0
      %v1594 = vadd.f32 %v1265, %v1593
      %v1595 = vpop.f32.mrf.mxu0
      %v1596 = vadd.f32 %v1267, %v1595
      %1597 = vmatmul.bf16.gmra.mxu0 %v1051
      %v1598 = vpop.f32.mrf.mxu0
      %v1599 = vadd.f32 %v1270, %v1598
      %v1600 = vpop.f32.mrf.mxu0
      %v1601 = vadd.f32 %v1272, %v1600
      %1602 = vmatmul.bf16.gmra.mxu0 %v1054
      %v1603 = vpop.f32.mrf.mxu0
      %v1604 = vadd.f32 %v1275, %v1603
      %v1605 = vpop.f32.mrf.mxu0
      %v1606 = vadd.f32 %v1277, %v1605
      %1607 = vmatmul.bf16.gmra.mxu0 %v1057
      %v1608 = vpop.f32.mrf.mxu0
      %v1609 = vadd.f32 %v1280, %v1608
      %v1610 = vpop.f32.mrf.mxu0
      %v1611 = vadd.f32 %v1282, %v1610
      %1612 = vmatmul.bf16.gmra.mxu0 %v1060
      %v1613 = vpop.f32.mrf.mxu0
      %v1614 = vadd.f32 %v1285, %v1613
      %v1615 = vpop.f32.mrf.mxu0
      %v1616 = vadd.f32 %v1287, %v1615
      %1617 = vmatmul.bf16.gmra.mxu0 %v1063
      %v1618 = vpop.f32.mrf.mxu0
      %v1619 = vadd.f32 %v1290, %v1618
      %v1620 = vpop.f32.mrf.mxu0
      %v1621 = vadd.f32 %v1292, %v1620
      %1622 = vmatmul.bf16.gmra.mxu0 %v1066
      %v1623 = vpop.f32.mrf.mxu0
      %v1624 = vadd.f32 %v1295, %v1623
      %v1625 = vpop.f32.mrf.mxu0
      %v1626 = vadd.f32 %v1297, %v1625
      %1627 = vmatmul.bf16.gmra.mxu0 %v1069
      %v1628 = vpop.f32.mrf.mxu0
      %v1629 = vadd.f32 %v1300, %v1628
      %v1630 = vpop.f32.mrf.mxu0
      %v1631 = vadd.f32 %v1302, %v1630
      %1632 = vmatmul.bf16.gmra.mxu0 %v1072
      %v1633 = vpop.f32.mrf.mxu0
      %v1634 = vadd.f32 %v1305, %v1633
      %v1635 = vpop.f32.mrf.mxu0
      %v1636 = vadd.f32 %v1307, %v1635
      %1637 = vmatmul.bf16.gmra.mxu0 %v1075
      %v1638 = vpop.f32.mrf.mxu0
      %v1639 = vadd.f32 %v1310, %v1638
      %v1640 = vpop.f32.mrf.mxu0
      %v1641 = vadd.f32 %v1312, %v1640
      %1642 = vmatmul.bf16.gmra.mxu0 %v1078
      %v1643 = vpop.f32.mrf.mxu0
      %v1644 = vadd.f32 %v1315, %v1643
      %v1645 = vpop.f32.mrf.mxu0
      %v1646 = vadd.f32 %v1317, %v1645
      %1647 = vmatmul.bf16.gmra.mxu0 %v1081
      %v1648 = vpop.f32.mrf.mxu0
      %v1649 = vadd.f32 %v1320, %v1648
      %v1650 = vpop.f32.mrf.mxu0
      %v1651 = vadd.f32 %v1322, %v1650
      %1652 = vmatmul.bf16.gmra.mxu0 %v1084
      %v1653 = vpop.f32.mrf.mxu0
      %v1654 = vadd.f32 %v1325, %v1653
      %v1655 = vpop.f32.mrf.mxu0
      %v1656 = vadd.f32 %v1327, %v1655
      %1657 = vmatmul.bf16.gmra.mxu0 %v1087
      %v1658 = vpop.f32.mrf.mxu0
      %v1659 = vadd.f32 %v1330, %v1658
      %v1660 = vpop.f32.mrf.mxu0
      %v1661 = vadd.f32 %v1332, %v1660
      %1662 = vmatmul.bf16.gmra.mxu0 %v1090
      %v1663 = vpop.f32.mrf.mxu0
      %v1664 = vadd.f32 %v1335, %v1663
      %v1665 = vpop.f32.mrf.mxu0
      %v1666 = vadd.f32 %v1337, %v1665
      %1667 = vmatmul.bf16.gmra.mxu0 %v1093
      %v1668 = vpop.f32.mrf.mxu0
      %v1669 = vadd.f32 %v1340, %v1668
      %v1670 = vpop.f32.mrf.mxu0
      %v1671 = vadd.f32 %v1342, %v1670
      %1672 = vmatmul.bf16.gmra.mxu0 %v1096
      %v1673 = vpop.f32.mrf.mxu0
      %v1674 = vadd.f32 %v1345, %v1673
      %v1675 = vpop.f32.mrf.mxu0
      %v1676 = vadd.f32 %v1347, %v1675
      %1677 = vmatmul.bf16.gmra.mxu0 %v1099
      %v1678 = vpop.f32.mrf.mxu0
      %v1679 = vadd.f32 %v1350, %v1678
      %v1680 = vpop.f32.mrf.mxu0
      %v1681 = vadd.f32 %v1352, %v1680
      %1682 = vmatmul.bf16.gmra.mxu0 %v1102
      %v1683 = vpop.f32.mrf.mxu0
      %v1684 = vadd.f32 %v1355, %v1683
      %v1685 = vpop.f32.mrf.mxu0
      %v1686 = vadd.f32 %v1357, %v1685
      %1687 = vmatmul.bf16.gmra.mxu0 %v1105
      %v1688 = vpop.f32.mrf.mxu0
      %v1689 = vadd.f32 %v1360, %v1688
      %v1690 = vpop.f32.mrf.mxu0
      %v1691 = vadd.f32 %v1362, %v1690
      %1692 = vmatmul.bf16.gmra.mxu0 %v1108
      %v1693 = vpop.f32.mrf.mxu0
      %v1694 = vadd.f32 %v1365, %v1693
      %v1695 = vpop.f32.mrf.mxu0
      %v1696 = vadd.f32 %v1367, %v1695
      %1697 = vmatmul.bf16.gmra.mxu0 %v1111
      %v1698 = vpop.f32.mrf.mxu0
      %v1699 = vadd.f32 %v1370, %v1698
      %v1700 = vpop.f32.mrf.mxu0
      %v1701 = vadd.f32 %v1372, %v1700
      %1702 = vmatmul.bf16.gmra.mxu0 %v1114
      %v1703 = vpop.f32.mrf.mxu0
      %v1704 = vadd.f32 %v1375, %v1703
      %v1705 = vpop.f32.mrf.mxu0
      %v1706 = vadd.f32 %v1377, %v1705
      %1707 = vmatmul.bf16.gmra.mxu0 %v1117
      %v1708 = vpop.f32.mrf.mxu0
      %v1709 = vadd.f32 %v1380, %v1708
      %v1710 = vpop.f32.mrf.mxu0
      %v1711 = vadd.f32 %v1382, %v1710
      %1712 = vmatmul.bf16.gmra.mxu0 %v1120
      %v1713 = vpop.f32.mrf.mxu0
      %v1714 = vadd.f32 %v1385, %v1713
      %v1715 = vpop.f32.mrf.mxu0
      %v1716 = vadd.f32 %v1387, %v1715
      %1717 = vmatmul.bf16.gmra.mxu0 %v1123
      %v1718 = vpop.f32.mrf.mxu0
      %v1719 = vadd.f32 %v1390, %v1718
      %v1720 = vpop.f32.mrf.mxu0
      %v1721 = vadd.f32 %v1392, %v1720
      %1722 = vmatmul.bf16.gmra.mxu0 %v1126
      %v1723 = vpop.f32.mrf.mxu0
      %v1724 = vadd.f32 %v1395, %v1723
      %v1725 = vpop.f32.mrf.mxu0
      %v1726 = vadd.f32 %v1397, %v1725
      %1727 = vmatmul.bf16.gmra.mxu0 %v1129
      %v1728 = vpop.f32.mrf.mxu0
      %v1729 = vadd.f32 %v1400, %v1728
      %v1730 = vpop.f32.mrf.mxu0
      %v1731 = vadd.f32 %v1402, %v1730
      %1732 = vmatmul.bf16.gmra.mxu0 %v1132
      %v1733 = vpop.f32.mrf.mxu0
      %v1734 = vadd.f32 %v1405, %v1733
      %v1735 = vpop.f32.mrf.mxu0
      %v1736 = vadd.f32 %v1407, %v1735
      %1737 = vmatmul.bf16.gmra.mxu0 %v1135
      %v1738 = vpop.f32.mrf.mxu0
      %v1739 = vadd.f32 %v1410, %v1738
      %v1740 = vpop.f32.mrf.mxu0
      %v1741 = vadd.f32 %v1412, %v1740
      %1742 = vmatmul.bf16.gmra.mxu0 %v1138
      %v1743 = vpop.f32.mrf.mxu0
      %v1744 = vadd.f32 %v1415, %v1743
      %v1745 = vpop.f32.mrf.mxu0
      %v1746 = vadd.f32 %v1417, %v1745
      %1747 = vmatmul.bf16.gmra.mxu0 %v1141
      %v1748 = vpop.f32.mrf.mxu0
      %v1749 = vadd.f32 %v1420, %v1748
      %v1750 = vpop.f32.mrf.mxu0
      %v1751 = vadd.f32 %v1422, %v1750
      %1752 = vmatmul.bf16.gmra.mxu0 %v1144
      %v1753 = vpop.f32.mrf.mxu0
      %v1754 = vadd.f32 %v1425, %v1753
      %v1755 = vpop.f32.mrf.mxu0
      %v1756 = vadd.f32 %v1427, %v1755
      %1757 = vmatmul.bf16.gmra.mxu0 %v1147
      %v1758 = vpop.f32.mrf.mxu0
      %v1759 = vadd.f32 %v1430, %v1758
      %v1760 = vpop.f32.mrf.mxu0
      %v1761 = vadd.f32 %v1432, %v1760
      %1762 = vmatmul.bf16.gmra.mxu0 %v1150
      %v1763 = vpop.f32.mrf.mxu0
      %v1764 = vadd.f32 %v1435, %v1763
      %v1765 = vpop.f32.mrf.mxu0
      %v1766 = vadd.f32 %v1437, %v1765
      %1767 = vmatmul.bf16.gmra.mxu0 %v1153
      %v1768 = vpop.f32.mrf.mxu0
      %v1769 = vadd.f32 %v1440, %v1768
      %v1770 = vpop.f32.mrf.mxu0
      %v1771 = vadd.f32 %v1442, %v1770
      %1772 = vmatmul.bf16.gmra.mxu0 %v1156
      %v1773 = vpop.f32.mrf.mxu0
      %v1774 = vadd.f32 %v1445, %v1773
      %v1775 = vpop.f32.mrf.mxu0
      %v1776 = vadd.f32 %v1447, %v1775
      %1777 = vmatmul.bf16.gmra.mxu0 %v1159
      %v1778 = vpop.f32.mrf.mxu0
      %v1779 = vadd.f32 %v1450, %v1778
      %v1780 = vpop.f32.mrf.mxu0
      %v1781 = vadd.f32 %v1452, %v1780
      %1782 = vmatmul.bf16.gmra.mxu0 %v1162
      %v1783 = vpop.f32.mrf.mxu0
      %v1784 = vadd.f32 %v1455, %v1783
      %v1785 = vpop.f32.mrf.mxu0
      %v1786 = vadd.f32 %v1457, %v1785
      %1787 = vmatmul.bf16.gmra.mxu0 %v1165
      %v1788 = vpop.f32.mrf.mxu0
      %v1789 = vadd.f32 %v1460, %v1788
      %v1790 = vpop.f32.mrf.mxu0
      %v1791 = vadd.f32 %v1462, %v1790
      %1792 = vmatmul.bf16.gmra.mxu0 %v1168
      %v1793 = vpop.f32.mrf.mxu0
      %v1794 = vadd.f32 %v1465, %v1793
      %v1795 = vpop.f32.mrf.mxu0
      %v1796 = vadd.f32 %v1467, %v1795
      %1797 = vmatmul.bf16.gmra.mxu0 %v1171
      %v1798 = vpop.f32.mrf.mxu0
      %v1799 = vadd.f32 %v1470, %v1798
      %v1800 = vpop.f32.mrf.mxu0
      %v1801 = vadd.f32 %v1472, %v1800
      %1802 = vmatmul.bf16.gmra.mxu0 %v1174
      %v1803 = vpop.f32.mrf.mxu0
      %v1804 = vadd.f32 %v1475, %v1803
      %v1805 = vpop.f32.mrf.mxu0
      %v1806 = vadd.f32 %v1477, %v1805
      %1807 = vmatmul.bf16.gmra.mxu0 %v1177
      %v1808 = vpop.f32.mrf.mxu0
      %v1809 = vadd.f32 %v1480, %v1808
      %v1810 = vpop.f32.mrf.mxu0
      %v1811 = vadd.f32 %v1482, %v1810
      %1812 = vmatmul.bf16.gmra.mxu0 %v1180
      %v1813 = vpop.f32.mrf.mxu0
      %v1814 = vadd.f32 %v1485, %v1813
      %v1815 = vpop.f32.mrf.mxu0
      %v1816 = vadd.f32 %v1487, %v1815
      %1817 = vmatmul.bf16.gmra.mxu0 %v1183
      %v1818 = vpop.f32.mrf.mxu0
      %v1819 = vadd.f32 %v1490, %v1818
      %v1820 = vpop.f32.mrf.mxu0
      %v1821 = vadd.f32 %v1492, %v1820
      %1822 = vmatmul.bf16.gmra.mxu0 %v1186
      %v1823 = vpop.f32.mrf.mxu0
      %v1824 = vadd.f32 %v1495, %v1823
      %v1825 = vpop.f32.mrf.mxu0
      %v1826 = vadd.f32 %v1497, %v1825
      %1827 = vmatmul.bf16.gmra.mxu0 %v1189
      %v1828 = vpop.f32.mrf.mxu0
      %v1829 = vadd.f32 %v1500, %v1828
      %v1830 = vpop.f32.mrf.mxu0
      %v1831 = vadd.f32 %v1502, %v1830
      %1832 = vmatmul.bf16.gmra.mxu0 %v1192
      %v1833 = vpop.f32.mrf.mxu0
      %v1834 = vadd.f32 %v1505, %v1833
      %v1835 = vpop.f32.mrf.mxu0
      %v1836 = vadd.f32 %v1507, %v1835
      %1837 = vmatmul.bf16.gmra.mxu0 %v1195
      %v1838 = vpop.f32.mrf.mxu0
      %v1839 = vadd.f32 %v1510, %v1838
      %v1840 = vpop.f32.mrf.mxu0
      %v1841 = vadd.f32 %v1512, %v1840
      %1842 = vmatmul.bf16.gmra.mxu0 %v1198
      %v1843 = vpop.f32.mrf.mxu0
      %v1844 = vadd.f32 %v1515, %v1843
      %v1845 = vpop.f32.mrf.mxu0
      %v1846 = vadd.f32 %v1517, %v1845
      %1847 = vmatmul.bf16.gmra.mxu0 %v1201
      %v1848 = vpop.f32.mrf.mxu0
      %v1849 = vadd.f32 %v1520, %v1848
      %v1850 = vpop.f32.mrf.mxu0
      %v1851 = vadd.f32 %v1522, %v1850
      %1852 = vmatmul.bf16.gmra.mxu0 %v1204
      %v1853 = vpop.f32.mrf.mxu0
      %v1854 = vadd.f32 %v1525, %v1853
      %v1855 = vpop.f32.mrf.mxu0
      %v1856 = vadd.f32 %v1527, %v1855
      %1857 = vmatmul.bf16.gmra.mxu0 %v1207
      %v1858 = vpop.f32.mrf.mxu0
      %v1859 = vadd.f32 %v1530, %v1858
      %v1860 = vpop.f32.mrf.mxu0
      %v1861 = vadd.f32 %v1532, %v1860
      %1862 = vmatmul.bf16.gmra.mxu0 %v1210
      %v1863 = vpop.f32.mrf.mxu0
      %v1864 = vadd.f32 %v1535, %v1863
      %v1865 = vpop.f32.mrf.mxu0
      %v1866 = vadd.f32 %v1537, %v1865
      %1867 = vmatmul.bf16.gmra.mxu0 %v1213
      %v1868 = vpop.f32.mrf.mxu0
      %v1869 = vadd.f32 %v1540, %v1868
      %v1870 = vpop.f32.mrf.mxu0
      %v1871 = vadd.f32 %v1542, %v1870
      %1872 = vdwg.mxu0
      %1873 = vst [vmem:[%s213] sm:$0xff] %v1554
      %1874 = vst [vmem:[%s213 + $0x8] sm:$0xff] %v1556
      %1875 = vst [vmem:[%s213 + $0x10] sm:$0xff] %v1559
      %1876 = vst [vmem:[%s213 + $0x18] sm:$0xff] %v1561
      %1877 = vst [vmem:[%s213 + $0x20] sm:$0xff] %v1564
      %1878 = vst [vmem:[%s213 + $0x28] sm:$0xff] %v1566
      %1879 = vst [vmem:[%s213 + $0x30] sm:$0xff] %v1569
      %1880 = vst [vmem:[%s213 + $0x38] sm:$0xff] %v1571
      %1881 = vst [vmem:[%s213 + $0x40] sm:$0xff] %v1574
      %1882 = vst [vmem:[%s213 + $0x48] sm:$0xff] %v1576
      %1883 = vst [vmem:[%s213 + $0x50] sm:$0xff] %v1579
      %1884 = vst [vmem:[%s213 + $0x58] sm:$0xff] %v1581
      %1885 = vst [vmem:[%s213 + $0x60] sm:$0xff] %v1584
      %1886 = vst [vmem:[%s213 + $0x68] sm:$0xff] %v1586
      %1887 = vst [vmem:[%s213 + $0x70] sm:$0xff] %v1589
      %1888 = vst [vmem:[%s213 + $0x78] sm:$0xff] %v1591
      %1889 = vst [vmem:[%s213 + $0x80] sm:$0xff] %v1594
      %1890 = vst [vmem:[%s213 + $0x88] sm:$0xff] %v1596
      %1891 = vst [vmem:[%s213 + $0x90] sm:$0xff] %v1599
      %1892 = vst [vmem:[%s213 + $0x98] sm:$0xff] %v1601
      %1893 = vst [vmem:[%s213 + $0xa0] sm:$0xff] %v1604
      %1894 = vst [vmem:[%s213 + $0xa8] sm:$0xff] %v1606
      %1895 = vst [vmem:[%s213 + $0xb0] sm:$0xff] %v1609
      %1896 = vst [vmem:[%s213 + $0xb8] sm:$0xff] %v1611
      %1897 = vst [vmem:[%s213 + $0xc0] sm:$0xff] %v1614
      %1898 = vst [vmem:[%s213 + $0xc8] sm:$0xff] %v1616
      %1899 = vst [vmem:[%s213 + $0xd0] sm:$0xff] %v1619
      %1900 = vst [vmem:[%s213 + $0xd8] sm:$0xff] %v1621
      %1901 = vst [vmem:[%s213 + $0xe0] sm:$0xff] %v1624
      %1902 = vst [vmem:[%s213 + $0xe8] sm:$0xff] %v1626
      %1903 = vst [vmem:[%s213 + $0xf0] sm:$0xff] %v1629
      %1904 = vst [vmem:[%s213 + $0xf8] sm:$0xff] %v1631
      %1905 = vst [vmem:[%s213 + $0x100] sm:$0xff] %v1634
      %1906 = vst [vmem:[%s213 + $0x108] sm:$0xff] %v1636
      %1907 = vst [vmem:[%s213 + $0x110] sm:$0xff] %v1639
      %1908 = vst [vmem:[%s213 + $0x118] sm:$0xff] %v1641
      %1909 = vst [vmem:[%s213 + $0x120] sm:$0xff] %v1644
      %1910 = vst [vmem:[%s213 + $0x128] sm:$0xff] %v1646
      %1911 = vst [vmem:[%s213 + $0x130] sm:$0xff] %v1649
      %1912 = vst [vmem:[%s213 + $0x138] sm:$0xff] %v1651
      %1913 = vst [vmem:[%s213 + $0x140] sm:$0xff] %v1654
      %1914 = vst [vmem:[%s213 + $0x148] sm:$0xff] %v1656
      %1915 = vst [vmem:[%s213 + $0x150] sm:$0xff] %v1659
      %1916 = vst [vmem:[%s213 + $0x158] sm:$0xff] %v1661
      %1917 = vst [vmem:[%s213 + $0x160] sm:$0xff] %v1664
      %1918 = vst [vmem:[%s213 + $0x168] sm:$0xff] %v1666
      %1919 = vst [vmem:[%s213 + $0x170] sm:$0xff] %v1669
      %1920 = vst [vmem:[%s213 + $0x178] sm:$0xff] %v1671
      %1921 = vst [vmem:[%s213 + $0x180] sm:$0xff] %v1674
      %1922 = vst [vmem:[%s213 + $0x188] sm:$0xff] %v1676
      %1923 = vst [vmem:[%s213 + $0x190] sm:$0xff] %v1679
      %1924 = vst [vmem:[%s213 + $0x198] sm:$0xff] %v1681
      %1925 = vst [vmem:[%s213 + $0x1a0] sm:$0xff] %v1684
      %1926 = vst [vmem:[%s213 + $0x1a8] sm:$0xff] %v1686
      %1927 = vst [vmem:[%s213 + $0x1b0] sm:$0xff] %v1689
      %1928 = vst [vmem:[%s213 + $0x1b8] sm:$0xff] %v1691
      %1929 = vst [vmem:[%s213 + $0x1c0] sm:$0xff] %v1694
      %1930 = vst [vmem:[%s213 + $0x1c8] sm:$0xff] %v1696
      %1931 = vst [vmem:[%s213 + $0x1d0] sm:$0xff] %v1699
      %1932 = vst [vmem:[%s213 + $0x1d8] sm:$0xff] %v1701
      %1933 = vst [vmem:[%s213 + $0x1e0] sm:$0xff] %v1704
      %1934 = vst [vmem:[%s213 + $0x1e8] sm:$0xff] %v1706
      %1935 = vst [vmem:[%s213 + $0x1f0] sm:$0xff] %v1709
      %1936 = vst [vmem:[%s213 + $0x1f8] sm:$0xff] %v1711
      %1937 = vst [vmem:[%s213 + $0x200] sm:$0xff] %v1714
      %1938 = vst [vmem:[%s213 + $0x208] sm:$0xff] %v1716
      %1939 = vst [vmem:[%s213 + $0x210] sm:$0xff] %v1719
      %1940 = vst [vmem:[%s213 + $0x218] sm:$0xff] %v1721
      %1941 = vst [vmem:[%s213 + $0x220] sm:$0xff] %v1724
      %1942 = vst [vmem:[%s213 + $0x228] sm:$0xff] %v1726
      %1943 = vst [vmem:[%s213 + $0x230] sm:$0xff] %v1729
      %1944 = vst [vmem:[%s213 + $0x238] sm:$0xff] %v1731
      %1945 = vst [vmem:[%s213 + $0x240] sm:$0xff] %v1734
      %1946 = vst [vmem:[%s213 + $0x248] sm:$0xff] %v1736
      %1947 = vst [vmem:[%s213 + $0x250] sm:$0xff] %v1739
      %1948 = vst [vmem:[%s213 + $0x258] sm:$0xff] %v1741
      %1949 = vst [vmem:[%s213 + $0x260] sm:$0xff] %v1744
      %1950 = vst [vmem:[%s213 + $0x268] sm:$0xff] %v1746
      %1951 = vst [vmem:[%s213 + $0x270] sm:$0xff] %v1749
      %1952 = vst [vmem:[%s213 + $0x278] sm:$0xff] %v1751
      %1953 = vst [vmem:[%s213 + $0x280] sm:$0xff] %v1754
      %1954 = vst [vmem:[%s213 + $0x288] sm:$0xff] %v1756
      %1955 = vst [vmem:[%s213 + $0x290] sm:$0xff] %v1759
      %1956 = vst [vmem:[%s213 + $0x298] sm:$0xff] %v1761
      %1957 = vst [vmem:[%s213 + $0x2a0] sm:$0xff] %v1764
      %1958 = vst [vmem:[%s213 + $0x2a8] sm:$0xff] %v1766
      %1959 = vst [vmem:[%s213 + $0x2b0] sm:$0xff] %v1769
      %1960 = vst [vmem:[%s213 + $0x2b8] sm:$0xff] %v1771
      %1961 = vst [vmem:[%s213 + $0x2c0] sm:$0xff] %v1774
      %1962 = vst [vmem:[%s213 + $0x2c8] sm:$0xff] %v1776
      %1963 = vst [vmem:[%s213 + $0x2d0] sm:$0xff] %v1779
      %1964 = vst [vmem:[%s213 + $0x2d8] sm:$0xff] %v1781
      %1965 = vst [vmem:[%s213 + $0x2e0] sm:$0xff] %v1784
      %1966 = vst [vmem:[%s213 + $0x2e8] sm:$0xff] %v1786
      %1967 = vst [vmem:[%s213 + $0x2f0] sm:$0xff] %v1789
      %1968 = vst [vmem:[%s213 + $0x2f8] sm:$0xff] %v1791
      %1969 = vst [vmem:[%s213 + $0x300] sm:$0xff] %v1794
      %1970 = vst [vmem:[%s213 + $0x308] sm:$0xff] %v1796
      %1971 = vst [vmem:[%s213 + $0x310] sm:$0xff] %v1799
      %1972 = vst [vmem:[%s213 + $0x318] sm:$0xff] %v1801
      %1973 = vst [vmem:[%s213 + $0x320] sm:$0xff] %v1804
      %1974 = vst [vmem:[%s213 + $0x328] sm:$0xff] %v1806
      %1975 = vst [vmem:[%s213 + $0x330] sm:$0xff] %v1809
      %1976 = vst [vmem:[%s213 + $0x338] sm:$0xff] %v1811
      %1977 = vst [vmem:[%s213 + $0x340] sm:$0xff] %v1814
      %1978 = vst [vmem:[%s213 + $0x348] sm:$0xff] %v1816
      %1979 = vst [vmem:[%s213 + $0x350] sm:$0xff] %v1819
      %1980 = vst [vmem:[%s213 + $0x358] sm:$0xff] %v1821
      %1981 = vst [vmem:[%s213 + $0x360] sm:$0xff] %v1824
      %1982 = vst [vmem:[%s213 + $0x368] sm:$0xff] %v1826
      %1983 = vst [vmem:[%s213 + $0x370] sm:$0xff] %v1829
      %1984 = vst [vmem:[%s213 + $0x378] sm:$0xff] %v1831
      %1985 = vst [vmem:[%s213 + $0x380] sm:$0xff] %v1834
      %1986 = vst [vmem:[%s213 + $0x388] sm:$0xff] %v1836
      %1987 = vst [vmem:[%s213 + $0x390] sm:$0xff] %v1839
      %1988 = vst [vmem:[%s213 + $0x398] sm:$0xff] %v1841
      %1989 = vst [vmem:[%s213 + $0x3a0] sm:$0xff] %v1844
      %1990 = vst [vmem:[%s213 + $0x3a8] sm:$0xff] %v1846
      %1991 = vst [vmem:[%s213 + $0x3b0] sm:$0xff] %v1849
      %1992 = vst [vmem:[%s213 + $0x3b8] sm:$0xff] %v1851
      %1993 = vst [vmem:[%s213 + $0x3c0] sm:$0xff] %v1854
      %1994 = vst [vmem:[%s213 + $0x3c8] sm:$0xff] %v1856
      %1995 = vst [vmem:[%s213 + $0x3d0] sm:$0xff] %v1859
      %1996 = vst [vmem:[%s213 + $0x3d8] sm:$0xff] %v1861
      %1997 = vst [vmem:[%s213 + $0x3e0] sm:$0xff] %v1864
      %1998 = vst [vmem:[%s213 + $0x3e8] sm:$0xff] %v1866
      %1999 = vst [vmem:[%s213 + $0x3f0] sm:$0xff] %v1869
      %2000 = vst [vmem:[%s213 + $0x3f8] sm:$0xff] %v1871
      %v2001 = vadd.f32 %v1554, %v1556
      %v2002 = vadd.f32 %v2001, %v1559
      %v2003 = vadd.f32 %v2002, %v1561
      %v2004 = vadd.f32 %v2003, %v1564
      %v2005 = vadd.f32 %v2004, %v1566
      %v2006 = vadd.f32 %v2005, %v1569
      %v2007 = vadd.f32 %v2006, %v1571
      %v2008 = vadd.f32 %v2007, %v1574
      %v2009 = vadd.f32 %v2008, %v1576
      %v2010 = vadd.f32 %v2009, %v1579
      %v2011 = vadd.f32 %v2010, %v1581
      %v2012 = vadd.f32 %v2011, %v1584
      %v2013 = vadd.f32 %v2012, %v1586
      %v2014 = vadd.f32 %v2013, %v1589
      %v2015 = vadd.f32 %v2014, %v1591
      %v2016 = vadd.f32 %v2015, %v1594
      %v2017 = vadd.f32 %v2016, %v1596
      %v2018 = vadd.f32 %v2017, %v1599
      %v2019 = vadd.f32 %v2018, %v1601
      %v2020 = vadd.f32 %v2019, %v1604
      %v2021 = vadd.f32 %v2020, %v1606
      %v2022 = vadd.f32 %v2021, %v1609
      %v2023 = vadd.f32 %v2022, %v1611
      %v2024 = vadd.f32 %v2023, %v1614
      %v2025 = vadd.f32 %v2024, %v1616
      %v2026 = vadd.f32 %v2025, %v1619
      %v2027 = vadd.f32 %v2026, %v1621
      %v2028 = vadd.f32 %v2027, %v1624
      %v2029 = vadd.f32 %v2028, %v1626
      %v2030 = vadd.f32 %v2029, %v1629
      %v2031 = vadd.f32 %v2030, %v1631
      %v2032 = vadd.f32 %v2031, %v1634
      %v2033 = vadd.f32 %v2032, %v1636
      %v2034 = vadd.f32 %v2033, %v1639
      %v2035 = vadd.f32 %v2034, %v1641
      %v2036 = vadd.f32 %v2035, %v1644
      %v2037 = vadd.f32 %v2036, %v1646
      %v2038 = vadd.f32 %v2037, %v1649
      %v2039 = vadd.f32 %v2038, %v1651
      %v2040 = vadd.f32 %v2039, %v1654
      %v2041 = vadd.f32 %v2040, %v1656
      %v2042 = vadd.f32 %v2041, %v1659
      %v2043 = vadd.f32 %v2042, %v1661
      %v2044 = vadd.f32 %v2043, %v1664
      %v2045 = vadd.f32 %v2044, %v1666
      %v2046 = vadd.f32 %v2045, %v1669
      %v2047 = vadd.f32 %v2046, %v1671
      %v2048 = vadd.f32 %v2047, %v1674
      %v2049 = vadd.f32 %v2048, %v1676
      %v2050 = vadd.f32 %v2049, %v1679
      %v2051 = vadd.f32 %v2050, %v1681
      %v2052 = vadd.f32 %v2051, %v1684
      %v2053 = vadd.f32 %v2052, %v1686
      %v2054 = vadd.f32 %v2053, %v1689
      %v2055 = vadd.f32 %v2054, %v1691
      %v2056 = vadd.f32 %v2055, %v1694
      %v2057 = vadd.f32 %v2056, %v1696
      %v2058 = vadd.f32 %v2057, %v1699
      %v2059 = vadd.f32 %v2058, %v1701
      %v2060 = vadd.f32 %v2059, %v1704
      %v2061 = vadd.f32 %v2060, %v1706
      %v2062 = vadd.f32 %v2061, %v1709
      %v2063 = vadd.f32 %v2062, %v1711
      %v2064 = vadd.f32 %v2063, %v1714
      %v2065 = vadd.f32 %v2064, %v1716
      %v2066 = vadd.f32 %v2065, %v1719
      %v2067 = vadd.f32 %v2066, %v1721
      %v2068 = vadd.f32 %v2067, %v1724
      %v2069 = vadd.f32 %v2068, %v1726
      %v2070 = vadd.f32 %v2069, %v1729
      %v2071 = vadd.f32 %v2070, %v1731
      %v2072 = vadd.f32 %v2071, %v1734
      %v2073 = vadd.f32 %v2072, %v1736
      %v2074 = vadd.f32 %v2073, %v1739
      %v2075 = vadd.f32 %v2074, %v1741
      %v2076 = vadd.f32 %v2075, %v1744
      %v2077 = vadd.f32 %v2076, %v1746
      %v2078 = vadd.f32 %v2077, %v1749
      %v2079 = vadd.f32 %v2078, %v1751
      %v2080 = vadd.f32 %v2079, %v1754
      %v2081 = vadd.f32 %v2080, %v1756
      %v2082 = vadd.f32 %v2081, %v1759
      %v2083 = vadd.f32 %v2082, %v1761
      %v2084 = vadd.f32 %v2083, %v1764
      %v2085 = vadd.f32 %v2084, %v1766
      %v2086 = vadd.f32 %v2085, %v1769
      %v2087 = vadd.f32 %v2086, %v1771
      %v2088 = vadd.f32 %v2087, %v1774
      %v2089 = vadd.f32 %v2088, %v1776
      %v2090 = vadd.f32 %v2089, %v1779
      %v2091 = vadd.f32 %v2090, %v1781
      %v2092 = vadd.f32 %v2091, %v1784
      %v2093 = vadd.f32 %v2092, %v1786
      %v2094 = vadd.f32 %v2093, %v1789
      %v2095 = vadd.f32 %v2094, %v1791
      %v2096 = vadd.f32 %v2095, %v1794
      %v2097 = vadd.f32 %v2096, %v1796
      %v2098 = vadd.f32 %v2097, %v1799
      %v2099 = vadd.f32 %v2098, %v1801
      %v2100 = vadd.f32 %v2099, %v1804
      %v2101 = vadd.f32 %v2100, %v1806
      %v2102 = vadd.f32 %v2101, %v1809
      %v2103 = vadd.f32 %v2102, %v1811
      %v2104 = vadd.f32 %v2103, %v1814
      %v2105 = vadd.f32 %v2104, %v1816
      %v2106 = vadd.f32 %v2105, %v1819
      %v2107 = vadd.f32 %v2106, %v1821
      %v2108 = vadd.f32 %v2107, %v1824
      %v2109 = vadd.f32 %v2108, %v1826
      %v2110 = vadd.f32 %v2109, %v1829
      %v2111 = vadd.f32 %v2110, %v1831
      %v2112 = vadd.f32 %v2111, %v1834
      %v2113 = vadd.f32 %v2112, %v1836
      %v2114 = vadd.f32 %v2113, %v1839
      %v2115 = vadd.f32 %v2114, %v1841
      %v2116 = vadd.f32 %v2115, %v1844
      %v2117 = vadd.f32 %v2116, %v1846
      %v2118 = vadd.f32 %v2117, %v1849
      %v2119 = vadd.f32 %v2118, %v1851
      %v2120 = vadd.f32 %v2119, %v1854
      %v2121 = vadd.f32 %v2120, %v1856
      %v2122 = vadd.f32 %v2121, %v1859
      %v2123 = vadd.f32 %v2122, %v1861
      %v2124 = vadd.f32 %v2123, %v1864
      %v2125 = vadd.f32 %v2124, %v1866
      %v2126 = vadd.f32 %v2125, %v1869
      %v2127 = vadd.f32 %v2126, %v1871
      %v2128 = vrot.slane %v2127, 4
      %v2129 = vadd.f32 %v2127, %v2128
      %v2130 = vrot.slane %v2129, 2
      %v2131 = vadd.f32 %v2129, %v2130
      %v2132 = vrot.slane %v2131, 1
      %v2133 = vadd.f32 %v2131, %v2132
      %2134 = vst [vmem:[%s217] sm:$0x1] %v2133
      %v2135 = vmul.f32 %v1554, %v1554
      %v2136 = vmul.f32 %v1556, %v1556
      %v2137 = vmul.f32 %v1559, %v1559
      %v2138 = vmul.f32 %v1561, %v1561
      %v2139 = vmul.f32 %v1564, %v1564
      %v2140 = vmul.f32 %v1566, %v1566
      %v2141 = vmul.f32 %v1569, %v1569
      %v2142 = vmul.f32 %v1571, %v1571
      %v2143 = vmul.f32 %v1574, %v1574
      %v2144 = vmul.f32 %v1576, %v1576
      %v2145 = vmul.f32 %v1579, %v1579
      %v2146 = vmul.f32 %v1581, %v1581
      %v2147 = vmul.f32 %v1584, %v1584
      %v2148 = vmul.f32 %v1586, %v1586
      %v2149 = vmul.f32 %v1589, %v1589
      %v2150 = vmul.f32 %v1591, %v1591
      %v2151 = vmul.f32 %v1594, %v1594
      %v2152 = vmul.f32 %v1596, %v1596
      %v2153 = vmul.f32 %v1599, %v1599
      %v2154 = vmul.f32 %v1601, %v1601
      %v2155 = vmul.f32 %v1604, %v1604
      %v2156 = vmul.f32 %v1606, %v1606
      %v2157 = vmul.f32 %v1609, %v1609
      %v2158 = vmul.f32 %v1611, %v1611
      %v2159 = vmul.f32 %v1614, %v1614
      %v2160 = vmul.f32 %v1616, %v1616
      %v2161 = vmul.f32 %v1619, %v1619
      %v2162 = vmul.f32 %v1621, %v1621
      %v2163 = vmul.f32 %v1624, %v1624
      %v2164 = vmul.f32 %v1626, %v1626
      %v2165 = vmul.f32 %v1629, %v1629
      %v2166 = vmul.f32 %v1631, %v1631
      %v2167 = vmul.f32 %v1634, %v1634
      %v2168 = vmul.f32 %v1636, %v1636
      %v2169 = vmul.f32 %v1639, %v1639
      %v2170 = vmul.f32 %v1641, %v1641
      %v2171 = vmul.f32 %v1644, %v1644
      %v2172 = vmul.f32 %v1646, %v1646
      %v2173 = vmul.f32 %v1649, %v1649
      %v2174 = vmul.f32 %v1651, %v1651
      %v2175 = vmul.f32 %v1654, %v1654
      %v2176 = vmul.f32 %v1656, %v1656
      %v2177 = vmul.f32 %v1659, %v1659
      %v2178 = vmul.f32 %v1661, %v1661
      %v2179 = vmul.f32 %v1664, %v1664
      %v2180 = vmul.f32 %v1666, %v1666
      %v2181 = vmul.f32 %v1669, %v1669
      %v2182 = vmul.f32 %v1671, %v1671
      %v2183 = vmul.f32 %v1674, %v1674
      %v2184 = vmul.f32 %v1676, %v1676
      %v2185 = vmul.f32 %v1679, %v1679
      %v2186 = vmul.f32 %v1681, %v1681
      %v2187 = vmul.f32 %v1684, %v1684
      %v2188 = vmul.f32 %v1686, %v1686
      %v2189 = vmul.f32 %v1689, %v1689
      %v2190 = vmul.f32 %v1691, %v1691
      %v2191 = vmul.f32 %v1694, %v1694
      %v2192 = vmul.f32 %v1696, %v1696
      %v2193 = vmul.f32 %v1699, %v1699
      %v2194 = vmul.f32 %v1701, %v1701
      %v2195 = vmul.f32 %v1704, %v1704
      %v2196 = vmul.f32 %v1706, %v1706
      %v2197 = vmul.f32 %v1709, %v1709
      %v2198 = vmul.f32 %v1711, %v1711
      %v2199 = vmul.f32 %v1714, %v1714
      %v2200 = vmul.f32 %v1716, %v1716
      %v2201 = vmul.f32 %v1719, %v1719
      %v2202 = vmul.f32 %v1721, %v1721
      %v2203 = vmul.f32 %v1724, %v1724
      %v2204 = vmul.f32 %v1726, %v1726
      %v2205 = vmul.f32 %v1729, %v1729
      %v2206 = vmul.f32 %v1731, %v1731
      %v2207 = vmul.f32 %v1734, %v1734
      %v2208 = vmul.f32 %v1736, %v1736
      %v2209 = vmul.f32 %v1739, %v1739
      %v2210 = vmul.f32 %v1741, %v1741
      %v2211 = vmul.f32 %v1744, %v1744
      %v2212 = vmul.f32 %v1746, %v1746
      %v2213 = vmul.f32 %v1749, %v1749
      %v2214 = vmul.f32 %v1751, %v1751
      %v2215 = vmul.f32 %v1754, %v1754
      %v2216 = vmul.f32 %v1756, %v1756
      %v2217 = vmul.f32 %v1759, %v1759
      %v2218 = vmul.f32 %v1761, %v1761
      %v2219 = vmul.f32 %v1764, %v1764
      %v2220 = vmul.f32 %v1766, %v1766
      %v2221 = vmul.f32 %v1769, %v1769
      %v2222 = vmul.f32 %v1771, %v1771
      %v2223 = vmul.f32 %v1774, %v1774
      %v2224 = vmul.f32 %v1776, %v1776
      %v2225 = vmul.f32 %v1779, %v1779
      %v2226 = vmul.f32 %v1781, %v1781
      %v2227 = vmul.f32 %v1784, %v1784
      %v2228 = vmul.f32 %v1786, %v1786
      %v2229 = vmul.f32 %v1789, %v1789
      %v2230 = vmul.f32 %v1791, %v1791
      %v2231 = vmul.f32 %v1794, %v1794
      %v2232 = vmul.f32 %v1796, %v1796
      %v2233 = vmul.f32 %v1799, %v1799
      %v2234 = vmul.f32 %v1801, %v1801
      %v2235 = vmul.f32 %v1804, %v1804
      %v2236 = vmul.f32 %v1806, %v1806
      %v2237 = vmul.f32 %v1809, %v1809
      %v2238 = vmul.f32 %v1811, %v1811
      %v2239 = vmul.f32 %v1814, %v1814
      %v2240 = vmul.f32 %v1816, %v1816
      %v2241 = vmul.f32 %v1819, %v1819
      %v2242 = vmul.f32 %v1821, %v1821
      %v2243 = vmul.f32 %v1824, %v1824
      %v2244 = vmul.f32 %v1826, %v1826
      %v2245 = vmul.f32 %v1829, %v1829
      %v2246 = vmul.f32 %v1831, %v1831
      %v2247 = vmul.f32 %v1834, %v1834
      %v2248 = vmul.f32 %v1836, %v1836
      %v2249 = vmul.f32 %v1839, %v1839
      %v2250 = vmul.f32 %v1841, %v1841
      %v2251 = vmul.f32 %v1844, %v1844
      %v2252 = vmul.f32 %v1846, %v1846
      %v2253 = vmul.f32 %v1849, %v1849
      %v2254 = vmul.f32 %v1851, %v1851
      %v2255 = vmul.f32 %v1854, %v1854
      %v2256 = vmul.f32 %v1856, %v1856
      %v2257 = vmul.f32 %v1859, %v1859
      %v2258 = vmul.f32 %v1861, %v1861
      %v2259 = vmul.f32 %v1864, %v1864
      %v2260 = vmul.f32 %v1866, %v1866
      %v2261 = vmul.f32 %v1869, %v1869
      %v2262 = vmul.f32 %v1871, %v1871
      %v2263 = vadd.f32 %v2135, %v2136
      %v2264 = vadd.f32 %v2263, %v2137
      %v2265 = vadd.f32 %v2264, %v2138
      %v2266 = vadd.f32 %v2265, %v2139
      %v2267 = vadd.f32 %v2266, %v2140
      %v2268 = vadd.f32 %v2267, %v2141
      %v2269 = vadd.f32 %v2268, %v2142
      %v2270 = vadd.f32 %v2269, %v2143
      %v2271 = vadd.f32 %v2270, %v2144
      %v2272 = vadd.f32 %v2271, %v2145
      %v2273 = vadd.f32 %v2272, %v2146
      %v2274 = vadd.f32 %v2273, %v2147
      %v2275 = vadd.f32 %v2274, %v2148
      %v2276 = vadd.f32 %v2275, %v2149
      %v2277 = vadd.f32 %v2276, %v2150
      %v2278 = vadd.f32 %v2277, %v2151
      %v2279 = vadd.f32 %v2278, %v2152
      %v2280 = vadd.f32 %v2279, %v2153
      %v2281 = vadd.f32 %v2280, %v2154
      %v2282 = vadd.f32 %v2281, %v2155
      %v2283 = vadd.f32 %v2282, %v2156
      %v2284 = vadd.f32 %v2283, %v2157
      %v2285 = vadd.f32 %v2284, %v2158
      %v2286 = vadd.f32 %v2285, %v2159
      %v2287 = vadd.f32 %v2286, %v2160
      %v2288 = vadd.f32 %v2287, %v2161
      %v2289 = vadd.f32 %v2288, %v2162
      %v2290 = vadd.f32 %v2289, %v2163
      %v2291 = vadd.f32 %v2290, %v2164
      %v2292 = vadd.f32 %v2291, %v2165
      %v2293 = vadd.f32 %v2292, %v2166
      %v2294 = vadd.f32 %v2293, %v2167
      %v2295 = vadd.f32 %v2294, %v2168
      %v2296 = vadd.f32 %v2295, %v2169
      %v2297 = vadd.f32 %v2296, %v2170
      %v2298 = vadd.f32 %v2297, %v2171
      %v2299 = vadd.f32 %v2298, %v2172
      %v2300 = vadd.f32 %v2299, %v2173
      %v2301 = vadd.f32 %v2300, %v2174
      %v2302 = vadd.f32 %v2301, %v2175
      %v2303 = vadd.f32 %v2302, %v2176
      %v2304 = vadd.f32 %v2303, %v2177
      %v2305 = vadd.f32 %v2304, %v2178
      %v2306 = vadd.f32 %v2305, %v2179
      %v2307 = vadd.f32 %v2306, %v2180
      %v2308 = vadd.f32 %v2307, %v2181
      %v2309 = vadd.f32 %v2308, %v2182
      %v2310 = vadd.f32 %v2309, %v2183
      %v2311 = vadd.f32 %v2310, %v2184
      %v2312 = vadd.f32 %v2311, %v2185
      %v2313 = vadd.f32 %v2312, %v2186
      %v2314 = vadd.f32 %v2313, %v2187
      %v2315 = vadd.f32 %v2314, %v2188
      %v2316 = vadd.f32 %v2315, %v2189
      %v2317 = vadd.f32 %v2316, %v2190
      %v2318 = vadd.f32 %v2317, %v2191
      %v2319 = vadd.f32 %v2318, %v2192
      %v2320 = vadd.f32 %v2319, %v2193
      %v2321 = vadd.f32 %v2320, %v2194
      %v2322 = vadd.f32 %v2321, %v2195
      %v2323 = vadd.f32 %v2322, %v2196
      %v2324 = vadd.f32 %v2323, %v2197
      %v2325 = vadd.f32 %v2324, %v2198
      %v2326 = vadd.f32 %v2325, %v2199
      %v2327 = vadd.f32 %v2326, %v2200
      %v2328 = vadd.f32 %v2327, %v2201
      %v2329 = vadd.f32 %v2328, %v2202
      %v2330 = vadd.f32 %v2329, %v2203
      %v2331 = vadd.f32 %v2330, %v2204
      %v2332 = vadd.f32 %v2331, %v2205
      %v2333 = vadd.f32 %v2332, %v2206
      %v2334 = vadd.f32 %v2333, %v2207
      %v2335 = vadd.f32 %v2334, %v2208
      %v2336 = vadd.f32 %v2335, %v2209
      %v2337 = vadd.f32 %v2336, %v2210
      %v2338 = vadd.f32 %v2337, %v2211
      %v2339 = vadd.f32 %v2338, %v2212
      %v2340 = vadd.f32 %v2339, %v2213
      %v2341 = vadd.f32 %v2340, %v2214
      %v2342 = vadd.f32 %v2341, %v2215
      %v2343 = vadd.f32 %v2342, %v2216
      %v2344 = vadd.f32 %v2343, %v2217
      %v2345 = vadd.f32 %v2344, %v2218
      %v2346 = vadd.f32 %v2345, %v2219
      %v2347 = vadd.f32 %v2346, %v2220
      %v2348 = vadd.f32 %v2347, %v2221
      %v2349 = vadd.f32 %v2348, %v2222
      %v2350 = vadd.f32 %v2349, %v2223
      %v2351 = vadd.f32 %v2350, %v2224
      %v2352 = vadd.f32 %v2351, %v2225
      %v2353 = vadd.f32 %v2352, %v2226
      %v2354 = vadd.f32 %v2353, %v2227
      %v2355 = vadd.f32 %v2354, %v2228
      %v2356 = vadd.f32 %v2355, %v2229
      %v2357 = vadd.f32 %v2356, %v2230
      %v2358 = vadd.f32 %v2357, %v2231
      %v2359 = vadd.f32 %v2358, %v2232
      %v2360 = vadd.f32 %v2359, %v2233
      %v2361 = vadd.f32 %v2360, %v2234
      %v2362 = vadd.f32 %v2361, %v2235
      %v2363 = vadd.f32 %v2362, %v2236
      %v2364 = vadd.f32 %v2363, %v2237
      %v2365 = vadd.f32 %v2364, %v2238
      %v2366 = vadd.f32 %v2365, %v2239
      %v2367 = vadd.f32 %v2366, %v2240
      %v2368 = vadd.f32 %v2367, %v2241
      %v2369 = vadd.f32 %v2368, %v2242
      %v2370 = vadd.f32 %v2369, %v2243
      %v2371 = vadd.f32 %v2370, %v2244
      %v2372 = vadd.f32 %v2371, %v2245
      %v2373 = vadd.f32 %v2372, %v2246
      %v2374 = vadd.f32 %v2373, %v2247
      %v2375 = vadd.f32 %v2374, %v2248
      %v2376 = vadd.f32 %v2375, %v2249
      %v2377 = vadd.f32 %v2376, %v2250
      %v2378 = vadd.f32 %v2377, %v2251
      %v2379 = vadd.f32 %v2378, %v2252
      %v2380 = vadd.f32 %v2379, %v2253
      %v2381 = vadd.f32 %v2380, %v2254
      %v2382 = vadd.f32 %v2381, %v2255
      %v2383 = vadd.f32 %v2382, %v2256
      %v2384 = vadd.f32 %v2383, %v2257
      %v2385 = vadd.f32 %v2384, %v2258
      %v2386 = vadd.f32 %v2385, %v2259
      %v2387 = vadd.f32 %v2386, %v2260
      %v2388 = vadd.f32 %v2387, %v2261
      %v2389 = vadd.f32 %v2388, %v2262
      %v2390 = vrot.slane %v2389, 4
      %v2391 = vadd.f32 %v2389, %v2390
      %v2392 = vrot.slane %v2391, 2
      %v2393 = vadd.f32 %v2391, %v2392
      %v2394 = vrot.slane %v2393, 1
      %v2395 = vadd.f32 %v2393, %v2394
      %2396 = vst [vmem:[%s220] sm:$0x1] %v2395
      %s2397 = smul.u32 128, %s16
      %p2398 = scmp.lt.s32.totalorder %s2397, 255
      %s2399 = scalar_select %p2398, %s2397, 255
      %s2400 = smul.addr %s2399, 8
      %s2401 = scalar_lea.vmem %s2, %s2400
      %p2402 = scmp.lt.s32.totalorder %s16, 1
      %s2403 = scalar_select %p2402, %s16, 1
      %s2404 = scalar_lea.vmem %s3, %s2403
      %p2405 = scmp.lt.s32.totalorder %s16, 1
      %s2406 = scalar_select %p2405, %s16, 1
      %s2407 = scalar_lea.vmem %s4, %s2406
      // Predicated region
      $region29: #{forward.2} parent=27 // pred_check
        %p2408 = pneg %p81
      $region30: #{forward.2} parent=27 // pred_check_branch
        %2410 = sbr.rel (%p2408) target = $region32
      $region31: #{forward.2} parent=27 // pred_region
        %s2411 = smul.u32 128, %s16
      $region32: #{forward.2} parent=27 // pred_fallthru
        _
      // Predicated region
      $region33: #{forward.2} parent=27 // pred_check
        %p2412 = pneg %p107
      $region34: #{forward.2} parent=27 // pred_check_branch
        %2414 = sbr.rel (%p2412) target = $region36
      $region35: #{forward.2} parent=27 // pred_region
        _
      $region36: #{forward.2} parent=27 // pred_fallthru
        _
      // Predicated region
      $region37: #{forward.2} parent=27 // pred_check
        %p2415 = pneg %p133
      $region38: #{forward.2} parent=27 // pred_check_branch
        %2417 = sbr.rel (%p2415) target = $region40
      $region39: #{forward.2} parent=27 // pred_region
        _
      $region40: #{forward.2} parent=27 // pred_fallthru
        _
    $region28: #{forward.2} parent=5 // pred_fallthru
      _
    %p2418 = scmp.le.s32.totalorder 2, %s11
    // Predicated region
    $region41: #{forward.2} parent=5 // pred_check
      %p2419 = pneg %p2418
    $region42: #{forward.2} parent=5 // pred_check_branch
      %2421 = sbr.rel (%p2419) target = $region44
    $region43: #{forward.2} parent=5 // pred_region
      %s2422 = ssub.s32 %s11, 2
      // Predicated region
      $region45: #{forward.2} parent=43 // pred_check
        %p2423 = pneg %p87
      $region46: #{forward.2} parent=43 // pred_check_branch
        %2425 = sbr.rel (%p2423) target = $region48
      $region47: #{forward.2} parent=43 // pred_region
        %s2426 = smul.u32 128, %s17
        %p2427 = scmp.lt.s32.totalorder %s2426, 255
        %s2428 = scalar_select %p2427, %s2426, 255
        %s2429 = smul.addr %s2428, 8
        %s2430 = scalar_lea.vmem %s2, %s2429
      $region48: #{forward.2} parent=43 // pred_fallthru
        _
      // Predicated region
      $region49: #{forward.2} parent=43 // pred_check
        %p2431 = pneg %p113
      $region50: #{forward.2} parent=43 // pred_check_branch
        %2433 = sbr.rel (%p2431) target = $region52
      $region51: #{forward.2} parent=43 // pred_region
        %p2434 = scmp.lt.s32.totalorder %s17, 1
        %s2435 = scalar_select %p2434, %s17, 1
        %s2436 = scalar_lea.vmem %s3, %s2435
      $region52: #{forward.2} parent=43 // pred_fallthru
        _
      // Predicated region
      $region53: #{forward.2} parent=43 // pred_check
        %p2437 = pneg %p139
      $region54: #{forward.2} parent=43 // pred_check_branch
        %2439 = sbr.rel (%p2437) target = $region56
      $region55: #{forward.2} parent=43 // pred_region
        %p2440 = scmp.lt.s32.totalorder %s17, 1
        %s2441 = scalar_select %p2440, %s17, 1
        %s2442 = scalar_lea.vmem %s4, %s2441
      $region56: #{forward.2} parent=43 // pred_fallthru
        _
    $region44: #{forward.2} parent=5 // pred_fallthru
      _
  $region6: #{forward.2} parent=0 // loop_footer
    %s15 = sadd.s32 1, %s11
  $region7: #{forward.2} parent=0 // loop_footer_branch
    %10 = sbr.rel target = $region3
  $region8: #{forward.2} parent=0 // loop_exit
    _

// kernel: forward.3
$region0: #{forward.3}
  #allocation0 [shape = 'u32[]', space=smem, size = 0x4, offset = 0x4, fixed_abs, tag = 'smem constant byte address 0x4 - core index']
  #allocation1 [shape = 'u32[72,128]{1,0:T(1,128)}', space=vmem, size = 0x9000, scoped, tag = 'internal scratch']
  #allocation2 [shape = 'bf16[18,32,128]{2,1,0:T(8,128)(2,1)}', space=vmem, size = 0x24000, scoped, tag = 'scratch operand']
  #allocation3 [shape = 'bf16[16,32,1152]{2,1,0:T(8,128)(2,1)}', space=vmem, size = 0x120000, scoped, tag = 'scratch operand']
  %s0 = inlined_call_operand.vmem [shape: f32[2,32,32,128], index: 0, kind: input, shape index: {}]
  %s1 = inlined_call_operand.vmem [shape: bf16[2,2,32,128], index: 1, kind: input, shape index: {}]
  %s2 = inlined_call_operand.vmem [shape: bf16[2,2,32,128], index: 2, kind: input, shape index: {}]
  %s3 = inlined_call_operand.vmem [shape: f32[1,128], index: 3, kind: input, shape index: {}]
  %s4 = inlined_call_operand.vmem [shape: f32[1,128], index: 4, kind: input, shape index: {}]
  %s5 = inlined_call_operand.vmem [shape: bf16[1152,32], index: 5, kind: input, shape index: {}]
  %s6 = inlined_call_operand.vmem [shape: f32[2,32,32,32], index: 6, kind: output, shape index: {}]
  %s7 = sld [smem:[#allocation0]]
  $region57: #{forward.3} parent=0
    _
  %s9 = ssub.s32 1, %s7
  %s10 = scalar_select 0, %s9, %s7
  loop: start=0, step=1, limit=6
  $region2: #{forward.3} parent=0 // loop_pre_header
    _
  $region3: #{forward.3} parent=0 // loop_header
    %s12 = sphi 0, %s16
    %p13 = scmp.ge.s32.totalorder %s12, 6
    %s19 = sphi 0, %s31
    %s20 = sphi 0, %s27
    %s21 = sphi 0, %s19
    %s22 = sphi 0, %s20
    %s23 = sphi 0, %s21
    %s24 = sphi 0, %s22
    %s36 = sphi 0, %s38
    %s39 = sphi 0, %s36
    %s40 = sphi 0, %s39
    %s56 = sphi 0, %s40
    %s64 = sphi 0, %s66
    %s67 = sphi 0, %s64
    %s68 = sphi 0, %s67
    %s84 = sphi 0, %s68
    %s92 = sphi 0, %s94
    %s95 = sphi 0, %s92
    %s96 = sphi 0, %s95
    %s112 = sphi 0, %s96
    %s116 = sphi 0, %s116
    %s118 = sphi 0, %s116
    %s119 = sphi 0, %s118
    %s133 = sphi 0, %s119
    %s137 = sphi 0, %s137
    %s139 = sphi 0, %s137
    %s140 = sphi 0, %s139
    %s154 = sphi 0, %s140
    %s158 = sphi 0, %s158
    %s160 = sphi 0, %s158
    %s161 = sphi 0, %s160
    %s175 = sphi 0, %s161
    %s183 = sphi 0, %s185
    %s186 = sphi 0, %s183
    %s187 = sphi 0, %s186
    %s203 = sphi 0, %s187
  $region4: #{forward.3} parent=0 // loop_header_branch
    %15 = sbr.rel (%p13) target = $region8
  $region5: #{forward.3} parent=0 // loop_body
    %s17 = ssub.s32 %s12, 1
    %s18 = ssub.s32 %s12, 2
    %s25 = sadd.s32 1, %s20
    %p26 = scmp.ge.s32.totalorder %s25, 2
    %s27 = scalar_select %p26, 0, %s25
    %s28 = sadd.s32 1, %s19
    %s29 = scalar_select %p26, %s28, %s19
    %p30 = scmp.ge.s32.totalorder %s29, 2
    %s31 = scalar_select %p30, 0, %s29
    %s32 = ssub.s32 %s19, %s31
    %s33 = ssub.s32 %s20, %s27
    %s34 = sor.u32 %s32, %s33
    %p35 = scmp.eq.s32.totalorder %s34, 0
    %s37 = sadd.s32 %s36, 1
    %s38 = scalar_select %p35, %s36, %s37
    %p41 = pneg %p35
    %p42 = scmp.eq.s32.totalorder %s12, 3
    %p43 = por %p41, %p42
    %p44 = scmp.ne.s32.totalorder %s36, %s39
    %p45 = scmp.eq.s32.totalorder %s12, 0
    %p46 = por %p44, %p45
    %p47 = scmp.ne.s32.totalorder %s36, %s39
    %p48 = scmp.eq.s32.totalorder %s17, 3
    %p49 = por %p47, %p48
    %p50 = scmp.ne.s32.totalorder %s39, %s40
    %p51 = scmp.eq.s32.totalorder %s17, 0
    %p52 = por %p50, %p51
    %p53 = scmp.ne.s32.totalorder %s39, %s40
    %p54 = scmp.eq.s32.totalorder %s18, 3
    %p55 = por %p53, %p54
    %p57 = scmp.ne.s32.totalorder %s40, %s56
    %p58 = scmp.eq.s32.totalorder %s18, 0
    %p59 = por %p57, %p58
    %s60 = ssub.s32 %s19, %s31
    %s61 = ssub.s32 %s20, %s27
    %s62 = sor.u32 %s60, %s61
    %p63 = scmp.eq.s32.totalorder %s62, 0
    %s65 = sadd.s32 %s64, 1
    %s66 = scalar_select %p63, %s64, %s65
    %p69 = pneg %p63
    %p70 = scmp.eq.s32.totalorder %s12, 3
    %p71 = por %p69, %p70
    %p72 = scmp.ne.s32.totalorder %s64, %s67
    %p73 = scmp.eq.s32.totalorder %s12, 0
    %p74 = por %p72, %p73
    %p75 = scmp.ne.s32.totalorder %s64, %s67
    %p76 = scmp.eq.s32.totalorder %s17, 3
    %p77 = por %p75, %p76
    %p78 = scmp.ne.s32.totalorder %s67, %s68
    %p79 = scmp.eq.s32.totalorder %s17, 0
    %p80 = por %p78, %p79
    %p81 = scmp.ne.s32.totalorder %s67, %s68
    %p82 = scmp.eq.s32.totalorder %s18, 3
    %p83 = por %p81, %p82
    %p85 = scmp.ne.s32.totalorder %s68, %s84
    %p86 = scmp.eq.s32.totalorder %s18, 0
    %p87 = por %p85, %p86
    %s88 = ssub.s32 %s19, %s31
    %s89 = ssub.s32 %s20, %s27
    %s90 = sor.u32 %s88, %s89
    %p91 = scmp.eq.s32.totalorder %s90, 0
    %s93 = sadd.s32 %s92, 1
    %s94 = scalar_select %p91, %s92, %s93
    %p97 = pneg %p91
    %p98 = scmp.eq.s32.totalorder %s12, 3
    %p99 = por %p97, %p98
    %p100 = scmp.ne.s32.totalorder %s92, %s95
    %p101 = scmp.eq.s32.totalorder %s12, 0
    %p102 = por %p100, %p101
    %p103 = scmp.ne.s32.totalorder %s92, %s95
    %p104 = scmp.eq.s32.totalorder %s17, 3
    %p105 = por %p103, %p104
    %p106 = scmp.ne.s32.totalorder %s95, %s96
    %p107 = scmp.eq.s32.totalorder %s17, 0
    %p108 = por %p106, %p107
    %p109 = scmp.ne.s32.totalorder %s95, %s96
    %p110 = scmp.eq.s32.totalorder %s18, 3
    %p111 = por %p109, %p110
    %p113 = scmp.ne.s32.totalorder %s96, %s112
    %p114 = scmp.eq.s32.totalorder %s18, 0
    %p115 = por %p113, %p114
    %s117 = sadd.s32 %s116, 1
    %p120 = scmp.eq.s32.totalorder %s12, 3
    %p121 = scmp.ne.s32.totalorder %s116, %s118
    %p122 = scmp.eq.s32.totalorder %s12, 0
    %p123 = por %p121, %p122
    %p124 = scmp.ne.s32.totalorder %s116, %s118
    %p125 = scmp.eq.s32.totalorder %s17, 3
    %p126 = por %p124, %p125
    %p127 = scmp.ne.s32.totalorder %s118, %s119
    %p128 = scmp.eq.s32.totalorder %s17, 0
    %p129 = por %p127, %p128
    %p130 = scmp.ne.s32.totalorder %s118, %s119
    %p131 = scmp.eq.s32.totalorder %s18, 3
    %p132 = por %p130, %p131
    %p134 = scmp.ne.s32.totalorder %s119, %s133
    %p135 = scmp.eq.s32.totalorder %s18, 0
    %p136 = por %p134, %p135
    %s138 = sadd.s32 %s137, 1
    %p141 = scmp.eq.s32.totalorder %s12, 3
    %p142 = scmp.ne.s32.totalorder %s137, %s139
    %p143 = scmp.eq.s32.totalorder %s12, 0
    %p144 = por %p142, %p143
    %p145 = scmp.ne.s32.totalorder %s137, %s139
    %p146 = scmp.eq.s32.totalorder %s17, 3
    %p147 = por %p145, %p146
    %p148 = scmp.ne.s32.totalorder %s139, %s140
    %p149 = scmp.eq.s32.totalorder %s17, 0
    %p150 = por %p148, %p149
    %p151 = scmp.ne.s32.totalorder %s139, %s140
    %p152 = scmp.eq.s32.totalorder %s18, 3
    %p153 = por %p151, %p152
    %p155 = scmp.ne.s32.totalorder %s140, %s154
    %p156 = scmp.eq.s32.totalorder %s18, 0
    %p157 = por %p155, %p156
    %s159 = sadd.s32 %s158, 1
    %p162 = scmp.eq.s32.totalorder %s12, 3
    %p163 = scmp.ne.s32.totalorder %s158, %s160
    %p164 = scmp.eq.s32.totalorder %s12, 0
    %p165 = por %p163, %p164
    %p166 = scmp.ne.s32.totalorder %s158, %s160
    %p167 = scmp.eq.s32.totalorder %s17, 3
    %p168 = por %p166, %p167
    %p169 = scmp.ne.s32.totalorder %s160, %s161
    %p170 = scmp.eq.s32.totalorder %s17, 0
    %p171 = por %p169, %p170
    %p172 = scmp.ne.s32.totalorder %s160, %s161
    %p173 = scmp.eq.s32.totalorder %s18, 3
    %p174 = por %p172, %p173
    %p176 = scmp.ne.s32.totalorder %s161, %s175
    %p177 = scmp.eq.s32.totalorder %s18, 0
    %p178 = por %p176, %p177
    %s179 = ssub.s32 %s19, %s31
    %s180 = ssub.s32 %s20, %s27
    %s181 = sor.u32 %s179, %s180
    %p182 = scmp.eq.s32.totalorder %s181, 0
    %s184 = sadd.s32 %s183, 1
    %s185 = scalar_select %p182, %s183, %s184
    %p188 = pneg %p182
    %p189 = scmp.eq.s32.totalorder %s12, 3
    %p190 = por %p188, %p189
    %p191 = scmp.ne.s32.totalorder %s183, %s186
    %p192 = scmp.eq.s32.totalorder %s12, 0
    %p193 = por %p191, %p192
    %p194 = scmp.ne.s32.totalorder %s183, %s186
    %p195 = scmp.eq.s32.totalorder %s17, 3
    %p196 = por %p194, %p195
    %p197 = scmp.ne.s32.totalorder %s186, %s187
    %p198 = scmp.eq.s32.totalorder %s17, 0
    %p199 = por %p197, %p198
    %p200 = scmp.ne.s32.totalorder %s186, %s187
    %p201 = scmp.eq.s32.totalorder %s18, 3
    %p202 = por %p200, %p201
    %p204 = scmp.ne.s32.totalorder %s187, %s203
    %p205 = scmp.eq.s32.totalorder %s18, 0
    %p206 = por %p204, %p205
    %p207 = scmp.le.s32.totalorder 1, %s12
    %p208 = scmp.lt.s32.totalorder %s12, 5
    %p209 = pnand %p207, %p208
    %p210 = pneg %p209
    // Predicated region
    $region9: #{forward.3} parent=5 // pred_check
      _
    $region10: #{forward.3} parent=5 // pred_check_branch
      %212 = sbr.rel (%p209) target = $region12
    $region11: #{forward.3} parent=5 // pred_region
      %s213 = ssub.s32 %s12, 1
      // Predicated region
      $region13: #{forward.3} parent=11 // pred_check
        %p214 = pneg %p129
      $region14: #{forward.3} parent=11 // pred_check_branch
        %216 = sbr.rel (%p214) target = $region16
      $region15: #{forward.3} parent=11 // pred_region
        _
      $region16: #{forward.3} parent=11 // pred_fallthru
        _
      // Predicated region
      $region17: #{forward.3} parent=11 // pred_check
        %p217 = pneg %p150
      $region18: #{forward.3} parent=11 // pred_check_branch
        %219 = sbr.rel (%p217) target = $region20
      $region19: #{forward.3} parent=11 // pred_region
        _
      $region20: #{forward.3} parent=11 // pred_fallthru
        _
      // Predicated region
      $region21: #{forward.3} parent=11 // pred_check
        %p220 = pneg %p171
      $region22: #{forward.3} parent=11 // pred_check_branch
        %222 = sbr.rel (%p220) target = $region24
      $region23: #{forward.3} parent=11 // pred_region
        _
      $region24: #{forward.3} parent=11 // pred_fallthru
        _
    $region12: #{forward.3} parent=5 // pred_fallthru
      _
    %p223 = scmp.lt.s32.totalorder %s12, 4
    // Predicated region
    $region25: #{forward.3} parent=5 // pred_check
      %p224 = pneg %p223
    $region26: #{forward.3} parent=5 // pred_check_branch
      %226 = sbr.rel (%p224) target = $region28
    $region27: #{forward.3} parent=5 // pred_region
      // Predicated region
      $region29: #{forward.3} parent=27 // pred_check
        %p227 = pneg %p46
      $region30: #{forward.3} parent=27 // pred_check_branch
        %229 = sbr.rel (%p227) target = $region32
      $region31: #{forward.3} parent=27 // pred_region
        %s230 = smul.u32 16, %s20
        %p231 = scmp.lt.s32.totalorder %s19, 1
        %s232 = scalar_select %p231, %s19, 1
        %p233 = scmp.lt.s32.totalorder %s230, 31
        %s234 = scalar_select %p233, %s230, 31
        %s235 = smul.addr %s234, 4
        %s236 = smul.addr %s232, 128
        %s237 = sadd.s32 %s235, %s236
        %s238 = smul.addr %s237, 8
        %s239 = scalar_lea.vmem %s0, %s238
        %s240 = smul.u32 16, %s20
      $region32: #{forward.3} parent=27 // pred_fallthru
        _
      // Predicated region
      $region33: #{forward.3} parent=27 // pred_check
        %p241 = pneg %p74
      $region34: #{forward.3} parent=27 // pred_check_branch
        %243 = sbr.rel (%p241) target = $region36
      $region35: #{forward.3} parent=27 // pred_region
        %p244 = scmp.lt.s32.totalorder %s19, 1
        %s245 = scalar_select %p244, %s19, 1
        %p246 = scmp.lt.s32.totalorder %s20, 1
        %s247 = scalar_select %p246, %s20, 1
        %s248 = smul.addr %s247, 4
        %s249 = smul.addr %s245, 8
        %s250 = sadd.s32 %s248, %s249
        %s251 = smul.addr %s250, 4
        %s252 = scalar_lea.vmem %s1, %s251
      $region36: #{forward.3} parent=27 // pred_fallthru
        _
      // Predicated region
      $region37: #{forward.3} parent=27 // pred_check
        %p253 = pneg %p102
      $region38: #{forward.3} parent=27 // pred_check_branch
        %255 = sbr.rel (%p253) target = $region40
      $region39: #{forward.3} parent=27 // pred_region
        %p256 = scmp.lt.s32.totalorder %s19, 1
        %s257 = scalar_select %p256, %s19, 1
        %p258 = scmp.lt.s32.totalorder %s20, 1
        %s259 = scalar_select %p258, %s20, 1
        %s260 = smul.addr %s259, 4
        %s261 = smul.addr %s257, 8
        %s262 = sadd.s32 %s260, %s261
        %s263 = smul.addr %s262, 4
        %s264 = scalar_lea.vmem %s2, %s263
      $region40: #{forward.3} parent=27 // pred_fallthru
        _
    $region28: #{forward.3} parent=5 // pred_fallthru
      _
    %p265 = scmp.le.s32.totalorder 1, %s12
    %p266 = scmp.lt.s32.totalorder %s12, 5
    %p267 = pnand %p265, %p266
    %p268 = pneg %p267
    // Predicated region
    $region41: #{forward.3} parent=5 // pred_check
      _
    $region42: #{forward.3} parent=5 // pred_check_branch
      %270 = sbr.rel (%p267) target = $region44
    $region43: #{forward.3} parent=5 // pred_region
      %s271 = ssub.s32 %s12, 1
      %s272 = smul.u32 16, %s22
      %p273 = scmp.lt.s32.totalorder %s21, 1
      %s274 = scalar_select %p273, %s21, 1
      %p275 = scmp.lt.s32.totalorder %s272, 31
      %s276 = scalar_select %p275, %s272, 31
      %s277 = smul.addr %s276, 4
      %s278 = smul.addr %s274, 128
      %s279 = sadd.s32 %s277, %s278
      %s280 = smul.addr %s279, 8
      %s281 = scalar_lea.vmem %s0, %s280
      %p282 = pneg %p52
      %p283 = pneg %p49
      %p284 = scmp.lt.s32.totalorder %s21, 1
      %s285 = scalar_select %p284, %s21, 1
      %p286 = scmp.lt.s32.totalorder %s22, 1
      %s287 = scalar_select %p286, %s22, 1
      %s288 = smul.addr %s287, 4
      %s289 = smul.addr %s285, 8
      %s290 = sadd.s32 %s288, %s289
      %s291 = smul.addr %s290, 4
      %s292 = scalar_lea.vmem %s1, %s291
      %p293 = pneg %p80
      %p294 = pneg %p77
      %p295 = scmp.lt.s32.totalorder %s21, 1
      %s296 = scalar_select %p295, %s21, 1
      %p297 = scmp.lt.s32.totalorder %s22, 1
      %s298 = scalar_select %p297, %s22, 1
      %s299 = smul.addr %s298, 4
      %s300 = smul.addr %s296, 8
      %s301 = sadd.s32 %s299, %s300
      %s302 = smul.addr %s301, 4
      %s303 = scalar_lea.vmem %s2, %s302
      %p304 = pneg %p108
      %p305 = pneg %p105
      %p306 = pneg %p129
      %p307 = pneg %p126
      %p308 = pneg %p150
      %p309 = pneg %p147
      %p310 = pneg %p171
      %p311 = pneg %p168
      %p312 = pneg %p199
      %p313 = pneg %p196
      %s314 = smul.u32 16, %s22
      %p315 = scmp.lt.s32.totalorder %s21, 1
      %s316 = scalar_select %p315, %s21, 1
      %p317 = scmp.lt.s32.totalorder %s314, 31
      %s318 = scalar_select %p317, %s314, 31
      %s319 = smul.addr %s318, 4
      %s320 = smul.addr %s316, 128
      %s321 = sadd.s32 %s319, %s320
      %s322 = smul.addr %s321, 8
      %s323 = scalar_lea.vmem %s6, %s322
      %s324 = smul.u32 16, %s22
      %p325 = scmp.lt.s32.totalorder %s21, 1
      %s326 = scalar_select %p325, %s21, 1
      %p327 = scmp.lt.s32.totalorder %s324, 31
      %s328 = scalar_select %p327, %s324, 31
      %s329 = smul.addr %s328, 4
      %s330 = smul.addr %s326, 128
      %s331 = sadd.s32 %s329, %s330
      %s332 = smul.addr %s331, 8
      %s333 = scalar_lea.vmem %s0, %s332
      %s334 = smul.u32 16, %s22
      %p335 = scmp.lt.s32.totalorder %s21, 1
      %s336 = scalar_select %p335, %s21, 1
      %p337 = scmp.lt.s32.totalorder %s22, 1
      %s338 = scalar_select %p337, %s22, 1
      %s339 = smul.addr %s338, 4
      %s340 = smul.addr %s336, 8
      %s341 = sadd.s32 %s339, %s340
      %s342 = smul.addr %s341, 4
      %s343 = scalar_lea.vmem %s1, %s342
      %p344 = scmp.lt.s32.totalorder %s21, 1
      %s345 = scalar_select %p344, %s21, 1
      %p346 = scmp.lt.s32.totalorder %s22, 1
      %s347 = scalar_select %p346, %s22, 1
      %s348 = smul.addr %s347, 4
      %s349 = smul.addr %s345, 8
      %s350 = sadd.s32 %s348, %s349
      %s351 = smul.addr %s350, 4
      %s352 = scalar_lea.vmem %s2, %s351
      %s353 = smul.u32 16, %s22
      %p354 = scmp.lt.s32.totalorder %s21, 1
      %s355 = scalar_select %p354, %s21, 1
      %p356 = scmp.lt.s32.totalorder %s353, 31
      %s357 = scalar_select %p356, %s353, 31
      %s358 = smul.addr %s357, 4
      %s359 = smul.addr %s355, 128
      %s360 = sadd.s32 %s358, %s359
      %s361 = smul.addr %s360, 8
      %s362 = scalar_lea.vmem %s6, %s361
      %s363 = smul.u32 16, %s22
      %v365 = vld [vmem:[%s333] sm:$0xff]
      %v366 = vld [vmem:[%s333 + $0x8] sm:$0xff]
      %v367 = vld [vmem:[%s333 + $0x10] sm:$0xff]
      %v368 = vld [vmem:[%s333 + $0x18] sm:$0xff]
      %v369 = vld [vmem:[%s333 + $0x20] sm:$0xff]
      %v370 = vld [vmem:[%s333 + $0x28] sm:$0xff]
      %v371 = vld [vmem:[%s333 + $0x30] sm:$0xff]
      %v372 = vld [vmem:[%s333 + $0x38] sm:$0xff]
      %v373 = vld [vmem:[%s333 + $0x40] sm:$0xff]
      %v374 = vld [vmem:[%s333 + $0x48] sm:$0xff]
      %v375 = vld [vmem:[%s333 + $0x50] sm:$0xff]
      %v376 = vld [vmem:[%s333 + $0x58] sm:$0xff]
      %v377 = vld [vmem:[%s333 + $0x60] sm:$0xff]
      %v378 = vld [vmem:[%s333 + $0x68] sm:$0xff]
      %v379 = vld [vmem:[%s333 + $0x70] sm:$0xff]
      %v380 = vld [vmem:[%s333 + $0x78] sm:$0xff]
      %v381 = vld [vmem:[%s333 + $0x80] sm:$0xff]
      %v382 = vld [vmem:[%s333 + $0x88] sm:$0xff]
      %v383 = vld [vmem:[%s333 + $0x90] sm:$0xff]
      %v384 = vld [vmem:[%s333 + $0x98] sm:$0xff]
      %v385 = vld [vmem:[%s333 + $0xa0] sm:$0xff]
      %v386 = vld [vmem:[%s333 + $0xa8] sm:$0xff]
      %v387 = vld [vmem:[%s333 + $0xb0] sm:$0xff]
      %v388 = vld [vmem:[%s333 + $0xb8] sm:$0xff]
      %v389 = vld [vmem:[%s333 + $0xc0] sm:$0xff]
      %v390 = vld [vmem:[%s333 + $0xc8] sm:$0xff]
      %v391 = vld [vmem:[%s333 + $0xd0] sm:$0xff]
      %v392 = vld [vmem:[%s333 + $0xd8] sm:$0xff]
      %v393 = vld [vmem:[%s333 + $0xe0] sm:$0xff]
      %v394 = vld [vmem:[%s333 + $0xe8] sm:$0xff]
      %v395 = vld [vmem:[%s333 + $0xf0] sm:$0xff]
      %v396 = vld [vmem:[%s333 + $0xf8] sm:$0xff]
      %v397 = vld [vmem:[%s333 + $0x100] sm:$0xff]
      %v398 = vld [vmem:[%s333 + $0x108] sm:$0xff]
      %v399 = vld [vmem:[%s333 + $0x110] sm:$0xff]
      %v400 = vld [vmem:[%s333 + $0x118] sm:$0xff]
      %v401 = vld [vmem:[%s333 + $0x120] sm:$0xff]
      %v402 = vld [vmem:[%s333 + $0x128] sm:$0xff]
      %v403 = vld [vmem:[%s333 + $0x130] sm:$0xff]
      %v404 = vld [vmem:[%s333 + $0x138] sm:$0xff]
      %v405 = vld [vmem:[%s333 + $0x140] sm:$0xff]
      %v406 = vld [vmem:[%s333 + $0x148] sm:$0xff]
      %v407 = vld [vmem:[%s333 + $0x150] sm:$0xff]
      %v408 = vld [vmem:[%s333 + $0x158] sm:$0xff]
      %v409 = vld [vmem:[%s333 + $0x160] sm:$0xff]
      %v410 = vld [vmem:[%s333 + $0x168] sm:$0xff]
      %v411 = vld [vmem:[%s333 + $0x170] sm:$0xff]
      %v412 = vld [vmem:[%s333 + $0x178] sm:$0xff]
      %v413 = vld [vmem:[%s333 + $0x180] sm:$0xff]
      %v414 = vld [vmem:[%s333 + $0x188] sm:$0xff]
      %v415 = vld [vmem:[%s333 + $0x190] sm:$0xff]
      %v416 = vld [vmem:[%s333 + $0x198] sm:$0xff]
      %v417 = vld [vmem:[%s333 + $0x1a0] sm:$0xff]
      %v418 = vld [vmem:[%s333 + $0x1a8] sm:$0xff]
      %v419 = vld [vmem:[%s333 + $0x1b0] sm:$0xff]
      %v420 = vld [vmem:[%s333 + $0x1b8] sm:$0xff]
      %v421 = vld [vmem:[%s333 + $0x1c0] sm:$0xff]
      %v422 = vld [vmem:[%s333 + $0x1c8] sm:$0xff]
      %v423 = vld [vmem:[%s333 + $0x1d0] sm:$0xff]
      %v424 = vld [vmem:[%s333 + $0x1d8] sm:$0xff]
      %v425 = vld [vmem:[%s333 + $0x1e0] sm:$0xff]
      %v426 = vld [vmem:[%s333 + $0x1e8] sm:$0xff]
      %v427 = vld [vmem:[%s333 + $0x1f0] sm:$0xff]
      %v428 = vld [vmem:[%s333 + $0x1f8] sm:$0xff]
      %v429 = vld [vmem:[%s3] sm:$0x1]
      %v431 = vperm.slane %v429, 0
      %v433 = vmul.f32 %v365, %v431
      %v434 = vmul.f32 %v366, %v431
      %v435 = vmul.f32 %v367, %v431
      %v436 = vmul.f32 %v368, %v431
      %v437 = vmul.f32 %v369, %v431
      %v438 = vmul.f32 %v370, %v431
      %v439 = vmul.f32 %v371, %v431
      %v440 = vmul.f32 %v372, %v431
      %v441 = vmul.f32 %v373, %v431
      %v442 = vmul.f32 %v374, %v431
      %v443 = vmul.f32 %v375, %v431
      %v444 = vmul.f32 %v376, %v431
      %v445 = vmul.f32 %v377, %v431
      %v446 = vmul.f32 %v378, %v431
      %v447 = vmul.f32 %v379, %v431
      %v448 = vmul.f32 %v380, %v431
      %v449 = vmul.f32 %v381, %v431
      %v450 = vmul.f32 %v382, %v431
      %v451 = vmul.f32 %v383, %v431
      %v452 = vmul.f32 %v384, %v431
      %v453 = vmul.f32 %v385, %v431
      %v454 = vmul.f32 %v386, %v431
      %v455 = vmul.f32 %v387, %v431
      %v456 = vmul.f32 %v388, %v431
      %v457 = vmul.f32 %v389, %v431
      %v458 = vmul.f32 %v390, %v431
      %v459 = vmul.f32 %v391, %v431
      %v460 = vmul.f32 %v392, %v431
      %v461 = vmul.f32 %v393, %v431
      %v462 = vmul.f32 %v394, %v431
      %v463 = vmul.f32 %v395, %v431
      %v464 = vmul.f32 %v396, %v431
      %v465 = vmul.f32 %v397, %v431
      %v466 = vmul.f32 %v398, %v431
      %v467 = vmul.f32 %v399, %v431
      %v468 = vmul.f32 %v400, %v431
      %v469 = vmul.f32 %v401, %v431
      %v470 = vmul.f32 %v402, %v431
      %v471 = vmul.f32 %v403, %v431
      %v472 = vmul.f32 %v404, %v431
      %v473 = vmul.f32 %v405, %v431
      %v474 = vmul.f32 %v406, %v431
      %v475 = vmul.f32 %v407, %v431
      %v476 = vmul.f32 %v408, %v431
      %v477 = vmul.f32 %v409, %v431
      %v478 = vmul.f32 %v410, %v431
      %v479 = vmul.f32 %v411, %v431
      %v480 = vmul.f32 %v412, %v431
      %v481 = vmul.f32 %v413, %v431
      %v482 = vmul.f32 %v414, %v431
      %v483 = vmul.f32 %v415, %v431
      %v484 = vmul.f32 %v416, %v431
      %v485 = vmul.f32 %v417, %v431
      %v486 = vmul.f32 %v418, %v431
      %v487 = vmul.f32 %v419, %v431
      %v488 = vmul.f32 %v420, %v431
      %v489 = vmul.f32 %v421, %v431
      %v490 = vmul.f32 %v422, %v431
      %v491 = vmul.f32 %v423, %v431
      %v492 = vmul.f32 %v424, %v431
      %v493 = vmul.f32 %v425, %v431
      %v494 = vmul.f32 %v426, %v431
      %v495 = vmul.f32 %v427, %v431
      %v496 = vmul.f32 %v428, %v431
      %v497 = vld [vmem:[%s4] sm:$0x1]
      %v499 = vperm.slane %v497, 0
      %v501 = vadd.f32 %v433, %v499
      %v502 = vadd.f32 %v434, %v499
      %v503 = vadd.f32 %v435, %v499
      %v504 = vadd.f32 %v436, %v499
      %v505 = vadd.f32 %v437, %v499
      %v506 = vadd.f32 %v438, %v499
      %v507 = vadd.f32 %v439, %v499
      %v508 = vadd.f32 %v440, %v499
      %v509 = vadd.f32 %v441, %v499
      %v510 = vadd.f32 %v442, %v499
      %v511 = vadd.f32 %v443, %v499
      %v512 = vadd.f32 %v444, %v499
      %v513 = vadd.f32 %v445, %v499
      %v514 = vadd.f32 %v446, %v499
      %v515 = vadd.f32 %v447, %v499
      %v516 = vadd.f32 %v448, %v499
      %v517 = vadd.f32 %v449, %v499
      %v518 = vadd.f32 %v450, %v499
      %v519 = vadd.f32 %v451, %v499
      %v520 = vadd.f32 %v452, %v499
      %v521 = vadd.f32 %v453, %v499
      %v522 = vadd.f32 %v454, %v499
      %v523 = vadd.f32 %v455, %v499
      %v524 = vadd.f32 %v456, %v499
      %v525 = vadd.f32 %v457, %v499
      %v526 = vadd.f32 %v458, %v499
      %v527 = vadd.f32 %v459, %v499
      %v528 = vadd.f32 %v460, %v499
      %v529 = vadd.f32 %v461, %v499
      %v530 = vadd.f32 %v462, %v499
      %v531 = vadd.f32 %v463, %v499
      %v532 = vadd.f32 %v464, %v499
      %v533 = vadd.f32 %v465, %v499
      %v534 = vadd.f32 %v466, %v499
      %v535 = vadd.f32 %v467, %v499
      %v536 = vadd.f32 %v468, %v499
      %v537 = vadd.f32 %v469, %v499
      %v538 = vadd.f32 %v470, %v499
      %v539 = vadd.f32 %v471, %v499
      %v540 = vadd.f32 %v472, %v499
      %v541 = vadd.f32 %v473, %v499
      %v542 = vadd.f32 %v474, %v499
      %v543 = vadd.f32 %v475, %v499
      %v544 = vadd.f32 %v476, %v499
      %v545 = vadd.f32 %v477, %v499
      %v546 = vadd.f32 %v478, %v499
      %v547 = vadd.f32 %v479, %v499
      %v548 = vadd.f32 %v480, %v499
      %v549 = vadd.f32 %v481, %v499
      %v550 = vadd.f32 %v482, %v499
      %v551 = vadd.f32 %v483, %v499
      %v552 = vadd.f32 %v484, %v499
      %v553 = vadd.f32 %v485, %v499
      %v554 = vadd.f32 %v486, %v499
      %v555 = vadd.f32 %v487, %v499
      %v556 = vadd.f32 %v488, %v499
      %v557 = vadd.f32 %v489, %v499
      %v558 = vadd.f32 %v490, %v499
      %v559 = vadd.f32 %v491, %v499
      %v560 = vadd.f32 %v492, %v499
      %v561 = vadd.f32 %v493, %v499
      %v562 = vadd.f32 %v494, %v499
      %v563 = vadd.f32 %v495, %v499
      %v564 = vadd.f32 %v496, %v499
      %v565 = vmax.f32 %v501, 0.0
      %v566 = vmax.f32 %v502, 0.0
      %v567 = vmax.f32 %v503, 0.0
      %v568 = vmax.f32 %v504, 0.0
      %v569 = vmax.f32 %v505, 0.0
      %v570 = vmax.f32 %v506, 0.0
      %v571 = vmax.f32 %v507, 0.0
      %v572 = vmax.f32 %v508, 0.0
      %v573 = vmax.f32 %v509, 0.0
      %v574 = vmax.f32 %v510, 0.0
      %v575 = vmax.f32 %v511, 0.0
      %v576 = vmax.f32 %v512, 0.0
      %v577 = vmax.f32 %v513, 0.0
      %v578 = vmax.f32 %v514, 0.0
      %v579 = vmax.f32 %v515, 0.0
      %v580 = vmax.f32 %v516, 0.0
      %v581 = vmax.f32 %v517, 0.0
      %v582 = vmax.f32 %v518, 0.0
      %v583 = vmax.f32 %v519, 0.0
      %v584 = vmax.f32 %v520, 0.0
      %v585 = vmax.f32 %v521, 0.0
      %v586 = vmax.f32 %v522, 0.0
      %v587 = vmax.f32 %v523, 0.0
      %v588 = vmax.f32 %v524, 0.0
      %v589 = vmax.f32 %v525, 0.0
      %v590 = vmax.f32 %v526, 0.0
      %v591 = vmax.f32 %v527, 0.0
      %v592 = vmax.f32 %v528, 0.0
      %v593 = vmax.f32 %v529, 0.0
      %v594 = vmax.f32 %v530, 0.0
      %v595 = vmax.f32 %v531, 0.0
      %v596 = vmax.f32 %v532, 0.0
      %v597 = vmax.f32 %v533, 0.0
      %v598 = vmax.f32 %v534, 0.0
      %v599 = vmax.f32 %v535, 0.0
      %v600 = vmax.f32 %v536, 0.0
      %v601 = vmax.f32 %v537, 0.0
      %v602 = vmax.f32 %v538, 0.0
      %v603 = vmax.f32 %v539, 0.0
      %v604 = vmax.f32 %v540, 0.0
      %v605 = vmax.f32 %v541, 0.0
      %v606 = vmax.f32 %v542, 0.0
      %v607 = vmax.f32 %v543, 0.0
      %v608 = vmax.f32 %v544, 0.0
      %v609 = vmax.f32 %v545, 0.0
      %v610 = vmax.f32 %v546, 0.0
      %v611 = vmax.f32 %v547, 0.0
      %v612 = vmax.f32 %v548, 0.0
      %v613 = vmax.f32 %v549, 0.0
      %v614 = vmax.f32 %v550, 0.0
      %v615 = vmax.f32 %v551, 0.0
      %v616 = vmax.f32 %v552, 0.0
      %v617 = vmax.f32 %v553, 0.0
      %v618 = vmax.f32 %v554, 0.0
      %v619 = vmax.f32 %v555, 0.0
      %v620 = vmax.f32 %v556, 0.0
      %v621 = vmax.f32 %v557, 0.0
      %v622 = vmax.f32 %v558, 0.0
      %v623 = vmax.f32 %v559, 0.0
      %v624 = vmax.f32 %v560, 0.0
      %v625 = vmax.f32 %v561, 0.0
      %v626 = vmax.f32 %v562, 0.0
      %v627 = vmax.f32 %v563, 0.0
      %v628 = vmax.f32 %v564, 0.0
      %v629 = vpack.c.bf16 %v565, %v565
      %v630 = vpack.c.bf16 %v566, %v566
      %v631 = vpack.c.bf16 %v567, %v567
      %v632 = vpack.c.bf16 %v568, %v568
      %v633 = vpack.c.bf16 %v569, %v569
      %v634 = vpack.c.bf16 %v570, %v570
      %v635 = vpack.c.bf16 %v571, %v571
      %v636 = vpack.c.bf16 %v572, %v572
      %v637 = vpack.c.bf16 %v573, %v573
      %v638 = vpack.c.bf16 %v574, %v574
      %v639 = vpack.c.bf16 %v575, %v575
      %v640 = vpack.c.bf16 %v576, %v576
      %v641 = vpack.c.bf16 %v577, %v577
      %v642 = vpack.c.bf16 %v578, %v578
      %v643 = vpack.c.bf16 %v579, %v579
      %v644 = vpack.c.bf16 %v580, %v580
      %v645 = vpack.c.bf16 %v581, %v581
      %v646 = vpack.c.bf16 %v582, %v582
      %v647 = vpack.c.bf16 %v583, %v583
      %v648 = vpack.c.bf16 %v584, %v584
      %v649 = vpack.c.bf16 %v585, %v585
      %v650 = vpack.c.bf16 %v586, %v586
      %v651 = vpack.c.bf16 %v587, %v587
      %v652 = vpack.c.bf16 %v588, %v588
      %v653 = vpack.c.bf16 %v589, %v589
      %v654 = vpack.c.bf16 %v590, %v590
      %v655 = vpack.c.bf16 %v591, %v591
      %v656 = vpack.c.bf16 %v592, %v592
      %v657 = vpack.c.bf16 %v593, %v593
      %v658 = vpack.c.bf16 %v594, %v594
      %v659 = vpack.c.bf16 %v595, %v595
      %v660 = vpack.c.bf16 %v596, %v596
      %v661 = vpack.c.bf16 %v597, %v597
      %v662 = vpack.c.bf16 %v598, %v598
      %v663 = vpack.c.bf16 %v599, %v599
      %v664 = vpack.c.bf16 %v600, %v600
      %v665 = vpack.c.bf16 %v601, %v601
      %v666 = vpack.c.bf16 %v602, %v602
      %v667 = vpack.c.bf16 %v603, %v603
      %v668 = vpack.c.bf16 %v604, %v604
      %v669 = vpack.c.bf16 %v605, %v605
      %v670 = vpack.c.bf16 %v606, %v606
      %v671 = vpack.c.bf16 %v607, %v607
      %v672 = vpack.c.bf16 %v608, %v608
      %v673 = vpack.c.bf16 %v609, %v609
      %v674 = vpack.c.bf16 %v610, %v610
      %v675 = vpack.c.bf16 %v611, %v611
      %v676 = vpack.c.bf16 %v612, %v612
      %v677 = vpack.c.bf16 %v613, %v613
      %v678 = vpack.c.bf16 %v614, %v614
      %v679 = vpack.c.bf16 %v615, %v615
      %v680 = vpack.c.bf16 %v616, %v616
      %v681 = vpack.c.bf16 %v617, %v617
      %v682 = vpack.c.bf16 %v618, %v618
      %v683 = vpack.c.bf16 %v619, %v619
      %v684 = vpack.c.bf16 %v620, %v620
      %v685 = vpack.c.bf16 %v621, %v621
      %v686 = vpack.c.bf16 %v622, %v622
      %v687 = vpack.c.bf16 %v623, %v623
      %v688 = vpack.c.bf16 %v624, %v624
      %v689 = vpack.c.bf16 %v625, %v625
      %v690 = vpack.c.bf16 %v626, %v626
      %v691 = vpack.c.bf16 %v627, %v627
      %v692 = vpack.c.bf16 %v628, %v628
      %s693 = scalar_lea.vmem [#allocation2], 16
      %694 = vst [vmem:[%s693] sm:$0xf] %v629
      %695 = vst [vmem:[%s693 + $0x4] sm:$0xf] %v630
      %696 = vst [vmem:[%s693 + $0x8] sm:$0xf] %v631
      %697 = vst [vmem:[%s693 + $0xc] sm:$0xf] %v632
      %698 = vst [vmem:[%s693 + $0x10] sm:$0xf] %v633
      %699 = vst [vmem:[%s693 + $0x14] sm:$0xf] %v634
      %700 = vst [vmem:[%s693 + $0x18] sm:$0xf] %v635
      %701 = vst [vmem:[%s693 + $0x1c] sm:$0xf] %v636
      %702 = vst [vmem:[%s693 + $0x20] sm:$0xf] %v637
      %703 = vst [vmem:[%s693 + $0x24] sm:$0xf] %v638
      %704 = vst [vmem:[%s693 + $0x28] sm:$0xf] %v639
      %705 = vst [vmem:[%s693 + $0x2c] sm:$0xf] %v640
      %706 = vst [vmem:[%s693 + $0x30] sm:$0xf] %v641
      %707 = vst [vmem:[%s693 + $0x34] sm:$0xf] %v642
      %708 = vst [vmem:[%s693 + $0x38] sm:$0xf] %v643
      %709 = vst [vmem:[%s693 + $0x3c] sm:$0xf] %v644
      %710 = vst [vmem:[%s693 + $0x40] sm:$0xf] %v645
      %711 = vst [vmem:[%s693 + $0x44] sm:$0xf] %v646
      %712 = vst [vmem:[%s693 + $0x48] sm:$0xf] %v647
      %713 = vst [vmem:[%s693 + $0x4c] sm:$0xf] %v648
      %714 = vst [vmem:[%s693 + $0x50] sm:$0xf] %v649
      %715 = vst [vmem:[%s693 + $0x54] sm:$0xf] %v650
      %716 = vst [vmem:[%s693 + $0x58] sm:$0xf] %v651
      %717 = vst [vmem:[%s693 + $0x5c] sm:$0xf] %v652
      %718 = vst [vmem:[%s693 + $0x60] sm:$0xf] %v653
      %719 = vst [vmem:[%s693 + $0x64] sm:$0xf] %v654
      %720 = vst [vmem:[%s693 + $0x68] sm:$0xf] %v655
      %721 = vst [vmem:[%s693 + $0x6c] sm:$0xf] %v656
      %722 = vst [vmem:[%s693 + $0x70] sm:$0xf] %v657
      %723 = vst [vmem:[%s693 + $0x74] sm:$0xf] %v658
      %724 = vst [vmem:[%s693 + $0x78] sm:$0xf] %v659
      %725 = vst [vmem:[%s693 + $0x7c] sm:$0xf] %v660
      %726 = vst [vmem:[%s693 + $0x80] sm:$0xf] %v661
      %727 = vst [vmem:[%s693 + $0x84] sm:$0xf] %v662
      %728 = vst [vmem:[%s693 + $0x88] sm:$0xf] %v663
      %729 = vst [vmem:[%s693 + $0x8c] sm:$0xf] %v664
      %730 = vst [vmem:[%s693 + $0x90] sm:$0xf] %v665
      %731 = vst [vmem:[%s693 + $0x94] sm:$0xf] %v666
      %732 = vst [vmem:[%s693 + $0x98] sm:$0xf] %v667
      %733 = vst [vmem:[%s693 + $0x9c] sm:$0xf] %v668
      %734 = vst [vmem:[%s693 + $0xa0] sm:$0xf] %v669
      %735 = vst [vmem:[%s693 + $0xa4] sm:$0xf] %v670
      %736 = vst [vmem:[%s693 + $0xa8] sm:$0xf] %v671
      %737 = vst [vmem:[%s693 + $0xac] sm:$0xf] %v672
      %738 = vst [vmem:[%s693 + $0xb0] sm:$0xf] %v673
      %739 = vst [vmem:[%s693 + $0xb4] sm:$0xf] %v674
      %740 = vst [vmem:[%s693 + $0xb8] sm:$0xf] %v675
      %741 = vst [vmem:[%s693 + $0xbc] sm:$0xf] %v676
      %742 = vst [vmem:[%s693 + $0xc0] sm:$0xf] %v677
      %743 = vst [vmem:[%s693 + $0xc4] sm:$0xf] %v678
      %744 = vst [vmem:[%s693 + $0xc8] sm:$0xf] %v679
      %745 = vst [vmem:[%s693 + $0xcc] sm:$0xf] %v680
      %746 = vst [vmem:[%s693 + $0xd0] sm:$0xf] %v681
      %747 = vst [vmem:[%s693 + $0xd4] sm:$0xf] %v682
      %748 = vst [vmem:[%s693 + $0xd8] sm:$0xf] %v683
      %749 = vst [vmem:[%s693 + $0xdc] sm:$0xf] %v684
      %750 = vst [vmem:[%s693 + $0xe0] sm:$0xf] %v685
      %751 = vst [vmem:[%s693 + $0xe4] sm:$0xf] %v686
      %752 = vst [vmem:[%s693 + $0xe8] sm:$0xf] %v687
      %753 = vst [vmem:[%s693 + $0xec] sm:$0xf] %v688
      %754 = vst [vmem:[%s693 + $0xf0] sm:$0xf] %v689
      %755 = vst [vmem:[%s693 + $0xf4] sm:$0xf] %v690
      %756 = vst [vmem:[%s693 + $0xf8] sm:$0xf] %v691
      %757 = vst [vmem:[%s693 + $0xfc] sm:$0xf] %v692
      %v758 = vld [vmem:[%s343] sm:$0xf]
      %v759 = vld [vmem:[%s343 + $0x4] sm:$0xf]
      %v760 = vld [vmem:[%s343 + $0x8] sm:$0xf]
      %v761 = vld [vmem:[%s343 + $0xc] sm:$0xf]
      %762 = vst [vmem:[#allocation2] sm:$0xf] %v758
      %763 = vst [vmem:[#allocation2 + $0x4] sm:$0xf] %v759
      %764 = vst [vmem:[#allocation2 + $0x8] sm:$0xf] %v760
      %765 = vst [vmem:[#allocation2 + $0xc] sm:$0xf] %v761
      %v766 = vld [vmem:[%s352] sm:$0xf]
      %v767 = vld [vmem:[%s352 + $0x4] sm:$0xf]
      %v768 = vld [vmem:[%s352 + $0x8] sm:$0xf]
      %v769 = vld [vmem:[%s352 + $0xc] sm:$0xf]
      %s770 = scalar_lea.vmem [#allocation2], 272
      %771 = vst [vmem:[%s770] sm:$0xf] %v766
      %772 = vst [vmem:[%s770 + $0x4] sm:$0xf] %v767
      %773 = vst [vmem:[%s770 + $0x8] sm:$0xf] %v768
      %774 = vst [vmem:[%s770 + $0xc] sm:$0xf] %v769
      %v775 = vld [vmem:[#allocation2] sm:$0xf]
      %v776 = vld [vmem:[#allocation2 + $0x4] sm:$0xf]
      %v777 = vld [vmem:[#allocation2 + $0x8] sm:$0xf]
      %v778 = vld [vmem:[#allocation2 + $0xc] sm:$0xf]
      %v779 = vld [vmem:[#allocation2 + $0x10] sm:$0xf]
      %v780 = vld [vmem:[#allocation2 + $0x14] sm:$0xf]
      %v781 = vld [vmem:[#allocation2 + $0x18] sm:$0xf]
      %v782 = vld [vmem:[#allocation2 + $0x1c] sm:$0xf]
      %v783 = vld [vmem:[#allocation2 + $0x20] sm:$0xf]
      %v784 = vld [vmem:[#allocation2 + $0x24] sm:$0xf]
      %v785 = vld [vmem:[#allocation2 + $0x28] sm:$0xf]
      %v786 = vld [vmem:[#allocation2 + $0x2c] sm:$0xf]
      %v787 = vld [vmem:[#allocation2 + $0x30] sm:$0xf]
      %v788 = vld [vmem:[#allocation2 + $0x34] sm:$0xf]
      %v789 = vld [vmem:[#allocation2 + $0x38] sm:$0xf]
      %v790 = vld [vmem:[#allocation2 + $0x3c] sm:$0xf]
      %v791 = vld [vmem:[#allocation2 + $0x40] sm:$0xf]
      %v792 = vld [vmem:[#allocation2 + $0x44] sm:$0xf]
      %v793 = vld [vmem:[#allocation2 + $0x48] sm:$0xf]
      %v794 = vld [vmem:[#allocation2 + $0x4c] sm:$0xf]
      %v795 = vld [vmem:[#allocation2 + $0x50] sm:$0xf]
      %v796 = vld [vmem:[#allocation2 + $0x54] sm:$0xf]
      %v797 = vld [vmem:[#allocation2 + $0x58] sm:$0xf]
      %v798 = vld [vmem:[#allocation2 + $0x5c] sm:$0xf]
      %v799 = vld [vmem:[#allocation2 + $0x60] sm:$0xf]
      %v800 = vld [vmem:[#allocation2 + $0x64] sm:$0xf]
      %v801 = vld [vmem:[#allocation2 + $0x68] sm:$0xf]
      %v802 = vld [vmem:[#allocation2 + $0x6c] sm:$0xf]
      %v803 = vld [vmem:[#allocation2 + $0x70] sm:$0xf]
      %v804 = vld [vmem:[#allocation2 + $0x74] sm:$0xf]
      %v805 = vld [vmem:[#allocation2 + $0x78] sm:$0xf]
      %v806 = vld [vmem:[#allocation2 + $0x7c] sm:$0xf]
      %v807 = vld [vmem:[#allocation2 + $0x80] sm:$0xf]
      %v808 = vld [vmem:[#allocation2 + $0x84] sm:$0xf]
      %v809 = vld [vmem:[#allocation2 + $0x88] sm:$0xf]
      %v810 = vld [vmem:[#allocation2 + $0x8c] sm:$0xf]
      %v811 = vld [vmem:[#allocation2 + $0x90] sm:$0xf]
      %v812 = vld [vmem:[#allocation2 + $0x94] sm:$0xf]
      %v813 = vld [vmem:[#allocation2 + $0x98] sm:$0xf]
      %v814 = vld [vmem:[#allocation2 + $0x9c] sm:$0xf]
      %v815 = vld [vmem:[#allocation2 + $0xa0] sm:$0xf]
      %v816 = vld [vmem:[#allocation2 + $0xa4] sm:$0xf]
      %v817 = vld [vmem:[#allocation2 + $0xa8] sm:$0xf]
      %v818 = vld [vmem:[#allocation2 + $0xac] sm:$0xf]
      %v819 = vld [vmem:[#allocation2 + $0xb0] sm:$0xf]
      %v820 = vld [vmem:[#allocation2 + $0xb4] sm:$0xf]
      %v821 = vld [vmem:[#allocation2 + $0xb8] sm:$0xf]
      %v822 = vld [vmem:[#allocation2 + $0xbc] sm:$0xf]
      %v823 = vld [vmem:[#allocation2 + $0xc0] sm:$0xf]
      %v824 = vld [vmem:[#allocation2 + $0xc4] sm:$0xf]
      %v825 = vld [vmem:[#allocation2 + $0xc8] sm:$0xf]
      %v826 = vld [vmem:[#allocation2 + $0xcc] sm:$0xf]
      %v827 = vld [vmem:[#allocation2 + $0xd0] sm:$0xf]
      %v828 = vld [vmem:[#allocation2 + $0xd4] sm:$0xf]
      %v829 = vld [vmem:[#allocation2 + $0xd8] sm:$0xf]
      %v830 = vld [vmem:[#allocation2 + $0xdc] sm:$0xf]
      %v831 = vld [vmem:[#allocation2 + $0xe0] sm:$0xf]
      %v832 = vld [vmem:[#allocation2 + $0xe4] sm:$0xf]
      %v833 = vld [vmem:[#allocation2 + $0xe8] sm:$0xf]
      %v834 = vld [vmem:[#allocation2 + $0xec] sm:$0xf]
      %v835 = vld [vmem:[#allocation2 + $0xf0] sm:$0xf]
      %v836 = vld [vmem:[#allocation2 + $0xf4] sm:$0xf]
      %v837 = vld [vmem:[#allocation2 + $0xf8] sm:$0xf]
      %v838 = vld [vmem:[#allocation2 + $0xfc] sm:$0xf]
      %vm839 = vsmask.f32 256
      %vm840 = vsmask.f32 4368
      %vm841 = vmor %vm839, %vm840
      %v843 = vshrl.u32 %v775, 16
      %v845 = vrot.slane %v843, 7
      %v846 = vshll.u32 %v775, 16
      %v848 = vor.u32 %v845, %v846
      %v849 = vrot.slane %v845, 4
      %v851 = vshrl.u32 %v776, 16
      %v853 = vrot.slane %v851, 7
      %v854 = vshll.u32 %v776, 16
      %v856 = vor.u32 %v853, %v854
      %v857 = vsel %vm841, %v849, %v856
      %v858 = vrot.slane %v853, 4
      %v860 = vshrl.u32 %v777, 16
      %v862 = vrot.slane %v860, 7
      %v863 = vshll.u32 %v777, 16
      %v865 = vor.u32 %v862, %v863
      %v866 = vsel %vm841, %v858, %v865
      %v867 = vrot.slane %v862, 4
      %v869 = vshrl.u32 %v778, 16
      %v871 = vrot.slane %v869, 7
      %v872 = vshll.u32 %v778, 16
      %v874 = vor.u32 %v871, %v872
      %v875 = vsel %vm841, %v867, %v874
      %v877 = vshrl.u32 %v779, 16
      %v879 = vrot.slane %v877, 7
      %v880 = vshll.u32 %v779, 16
      %v882 = vor.u32 %v879, %v880
      %v883 = vrot.slane %v879, 4
      %v885 = vshrl.u32 %v780, 16
      %v887 = vrot.slane %v885, 7
      %v888 = vshll.u32 %v780, 16
      %v890 = vor.u32 %v887, %v888
      %v891 = vsel %vm841, %v883, %v890
      %v892 = vrot.slane %v887, 4
      %v894 = vshrl.u32 %v781, 16
      %v896 = vrot.slane %v894, 7
      %v897 = vshll.u32 %v781, 16
      %v899 = vor.u32 %v896, %v897
      %v900 = vsel %vm841, %v892, %v899
      %v901 = vrot.slane %v896, 4
      %v903 = vshrl.u32 %v782, 16
      %v905 = vrot.slane %v903, 7
      %v906 = vshll.u32 %v782, 16
      %v908 = vor.u32 %v905, %v906
      %v909 = vsel %vm841, %v901, %v908
      %v911 = vshrl.u32 %v783, 16
      %v913 = vrot.slane %v911, 7
      %v914 = vshll.u32 %v783, 16
      %v916 = vor.u32 %v913, %v914
      %v917 = vrot.slane %v913, 4
      %v919 = vshrl.u32 %v784, 16
      %v921 = vrot.slane %v919, 7
      %v922 = vshll.u32 %v784, 16
      %v924 = vor.u32 %v921, %v922
      %v925 = vsel %vm841, %v917, %v924
      %v926 = vrot.slane %v921, 4
      %v928 = vshrl.u32 %v785, 16
      %v930 = vrot.slane %v928, 7
      %v931 = vshll.u32 %v785, 16
      %v933 = vor.u32 %v930, %v931
      %v934 = vsel %vm841, %v926, %v933
      %v935 = vrot.slane %v930, 4
      %v937 = vshrl.u32 %v786, 16
      %v939 = vrot.slane %v937, 7
      %v940 = vshll.u32 %v786, 16
      %v942 = vor.u32 %v939, %v940
      %v943 = vsel %vm841, %v935, %v942
      %v945 = vshrl.u32 %v787, 16
      %v947 = vrot.slane %v945, 7
      %v948 = vshll.u32 %v787, 16
      %v950 = vor.u32 %v947, %v948
      %v951 = vrot.slane %v947, 4
      %v953 = vshrl.u32 %v788, 16
      %v955 = vrot.slane %v953, 7
      %v956 = vshll.u32 %v788, 16
      %v958 = vor.u32 %v955, %v956
      %v959 = vsel %vm841, %v951, %v958
      %v960 = vrot.slane %v955, 4
      %v962 = vshrl.u32 %v789, 16
      %v964 = vrot.slane %v962, 7
      %v965 = vshll.u32 %v789, 16
      %v967 = vor.u32 %v964, %v965
      %v968 = vsel %vm841, %v960, %v967
      %v969 = vrot.slane %v964, 4
      %v971 = vshrl.u32 %v790, 16
      %v973 = vrot.slane %v971, 7
      %v974 = vshll.u32 %v790, 16
      %v976 = vor.u32 %v973, %v974
      %v977 = vsel %vm841, %v969, %v976
      %v979 = vshrl.u32 %v791, 16
      %v981 = vrot.slane %v979, 7
      %v982 = vshll.u32 %v791, 16
      %v984 = vor.u32 %v981, %v982
      %v985 = vrot.slane %v981, 4
      %v987 = vshrl.u32 %v792, 16
      %v989 = vrot.slane %v987, 7
      %v990 = vshll.u32 %v792, 16
      %v992 = vor.u32 %v989, %v990
      %v993 = vsel %vm841, %v985, %v992
      %v994 = vrot.slane %v989, 4
      %v996 = vshrl.u32 %v793, 16
      %v998 = vrot.slane %v996, 7
      %v999 = vshll.u32 %v793, 16
      %v1001 = vor.u32 %v998, %v999
      %v1002 = vsel %vm841, %v994, %v1001
      %v1003 = vrot.slane %v998, 4
      %v1005 = vshrl.u32 %v794, 16
      %v1007 = vrot.slane %v1005, 7
      %v1008 = vshll.u32 %v794, 16
      %v1010 = vor.u32 %v1007, %v1008
      %v1011 = vsel %vm841, %v1003, %v1010
      %v1013 = vshrl.u32 %v795, 16
      %v1015 = vrot.slane %v1013, 7
      %v1016 = vshll.u32 %v795, 16
      %v1018 = vor.u32 %v1015, %v1016
      %v1019 = vrot.slane %v1015, 4
      %v1021 = vshrl.u32 %v796, 16
      %v1023 = vrot.slane %v1021, 7
      %v1024 = vshll.u32 %v796, 16
      %v1026 = vor.u32 %v1023, %v1024
      %v1027 = vsel %vm841, %v1019, %v1026
      %v1028 = vrot.slane %v1023, 4
      %v1030 = vshrl.u32 %v797, 16
      %v1032 = vrot.slane %v1030, 7
      %v1033 = vshll.u32 %v797, 16
      %v1035 = vor.u32 %v1032, %v1033
      %v1036 = vsel %vm841, %v1028, %v1035
      %v1037 = vrot.slane %v1032, 4
      %v1039 = vshrl.u32 %v798, 16
      %v1041 = vrot.slane %v1039, 7
      %v1042 = vshll.u32 %v798, 16
      %v1044 = vor.u32 %v1041, %v1042
      %v1045 = vsel %vm841, %v1037, %v1044
      %v1047 = vshrl.u32 %v799, 16
      %v1049 = vrot.slane %v1047, 7
      %v1050 = vshll.u32 %v799, 16
      %v1052 = vor.u32 %v1049, %v1050
      %v1053 = vrot.slane %v1049, 4
      %v1055 = vshrl.u32 %v800, 16
      %v1057 = vrot.slane %v1055, 7
      %v1058 = vshll.u32 %v800, 16
      %v1060 = vor.u32 %v1057, %v1058
      %v1061 = vsel %vm841, %v1053, %v1060
      %v1062 = vrot.slane %v1057, 4
      %v1064 = vshrl.u32 %v801, 16
      %v1066 = vrot.slane %v1064, 7
      %v1067 = vshll.u32 %v801, 16
      %v1069 = vor.u32 %v1066, %v1067
      %v1070 = vsel %vm841, %v1062, %v1069
      %v1071 = vrot.slane %v1066, 4
      %v1073 = vshrl.u32 %v802, 16
      %v1075 = vrot.slane %v1073, 7
      %v1076 = vshll.u32 %v802, 16
      %v1078 = vor.u32 %v1075, %v1076
      %v1079 = vsel %vm841, %v1071, %v1078
      %v1081 = vshrl.u32 %v803, 16
      %v1083 = vrot.slane %v1081, 7
      %v1084 = vshll.u32 %v803, 16
      %v1086 = vor.u32 %v1083, %v1084
      %v1087 = vrot.slane %v1083, 4
      %v1089 = vshrl.u32 %v804, 16
      %v1091 = vrot.slane %v1089, 7
      %v1092 = vshll.u32 %v804, 16
      %v1094 = vor.u32 %v1091, %v1092
      %v1095 = vsel %vm841, %v1087, %v1094
      %v1096 = vrot.slane %v1091, 4
      %v1098 = vshrl.u32 %v805, 16
      %v1100 = vrot.slane %v1098, 7
      %v1101 = vshll.u32 %v805, 16
      %v1103 = vor.u32 %v1100, %v1101
      %v1104 = vsel %vm841, %v1096, %v1103
      %v1105 = vrot.slane %v1100, 4
      %v1107 = vshrl.u32 %v806, 16
      %v1109 = vrot.slane %v1107, 7
      %v1110 = vshll.u32 %v806, 16
      %v1112 = vor.u32 %v1109, %v1110
      %v1113 = vsel %vm841, %v1105, %v1112
      %v1115 = vshrl.u32 %v807, 16
      %v1117 = vrot.slane %v1115, 7
      %v1118 = vshll.u32 %v807, 16
      %v1120 = vor.u32 %v1117, %v1118
      %v1121 = vrot.slane %v1117, 4
      %v1123 = vshrl.u32 %v808, 16
      %v1125 = vrot.slane %v1123, 7
      %v1126 = vshll.u32 %v808, 16
      %v1128 = vor.u32 %v1125, %v1126
      %v1129 = vsel %vm841, %v1121, %v1128
      %v1130 = vrot.slane %v1125, 4
      %v1132 = vshrl.u32 %v809, 16
      %v1134 = vrot.slane %v1132, 7
      %v1135 = vshll.u32 %v809, 16
      %v1137 = vor.u32 %v1134, %v1135
      %v1138 = vsel %vm841, %v1130, %v1137
      %v1139 = vrot.slane %v1134, 4
      %v1141 = vshrl.u32 %v810, 16
      %v1143 = vrot.slane %v1141, 7
      %v1144 = vshll.u32 %v810, 16
      %v1146 = vor.u32 %v1143, %v1144
      %v1147 = vsel %vm841, %v1139, %v1146
      %v1149 = vshrl.u32 %v811, 16
      %v1151 = vrot.slane %v1149, 7
      %v1152 = vshll.u32 %v811, 16
      %v1154 = vor.u32 %v1151, %v1152
      %v1155 = vrot.slane %v1151, 4
      %v1157 = vshrl.u32 %v812, 16
      %v1159 = vrot.slane %v1157, 7
      %v1160 = vshll.u32 %v812, 16
      %v1162 = vor.u32 %v1159, %v1160
      %v1163 = vsel %vm841, %v1155, %v1162
      %v1164 = vrot.slane %v1159, 4
      %v1166 = vshrl.u32 %v813, 16
      %v1168 = vrot.slane %v1166, 7
      %v1169 = vshll.u32 %v813, 16
      %v1171 = vor.u32 %v1168, %v1169
      %v1172 = vsel %vm841, %v1164, %v1171
      %v1173 = vrot.slane %v1168, 4
      %v1175 = vshrl.u32 %v814, 16
      %v1177 = vrot.slane %v1175, 7
      %v1178 = vshll.u32 %v814, 16
      %v1180 = vor.u32 %v1177, %v1178
      %v1181 = vsel %vm841, %v1173, %v1180
      %v1183 = vshrl.u32 %v815, 16
      %v1185 = vrot.slane %v1183, 7
      %v1186 = vshll.u32 %v815, 16
      %v1188 = vor.u32 %v1185, %v1186
      %v1189 = vrot.slane %v1185, 4
      %v1191 = vshrl.u32 %v816, 16
      %v1193 = vrot.slane %v1191, 7
      %v1194 = vshll.u32 %v816, 16
      %v1196 = vor.u32 %v1193, %v1194
      %v1197 = vsel %vm841, %v1189, %v1196
      %v1198 = vrot.slane %v1193, 4
      %v1200 = vshrl.u32 %v817, 16
      %v1202 = vrot.slane %v1200, 7
      %v1203 = vshll.u32 %v817, 16
      %v1205 = vor.u32 %v1202, %v1203
      %v1206 = vsel %vm841, %v1198, %v1205
      %v1207 = vrot.slane %v1202, 4
      %v1209 = vshrl.u32 %v818, 16
      %v1211 = vrot.slane %v1209, 7
      %v1212 = vshll.u32 %v818, 16
      %v1214 = vor.u32 %v1211, %v1212
      %v1215 = vsel %vm841, %v1207, %v1214
      %v1217 = vshrl.u32 %v819, 16
      %v1219 = vrot.slane %v1217, 7
      %v1220 = vshll.u32 %v819, 16
      %v1222 = vor.u32 %v1219, %v1220
      %v1223 = vrot.slane %v1219, 4
      %v1225 = vshrl.u32 %v820, 16
      %v1227 = vrot.slane %v1225, 7
      %v1228 = vshll.u32 %v820, 16
      %v1230 = vor.u32 %v1227, %v1228
      %v1231 = vsel %vm841, %v1223, %v1230
      %v1232 = vrot.slane %v1227, 4
      %v1234 = vshrl.u32 %v821, 16
      %v1236 = vrot.slane %v1234, 7
      %v1237 = vshll.u32 %v821, 16
      %v1239 = vor.u32 %v1236, %v1237
      %v1240 = vsel %vm841, %v1232, %v1239
      %v1241 = vrot.slane %v1236, 4
      %v1243 = vshrl.u32 %v822, 16
      %v1245 = vrot.slane %v1243, 7
      %v1246 = vshll.u32 %v822, 16
      %v1248 = vor.u32 %v1245, %v1246
      %v1249 = vsel %vm841, %v1241, %v1248
      %v1251 = vshrl.u32 %v823, 16
      %v1253 = vrot.slane %v1251, 7
      %v1254 = vshll.u32 %v823, 16
      %v1256 = vor.u32 %v1253, %v1254
      %v1257 = vrot.slane %v1253, 4
      %v1259 = vshrl.u32 %v824, 16
      %v1261 = vrot.slane %v1259, 7
      %v1262 = vshll.u32 %v824, 16
      %v1264 = vor.u32 %v1261, %v1262
      %v1265 = vsel %vm841, %v1257, %v1264
      %v1266 = vrot.slane %v1261, 4
      %v1268 = vshrl.u32 %v825, 16
      %v1270 = vrot.slane %v1268, 7
      %v1271 = vshll.u32 %v825, 16
      %v1273 = vor.u32 %v1270, %v1271
      %v1274 = vsel %vm841, %v1266, %v1273
      %v1275 = vrot.slane %v1270, 4
      %v1277 = vshrl.u32 %v826, 16
      %v1279 = vrot.slane %v1277, 7
      %v1280 = vshll.u32 %v826, 16
      %v1282 = vor.u32 %v1279, %v1280
      %v1283 = vsel %vm841, %v1275, %v1282
      %v1285 = vshrl.u32 %v827, 16
      %v1287 = vrot.slane %v1285, 7
      %v1288 = vshll.u32 %v827, 16
      %v1290 = vor.u32 %v1287, %v1288
      %v1291 = vrot.slane %v1287, 4
      %v1293 = vshrl.u32 %v828, 16
      %v1295 = vrot.slane %v1293, 7
      %v1296 = vshll.u32 %v828, 16
      %v1298 = vor.u32 %v1295, %v1296
      %v1299 = vsel %vm841, %v1291, %v1298
      %v1300 = vrot.slane %v1295, 4
      %v1302 = vshrl.u32 %v829, 16
      %v1304 = vrot.slane %v1302, 7
      %v1305 = vshll.u32 %v829, 16
      %v1307 = vor.u32 %v1304, %v1305
      %v1308 = vsel %vm841, %v1300, %v1307
      %v1309 = vrot.slane %v1304, 4
      %v1311 = vshrl.u32 %v830, 16
      %v1313 = vrot.slane %v1311, 7
      %v1314 = vshll.u32 %v830, 16
      %v1316 = vor.u32 %v1313, %v1314
      %v1317 = vsel %vm841, %v1309, %v1316
      %v1319 = vshrl.u32 %v831, 16
      %v1321 = vrot.slane %v1319, 7
      %v1322 = vshll.u32 %v831, 16
      %v1324 = vor.u32 %v1321, %v1322
      %v1325 = vrot.slane %v1321, 4
      %v1327 = vshrl.u32 %v832, 16
      %v1329 = vrot.slane %v1327, 7
      %v1330 = vshll.u32 %v832, 16
      %v1332 = vor.u32 %v1329, %v1330
      %v1333 = vsel %vm841, %v1325, %v1332
      %v1334 = vrot.slane %v1329, 4
      %v1336 = vshrl.u32 %v833, 16
      %v1338 = vrot.slane %v1336, 7
      %v1339 = vshll.u32 %v833, 16
      %v1341 = vor.u32 %v1338, %v1339
      %v1342 = vsel %vm841, %v1334, %v1341
      %v1343 = vrot.slane %v1338, 4
      %v1345 = vshrl.u32 %v834, 16
      %v1347 = vrot.slane %v1345, 7
      %v1348 = vshll.u32 %v834, 16
      %v1350 = vor.u32 %v1347, %v1348
      %v1351 = vsel %vm841, %v1343, %v1350
      %v1353 = vshrl.u32 %v835, 16
      %v1355 = vrot.slane %v1353, 7
      %v1356 = vshll.u32 %v835, 16
      %v1358 = vor.u32 %v1355, %v1356
      %v1359 = vrot.slane %v1355, 4
      %v1361 = vshrl.u32 %v836, 16
      %v1363 = vrot.slane %v1361, 7
      %v1364 = vshll.u32 %v836, 16
      %v1366 = vor.u32 %v1363, %v1364
      %v1367 = vsel %vm841, %v1359, %v1366
      %v1368 = vrot.slane %v1363, 4
      %v1370 = vshrl.u32 %v837, 16
      %v1372 = vrot.slane %v1370, 7
      %v1373 = vshll.u32 %v837, 16
      %v1375 = vor.u32 %v1372, %v1373
      %v1376 = vsel %vm841, %v1368, %v1375
      %v1377 = vrot.slane %v1372, 4
      %v1379 = vshrl.u32 %v838, 16
      %v1381 = vrot.slane %v1379, 7
      %v1382 = vshll.u32 %v838, 16
      %v1384 = vor.u32 %v1381, %v1382
      %v1385 = vsel %vm841, %v1377, %v1384
      %vm1450 = vcmask 1043456
      %vm1451 = vsmask.f32 7938
      %vm1452 = vmand %vm1450, %vm1451
      %v1453 = vld [vmem:[#allocation3] sm:$0xf]
      %v1454 = vsel %vm1452, %v848, %v1453
      %1455 = vst [vmem:[#allocation3] sm:$0xf] %v1454
      %1456 = vst [vmem:[#allocation3 + $0x24] sm:$0xf] %v857
      %1457 = vst [vmem:[#allocation3 + $0x48] sm:$0xf] %v866
      %1458 = vst [vmem:[#allocation3 + $0x6c] sm:$0xf] %v875
      %v1459 = vld [vmem:[#allocation3 + $0x90] sm:$0xf]
      %v1460 = vsel %vm1452, %v882, %v1459
      %1461 = vst [vmem:[#allocation3 + $0x90] sm:$0xf] %v1460
      %1462 = vst [vmem:[#allocation3 + $0xb4] sm:$0xf] %v891
      %1463 = vst [vmem:[#allocation3 + $0xd8] sm:$0xf] %v900
      %1464 = vst [vmem:[#allocation3 + $0xfc] sm:$0xf] %v909
      %v1465 = vld [vmem:[#allocation3 + $0x120] sm:$0xf]
      %v1466 = vsel %vm1452, %v916, %v1465
      %1467 = vst [vmem:[#allocation3 + $0x120] sm:$0xf] %v1466
      %1468 = vst [vmem:[#allocation3 + $0x144] sm:$0xf] %v925
      %1469 = vst [vmem:[#allocation3 + $0x168] sm:$0xf] %v934
      %1470 = vst [vmem:[#allocation3 + $0x18c] sm:$0xf] %v943
      %v1471 = vld [vmem:[#allocation3 + $0x1b0] sm:$0xf]
      %v1472 = vsel %vm1452, %v950, %v1471
      %1473 = vst [vmem:[#allocation3 + $0x1b0] sm:$0xf] %v1472
      %1474 = vst [vmem:[#allocation3 + $0x1d4] sm:$0xf] %v959
      %1475 = vst [vmem:[#allocation3 + $0x1f8] sm:$0xf] %v968
      %1476 = vst [vmem:[#allocation3 + $0x21c] sm:$0xf] %v977
      %v1477 = vld [vmem:[#allocation3 + $0x240] sm:$0xf]
      %v1478 = vsel %vm1452, %v984, %v1477
      %1479 = vst [vmem:[#allocation3 + $0x240] sm:$0xf] %v1478
      %1480 = vst [vmem:[#allocation3 + $0x264] sm:$0xf] %v993
      %1481 = vst [vmem:[#allocation3 + $0x288] sm:$0xf] %v1002
      %1482 = vst [vmem:[#allocation3 + $0x2ac] sm:$0xf] %v1011
      %v1483 = vld [vmem:[#allocation3 + $0x2d0] sm:$0xf]
      %v1484 = vsel %vm1452, %v1018, %v1483
      %1485 = vst [vmem:[#allocation3 + $0x2d0] sm:$0xf] %v1484
      %1486 = vst [vmem:[#allocation3 + $0x2f4] sm:$0xf] %v1027
      %1487 = vst [vmem:[#allocation3 + $0x318] sm:$0xf] %v1036
      %1488 = vst [vmem:[#allocation3 + $0x33c] sm:$0xf] %v1045
      %v1489 = vld [vmem:[#allocation3 + $0x360] sm:$0xf]
      %v1490 = vsel %vm1452, %v1052, %v1489
      %1491 = vst [vmem:[#allocation3 + $0x360] sm:$0xf] %v1490
      %1492 = vst [vmem:[#allocation3 + $0x384] sm:$0xf] %v1061
      %1493 = vst [vmem:[#allocation3 + $0x3a8] sm:$0xf] %v1070
      %1494 = vst [vmem:[#allocation3 + $0x3cc] sm:$0xf] %v1079
      %v1495 = vld [vmem:[#allocation3 + $0x3f0] sm:$0xf]
      %v1496 = vsel %vm1452, %v1086, %v1495
      %1497 = vst [vmem:[#allocation3 + $0x3f0] sm:$0xf] %v1496
      %1498 = vst [vmem:[#allocation3 + $0x414] sm:$0xf] %v1095
      %1499 = vst [vmem:[#allocation3 + $0x438] sm:$0xf] %v1104
      %1500 = vst [vmem:[#allocation3 + $0x45c] sm:$0xf] %v1113
      %v1501 = vld [vmem:[#allocation3 + $0x480] sm:$0xf]
      %v1502 = vsel %vm1452, %v1120, %v1501
      %1503 = vst [vmem:[#allocation3 + $0x480] sm:$0xf] %v1502
      %1504 = vst [vmem:[#allocation3 + $0x4a4] sm:$0xf] %v1129
      %1505 = vst [vmem:[#allocation3 + $0x4c8] sm:$0xf] %v1138
      %1506 = vst [vmem:[#allocation3 + $0x4ec] sm:$0xf] %v1147
      %v1507 = vld [vmem:[#allocation3 + $0x510] sm:$0xf]
      %v1508 = vsel %vm1452, %v1154, %v1507
      %1509 = vst [vmem:[#allocation3 + $0x510] sm:$0xf] %v1508
      %1510 = vst [vmem:[#allocation3 + $0x534] sm:$0xf] %v1163
      %1511 = vst [vmem:[#allocation3 + $0x558] sm:$0xf] %v1172
      %1512 = vst [vmem:[#allocation3 + $0x57c] sm:$0xf] %v1181
      %v1513 = vld [vmem:[#allocation3 + $0x5a0] sm:$0xf]
      %v1514 = vsel %vm1452, %v1188, %v1513
      %1515 = vst [vmem:[#allocation3 + $0x5a0] sm:$0xf] %v1514
      %1516 = vst [vmem:[#allocation3 + $0x5c4] sm:$0xf] %v1197
      %1517 = vst [vmem:[#allocation3 + $0x5e8] sm:$0xf] %v1206
      %1518 = vst [vmem:[#allocation3 + $0x60c] sm:$0xf] %v1215
      %v1519 = vld [vmem:[#allocation3 + $0x630] sm:$0xf]
      %v1520 = vsel %vm1452, %v1222, %v1519
      %1521 = vst [vmem:[#allocation3 + $0x630] sm:$0xf] %v1520
      %1522 = vst [vmem:[#allocation3 + $0x654] sm:$0xf] %v1231
      %1523 = vst [vmem:[#allocation3 + $0x678] sm:$0xf] %v1240
      %1524 = vst [vmem:[#allocation3 + $0x69c] sm:$0xf] %v1249
      %v1525 = vld [vmem:[#allocation3 + $0x6c0] sm:$0xf]
      %v1526 = vsel %vm1452, %v1256, %v1525
      %1527 = vst [vmem:[#allocation3 + $0x6c0] sm:$0xf] %v1526
      %1528 = vst [vmem:[#allocation3 + $0x6e4] sm:$0xf] %v1265
      %1529 = vst [vmem:[#allocation3 + $0x708] sm:$0xf] %v1274
      %1530 = vst [vmem:[#allocation3 + $0x72c] sm:$0xf] %v1283
      %v1531 = vld [vmem:[#allocation3 + $0x750] sm:$0xf]
      %v1532 = vsel %vm1452, %v1290, %v1531
      %1533 = vst [vmem:[#allocation3 + $0x750] sm:$0xf] %v1532
      %1534 = vst [vmem:[#allocation3 + $0x774] sm:$0xf] %v1299
      %1535 = vst [vmem:[#allocation3 + $0x798] sm:$0xf] %v1308
      %1536 = vst [vmem:[#allocation3 + $0x7bc] sm:$0xf] %v1317
      %v1537 = vld [vmem:[#allocation3 + $0x7e0] sm:$0xf]
      %v1538 = vsel %vm1452, %v1324, %v1537
      %1539 = vst [vmem:[#allocation3 + $0x7e0] sm:$0xf] %v1538
      %1540 = vst [vmem:[#allocation3 + $0x804] sm:$0xf] %v1333
      %1541 = vst [vmem:[#allocation3 + $0x828] sm:$0xf] %v1342
      %1542 = vst [vmem:[#allocation3 + $0x84c] sm:$0xf] %v1351
      %v1543 = vld [vmem:[#allocation3 + $0x870] sm:$0xf]
      %v1544 = vsel %vm1452, %v1358, %v1543
      %1545 = vst [vmem:[#allocation3 + $0x870] sm:$0xf] %v1544
      %1546 = vst [vmem:[#allocation3 + $0x894] sm:$0xf] %v1367
      %1547 = vst [vmem:[#allocation3 + $0x8b8] sm:$0xf] %v1376
      %1548 = vst [vmem:[#allocation3 + $0x8dc] sm:$0xf] %v1385
      %vm1549 = vcmask 1040384
      %vm1550 = vmand %vm1549, %vm839
      %v1551 = vld [vmem:[#allocation3] sm:$0x1]
      %v1552 = vsel %vm1550, 0, %v1551
      %1553 = vst [vmem:[#allocation3] sm:$0x1] %v1552
      %v1554 = vld [vmem:[#allocation3 + $0x90] sm:$0x1]
      %v1555 = vsel %vm1550, 0, %v1554
      %1556 = vst [vmem:[#allocation3 + $0x90] sm:$0x1] %v1555
      %v1557 = vld [vmem:[#allocation3 + $0x120] sm:$0x1]
      %v1558 = vsel %vm1550, 0, %v1557
      %1559 = vst [vmem:[#allocation3 + $0x120] sm:$0x1] %v1558
      %v1560 = vld [vmem:[#allocation3 + $0x1b0] sm:$0x1]
      %v1561 = vsel %vm1550, 0, %v1560
      %1562 = vst [vmem:[#allocation3 + $0x1b0] sm:$0x1] %v1561
      %v1563 = vld [vmem:[#allocation3 + $0x240] sm:$0x1]
      %v1564 = vsel %vm1550, 0, %v1563
      %1565 = vst [vmem:[#allocation3 + $0x240] sm:$0x1] %v1564
      %v1566 = vld [vmem:[#allocation3 + $0x2d0] sm:$0x1]
      %v1567 = vsel %vm1550, 0, %v1566
      %1568 = vst [vmem:[#allocation3 + $0x2d0] sm:$0x1] %v1567
      %v1569 = vld [vmem:[#allocation3 + $0x360] sm:$0x1]
      %v1570 = vsel %vm1550, 0, %v1569
      %1571 = vst [vmem:[#allocation3 + $0x360] sm:$0x1] %v1570
      %v1572 = vld [vmem:[#allocation3 + $0x3f0] sm:$0x1]
      %v1573 = vsel %vm1550, 0, %v1572
      %1574 = vst [vmem:[#allocation3 + $0x3f0] sm:$0x1] %v1573
      %v1575 = vld [vmem:[#allocation3 + $0x480] sm:$0x1]
      %v1576 = vsel %vm1550, 0, %v1575
      %1577 = vst [vmem:[#allocation3 + $0x480] sm:$0x1] %v1576
      %v1578 = vld [vmem:[#allocation3 + $0x510] sm:$0x1]
      %v1579 = vsel %vm1550, 0, %v1578
      %1580 = vst [vmem:[#allocation3 + $0x510] sm:$0x1] %v1579
      %v1581 = vld [vmem:[#allocation3 + $0x5a0] sm:$0x1]
      %v1582 = vsel %vm1550, 0, %v1581
      %1583 = vst [vmem:[#allocation3 + $0x5a0] sm:$0x1] %v1582
      %v1584 = vld [vmem:[#allocation3 + $0x630] sm:$0x1]
      %v1585 = vsel %vm1550, 0, %v1584
      %1586 = vst [vmem:[#allocation3 + $0x630] sm:$0x1] %v1585
      %v1587 = vld [vmem:[#allocation3 + $0x6c0] sm:$0x1]
      %v1588 = vsel %vm1550, 0, %v1587
      %1589 = vst [vmem:[#allocation3 + $0x6c0] sm:$0x1] %v1588
      %v1590 = vld [vmem:[#allocation3 + $0x750] sm:$0x1]
      %v1591 = vsel %vm1550, 0, %v1590
      %1592 = vst [vmem:[#allocation3 + $0x750] sm:$0x1] %v1591
      %v1593 = vld [vmem:[#allocation3 + $0x7e0] sm:$0x1]
      %v1594 = vsel %vm1550, 0, %v1593
      %1595 = vst [vmem:[#allocation3 + $0x7e0] sm:$0x1] %v1594
      %v1596 = vld [vmem:[#allocation3 + $0x870] sm:$0x1]
      %v1597 = vsel %vm1550, 0, %v1596
      %1598 = vst [vmem:[#allocation3 + $0x870] sm:$0x1] %v1597
      %1599 = vst [vmem:[#allocation3 + $0x4] sm:$0xf] %v775
      %1600 = vst [vmem:[#allocation3 + $0x28] sm:$0xf] %v776
      %1601 = vst [vmem:[#allocation3 + $0x4c] sm:$0xf] %v777
      %1602 = vst [vmem:[#allocation3 + $0x70] sm:$0xf] %v778
      %1603 = vst [vmem:[#allocation3 + $0x94] sm:$0xf] %v779
      %1604 = vst [vmem:[#allocation3 + $0xb8] sm:$0xf] %v780
      %1605 = vst [vmem:[#allocation3 + $0xdc] sm:$0xf] %v781
      %1606 = vst [vmem:[#allocation3 + $0x100] sm:$0xf] %v782
      %1607 = vst [vmem:[#allocation3 + $0x124] sm:$0xf] %v783
      %1608 = vst [vmem:[#allocation3 + $0x148] sm:$0xf] %v784
      %1609 = vst [vmem:[#allocation3 + $0x16c] sm:$0xf] %v785
      %1610 = vst [vmem:[#allocation3 + $0x190] sm:$0xf] %v786
      %1611 = vst [vmem:[#allocation3 + $0x1b4] sm:$0xf] %v787
      %1612 = vst [vmem:[#allocation3 + $0x1d8] sm:$0xf] %v788
      %1613 = vst [vmem:[#allocation3 + $0x1fc] sm:$0xf] %v789
      %1614 = vst [vmem:[#allocation3 + $0x220] sm:$0xf] %v790
      %1615 = vst [vmem:[#allocation3 + $0x244] sm:$0xf] %v791
      %1616 = vst [vmem:[#allocation3 + $0x268] sm:$0xf] %v792
      %1617 = vst [vmem:[#allocation3 + $0x28c] sm:$0xf] %v793
      %1618 = vst [vmem:[#allocation3 + $0x2b0] sm:$0xf] %v794
      %1619 = vst [vmem:[#allocation3 + $0x2d4] sm:$0xf] %v795
      %1620 = vst [vmem:[#allocation3 + $0x2f8] sm:$0xf] %v796
      %1621 = vst [vmem:[#allocation3 + $0x31c] sm:$0xf] %v797
      %1622 = vst [vmem:[#allocation3 + $0x340] sm:$0xf] %v798
      %1623 = vst [vmem:[#allocation3 + $0x364] sm:$0xf] %v799
      %1624 = vst [vmem:[#allocation3 + $0x388] sm:$0xf] %v800
      %1625 = vst [vmem:[#allocation3 + $0x3ac] sm:$0xf] %v801
      %1626 = vst [vmem:[#allocation3 + $0x3d0] sm:$0xf] %v802
      %1627 = vst [vmem:[#allocation3 + $0x3f4] sm:$0xf] %v803
      %1628 = vst [vmem:[#allocation3 + $0x418] sm:$0xf] %v804
      %1629 = vst [vmem:[#allocation3 + $0x43c] sm:$0xf] %v805
      %1630 = vst [vmem:[#allocation3 + $0x460] sm:$0xf] %v806
      %1631 = vst [vmem:[#allocation3 + $0x484] sm:$0xf] %v807
      %1632 = vst [vmem:[#allocation3 + $0x4a8] sm:$0xf] %v808
      %1633 = vst [vmem:[#allocation3 + $0x4cc] sm:$0xf] %v809
      %1634 = vst [vmem:[#allocation3 + $0x4f0] sm:$0xf] %v810
      %1635 = vst [vmem:[#allocation3 + $0x514] sm:$0xf] %v811
      %1636 = vst [vmem:[#allocation3 + $0x538] sm:$0xf] %v812
      %1637 = vst [vmem:[#allocation3 + $0x55c] sm:$0xf] %v813
      %1638 = vst [vmem:[#allocation3 + $0x580] sm:$0xf] %v814
      %1639 = vst [vmem:[#allocation3 + $0x5a4] sm:$0xf] %v815
      %1640 = vst [vmem:[#allocation3 + $0x5c8] sm:$0xf] %v816
      %1641 = vst [vmem:[#allocation3 + $0x5ec] sm:$0xf] %v817
      %1642 = vst [vmem:[#allocation3 + $0x610] sm:$0xf] %v818
      %1643 = vst [vmem:[#allocation3 + $0x634] sm:$0xf] %v819
      %1644 = vst [vmem:[#allocation3 + $0x658] sm:$0xf] %v820
      %1645 = vst [vmem:[#allocation3 + $0x67c] sm:$0xf] %v821
      %1646 = vst [vmem:[#allocation3 + $0x6a0] sm:$0xf] %v822
      %1647 = vst [vmem:[#allocation3 + $0x6c4] sm:$0xf] %v823
      %1648 = vst [vmem:[#allocation3 + $0x6e8] sm:$0xf] %v824
      %1649 = vst [vmem:[#allocation3 + $0x70c] sm:$0xf] %v825
      %1650 = vst [vmem:[#allocation3 + $0x730] sm:$0xf] %v826
      %1651 = vst [vmem:[#allocation3 + $0x754] sm:$0xf] %v827
      %1652 = vst [vmem:[#allocation3 + $0x778] sm:$0xf] %v828
      %1653 = vst [vmem:[#allocation3 + $0x79c] sm:$0xf] %v829
      %1654 = vst [vmem:[#allocation3 + $0x7c0] sm:$0xf] %v830
      %1655 = vst [vmem:[#allocation3 + $0x7e4] sm:$0xf] %v831
      %1656 = vst [vmem:[#allocation3 + $0x808] sm:$0xf] %v832
      %1657 = vst [vmem:[#allocation3 + $0x82c] sm:$0xf] %v833
      %1658 = vst [vmem:[#allocation3 + $0x850] sm:$0xf] %v834
      %1659 = vst [vmem:[#allocation3 + $0x874] sm:$0xf] %v835
      %1660 = vst [vmem:[#allocation3 + $0x898] sm:$0xf] %v836
      %1661 = vst [vmem:[#allocation3 + $0x8bc] sm:$0xf] %v837
      %1662 = vst [vmem:[#allocation3 + $0x8e0] sm:$0xf] %v838
      %vm1663 = vsmask.f32 3328
      %vm1664 = vsmask.f32 7440
      %vm1665 = vmor %vm1663, %vm1664
      %v1666 = vrot.slane %v843, 4
      %v1667 = vrot.slane %v846, 5
      %v1668 = vor.u32 %v1666, %v1667
      %v1669 = vrot.slane %v1668, 4
      %v1670 = vrot.slane %v854, 5
      %v1671 = vsel %vm1665, %v1669, %v1670
      %v1672 = vrot.slane %v851, 4
      %v1673 = vor.u32 %v1672, %v1670
      %v1674 = vrot.slane %v1673, 4
      %v1675 = vrot.slane %v863, 5
      %v1676 = vsel %vm1665, %v1674, %v1675
      %v1677 = vrot.slane %v860, 4
      %v1678 = vor.u32 %v1677, %v1675
      %v1679 = vrot.slane %v1678, 4
      %v1680 = vrot.slane %v872, 5
      %v1681 = vsel %vm1665, %v1679, %v1680
      %v1682 = vrot.slane %v869, 4
      %v1683 = vor.u32 %v1682, %v1680
      %v1684 = vrot.slane %v1683, 4
      %v1685 = vrot.slane %v877, 4
      %v1686 = vrot.slane %v880, 5
      %v1687 = vor.u32 %v1685, %v1686
      %v1688 = vrot.slane %v1687, 4
      %v1689 = vrot.slane %v888, 5
      %v1690 = vsel %vm1665, %v1688, %v1689
      %v1691 = vrot.slane %v885, 4
      %v1692 = vor.u32 %v1691, %v1689
      %v1693 = vrot.slane %v1692, 4
      %v1694 = vrot.slane %v897, 5
      %v1695 = vsel %vm1665, %v1693, %v1694
      %v1696 = vrot.slane %v894, 4
      %v1697 = vor.u32 %v1696, %v1694
      %v1698 = vrot.slane %v1697, 4
      %v1699 = vrot.slane %v906, 5
      %v1700 = vsel %vm1665, %v1698, %v1699
      %v1701 = vrot.slane %v903, 4
      %v1702 = vor.u32 %v1701, %v1699
      %v1703 = vrot.slane %v1702, 4
      %v1704 = vrot.slane %v911, 4
      %v1705 = vrot.slane %v914, 5
      %v1706 = vor.u32 %v1704, %v1705
      %v1707 = vrot.slane %v1706, 4
      %v1708 = vrot.slane %v922, 5
      %v1709 = vsel %vm1665, %v1707, %v1708
      %v1710 = vrot.slane %v919, 4
      %v1711 = vor.u32 %v1710, %v1708
      %v1712 = vrot.slane %v1711, 4
      %v1713 = vrot.slane %v931, 5
      %v1714 = vsel %vm1665, %v1712, %v1713
      %v1715 = vrot.slane %v928, 4
      %v1716 = vor.u32 %v1715, %v1713
      %v1717 = vrot.slane %v1716, 4
      %v1718 = vrot.slane %v940, 5
      %v1719 = vsel %vm1665, %v1717, %v1718
      %v1720 = vrot.slane %v937, 4
      %v1721 = vor.u32 %v1720, %v1718
      %v1722 = vrot.slane %v1721, 4
      %v1723 = vrot.slane %v945, 4
      %v1724 = vrot.slane %v948, 5
      %v1725 = vor.u32 %v1723, %v1724
      %v1726 = vrot.slane %v1725, 4
      %v1727 = vrot.slane %v956, 5
      %v1728 = vsel %vm1665, %v1726, %v1727
      %v1729 = vrot.slane %v953, 4
      %v1730 = vor.u32 %v1729, %v1727
      %v1731 = vrot.slane %v1730, 4
      %v1732 = vrot.slane %v965, 5
      %v1733 = vsel %vm1665, %v1731, %v1732
      %v1734 = vrot.slane %v962, 4
      %v1735 = vor.u32 %v1734, %v1732
      %v1736 = vrot.slane %v1735, 4
      %v1737 = vrot.slane %v974, 5
      %v1738 = vsel %vm1665, %v1736, %v1737
      %v1739 = vrot.slane %v971, 4
      %v1740 = vor.u32 %v1739, %v1737
      %v1741 = vrot.slane %v1740, 4
      %v1742 = vrot.slane %v979, 4
      %v1743 = vrot.slane %v982, 5
      %v1744 = vor.u32 %v1742, %v1743
      %v1745 = vrot.slane %v1744, 4
      %v1746 = vrot.slane %v990, 5
      %v1747 = vsel %vm1665, %v1745, %v1746
      %v1748 = vrot.slane %v987, 4
      %v1749 = vor.u32 %v1748, %v1746
      %v1750 = vrot.slane %v1749, 4
      %v1751 = vrot.slane %v999, 5
      %v1752 = vsel %vm1665, %v1750, %v1751
      %v1753 = vrot.slane %v996, 4
      %v1754 = vor.u32 %v1753, %v1751
      %v1755 = vrot.slane %v1754, 4
      %v1756 = vrot.slane %v1008, 5
      %v1757 = vsel %vm1665, %v1755, %v1756
      %v1758 = vrot.slane %v1005, 4
      %v1759 = vor.u32 %v1758, %v1756
      %v1760 = vrot.slane %v1759, 4
      %v1761 = vrot.slane %v1013, 4
      %v1762 = vrot.slane %v1016, 5
      %v1763 = vor.u32 %v1761, %v1762
      %v1764 = vrot.slane %v1763, 4
      %v1765 = vrot.slane %v1024, 5
      %v1766 = vsel %vm1665, %v1764, %v1765
      %v1767 = vrot.slane %v1021, 4
      %v1768 = vor.u32 %v1767, %v1765
      %v1769 = vrot.slane %v1768, 4
      %v1770 = vrot.slane %v1033, 5
      %v1771 = vsel %vm1665, %v1769, %v1770
      %v1772 = vrot.slane %v1030, 4
      %v1773 = vor.u32 %v1772, %v1770
      %v1774 = vrot.slane %v1773, 4
      %v1775 = vrot.slane %v1042, 5
      %v1776 = vsel %vm1665, %v1774, %v1775
      %v1777 = vrot.slane %v1039, 4
      %v1778 = vor.u32 %v1777, %v1775
      %v1779 = vrot.slane %v1778, 4
      %v1780 = vrot.slane %v1047, 4
      %v1781 = vrot.slane %v1050, 5
      %v1782 = vor.u32 %v1780, %v1781
      %v1783 = vrot.slane %v1782, 4
      %v1784 = vrot.slane %v1058, 5
      %v1785 = vsel %vm1665, %v1783, %v1784
      %v1786 = vrot.slane %v1055, 4
      %v1787 = vor.u32 %v1786, %v1784
      %v1788 = vrot.slane %v1787, 4
      %v1789 = vrot.slane %v1067, 5
      %v1790 = vsel %vm1665, %v1788, %v1789
      %v1791 = vrot.slane %v1064, 4
      %v1792 = vor.u32 %v1791, %v1789
      %v1793 = vrot.slane %v1792, 4
      %v1794 = vrot.slane %v1076, 5
      %v1795 = vsel %vm1665, %v1793, %v1794
      %v1796 = vrot.slane %v1073, 4
      %v1797 = vor.u32 %v1796, %v1794
      %v1798 = vrot.slane %v1797, 4
      %v1799 = vrot.slane %v1081, 4
      %v1800 = vrot.slane %v1084, 5
      %v1801 = vor.u32 %v1799, %v1800
      %v1802 = vrot.slane %v1801, 4
      %v1803 = vrot.slane %v1092, 5
      %v1804 = vsel %vm1665, %v1802, %v1803
      %v1805 = vrot.slane %v1089, 4
      %v1806 = vor.u32 %v1805, %v1803
      %v1807 = vrot.slane %v1806, 4
      %v1808 = vrot.slane %v1101, 5
      %v1809 = vsel %vm1665, %v1807, %v1808
      %v1810 = vrot.slane %v1098, 4
      %v1811 = vor.u32 %v1810, %v1808
      %v1812 = vrot.slane %v1811, 4
      %v1813 = vrot.slane %v1110, 5
      %v1814 = vsel %vm1665, %v1812, %v1813
      %v1815 = vrot.slane %v1107, 4
      %v1816 = vor.u32 %v1815, %v1813
      %v1817 = vrot.slane %v1816, 4
      %v1818 = vrot.slane %v1115, 4
      %v1819 = vrot.slane %v1118, 5
      %v1820 = vor.u32 %v1818, %v1819
      %v1821 = vrot.slane %v1820, 4
      %v1822 = vrot.slane %v1126, 5
      %v1823 = vsel %vm1665, %v1821, %v1822
      %v1824 = vrot.slane %v1123, 4
      %v1825 = vor.u32 %v1824, %v1822
      %v1826 = vrot.slane %v1825, 4
      %v1827 = vrot.slane %v1135, 5
      %v1828 = vsel %vm1665, %v1826, %v1827
      %v1829 = vrot.slane %v1132, 4
      %v1830 = vor.u32 %v1829, %v1827
      %v1831 = vrot.slane %v1830, 4
      %v1832 = vrot.slane %v1144, 5
      %v1833 = vsel %vm1665, %v1831, %v1832
      %v1834 = vrot.slane %v1141, 4
      %v1835 = vor.u32 %v1834, %v1832
      %v1836 = vrot.slane %v1835, 4
      %v1837 = vrot.slane %v1149, 4
      %v1838 = vrot.slane %v1152, 5
      %v1839 = vor.u32 %v1837, %v1838
      %v1840 = vrot.slane %v1839, 4
      %v1841 = vrot.slane %v1160, 5
      %v1842 = vsel %vm1665, %v1840, %v1841
      %v1843 = vrot.slane %v1157, 4
      %v1844 = vor.u32 %v1843, %v1841
      %v1845 = vrot.slane %v1844, 4
      %v1846 = vrot.slane %v1169, 5
      %v1847 = vsel %vm1665, %v1845, %v1846
      %v1848 = vrot.slane %v1166, 4
      %v1849 = vor.u32 %v1848, %v1846
      %v1850 = vrot.slane %v1849, 4
      %v1851 = vrot.slane %v1178, 5
      %v1852 = vsel %vm1665, %v1850, %v1851
      %v1853 = vrot.slane %v1175, 4
      %v1854 = vor.u32 %v1853, %v1851
      %v1855 = vrot.slane %v1854, 4
      %v1856 = vrot.slane %v1183, 4
      %v1857 = vrot.slane %v1186, 5
      %v1858 = vor.u32 %v1856, %v1857
      %v1859 = vrot.slane %v1858, 4
      %v1860 = vrot.slane %v1194, 5
      %v1861 = vsel %vm1665, %v1859, %v1860
      %v1862 = vrot.slane %v1191, 4
      %v1863 = vor.u32 %v1862, %v1860
      %v1864 = vrot.slane %v1863, 4
      %v1865 = vrot.slane %v1203, 5
      %v1866 = vsel %vm1665, %v1864, %v1865
      %v1867 = vrot.slane %v1200, 4
      %v1868 = vor.u32 %v1867, %v1865
      %v1869 = vrot.slane %v1868, 4
      %v1870 = vrot.slane %v1212, 5
      %v1871 = vsel %vm1665, %v1869, %v1870
      %v1872 = vrot.slane %v1209, 4
      %v1873 = vor.u32 %v1872, %v1870
      %v1874 = vrot.slane %v1873, 4
      %v1875 = vrot.slane %v1217, 4
      %v1876 = vrot.slane %v1220, 5
      %v1877 = vor.u32 %v1875, %v1876
      %v1878 = vrot.slane %v1877, 4
      %v1879 = vrot.slane %v1228, 5
      %v1880 = vsel %vm1665, %v1878, %v1879
      %v1881 = vrot.slane %v1225, 4
      %v1882 = vor.u32 %v1881, %v1879
      %v1883 = vrot.slane %v1882, 4
      %v1884 = vrot.slane %v1237, 5
      %v1885 = vsel %vm1665, %v1883, %v1884
      %v1886 = vrot.slane %v1234, 4
      %v1887 = vor.u32 %v1886, %v1884
      %v1888 = vrot.slane %v1887, 4
      %v1889 = vrot.slane %v1246, 5
      %v1890 = vsel %vm1665, %v1888, %v1889
      %v1891 = vrot.slane %v1243, 4
      %v1892 = vor.u32 %v1891, %v1889
      %v1893 = vrot.slane %v1892, 4
      %v1894 = vrot.slane %v1251, 4
      %v1895 = vrot.slane %v1254, 5
      %v1896 = vor.u32 %v1894, %v1895
      %v1897 = vrot.slane %v1896, 4
      %v1898 = vrot.slane %v1262, 5
      %v1899 = vsel %vm1665, %v1897, %v1898
      %v1900 = vrot.slane %v1259, 4
      %v1901 = vor.u32 %v1900, %v1898
      %v1902 = vrot.slane %v1901, 4
      %v1903 = vrot.slane %v1271, 5
      %v1904 = vsel %vm1665, %v1902, %v1903
      %v1905 = vrot.slane %v1268, 4
      %v1906 = vor.u32 %v1905, %v1903
      %v1907 = vrot.slane %v1906, 4
      %v1908 = vrot.slane %v1280, 5
      %v1909 = vsel %vm1665, %v1907, %v1908
      %v1910 = vrot.slane %v1277, 4
      %v1911 = vor.u32 %v1910, %v1908
      %v1912 = vrot.slane %v1911, 4
      %v1913 = vrot.slane %v1285, 4
      %v1914 = vrot.slane %v1288, 5
      %v1915 = vor.u32 %v1913, %v1914
      %v1916 = vrot.slane %v1915, 4
      %v1917 = vrot.slane %v1296, 5
      %v1918 = vsel %vm1665, %v1916, %v1917
      %v1919 = vrot.slane %v1293, 4
      %v1920 = vor.u32 %v1919, %v1917
      %v1921 = vrot.slane %v1920, 4
      %v1922 = vrot.slane %v1305, 5
      %v1923 = vsel %vm1665, %v1921, %v1922
      %v1924 = vrot.slane %v1302, 4
      %v1925 = vor.u32 %v1924, %v1922
      %v1926 = vrot.slane %v1925, 4
      %v1927 = vrot.slane %v1314, 5
      %v1928 = vsel %vm1665, %v1926, %v1927
      %v1929 = vrot.slane %v1311, 4
      %v1930 = vor.u32 %v1929, %v1927
      %v1931 = vrot.slane %v1930, 4
      %v1932 = vrot.slane %v1319, 4
      %v1933 = vrot.slane %v1322, 5
      %v1934 = vor.u32 %v1932, %v1933
      %v1935 = vrot.slane %v1934, 4
      %v1936 = vrot.slane %v1330, 5
      %v1937 = vsel %vm1665, %v1935, %v1936
      %v1938 = vrot.slane %v1327, 4
      %v1939 = vor.u32 %v1938, %v1936
      %v1940 = vrot.slane %v1939, 4
      %v1941 = vrot.slane %v1339, 5
      %v1942 = vsel %vm1665, %v1940, %v1941
      %v1943 = vrot.slane %v1336, 4
      %v1944 = vor.u32 %v1943, %v1941
      %v1945 = vrot.slane %v1944, 4
      %v1946 = vrot.slane %v1348, 5
      %v1947 = vsel %vm1665, %v1945, %v1946
      %v1948 = vrot.slane %v1345, 4
      %v1949 = vor.u32 %v1948, %v1946
      %v1950 = vrot.slane %v1949, 4
      %v1951 = vrot.slane %v1353, 4
      %v1952 = vrot.slane %v1356, 5
      %v1953 = vor.u32 %v1951, %v1952
      %v1954 = vrot.slane %v1953, 4
      %v1955 = vrot.slane %v1364, 5
      %v1956 = vsel %vm1665, %v1954, %v1955
      %v1957 = vrot.slane %v1361, 4
      %v1958 = vor.u32 %v1957, %v1955
      %v1959 = vrot.slane %v1958, 4
      %v1960 = vrot.slane %v1373, 5
      %v1961 = vsel %vm1665, %v1959, %v1960
      %v1962 = vrot.slane %v1370, 4
      %v1963 = vor.u32 %v1962, %v1960
      %v1964 = vrot.slane %v1963, 4
      %v1965 = vrot.slane %v1382, 5
      %v1966 = vsel %vm1665, %v1964, %v1965
      %v1967 = vrot.slane %v1379, 4
      %v1968 = vor.u32 %v1967, %v1965
      %v1969 = vrot.slane %v1968, 4
      %2034 = vst [vmem:[#allocation3 + $0x8] sm:$0xf] %v1671
      %2035 = vst [vmem:[#allocation3 + $0x2c] sm:$0xf] %v1676
      %2036 = vst [vmem:[#allocation3 + $0x50] sm:$0xf] %v1681
      %vm2037 = vmand %vm1450, %vm1663
      %v2038 = vld [vmem:[#allocation3 + $0x74] sm:$0xf]
      %v2039 = vsel %vm2037, %v1684, %v2038
      %2040 = vst [vmem:[#allocation3 + $0x74] sm:$0xf] %v2039
      %2041 = vst [vmem:[#allocation3 + $0x98] sm:$0xf] %v1690
      %2042 = vst [vmem:[#allocation3 + $0xbc] sm:$0xf] %v1695
      %2043 = vst [vmem:[#allocation3 + $0xe0] sm:$0xf] %v1700
      %v2044 = vld [vmem:[#allocation3 + $0x104] sm:$0xf]
      %v2045 = vsel %vm2037, %v1703, %v2044
      %2046 = vst [vmem:[#allocation3 + $0x104] sm:$0xf] %v2045
      %2047 = vst [vmem:[#allocation3 + $0x128] sm:$0xf] %v1709
      %2048 = vst [vmem:[#allocation3 + $0x14c] sm:$0xf] %v1714
      %2049 = vst [vmem:[#allocation3 + $0x170] sm:$0xf] %v1719
      %v2050 = vld [vmem:[#allocation3 + $0x194] sm:$0xf]
      %v2051 = vsel %vm2037, %v1722, %v2050
      %2052 = vst [vmem:[#allocation3 + $0x194] sm:$0xf] %v2051
      %2053 = vst [vmem:[#allocation3 + $0x1b8] sm:$0xf] %v1728
      %2054 = vst [vmem:[#allocation3 + $0x1dc] sm:$0xf] %v1733
      %2055 = vst [vmem:[#allocation3 + $0x200] sm:$0xf] %v1738
      %v2056 = vld [vmem:[#allocation3 + $0x224] sm:$0xf]
      %v2057 = vsel %vm2037, %v1741, %v2056
      %2058 = vst [vmem:[#allocation3 + $0x224] sm:$0xf] %v2057
      %2059 = vst [vmem:[#allocation3 + $0x248] sm:$0xf] %v1747
      %2060 = vst [vmem:[#allocation3 + $0x26c] sm:$0xf] %v1752
      %2061 = vst [vmem:[#allocation3 + $0x290] sm:$0xf] %v1757
      %v2062 = vld [vmem:[#allocation3 + $0x2b4] sm:$0xf]
      %v2063 = vsel %vm2037, %v1760, %v2062
      %2064 = vst [vmem:[#allocation3 + $0x2b4] sm:$0xf] %v2063
      %2065 = vst [vmem:[#allocation3 + $0x2d8] sm:$0xf] %v1766
      %2066 = vst [vmem:[#allocation3 + $0x2fc] sm:$0xf] %v1771
      %2067 = vst [vmem:[#allocation3 + $0x320] sm:$0xf] %v1776
      %v2068 = vld [vmem:[#allocation3 + $0x344] sm:$0xf]
      %v2069 = vsel %vm2037, %v1779, %v2068
      %2070 = vst [vmem:[#allocation3 + $0x344] sm:$0xf] %v2069
      %2071 = vst [vmem:[#allocation3 + $0x368] sm:$0xf] %v1785
      %2072 = vst [vmem:[#allocation3 + $0x38c] sm:$0xf] %v1790
      %2073 = vst [vmem:[#allocation3 + $0x3b0] sm:$0xf] %v1795
      %v2074 = vld [vmem:[#allocation3 + $0x3d4] sm:$0xf]
      %v2075 = vsel %vm2037, %v1798, %v2074
      %2076 = vst [vmem:[#allocation3 + $0x3d4] sm:$0xf] %v2075
      %2077 = vst [vmem:[#allocation3 + $0x3f8] sm:$0xf] %v1804
      %2078 = vst [vmem:[#allocation3 + $0x41c] sm:$0xf] %v1809
      %2079 = vst [vmem:[#allocation3 + $0x440] sm:$0xf] %v1814
      %v2080 = vld [vmem:[#allocation3 + $0x464] sm:$0xf]
      %v2081 = vsel %vm2037, %v1817, %v2080
      %2082 = vst [vmem:[#allocation3 + $0x464] sm:$0xf] %v2081
      %2083 = vst [vmem:[#allocation3 + $0x488] sm:$0xf] %v1823
      %2084 = vst [vmem:[#allocation3 + $0x4ac] sm:$0xf] %v1828
      %2085 = vst [vmem:[#allocation3 + $0x4d0] sm:$0xf] %v1833
      %v2086 = vld [vmem:[#allocation3 + $0x4f4] sm:$0xf]
      %v2087 = vsel %vm2037, %v1836, %v2086
      %2088 = vst [vmem:[#allocation3 + $0x4f4] sm:$0xf] %v2087
      %2089 = vst [vmem:[#allocation3 + $0x518] sm:$0xf] %v1842
      %2090 = vst [vmem:[#allocation3 + $0x53c] sm:$0xf] %v1847
      %2091 = vst [vmem:[#allocation3 + $0x560] sm:$0xf] %v1852
      %v2092 = vld [vmem:[#allocation3 + $0x584] sm:$0xf]
      %v2093 = vsel %vm2037, %v1855, %v2092
      %2094 = vst [vmem:[#allocation3 + $0x584] sm:$0xf] %v2093
      %2095 = vst [vmem:[#allocation3 + $0x5a8] sm:$0xf] %v1861
      %2096 = vst [vmem:[#allocation3 + $0x5cc] sm:$0xf] %v1866
      %2097 = vst [vmem:[#allocation3 + $0x5f0] sm:$0xf] %v1871
      %v2098 = vld [vmem:[#allocation3 + $0x614] sm:$0xf]
      %v2099 = vsel %vm2037, %v1874, %v2098
      %2100 = vst [vmem:[#allocation3 + $0x614] sm:$0xf] %v2099
      %2101 = vst [vmem:[#allocation3 + $0x638] sm:$0xf] %v1880
      %2102 = vst [vmem:[#allocation3 + $0x65c] sm:$0xf] %v1885
      %2103 = vst [vmem:[#allocation3 + $0x680] sm:$0xf] %v1890
      %v2104 = vld [vmem:[#allocation3 + $0x6a4] sm:$0xf]
      %v2105 = vsel %vm2037, %v1893, %v2104
      %2106 = vst [vmem:[#allocation3 + $0x6a4] sm:$0xf] %v2105
      %2107 = vst [vmem:[#allocation3 + $0x6c8] sm:$0xf] %v1899
      %2108 = vst [vmem:[#allocation3 + $0x6ec] sm:$0xf] %v1904
      %2109 = vst [vmem:[#allocation3 + $0x710] sm:$0xf] %v1909
      %v2110 = vld [vmem:[#allocation3 + $0x734] sm:$0xf]
      %v2111 = vsel %vm2037, %v1912, %v2110
      %2112 = vst [vmem:[#allocation3 + $0x734] sm:$0xf] %v2111
      %2113 = vst [vmem:[#allocation3 + $0x758] sm:$0xf] %v1918
      %2114 = vst [vmem:[#allocation3 + $0x77c] sm:$0xf] %v1923
      %2115 = vst [vmem:[#allocation3 + $0x7a0] sm:$0xf] %v1928
      %v2116 = vld [vmem:[#allocation3 + $0x7c4] sm:$0xf]
      %v2117 = vsel %vm2037, %v1931, %v2116
      %2118 = vst [vmem:[#allocation3 + $0x7c4] sm:$0xf] %v2117
      %2119 = vst [vmem:[#allocation3 + $0x7e8] sm:$0xf] %v1937
      %2120 = vst [vmem:[#allocation3 + $0x80c] sm:$0xf] %v1942
      %2121 = vst [vmem:[#allocation3 + $0x830] sm:$0xf] %v1947
      %v2122 = vld [vmem:[#allocation3 + $0x854] sm:$0xf]
      %v2123 = vsel %vm2037, %v1950, %v2122
      %2124 = vst [vmem:[#allocation3 + $0x854] sm:$0xf] %v2123
      %2125 = vst [vmem:[#allocation3 + $0x878] sm:$0xf] %v1956
      %2126 = vst [vmem:[#allocation3 + $0x89c] sm:$0xf] %v1961
      %2127 = vst [vmem:[#allocation3 + $0x8c0] sm:$0xf] %v1966
      %v2128 = vld [vmem:[#allocation3 + $0x8e4] sm:$0xf]
      %v2129 = vsel %vm2037, %v1969, %v2128
      %2130 = vst [vmem:[#allocation3 + $0x8e4] sm:$0xf] %v2129
      %vm2131 = vcmask 1043459
      %vm2132 = vsmask.f32 7950
      %vm2133 = vmand %vm2131, %vm2132
      %v2134 = vld [vmem:[#allocation3 + $0x74] sm:$0x8]
      %v2135 = vsel %vm2133, 0, %v2134
      %2136 = vst [vmem:[#allocation3 + $0x74] sm:$0x8] %v2135
      %v2137 = vld [vmem:[#allocation3 + $0x104] sm:$0x8]
      %v2138 = vsel %vm2133, 0, %v2137
      %2139 = vst [vmem:[#allocation3 + $0x104] sm:$0x8] %v2138
      %v2140 = vld [vmem:[#allocation3 + $0x194] sm:$0x8]
      %v2141 = vsel %vm2133, 0, %v2140
      %2142 = vst [vmem:[#allocation3 + $0x194] sm:$0x8] %v2141
      %v2143 = vld [vmem:[#allocation3 + $0x224] sm:$0x8]
      %v2144 = vsel %vm2133, 0, %v2143
      %2145 = vst [vmem:[#allocation3 + $0x224] sm:$0x8] %v2144
      %v2146 = vld [vmem:[#allocation3 + $0x2b4] sm:$0x8]
      %v2147 = vsel %vm2133, 0, %v2146
      %2148 = vst [vmem:[#allocation3 + $0x2b4] sm:$0x8] %v2147
      %v2149 = vld [vmem:[#allocation3 + $0x344] sm:$0x8]
      %v2150 = vsel %vm2133, 0, %v2149
      %2151 = vst [vmem:[#allocation3 + $0x344] sm:$0x8] %v2150
      %v2152 = vld [vmem:[#allocation3 + $0x3d4] sm:$0x8]
      %v2153 = vsel %vm2133, 0, %v2152
      %2154 = vst [vmem:[#allocation3 + $0x3d4] sm:$0x8] %v2153
      %v2155 = vld [vmem:[#allocation3 + $0x464] sm:$0x8]
      %v2156 = vsel %vm2133, 0, %v2155
      %2157 = vst [vmem:[#allocation3 + $0x464] sm:$0x8] %v2156
      %v2158 = vld [vmem:[#allocation3 + $0x4f4] sm:$0x8]
      %v2159 = vsel %vm2133, 0, %v2158
      %2160 = vst [vmem:[#allocation3 + $0x4f4] sm:$0x8] %v2159
      %v2161 = vld [vmem:[#allocation3 + $0x584] sm:$0x8]
      %v2162 = vsel %vm2133, 0, %v2161
      %2163 = vst [vmem:[#allocation3 + $0x584] sm:$0x8] %v2162
      %v2164 = vld [vmem:[#allocation3 + $0x614] sm:$0x8]
      %v2165 = vsel %vm2133, 0, %v2164
      %2166 = vst [vmem:[#allocation3 + $0x614] sm:$0x8] %v2165
      %v2167 = vld [vmem:[#allocation3 + $0x6a4] sm:$0x8]
      %v2168 = vsel %vm2133, 0, %v2167
      %2169 = vst [vmem:[#allocation3 + $0x6a4] sm:$0x8] %v2168
      %v2170 = vld [vmem:[#allocation3 + $0x734] sm:$0x8]
      %v2171 = vsel %vm2133, 0, %v2170
      %2172 = vst [vmem:[#allocation3 + $0x734] sm:$0x8] %v2171
      %v2173 = vld [vmem:[#allocation3 + $0x7c4] sm:$0x8]
      %v2174 = vsel %vm2133, 0, %v2173
      %2175 = vst [vmem:[#allocation3 + $0x7c4] sm:$0x8] %v2174
      %v2176 = vld [vmem:[#allocation3 + $0x854] sm:$0x8]
      %v2177 = vsel %vm2133, 0, %v2176
      %2178 = vst [vmem:[#allocation3 + $0x854] sm:$0x8] %v2177
      %v2179 = vld [vmem:[#allocation3 + $0x8e4] sm:$0x8]
      %v2180 = vsel %vm2133, 0, %v2179
      %2181 = vst [vmem:[#allocation3 + $0x8e4] sm:$0x8] %v2180
      %v2182 = vld [vmem:[%s693] sm:$0xf]
      %v2183 = vld [vmem:[%s693 + $0x4] sm:$0xf]
      %v2184 = vld [vmem:[%s693 + $0x8] sm:$0xf]
      %v2185 = vld [vmem:[%s693 + $0xc] sm:$0xf]
      %v2186 = vld [vmem:[%s693 + $0x10] sm:$0xf]
      %v2187 = vld [vmem:[%s693 + $0x14] sm:$0xf]
      %v2188 = vld [vmem:[%s693 + $0x18] sm:$0xf]
      %v2189 = vld [vmem:[%s693 + $0x1c] sm:$0xf]
      %v2190 = vld [vmem:[%s693 + $0x20] sm:$0xf]
      %v2191 = vld [vmem:[%s693 + $0x24] sm:$0xf]
      %v2192 = vld [vmem:[%s693 + $0x28] sm:$0xf]
      %v2193 = vld [vmem:[%s693 + $0x2c] sm:$0xf]
      %v2194 = vld [vmem:[%s693 + $0x30] sm:$0xf]
      %v2195 = vld [vmem:[%s693 + $0x34] sm:$0xf]
      %v2196 = vld [vmem:[%s693 + $0x38] sm:$0xf]
      %v2197 = vld [vmem:[%s693 + $0x3c] sm:$0xf]
      %v2198 = vld [vmem:[%s693 + $0x40] sm:$0xf]
      %v2199 = vld [vmem:[%s693 + $0x44] sm:$0xf]
      %v2200 = vld [vmem:[%s693 + $0x48] sm:$0xf]
      %v2201 = vld [vmem:[%s693 + $0x4c] sm:$0xf]
      %v2202 = vld [vmem:[%s693 + $0x50] sm:$0xf]
      %v2203 = vld [vmem:[%s693 + $0x54] sm:$0xf]
      %v2204 = vld [vmem:[%s693 + $0x58] sm:$0xf]
      %v2205 = vld [vmem:[%s693 + $0x5c] sm:$0xf]
      %v2206 = vld [vmem:[%s693 + $0x60] sm:$0xf]
      %v2207 = vld [vmem:[%s693 + $0x64] sm:$0xf]
      %v2208 = vld [vmem:[%s693 + $0x68] sm:$0xf]
      %v2209 = vld [vmem:[%s693 + $0x6c] sm:$0xf]
      %v2210 = vld [vmem:[%s693 + $0x70] sm:$0xf]
      %v2211 = vld [vmem:[%s693 + $0x74] sm:$0xf]
      %v2212 = vld [vmem:[%s693 + $0x78] sm:$0xf]
      %v2213 = vld [vmem:[%s693 + $0x7c] sm:$0xf]
      %v2214 = vld [vmem:[%s693 + $0x80] sm:$0xf]
      %v2215 = vld [vmem:[%s693 + $0x84] sm:$0xf]
      %v2216 = vld [vmem:[%s693 + $0x88] sm:$0xf]
      %v2217 = vld [vmem:[%s693 + $0x8c] sm:$0xf]
      %v2218 = vld [vmem:[%s693 + $0x90] sm:$0xf]
      %v2219 = vld [vmem:[%s693 + $0x94] sm:$0xf]
      %v2220 = vld [vmem:[%s693 + $0x98] sm:$0xf]
      %v2221 = vld [vmem:[%s693 + $0x9c] sm:$0xf]
      %v2222 = vld [vmem:[%s693 + $0xa0] sm:$0xf]
      %v2223 = vld [vmem:[%s693 + $0xa4] sm:$0xf]
      %v2224 = vld [vmem:[%s693 + $0xa8] sm:$0xf]
      %v2225 = vld [vmem:[%s693 + $0xac] sm:$0xf]
      %v2226 = vld [vmem:[%s693 + $0xb0] sm:$0xf]
      %v2227 = vld [vmem:[%s693 + $0xb4] sm:$0xf]
      %v2228 = vld [vmem:[%s693 + $0xb8] sm:$0xf]
      %v2229 = vld [vmem:[%s693 + $0xbc] sm:$0xf]
      %v2230 = vld [vmem:[%s693 + $0xc0] sm:$0xf]
      %v2231 = vld [vmem:[%s693 + $0xc4] sm:$0xf]
      %v2232 = vld [vmem:[%s693 + $0xc8] sm:$0xf]
      %v2233 = vld [vmem:[%s693 + $0xcc] sm:$0xf]
      %v2234 = vld [vmem:[%s693 + $0xd0] sm:$0xf]
      %v2235 = vld [vmem:[%s693 + $0xd4] sm:$0xf]
      %v2236 = vld [vmem:[%s693 + $0xd8] sm:$0xf]
      %v2237 = vld [vmem:[%s693 + $0xdc] sm:$0xf]
      %v2238 = vld [vmem:[%s693 + $0xe0] sm:$0xf]
      %v2239 = vld [vmem:[%s693 + $0xe4] sm:$0xf]
      %v2240 = vld [vmem:[%s693 + $0xe8] sm:$0xf]
      %v2241 = vld [vmem:[%s693 + $0xec] sm:$0xf]
      %v2242 = vld [vmem:[%s693 + $0xf0] sm:$0xf]
      %v2243 = vld [vmem:[%s693 + $0xf4] sm:$0xf]
      %v2244 = vld [vmem:[%s693 + $0xf8] sm:$0xf]
      %v2245 = vld [vmem:[%s693 + $0xfc] sm:$0xf]
      %v2247 = vshrl.u32 %v2182, 16
      %v2249 = vrot.slane %v2247, 7
      %v2250 = vshll.u32 %v2182, 16
      %v2252 = vor.u32 %v2249, %v2250
      %v2253 = vrot.slane %v2249, 4
      %v2255 = vshrl.u32 %v2183, 16
      %v2257 = vrot.slane %v2255, 7
      %v2258 = vshll.u32 %v2183, 16
      %v2260 = vor.u32 %v2257, %v2258
      %v2261 = vsel %vm841, %v2253, %v2260
      %v2262 = vrot.slane %v2257, 4
      %v2264 = vshrl.u32 %v2184, 16
      %v2266 = vrot.slane %v2264, 7
      %v2267 = vshll.u32 %v2184, 16
      %v2269 = vor.u32 %v2266, %v2267
      %v2270 = vsel %vm841, %v2262, %v2269
      %v2271 = vrot.slane %v2266, 4
      %v2273 = vshrl.u32 %v2185, 16
      %v2275 = vrot.slane %v2273, 7
      %v2276 = vshll.u32 %v2185, 16
      %v2278 = vor.u32 %v2275, %v2276
      %v2279 = vsel %vm841, %v2271, %v2278
      %v2281 = vshrl.u32 %v2186, 16
      %v2283 = vrot.slane %v2281, 7
      %v2284 = vshll.u32 %v2186, 16
      %v2286 = vor.u32 %v2283, %v2284
      %v2287 = vrot.slane %v2283, 4
      %v2289 = vshrl.u32 %v2187, 16
      %v2291 = vrot.slane %v2289, 7
      %v2292 = vshll.u32 %v2187, 16
      %v2294 = vor.u32 %v2291, %v2292
      %v2295 = vsel %vm841, %v2287, %v2294
      %v2296 = vrot.slane %v2291, 4
      %v2298 = vshrl.u32 %v2188, 16
      %v2300 = vrot.slane %v2298, 7
      %v2301 = vshll.u32 %v2188, 16
      %v2303 = vor.u32 %v2300, %v2301
      %v2304 = vsel %vm841, %v2296, %v2303
      %v2305 = vrot.slane %v2300, 4
      %v2307 = vshrl.u32 %v2189, 16
      %v2309 = vrot.slane %v2307, 7
      %v2310 = vshll.u32 %v2189, 16
      %v2312 = vor.u32 %v2309, %v2310
      %v2313 = vsel %vm841, %v2305, %v2312
      %v2315 = vshrl.u32 %v2190, 16
      %v2317 = vrot.slane %v2315, 7
      %v2318 = vshll.u32 %v2190, 16
      %v2320 = vor.u32 %v2317, %v2318
      %v2321 = vrot.slane %v2317, 4
      %v2323 = vshrl.u32 %v2191, 16
      %v2325 = vrot.slane %v2323, 7
      %v2326 = vshll.u32 %v2191, 16
      %v2328 = vor.u32 %v2325, %v2326
      %v2329 = vsel %vm841, %v2321, %v2328
      %v2330 = vrot.slane %v2325, 4
      %v2332 = vshrl.u32 %v2192, 16
      %v2334 = vrot.slane %v2332, 7
      %v2335 = vshll.u32 %v2192, 16
      %v2337 = vor.u32 %v2334, %v2335
      %v2338 = vsel %vm841, %v2330, %v2337
      %v2339 = vrot.slane %v2334, 4
      %v2341 = vshrl.u32 %v2193, 16
      %v2343 = vrot.slane %v2341, 7
      %v2344 = vshll.u32 %v2193, 16
      %v2346 = vor.u32 %v2343, %v2344
      %v2347 = vsel %vm841, %v2339, %v2346
      %v2349 = vshrl.u32 %v2194, 16
      %v2351 = vrot.slane %v2349, 7
      %v2352 = vshll.u32 %v2194, 16
      %v2354 = vor.u32 %v2351, %v2352
      %v2355 = vrot.slane %v2351, 4
      %v2357 = vshrl.u32 %v2195, 16
      %v2359 = vrot.slane %v2357, 7
      %v2360 = vshll.u32 %v2195, 16
      %v2362 = vor.u32 %v2359, %v2360
      %v2363 = vsel %vm841, %v2355, %v2362
      %v2364 = vrot.slane %v2359, 4
      %v2366 = vshrl.u32 %v2196, 16
      %v2368 = vrot.slane %v2366, 7
      %v2369 = vshll.u32 %v2196, 16
      %v2371 = vor.u32 %v2368, %v2369
      %v2372 = vsel %vm841, %v2364, %v2371
      %v2373 = vrot.slane %v2368, 4
      %v2375 = vshrl.u32 %v2197, 16
      %v2377 = vrot.slane %v2375, 7
      %v2378 = vshll.u32 %v2197, 16
      %v2380 = vor.u32 %v2377, %v2378
      %v2381 = vsel %vm841, %v2373, %v2380
      %v2383 = vshrl.u32 %v2198, 16
      %v2385 = vrot.slane %v2383, 7
      %v2386 = vshll.u32 %v2198, 16
      %v2388 = vor.u32 %v2385, %v2386
      %v2389 = vrot.slane %v2385, 4
      %v2391 = vshrl.u32 %v2199, 16
      %v2393 = vrot.slane %v2391, 7
      %v2394 = vshll.u32 %v2199, 16
      %v2396 = vor.u32 %v2393, %v2394
      %v2397 = vsel %vm841, %v2389, %v2396
      %v2398 = vrot.slane %v2393, 4
      %v2400 = vshrl.u32 %v2200, 16
      %v2402 = vrot.slane %v2400, 7
      %v2403 = vshll.u32 %v2200, 16
      %v2405 = vor.u32 %v2402, %v2403
      %v2406 = vsel %vm841, %v2398, %v2405
      %v2407 = vrot.slane %v2402, 4
      %v2409 = vshrl.u32 %v2201, 16
      %v2411 = vrot.slane %v2409, 7
      %v2412 = vshll.u32 %v2201, 16
      %v2414 = vor.u32 %v2411, %v2412
      %v2415 = vsel %vm841, %v2407, %v2414
      %v2417 = vshrl.u32 %v2202, 16
      %v2419 = vrot.slane %v2417, 7
      %v2420 = vshll.u32 %v2202, 16
      %v2422 = vor.u32 %v2419, %v2420
      %v2423 = vrot.slane %v2419, 4
      %v2425 = vshrl.u32 %v2203, 16
      %v2427 = vrot.slane %v2425, 7
      %v2428 = vshll.u32 %v2203, 16
      %v2430 = vor.u32 %v2427, %v2428
      %v2431 = vsel %vm841, %v2423, %v2430
      %v2432 = vrot.slane %v2427, 4
      %v2434 = vshrl.u32 %v2204, 16
      %v2436 = vrot.slane %v2434, 7
      %v2437 = vshll.u32 %v2204, 16
      %v2439 = vor.u32 %v2436, %v2437
      %v2440 = vsel %vm841, %v2432, %v2439
      %v2441 = vrot.slane %v2436, 4
      %v2443 = vshrl.u32 %v2205, 16
      %v2445 = vrot.slane %v2443, 7
      %v2446 = vshll.u32 %v2205, 16
      %v2448 = vor.u32 %v2445, %v2446
      %v2449 = vsel %vm841, %v2441, %v2448
      %v2451 = vshrl.u32 %v2206, 16
      %v2453 = vrot.slane %v2451, 7
      %v2454 = vshll.u32 %v2206, 16
      %v2456 = vor.u32 %v2453, %v2454
      %v2457 = vrot.slane %v2453, 4
      %v2459 = vshrl.u32 %v2207, 16
      %v2461 = vrot.slane %v2459, 7
      %v2462 = vshll.u32 %v2207, 16
      %v2464 = vor.u32 %v2461, %v2462
      %v2465 = vsel %vm841, %v2457, %v2464
      %v2466 = vrot.slane %v2461, 4
      %v2468 = vshrl.u32 %v2208, 16
      %v2470 = vrot.slane %v2468, 7
      %v2471 = vshll.u32 %v2208, 16
      %v2473 = vor.u32 %v2470, %v2471
      %v2474 = vsel %vm841, %v2466, %v2473
      %v2475 = vrot.slane %v2470, 4
      %v2477 = vshrl.u32 %v2209, 16
      %v2479 = vrot.slane %v2477, 7
      %v2480 = vshll.u32 %v2209, 16
      %v2482 = vor.u32 %v2479, %v2480
      %v2483 = vsel %vm841, %v2475, %v2482
      %v2485 = vshrl.u32 %v2210, 16
      %v2487 = vrot.slane %v2485, 7
      %v2488 = vshll.u32 %v2210, 16
      %v2490 = vor.u32 %v2487, %v2488
      %v2491 = vrot.slane %v2487, 4
      %v2493 = vshrl.u32 %v2211, 16
      %v2495 = vrot.slane %v2493, 7
      %v2496 = vshll.u32 %v2211, 16
      %v2498 = vor.u32 %v2495, %v2496
      %v2499 = vsel %vm841, %v2491, %v2498
      %v2500 = vrot.slane %v2495, 4
      %v2502 = vshrl.u32 %v2212, 16
      %v2504 = vrot.slane %v2502, 7
      %v2505 = vshll.u32 %v2212, 16
      %v2507 = vor.u32 %v2504, %v2505
      %v2508 = vsel %vm841, %v2500, %v2507
      %v2509 = vrot.slane %v2504, 4
      %v2511 = vshrl.u32 %v2213, 16
      %v2513 = vrot.slane %v2511, 7
      %v2514 = vshll.u32 %v2213, 16
      %v2516 = vor.u32 %v2513, %v2514
      %v2517 = vsel %vm841, %v2509, %v2516
      %v2519 = vshrl.u32 %v2214, 16
      %v2521 = vrot.slane %v2519, 7
      %v2522 = vshll.u32 %v2214, 16
      %v2524 = vor.u32 %v2521, %v2522
      %v2525 = vrot.slane %v2521, 4
      %v2527 = vshrl.u32 %v2215, 16
      %v2529 = vrot.slane %v2527, 7
      %v2530 = vshll.u32 %v2215, 16
      %v2532 = vor.u32 %v2529, %v2530
      %v2533 = vsel %vm841, %v2525, %v2532
      %v2534 = vrot.slane %v2529, 4
      %v2536 = vshrl.u32 %v2216, 16
      %v2538 = vrot.slane %v2536, 7
      %v2539 = vshll.u32 %v2216, 16
      %v2541 = vor.u32 %v2538, %v2539
      %v2542 = vsel %vm841, %v2534, %v2541
      %v2543 = vrot.slane %v2538, 4
      %v2545 = vshrl.u32 %v2217, 16
      %v2547 = vrot.slane %v2545, 7
      %v2548 = vshll.u32 %v2217, 16
      %v2550 = vor.u32 %v2547, %v2548
      %v2551 = vsel %vm841, %v2543, %v2550
      %v2553 = vshrl.u32 %v2218, 16
      %v2555 = vrot.slane %v2553, 7
      %v2556 = vshll.u32 %v2218, 16
      %v2558 = vor.u32 %v2555, %v2556
      %v2559 = vrot.slane %v2555, 4
      %v2561 = vshrl.u32 %v2219, 16
      %v2563 = vrot.slane %v2561, 7
      %v2564 = vshll.u32 %v2219, 16
      %v2566 = vor.u32 %v2563, %v2564
      %v2567 = vsel %vm841, %v2559, %v2566
      %v2568 = vrot.slane %v2563, 4
      %v2570 = vshrl.u32 %v2220, 16
      %v2572 = vrot.slane %v2570, 7
      %v2573 = vshll.u32 %v2220, 16
      %v2575 = vor.u32 %v2572, %v2573
      %v2576 = vsel %vm841, %v2568, %v2575
      %v2577 = vrot.slane %v2572, 4
      %v2579 = vshrl.u32 %v2221, 16
      %v2581 = vrot.slane %v2579, 7
      %v2582 = vshll.u32 %v2221, 16
      %v2584 = vor.u32 %v2581, %v2582
      %v2585 = vsel %vm841, %v2577, %v2584
      %v2587 = vshrl.u32 %v2222, 16
      %v2589 = vrot.slane %v2587, 7
      %v2590 = vshll.u32 %v2222, 16
      %v2592 = vor.u32 %v2589, %v2590
      %v2593 = vrot.slane %v2589, 4
      %v2595 = vshrl.u32 %v2223, 16
      %v2597 = vrot.slane %v2595, 7
      %v2598 = vshll.u32 %v2223, 16
      %v2600 = vor.u32 %v2597, %v2598
      %v2601 = vsel %vm841, %v2593, %v2600
      %v2602 = vrot.slane %v2597, 4
      %v2604 = vshrl.u32 %v2224, 16
      %v2606 = vrot.slane %v2604, 7
      %v2607 = vshll.u32 %v2224, 16
      %v2609 = vor.u32 %v2606, %v2607
      %v2610 = vsel %vm841, %v2602, %v2609
      %v2611 = vrot.slane %v2606, 4
      %v2613 = vshrl.u32 %v2225, 16
      %v2615 = vrot.slane %v2613, 7
      %v2616 = vshll.u32 %v2225, 16
      %v2618 = vor.u32 %v2615, %v2616
      %v2619 = vsel %vm841, %v2611, %v2618
      %v2621 = vshrl.u32 %v2226, 16
      %v2623 = vrot.slane %v2621, 7
      %v2624 = vshll.u32 %v2226, 16
      %v2626 = vor.u32 %v2623, %v2624
      %v2627 = vrot.slane %v2623, 4
      %v2629 = vshrl.u32 %v2227, 16
      %v2631 = vrot.slane %v2629, 7
      %v2632 = vshll.u32 %v2227, 16
      %v2634 = vor.u32 %v2631, %v2632
      %v2635 = vsel %vm841, %v2627, %v2634
      %v2636 = vrot.slane %v2631, 4
      %v2638 = vshrl.u32 %v2228, 16
      %v2640 = vrot.slane %v2638, 7
      %v2641 = vshll.u32 %v2228, 16
      %v2643 = vor.u32 %v2640, %v2641
      %v2644 = vsel %vm841, %v2636, %v2643
      %v2645 = vrot.slane %v2640, 4
      %v2647 = vshrl.u32 %v2229, 16
      %v2649 = vrot.slane %v2647, 7
      %v2650 = vshll.u32 %v2229, 16
      %v2652 = vor.u32 %v2649, %v2650
      %v2653 = vsel %vm841, %v2645, %v2652
      %v2655 = vshrl.u32 %v2230, 16
      %v2657 = vrot.slane %v2655, 7
      %v2658 = vshll.u32 %v2230, 16
      %v2660 = vor.u32 %v2657, %v2658
      %v2661 = vrot.slane %v2657, 4
      %v2663 = vshrl.u32 %v2231, 16
      %v2665 = vrot.slane %v2663, 7
      %v2666 = vshll.u32 %v2231, 16
      %v2668 = vor.u32 %v2665, %v2666
      %v2669 = vsel %vm841, %v2661, %v2668
      %v2670 = vrot.slane %v2665, 4
      %v2672 = vshrl.u32 %v2232, 16
      %v2674 = vrot.slane %v2672, 7
      %v2675 = vshll.u32 %v2232, 16
      %v2677 = vor.u32 %v2674, %v2675
      %v2678 = vsel %vm841, %v2670, %v2677
      %v2679 = vrot.slane %v2674, 4
      %v2681 = vshrl.u32 %v2233, 16
      %v2683 = vrot.slane %v2681, 7
      %v2684 = vshll.u32 %v2233, 16
      %v2686 = vor.u32 %v2683, %v2684
      %v2687 = vsel %vm841, %v2679, %v2686
      %v2689 = vshrl.u32 %v2234, 16
      %v2691 = vrot.slane %v2689, 7
      %v2692 = vshll.u32 %v2234, 16
      %v2694 = vor.u32 %v2691, %v2692
      %v2695 = vrot.slane %v2691, 4
      %v2697 = vshrl.u32 %v2235, 16
      %v2699 = vrot.slane %v2697, 7
      %v2700 = vshll.u32 %v2235, 16
      %v2702 = vor.u32 %v2699, %v2700
      %v2703 = vsel %vm841, %v2695, %v2702
      %v2704 = vrot.slane %v2699, 4
      %v2706 = vshrl.u32 %v2236, 16
      %v2708 = vrot.slane %v2706, 7
      %v2709 = vshll.u32 %v2236, 16
      %v2711 = vor.u32 %v2708, %v2709
      %v2712 = vsel %vm841, %v2704, %v2711
      %v2713 = vrot.slane %v2708, 4
      %v2715 = vshrl.u32 %v2237, 16
      %v2717 = vrot.slane %v2715, 7
      %v2718 = vshll.u32 %v2237, 16
      %v2720 = vor.u32 %v2717, %v2718
      %v2721 = vsel %vm841, %v2713, %v2720
      %v2723 = vshrl.u32 %v2238, 16
      %v2725 = vrot.slane %v2723, 7
      %v2726 = vshll.u32 %v2238, 16
      %v2728 = vor.u32 %v2725, %v2726
      %v2729 = vrot.slane %v2725, 4
      %v2731 = vshrl.u32 %v2239, 16
      %v2733 = vrot.slane %v2731, 7
      %v2734 = vshll.u32 %v2239, 16
      %v2736 = vor.u32 %v2733, %v2734
      %v2737 = vsel %vm841, %v2729, %v2736
      %v2738 = vrot.slane %v2733, 4
      %v2740 = vshrl.u32 %v2240, 16
      %v2742 = vrot.slane %v2740, 7
      %v2743 = vshll.u32 %v2240, 16
      %v2745 = vor.u32 %v2742, %v2743
      %v2746 = vsel %vm841, %v2738, %v2745
      %v2747 = vrot.slane %v2742, 4
      %v2749 = vshrl.u32 %v2241, 16
      %v2751 = vrot.slane %v2749, 7
      %v2752 = vshll.u32 %v2241, 16
      %v2754 = vor.u32 %v2751, %v2752
      %v2755 = vsel %vm841, %v2747, %v2754
      %v2757 = vshrl.u32 %v2242, 16
      %v2759 = vrot.slane %v2757, 7
      %v2760 = vshll.u32 %v2242, 16
      %v2762 = vor.u32 %v2759, %v2760
      %v2763 = vrot.slane %v2759, 4
      %v2765 = vshrl.u32 %v2243, 16
      %v2767 = vrot.slane %v2765, 7
      %v2768 = vshll.u32 %v2243, 16
      %v2770 = vor.u32 %v2767, %v2768
      %v2771 = vsel %vm841, %v2763, %v2770
      %v2772 = vrot.slane %v2767, 4
      %v2774 = vshrl.u32 %v2244, 16
      %v2776 = vrot.slane %v2774, 7
      %v2777 = vshll.u32 %v2244, 16
      %v2779 = vor.u32 %v2776, %v2777
      %v2780 = vsel %vm841, %v2772, %v2779
      %v2781 = vrot.slane %v2776, 4
      %v2783 = vshrl.u32 %v2245, 16
      %v2785 = vrot.slane %v2783, 7
      %v2786 = vshll.u32 %v2245, 16
      %v2788 = vor.u32 %v2785, %v2786
      %v2789 = vsel %vm841, %v2781, %v2788
      %v2854 = vld [vmem:[#allocation3 + $0xc] sm:$0xf]
      %v2855 = vsel %vm1452, %v2252, %v2854
      %2856 = vst [vmem:[#allocation3 + $0xc] sm:$0xf] %v2855
      %2857 = vst [vmem:[#allocation3 + $0x30] sm:$0xf] %v2261
      %2858 = vst [vmem:[#allocation3 + $0x54] sm:$0xf] %v2270
      %2859 = vst [vmem:[#allocation3 + $0x78] sm:$0xf] %v2279
      %v2860 = vld [vmem:[#allocation3 + $0x9c] sm:$0xf]
      %v2861 = vsel %vm1452, %v2286, %v2860
      %2862 = vst [vmem:[#allocation3 + $0x9c] sm:$0xf] %v2861
      %2863 = vst [vmem:[#allocation3 + $0xc0] sm:$0xf] %v2295
      %2864 = vst [vmem:[#allocation3 + $0xe4] sm:$0xf] %v2304
      %2865 = vst [vmem:[#allocation3 + $0x108] sm:$0xf] %v2313
      %v2866 = vld [vmem:[#allocation3 + $0x12c] sm:$0xf]
      %v2867 = vsel %vm1452, %v2320, %v2866
      %2868 = vst [vmem:[#allocation3 + $0x12c] sm:$0xf] %v2867
      %2869 = vst [vmem:[#allocation3 + $0x150] sm:$0xf] %v2329
      %2870 = vst [vmem:[#allocation3 + $0x174] sm:$0xf] %v2338
      %2871 = vst [vmem:[#allocation3 + $0x198] sm:$0xf] %v2347
      %v2872 = vld [vmem:[#allocation3 + $0x1bc] sm:$0xf]
      %v2873 = vsel %vm1452, %v2354, %v2872
      %2874 = vst [vmem:[#allocation3 + $0x1bc] sm:$0xf] %v2873
      %2875 = vst [vmem:[#allocation3 + $0x1e0] sm:$0xf] %v2363
      %2876 = vst [vmem:[#allocation3 + $0x204] sm:$0xf] %v2372
      %2877 = vst [vmem:[#allocation3 + $0x228] sm:$0xf] %v2381
      %v2878 = vld [vmem:[#allocation3 + $0x24c] sm:$0xf]
      %v2879 = vsel %vm1452, %v2388, %v2878
      %2880 = vst [vmem:[#allocation3 + $0x24c] sm:$0xf] %v2879
      %2881 = vst [vmem:[#allocation3 + $0x270] sm:$0xf] %v2397
      %2882 = vst [vmem:[#allocation3 + $0x294] sm:$0xf] %v2406
      %2883 = vst [vmem:[#allocation3 + $0x2b8] sm:$0xf] %v2415
      %v2884 = vld [vmem:[#allocation3 + $0x2dc] sm:$0xf]
      %v2885 = vsel %vm1452, %v2422, %v2884
      %2886 = vst [vmem:[#allocation3 + $0x2dc] sm:$0xf] %v2885
      %2887 = vst [vmem:[#allocation3 + $0x300] sm:$0xf] %v2431
      %2888 = vst [vmem:[#allocation3 + $0x324] sm:$0xf] %v2440
      %2889 = vst [vmem:[#allocation3 + $0x348] sm:$0xf] %v2449
      %v2890 = vld [vmem:[#allocation3 + $0x36c] sm:$0xf]
      %v2891 = vsel %vm1452, %v2456, %v2890
      %2892 = vst [vmem:[#allocation3 + $0x36c] sm:$0xf] %v2891
      %2893 = vst [vmem:[#allocation3 + $0x390] sm:$0xf] %v2465
      %2894 = vst [vmem:[#allocation3 + $0x3b4] sm:$0xf] %v2474
      %2895 = vst [vmem:[#allocation3 + $0x3d8] sm:$0xf] %v2483
      %v2896 = vld [vmem:[#allocation3 + $0x3fc] sm:$0xf]
      %v2897 = vsel %vm1452, %v2490, %v2896
      %2898 = vst [vmem:[#allocation3 + $0x3fc] sm:$0xf] %v2897
      %2899 = vst [vmem:[#allocation3 + $0x420] sm:$0xf] %v2499
      %2900 = vst [vmem:[#allocation3 + $0x444] sm:$0xf] %v2508
      %2901 = vst [vmem:[#allocation3 + $0x468] sm:$0xf] %v2517
      %v2902 = vld [vmem:[#allocation3 + $0x48c] sm:$0xf]
      %v2903 = vsel %vm1452, %v2524, %v2902
      %2904 = vst [vmem:[#allocation3 + $0x48c] sm:$0xf] %v2903
      %2905 = vst [vmem:[#allocation3 + $0x4b0] sm:$0xf] %v2533
      %2906 = vst [vmem:[#allocation3 + $0x4d4] sm:$0xf] %v2542
      %2907 = vst [vmem:[#allocation3 + $0x4f8] sm:$0xf] %v2551
      %v2908 = vld [vmem:[#allocation3 + $0x51c] sm:$0xf]
      %v2909 = vsel %vm1452, %v2558, %v2908
      %2910 = vst [vmem:[#allocation3 + $0x51c] sm:$0xf] %v2909
      %2911 = vst [vmem:[#allocation3 + $0x540] sm:$0xf] %v2567
      %2912 = vst [vmem:[#allocation3 + $0x564] sm:$0xf] %v2576
      %2913 = vst [vmem:[#allocation3 + $0x588] sm:$0xf] %v2585
      %v2914 = vld [vmem:[#allocation3 + $0x5ac] sm:$0xf]
      %v2915 = vsel %vm1452, %v2592, %v2914
      %2916 = vst [vmem:[#allocation3 + $0x5ac] sm:$0xf] %v2915
      %2917 = vst [vmem:[#allocation3 + $0x5d0] sm:$0xf] %v2601
      %2918 = vst [vmem:[#allocation3 + $0x5f4] sm:$0xf] %v2610
      %2919 = vst [vmem:[#allocation3 + $0x618] sm:$0xf] %v2619
      %v2920 = vld [vmem:[#allocation3 + $0x63c] sm:$0xf]
      %v2921 = vsel %vm1452, %v2626, %v2920
      %2922 = vst [vmem:[#allocation3 + $0x63c] sm:$0xf] %v2921
      %2923 = vst [vmem:[#allocation3 + $0x660] sm:$0xf] %v2635
      %2924 = vst [vmem:[#allocation3 + $0x684] sm:$0xf] %v2644
      %2925 = vst [vmem:[#allocation3 + $0x6a8] sm:$0xf] %v2653
      %v2926 = vld [vmem:[#allocation3 + $0x6cc] sm:$0xf]
      %v2927 = vsel %vm1452, %v2660, %v2926
      %2928 = vst [vmem:[#allocation3 + $0x6cc] sm:$0xf] %v2927
      %2929 = vst [vmem:[#allocation3 + $0x6f0] sm:$0xf] %v2669
      %2930 = vst [vmem:[#allocation3 + $0x714] sm:$0xf] %v2678
      %2931 = vst [vmem:[#allocation3 + $0x738] sm:$0xf] %v2687
      %v2932 = vld [vmem:[#allocation3 + $0x75c] sm:$0xf]
      %v2933 = vsel %vm1452, %v2694, %v2932
      %2934 = vst [vmem:[#allocation3 + $0x75c] sm:$0xf] %v2933
      %2935 = vst [vmem:[#allocation3 + $0x780] sm:$0xf] %v2703
      %2936 = vst [vmem:[#allocation3 + $0x7a4] sm:$0xf] %v2712
      %2937 = vst [vmem:[#allocation3 + $0x7c8] sm:$0xf] %v2721
      %v2938 = vld [vmem:[#allocation3 + $0x7ec] sm:$0xf]
      %v2939 = vsel %vm1452, %v2728, %v2938
      %2940 = vst [vmem:[#allocation3 + $0x7ec] sm:$0xf] %v2939
      %2941 = vst [vmem:[#allocation3 + $0x810] sm:$0xf] %v2737
      %2942 = vst [vmem:[#allocation3 + $0x834] sm:$0xf] %v2746
      %2943 = vst [vmem:[#allocation3 + $0x858] sm:$0xf] %v2755
      %v2944 = vld [vmem:[#allocation3 + $0x87c] sm:$0xf]
      %v2945 = vsel %vm1452, %v2762, %v2944
      %2946 = vst [vmem:[#allocation3 + $0x87c] sm:$0xf] %v2945
      %2947 = vst [vmem:[#allocation3 + $0x8a0] sm:$0xf] %v2771
      %2948 = vst [vmem:[#allocation3 + $0x8c4] sm:$0xf] %v2780
      %2949 = vst [vmem:[#allocation3 + $0x8e8] sm:$0xf] %v2789
      %v2950 = vld [vmem:[#allocation3 + $0xc] sm:$0x1]
      %v2951 = vsel %vm1550, 0, %v2950
      %2952 = vst [vmem:[#allocation3 + $0xc] sm:$0x1] %v2951
      %v2953 = vld [vmem:[#allocation3 + $0x9c] sm:$0x1]
      %v2954 = vsel %vm1550, 0, %v2953
      %2955 = vst [vmem:[#allocation3 + $0x9c] sm:$0x1] %v2954
      %v2956 = vld [vmem:[#allocation3 + $0x12c] sm:$0x1]
      %v2957 = vsel %vm1550, 0, %v2956
      %2958 = vst [vmem:[#allocation3 + $0x12c] sm:$0x1] %v2957
      %v2959 = vld [vmem:[#allocation3 + $0x1bc] sm:$0x1]
      %v2960 = vsel %vm1550, 0, %v2959
      %2961 = vst [vmem:[#allocation3 + $0x1bc] sm:$0x1] %v2960
      %v2962 = vld [vmem:[#allocation3 + $0x24c] sm:$0x1]
      %v2963 = vsel %vm1550, 0, %v2962
      %2964 = vst [vmem:[#allocation3 + $0x24c] sm:$0x1] %v2963
      %v2965 = vld [vmem:[#allocation3 + $0x2dc] sm:$0x1]
      %v2966 = vsel %vm1550, 0, %v2965
      %2967 = vst [vmem:[#allocation3 + $0x2dc] sm:$0x1] %v2966
      %v2968 = vld [vmem:[#allocation3 + $0x36c] sm:$0x1]
      %v2969 = vsel %vm1550, 0, %v2968
      %2970 = vst [vmem:[#allocation3 + $0x36c] sm:$0x1] %v2969
      %v2971 = vld [vmem:[#allocation3 + $0x3fc] sm:$0x1]
      %v2972 = vsel %vm1550, 0, %v2971
      %2973 = vst [vmem:[#allocation3 + $0x3fc] sm:$0x1] %v2972
      %v2974 = vld [vmem:[#allocation3 + $0x48c] sm:$0x1]
      %v2975 = vsel %vm1550, 0, %v2974
      %2976 = vst [vmem:[#allocation3 + $0x48c] sm:$0x1] %v2975
      %v2977 = vld [vmem:[#allocation3 + $0x51c] sm:$0x1]
      %v2978 = vsel %vm1550, 0, %v2977
      %2979 = vst [vmem:[#allocation3 + $0x51c] sm:$0x1] %v2978
      %v2980 = vld [vmem:[#allocation3 + $0x5ac] sm:$0x1]
      %v2981 = vsel %vm1550, 0, %v2980
      %2982 = vst [vmem:[#allocation3 + $0x5ac] sm:$0x1] %v2981
      %v2983 = vld [vmem:[#allocation3 + $0x63c] sm:$0x1]
      %v2984 = vsel %vm1550, 0, %v2983
      %2985 = vst [vmem:[#allocation3 + $0x63c] sm:$0x1] %v2984
      %v2986 = vld [vmem:[#allocation3 + $0x6cc] sm:$0x1]
      %v2987 = vsel %vm1550, 0, %v2986
      %2988 = vst [vmem:[#allocation3 + $0x6cc] sm:$0x1] %v2987
      %v2989 = vld [vmem:[#allocation3 + $0x75c] sm:$0x1]
      %v2990 = vsel %vm1550, 0, %v2989
      %2991 = vst [vmem:[#allocation3 + $0x75c] sm:$0x1] %v2990
      %v2992 = vld [vmem:[#allocation3 + $0x7ec] sm:$0x1]
      %v2993 = vsel %vm1550, 0, %v2992
      %2994 = vst [vmem:[#allocation3 + $0x7ec] sm:$0x1] %v2993
      %v2995 = vld [vmem:[#allocation3 + $0x87c] sm:$0x1]
      %v2996 = vsel %vm1550, 0, %v2995
      %2997 = vst [vmem:[#allocation3 + $0x87c] sm:$0x1] %v2996
      %2998 = vst [vmem:[#allocation3 + $0x10] sm:$0xf] %v2182
      %2999 = vst [vmem:[#allocation3 + $0x34] sm:$0xf] %v2183
      %3000 = vst [vmem:[#allocation3 + $0x58] sm:$0xf] %v2184
      %3001 = vst [vmem:[#allocation3 + $0x7c] sm:$0xf] %v2185
      %3002 = vst [vmem:[#allocation3 + $0xa0] sm:$0xf] %v2186
      %3003 = vst [vmem:[#allocation3 + $0xc4] sm:$0xf] %v2187
      %3004 = vst [vmem:[#allocation3 + $0xe8] sm:$0xf] %v2188
      %3005 = vst [vmem:[#allocation3 + $0x10c] sm:$0xf] %v2189
      %3006 = vst [vmem:[#allocation3 + $0x130] sm:$0xf] %v2190
      %3007 = vst [vmem:[#allocation3 + $0x154] sm:$0xf] %v2191
      %3008 = vst [vmem:[#allocation3 + $0x178] sm:$0xf] %v2192
      %3009 = vst [vmem:[#allocation3 + $0x19c] sm:$0xf] %v2193
      %3010 = vst [vmem:[#allocation3 + $0x1c0] sm:$0xf] %v2194
      %3011 = vst [vmem:[#allocation3 + $0x1e4] sm:$0xf] %v2195
      %3012 = vst [vmem:[#allocation3 + $0x208] sm:$0xf] %v2196
      %3013 = vst [vmem:[#allocation3 + $0x22c] sm:$0xf] %v2197
      %3014 = vst [vmem:[#allocation3 + $0x250] sm:$0xf] %v2198
      %3015 = vst [vmem:[#allocation3 + $0x274] sm:$0xf] %v2199
      %3016 = vst [vmem:[#allocation3 + $0x298] sm:$0xf] %v2200
      %3017 = vst [vmem:[#allocation3 + $0x2bc] sm:$0xf] %v2201
      %3018 = vst [vmem:[#allocation3 + $0x2e0] sm:$0xf] %v2202
      %3019 = vst [vmem:[#allocation3 + $0x304] sm:$0xf] %v2203
      %3020 = vst [vmem:[#allocation3 + $0x328] sm:$0xf] %v2204
      %3021 = vst [vmem:[#allocation3 + $0x34c] sm:$0xf] %v2205
      %3022 = vst [vmem:[#allocation3 + $0x370] sm:$0xf] %v2206
      %3023 = vst [vmem:[#allocation3 + $0x394] sm:$0xf] %v2207
      %3024 = vst [vmem:[#allocation3 + $0x3b8] sm:$0xf] %v2208
      %3025 = vst [vmem:[#allocation3 + $0x3dc] sm:$0xf] %v2209
      %3026 = vst [vmem:[#allocation3 + $0x400] sm:$0xf] %v2210
      %3027 = vst [vmem:[#allocation3 + $0x424] sm:$0xf] %v2211
      %3028 = vst [vmem:[#allocation3 + $0x448] sm:$0xf] %v2212
      %3029 = vst [vmem:[#allocation3 + $0x46c] sm:$0xf] %v2213
      %3030 = vst [vmem:[#allocation3 + $0x490] sm:$0xf] %v2214
      %3031 = vst [vmem:[#allocation3 + $0x4b4] sm:$0xf] %v2215
      %3032 = vst [vmem:[#allocation3 + $0x4d8] sm:$0xf] %v2216
      %3033 = vst [vmem:[#allocation3 + $0x4fc] sm:$0xf] %v2217
      %3034 = vst [vmem:[#allocation3 + $0x520] sm:$0xf] %v2218
      %3035 = vst [vmem:[#allocation3 + $0x544] sm:$0xf] %v2219
      %3036 = vst [vmem:[#allocation3 + $0x568] sm:$0xf] %v2220
      %3037 = vst [vmem:[#allocation3 + $0x58c] sm:$0xf] %v2221
      %3038 = vst [vmem:[#allocation3 + $0x5b0] sm:$0xf] %v2222
      %3039 = vst [vmem:[#allocation3 + $0x5d4] sm:$0xf] %v2223
      %3040 = vst [vmem:[#allocation3 + $0x5f8] sm:$0xf] %v2224
      %3041 = vst [vmem:[#allocation3 + $0x61c] sm:$0xf] %v2225
      %3042 = vst [vmem:[#allocation3 + $0x640] sm:$0xf] %v2226
      %3043 = vst [vmem:[#allocation3 + $0x664] sm:$0xf] %v2227
      %3044 = vst [vmem:[#allocation3 + $0x688] sm:$0xf] %v2228
      %3045 = vst [vmem:[#allocation3 + $0x6ac] sm:$0xf] %v2229
      %3046 = vst [vmem:[#allocation3 + $0x6d0] sm:$0xf] %v2230
      %3047 = vst [vmem:[#allocation3 + $0x6f4] sm:$0xf] %v2231
      %3048 = vst [vmem:[#allocation3 + $0x718] sm:$0xf] %v2232
      %3049 = vst [vmem:[#allocation3 + $0x73c] sm:$0xf] %v2233
      %3050 = vst [vmem:[#allocation3 + $0x760] sm:$0xf] %v2234
      %3051 = vst [vmem:[#allocation3 + $0x784] sm:$0xf] %v2235
      %3052 = vst [vmem:[#allocation3 + $0x7a8] sm:$0xf] %v2236
      %3053 = vst [vmem:[#allocation3 + $0x7cc] sm:$0xf] %v2237
      %3054 = vst [vmem:[#allocation3 + $0x7f0] sm:$0xf] %v2238
      %3055 = vst [vmem:[#allocation3 + $0x814] sm:$0xf] %v2239
      %3056 = vst [vmem:[#allocation3 + $0x838] sm:$0xf] %v2240
      %3057 = vst [vmem:[#allocation3 + $0x85c] sm:$0xf] %v2241
      %3058 = vst [vmem:[#allocation3 + $0x880] sm:$0xf] %v2242
      %3059 = vst [vmem:[#allocation3 + $0x8a4] sm:$0xf] %v2243
      %3060 = vst [vmem:[#allocation3 + $0x8c8] sm:$0xf] %v2244
      %3061 = vst [vmem:[#allocation3 + $0x8ec] sm:$0xf] %v2245
      %v3062 = vrot.slane %v2247, 4
      %v3063 = vrot.slane %v2250, 5
      %v3064 = vor.u32 %v3062, %v3063
      %v3065 = vrot.slane %v3064, 4
      %v3066 = vrot.slane %v2258, 5
      %v3067 = vsel %vm1665, %v3065, %v3066
      %v3068 = vrot.slane %v2255, 4
      %v3069 = vor.u32 %v3068, %v3066
      %v3070 = vrot.slane %v3069, 4
      %v3071 = vrot.slane %v2267, 5
      %v3072 = vsel %vm1665, %v3070, %v3071
      %v3073 = vrot.slane %v2264, 4
      %v3074 = vor.u32 %v3073, %v3071
      %v3075 = vrot.slane %v3074, 4
      %v3076 = vrot.slane %v2276, 5
      %v3077 = vsel %vm1665, %v3075, %v3076
      %v3078 = vrot.slane %v2273, 4
      %v3079 = vor.u32 %v3078, %v3076
      %v3080 = vrot.slane %v3079, 4
      %v3081 = vrot.slane %v2281, 4
      %v3082 = vrot.slane %v2284, 5
      %v3083 = vor.u32 %v3081, %v3082
      %v3084 = vrot.slane %v3083, 4
      %v3085 = vrot.slane %v2292, 5
      %v3086 = vsel %vm1665, %v3084, %v3085
      %v3087 = vrot.slane %v2289, 4
      %v3088 = vor.u32 %v3087, %v3085
      %v3089 = vrot.slane %v3088, 4
      %v3090 = vrot.slane %v2301, 5
      %v3091 = vsel %vm1665, %v3089, %v3090
      %v3092 = vrot.slane %v2298, 4
      %v3093 = vor.u32 %v3092, %v3090
      %v3094 = vrot.slane %v3093, 4
      %v3095 = vrot.slane %v2310, 5
      %v3096 = vsel %vm1665, %v3094, %v3095
      %v3097 = vrot.slane %v2307, 4
      %v3098 = vor.u32 %v3097, %v3095
      %v3099 = vrot.slane %v3098, 4
      %v3100 = vrot.slane %v2315, 4
      %v3101 = vrot.slane %v2318, 5
      %v3102 = vor.u32 %v3100, %v3101
      %v3103 = vrot.slane %v3102, 4
      %v3104 = vrot.slane %v2326, 5
      %v3105 = vsel %vm1665, %v3103, %v3104
      %v3106 = vrot.slane %v2323, 4
      %v3107 = vor.u32 %v3106, %v3104
      %v3108 = vrot.slane %v3107, 4
      %v3109 = vrot.slane %v2335, 5
      %v3110 = vsel %vm1665, %v3108, %v3109
      %v3111 = vrot.slane %v2332, 4
      %v3112 = vor.u32 %v3111, %v3109
      %v3113 = vrot.slane %v3112, 4
      %v3114 = vrot.slane %v2344, 5
      %v3115 = vsel %vm1665, %v3113, %v3114
      %v3116 = vrot.slane %v2341, 4
      %v3117 = vor.u32 %v3116, %v3114
      %v3118 = vrot.slane %v3117, 4
      %v3119 = vrot.slane %v2349, 4
      %v3120 = vrot.slane %v2352, 5
      %v3121 = vor.u32 %v3119, %v3120
      %v3122 = vrot.slane %v3121, 4
      %v3123 = vrot.slane %v2360, 5
      %v3124 = vsel %vm1665, %v3122, %v3123
      %v3125 = vrot.slane %v2357, 4
      %v3126 = vor.u32 %v3125, %v3123
      %v3127 = vrot.slane %v3126, 4
      %v3128 = vrot.slane %v2369, 5
      %v3129 = vsel %vm1665, %v3127, %v3128
      %v3130 = vrot.slane %v2366, 4
      %v3131 = vor.u32 %v3130, %v3128
      %v3132 = vrot.slane %v3131, 4
      %v3133 = vrot.slane %v2378, 5
      %v3134 = vsel %vm1665, %v3132, %v3133
      %v3135 = vrot.slane %v2375, 4
      %v3136 = vor.u32 %v3135, %v3133
      %v3137 = vrot.slane %v3136, 4
      %v3138 = vrot.slane %v2383, 4
      %v3139 = vrot.slane %v2386, 5
      %v3140 = vor.u32 %v3138, %v3139
      %v3141 = vrot.slane %v3140, 4
      %v3142 = vrot.slane %v2394, 5
      %v3143 = vsel %vm1665, %v3141, %v3142
      %v3144 = vrot.slane %v2391, 4
      %v3145 = vor.u32 %v3144, %v3142
      %v3146 = vrot.slane %v3145, 4
      %v3147 = vrot.slane %v2403, 5
      %v3148 = vsel %vm1665, %v3146, %v3147
      %v3149 = vrot.slane %v2400, 4
      %v3150 = vor.u32 %v3149, %v3147
      %v3151 = vrot.slane %v3150, 4
      %v3152 = vrot.slane %v2412, 5
      %v3153 = vsel %vm1665, %v3151, %v3152
      %v3154 = vrot.slane %v2409, 4
      %v3155 = vor.u32 %v3154, %v3152
      %v3156 = vrot.slane %v3155, 4
      %v3157 = vrot.slane %v2417, 4
      %v3158 = vrot.slane %v2420, 5
      %v3159 = vor.u32 %v3157, %v3158
      %v3160 = vrot.slane %v3159, 4
      %v3161 = vrot.slane %v2428, 5
      %v3162 = vsel %vm1665, %v3160, %v3161
      %v3163 = vrot.slane %v2425, 4
      %v3164 = vor.u32 %v3163, %v3161
      %v3165 = vrot.slane %v3164, 4
      %v3166 = vrot.slane %v2437, 5
      %v3167 = vsel %vm1665, %v3165, %v3166
      %v3168 = vrot.slane %v2434, 4
      %v3169 = vor.u32 %v3168, %v3166
      %v3170 = vrot.slane %v3169, 4
      %v3171 = vrot.slane %v2446, 5
      %v3172 = vsel %vm1665, %v3170, %v3171
      %v3173 = vrot.slane %v2443, 4
      %v3174 = vor.u32 %v3173, %v3171
      %v3175 = vrot.slane %v3174, 4
      %v3176 = vrot.slane %v2451, 4
      %v3177 = vrot.slane %v2454, 5
      %v3178 = vor.u32 %v3176, %v3177
      %v3179 = vrot.slane %v3178, 4
      %v3180 = vrot.slane %v2462, 5
      %v3181 = vsel %vm1665, %v3179, %v3180
      %v3182 = vrot.slane %v2459, 4
      %v3183 = vor.u32 %v3182, %v3180
      %v3184 = vrot.slane %v3183, 4
      %v3185 = vrot.slane %v2471, 5
      %v3186 = vsel %vm1665, %v3184, %v3185
      %v3187 = vrot.slane %v2468, 4
      %v3188 = vor.u32 %v3187, %v3185
      %v3189 = vrot.slane %v3188, 4
      %v3190 = vrot.slane %v2480, 5
      %v3191 = vsel %vm1665, %v3189, %v3190
      %v3192 = vrot.slane %v2477, 4
      %v3193 = vor.u32 %v3192, %v3190
      %v3194 = vrot.slane %v3193, 4
      %v3195 = vrot.slane %v2485, 4
      %v3196 = vrot.slane %v2488, 5
      %v3197 = vor.u32 %v3195, %v3196
      %v3198 = vrot.slane %v3197, 4
      %v3199 = vrot.slane %v2496, 5
      %v3200 = vsel %vm1665, %v3198, %v3199
      %v3201 = vrot.slane %v2493, 4
      %v3202 = vor.u32 %v3201, %v3199
      %v3203 = vrot.slane %v3202, 4
      %v3204 = vrot.slane %v2505, 5
      %v3205 = vsel %vm1665, %v3203, %v3204
      %v3206 = vrot.slane %v2502, 4
      %v3207 = vor.u32 %v3206, %v3204
      %v3208 = vrot.slane %v3207, 4
      %v3209 = vrot.slane %v2514, 5
      %v3210 = vsel %vm1665, %v3208, %v3209
      %v3211 = vrot.slane %v2511, 4
      %v3212 = vor.u32 %v3211, %v3209
      %v3213 = vrot.slane %v3212, 4
      %v3214 = vrot.slane %v2519, 4
      %v3215 = vrot.slane %v2522, 5
      %v3216 = vor.u32 %v3214, %v3215
      %v3217 = vrot.slane %v3216, 4
      %v3218 = vrot.slane %v2530, 5
      %v3219 = vsel %vm1665, %v3217, %v3218
      %v3220 = vrot.slane %v2527, 4
      %v3221 = vor.u32 %v3220, %v3218
      %v3222 = vrot.slane %v3221, 4
      %v3223 = vrot.slane %v2539, 5
      %v3224 = vsel %vm1665, %v3222, %v3223
      %v3225 = vrot.slane %v2536, 4
      %v3226 = vor.u32 %v3225, %v3223
      %v3227 = vrot.slane %v3226, 4
      %v3228 = vrot.slane %v2548, 5
      %v3229 = vsel %vm1665, %v3227, %v3228
      %v3230 = vrot.slane %v2545, 4
      %v3231 = vor.u32 %v3230, %v3228
      %v3232 = vrot.slane %v3231, 4
      %v3233 = vrot.slane %v2553, 4
      %v3234 = vrot.slane %v2556, 5
      %v3235 = vor.u32 %v3233, %v3234
      %v3236 = vrot.slane %v3235, 4
      %v3237 = vrot.slane %v2564, 5
      %v3238 = vsel %vm1665, %v3236, %v3237
      %v3239 = vrot.slane %v2561, 4
      %v3240 = vor.u32 %v3239, %v3237
      %v3241 = vrot.slane %v3240, 4
      %v3242 = vrot.slane %v2573, 5
      %v3243 = vsel %vm1665, %v3241, %v3242
      %v3244 = vrot.slane %v2570, 4
      %v3245 = vor.u32 %v3244, %v3242
      %v3246 = vrot.slane %v3245, 4
      %v3247 = vrot.slane %v2582, 5
      %v3248 = vsel %vm1665, %v3246, %v3247
      %v3249 = vrot.slane %v2579, 4
      %v3250 = vor.u32 %v3249, %v3247
      %v3251 = vrot.slane %v3250, 4
      %v3252 = vrot.slane %v2587, 4
      %v3253 = vrot.slane %v2590, 5
      %v3254 = vor.u32 %v3252, %v3253
      %v3255 = vrot.slane %v3254, 4
      %v3256 = vrot.slane %v2598, 5
      %v3257 = vsel %vm1665, %v3255, %v3256
      %v3258 = vrot.slane %v2595, 4
      %v3259 = vor.u32 %v3258, %v3256
      %v3260 = vrot.slane %v3259, 4
      %v3261 = vrot.slane %v2607, 5
      %v3262 = vsel %vm1665, %v3260, %v3261
      %v3263 = vrot.slane %v2604, 4
      %v3264 = vor.u32 %v3263, %v3261
      %v3265 = vrot.slane %v3264, 4
      %v3266 = vrot.slane %v2616, 5
      %v3267 = vsel %vm1665, %v3265, %v3266
      %v3268 = vrot.slane %v2613, 4
      %v3269 = vor.u32 %v3268, %v3266
      %v3270 = vrot.slane %v3269, 4
      %v3271 = vrot.slane %v2621, 4
      %v3272 = vrot.slane %v2624, 5
      %v3273 = vor.u32 %v3271, %v3272
      %v3274 = vrot.slane %v3273, 4
      %v3275 = vrot.slane %v2632, 5
      %v3276 = vsel %vm1665, %v3274, %v3275
      %v3277 = vrot.slane %v2629, 4
      %v3278 = vor.u32 %v3277, %v3275
      %v3279 = vrot.slane %v3278, 4
      %v3280 = vrot.slane %v2641, 5
      %v3281 = vsel %vm1665, %v3279, %v3280
      %v3282 = vrot.slane %v2638, 4
      %v3283 = vor.u32 %v3282, %v3280
      %v3284 = vrot.slane %v3283, 4
      %v3285 = vrot.slane %v2650, 5
      %v3286 = vsel %vm1665, %v3284, %v3285
      %v3287 = vrot.slane %v2647, 4
      %v3288 = vor.u32 %v3287, %v3285
      %v3289 = vrot.slane %v3288, 4
      %v3290 = vrot.slane %v2655, 4
      %v3291 = vrot.slane %v2658, 5
      %v3292 = vor.u32 %v3290, %v3291
      %v3293 = vrot.slane %v3292, 4
      %v3294 = vrot.slane %v2666, 5
      %v3295 = vsel %vm1665, %v3293, %v3294
      %v3296 = vrot.slane %v2663, 4
      %v3297 = vor.u32 %v3296, %v3294
      %v3298 = vrot.slane %v3297, 4
      %v3299 = vrot.slane %v2675, 5
      %v3300 = vsel %vm1665, %v3298, %v3299
      %v3301 = vrot.slane %v2672, 4
      %v3302 = vor.u32 %v3301, %v3299
      %v3303 = vrot.slane %v3302, 4
      %v3304 = vrot.slane %v2684, 5
      %v3305 = vsel %vm1665, %v3303, %v3304
      %v3306 = vrot.slane %v2681, 4
      %v3307 = vor.u32 %v3306, %v3304
      %v3308 = vrot.slane %v3307, 4
      %v3309 = vrot.slane %v2689, 4
      %v3310 = vrot.slane %v2692, 5
      %v3311 = vor.u32 %v3309, %v3310
      %v3312 = vrot.slane %v3311, 4
      %v3313 = vrot.slane %v2700, 5
      %v3314 = vsel %vm1665, %v3312, %v3313
      %v3315 = vrot.slane %v2697, 4
      %v3316 = vor.u32 %v3315, %v3313
      %v3317 = vrot.slane %v3316, 4
      %v3318 = vrot.slane %v2709, 5
      %v3319 = vsel %vm1665, %v3317, %v3318
      %v3320 = vrot.slane %v2706, 4
      %v3321 = vor.u32 %v3320, %v3318
      %v3322 = vrot.slane %v3321, 4
      %v3323 = vrot.slane %v2718, 5
      %v3324 = vsel %vm1665, %v3322, %v3323
      %v3325 = vrot.slane %v2715, 4
      %v3326 = vor.u32 %v3325, %v3323
      %v3327 = vrot.slane %v3326, 4
      %v3328 = vrot.slane %v2723, 4
      %v3329 = vrot.slane %v2726, 5
      %v3330 = vor.u32 %v3328, %v3329
      %v3331 = vrot.slane %v3330, 4
      %v3332 = vrot.slane %v2734, 5
      %v3333 = vsel %vm1665, %v3331, %v3332
      %v3334 = vrot.slane %v2731, 4
      %v3335 = vor.u32 %v3334, %v3332
      %v3336 = vrot.slane %v3335, 4
      %v3337 = vrot.slane %v2743, 5
      %v3338 = vsel %vm1665, %v3336, %v3337
      %v3339 = vrot.slane %v2740, 4
      %v3340 = vor.u32 %v3339, %v3337
      %v3341 = vrot.slane %v3340, 4
      %v3342 = vrot.slane %v2752, 5
      %v3343 = vsel %vm1665, %v3341, %v3342
      %v3344 = vrot.slane %v2749, 4
      %v3345 = vor.u32 %v3344, %v3342
      %v3346 = vrot.slane %v3345, 4
      %v3347 = vrot.slane %v2757, 4
      %v3348 = vrot.slane %v2760, 5
      %v3349 = vor.u32 %v3347, %v3348
      %v3350 = vrot.slane %v3349, 4
      %v3351 = vrot.slane %v2768, 5
      %v3352 = vsel %vm1665, %v3350, %v3351
      %v3353 = vrot.slane %v2765, 4
      %v3354 = vor.u32 %v3353, %v3351
      %v3355 = vrot.slane %v3354, 4
      %v3356 = vrot.slane %v2777, 5
      %v3357 = vsel %vm1665, %v3355, %v3356
      %v3358 = vrot.slane %v2774, 4
      %v3359 = vor.u32 %v3358, %v3356
      %v3360 = vrot.slane %v3359, 4
      %v3361 = vrot.slane %v2786, 5
      %v3362 = vsel %vm1665, %v3360, %v3361
      %v3363 = vrot.slane %v2783, 4
      %v3364 = vor.u32 %v3363, %v3361
      %v3365 = vrot.slane %v3364, 4
      %3430 = vst [vmem:[#allocation3 + $0x14] sm:$0xf] %v3067
      %3431 = vst [vmem:[#allocation3 + $0x38] sm:$0xf] %v3072
      %3432 = vst [vmem:[#allocation3 + $0x5c] sm:$0xf] %v3077
      %v3433 = vld [vmem:[#allocation3 + $0x80] sm:$0xf]
      %v3434 = vsel %vm2037, %v3080, %v3433
      %3435 = vst [vmem:[#allocation3 + $0x80] sm:$0xf] %v3434
      %3436 = vst [vmem:[#allocation3 + $0xa4] sm:$0xf] %v3086
      %3437 = vst [vmem:[#allocation3 + $0xc8] sm:$0xf] %v3091
      %3438 = vst [vmem:[#allocation3 + $0xec] sm:$0xf] %v3096
      %v3439 = vld [vmem:[#allocation3 + $0x110] sm:$0xf]
      %v3440 = vsel %vm2037, %v3099, %v3439
      %3441 = vst [vmem:[#allocation3 + $0x110] sm:$0xf] %v3440
      %3442 = vst [vmem:[#allocation3 + $0x134] sm:$0xf] %v3105
      %3443 = vst [vmem:[#allocation3 + $0x158] sm:$0xf] %v3110
      %3444 = vst [vmem:[#allocation3 + $0x17c] sm:$0xf] %v3115
      %v3445 = vld [vmem:[#allocation3 + $0x1a0] sm:$0xf]
      %v3446 = vsel %vm2037, %v3118, %v3445
      %3447 = vst [vmem:[#allocation3 + $0x1a0] sm:$0xf] %v3446
      %3448 = vst [vmem:[#allocation3 + $0x1c4] sm:$0xf] %v3124
      %3449 = vst [vmem:[#allocation3 + $0x1e8] sm:$0xf] %v3129
      %3450 = vst [vmem:[#allocation3 + $0x20c] sm:$0xf] %v3134
      %v3451 = vld [vmem:[#allocation3 + $0x230] sm:$0xf]
      %v3452 = vsel %vm2037, %v3137, %v3451
      %3453 = vst [vmem:[#allocation3 + $0x230] sm:$0xf] %v3452
      %3454 = vst [vmem:[#allocation3 + $0x254] sm:$0xf] %v3143
      %3455 = vst [vmem:[#allocation3 + $0x278] sm:$0xf] %v3148
      %3456 = vst [vmem:[#allocation3 + $0x29c] sm:$0xf] %v3153
      %v3457 = vld [vmem:[#allocation3 + $0x2c0] sm:$0xf]
      %v3458 = vsel %vm2037, %v3156, %v3457
      %3459 = vst [vmem:[#allocation3 + $0x2c0] sm:$0xf] %v3458
      %3460 = vst [vmem:[#allocation3 + $0x2e4] sm:$0xf] %v3162
      %3461 = vst [vmem:[#allocation3 + $0x308] sm:$0xf] %v3167
      %3462 = vst [vmem:[#allocation3 + $0x32c] sm:$0xf] %v3172
      %v3463 = vld [vmem:[#allocation3 + $0x350] sm:$0xf]
      %v3464 = vsel %vm2037, %v3175, %v3463
      %3465 = vst [vmem:[#allocation3 + $0x350] sm:$0xf] %v3464
      %3466 = vst [vmem:[#allocation3 + $0x374] sm:$0xf] %v3181
      %3467 = vst [vmem:[#allocation3 + $0x398] sm:$0xf] %v3186
      %3468 = vst [vmem:[#allocation3 + $0x3bc] sm:$0xf] %v3191
      %v3469 = vld [vmem:[#allocation3 + $0x3e0] sm:$0xf]
      %v3470 = vsel %vm2037, %v3194, %v3469
      %3471 = vst [vmem:[#allocation3 + $0x3e0] sm:$0xf] %v3470
      %3472 = vst [vmem:[#allocation3 + $0x404] sm:$0xf] %v3200
      %3473 = vst [vmem:[#allocation3 + $0x428] sm:$0xf] %v3205
      %3474 = vst [vmem:[#allocation3 + $0x44c] sm:$0xf] %v3210
      %v3475 = vld [vmem:[#allocation3 + $0x470] sm:$0xf]
      %v3476 = vsel %vm2037, %v3213, %v3475
      %3477 = vst [vmem:[#allocation3 + $0x470] sm:$0xf] %v3476
      %3478 = vst [vmem:[#allocation3 + $0x494] sm:$0xf] %v3219
      %3479 = vst [vmem:[#allocation3 + $0x4b8] sm:$0xf] %v3224
      %3480 = vst [vmem:[#allocation3 + $0x4dc] sm:$0xf] %v3229
      %v3481 = vld [vmem:[#allocation3 + $0x500] sm:$0xf]
      %v3482 = vsel %vm2037, %v3232, %v3481
      %3483 = vst [vmem:[#allocation3 + $0x500] sm:$0xf] %v3482
      %3484 = vst [vmem:[#allocation3 + $0x524] sm:$0xf] %v3238
      %3485 = vst [vmem:[#allocation3 + $0x548] sm:$0xf] %v3243
      %3486 = vst [vmem:[#allocation3 + $0x56c] sm:$0xf] %v3248
      %v3487 = vld [vmem:[#allocation3 + $0x590] sm:$0xf]
      %v3488 = vsel %vm2037, %v3251, %v3487
      %3489 = vst [vmem:[#allocation3 + $0x590] sm:$0xf] %v3488
      %3490 = vst [vmem:[#allocation3 + $0x5b4] sm:$0xf] %v3257
      %3491 = vst [vmem:[#allocation3 + $0x5d8] sm:$0xf] %v3262
      %3492 = vst [vmem:[#allocation3 + $0x5fc] sm:$0xf] %v3267
      %v3493 = vld [vmem:[#allocation3 + $0x620] sm:$0xf]
      %v3494 = vsel %vm2037, %v3270, %v3493
      %3495 = vst [vmem:[#allocation3 + $0x620] sm:$0xf] %v3494
      %3496 = vst [vmem:[#allocation3 + $0x644] sm:$0xf] %v3276
      %3497 = vst [vmem:[#allocation3 + $0x668] sm:$0xf] %v3281
      %3498 = vst [vmem:[#allocation3 + $0x68c] sm:$0xf] %v3286
      %v3499 = vld [vmem:[#allocation3 + $0x6b0] sm:$0xf]
      %v3500 = vsel %vm2037, %v3289, %v3499
      %3501 = vst [vmem:[#allocation3 + $0x6b0] sm:$0xf] %v3500
      %3502 = vst [vmem:[#allocation3 + $0x6d4] sm:$0xf] %v3295
      %3503 = vst [vmem:[#allocation3 + $0x6f8] sm:$0xf] %v3300
      %3504 = vst [vmem:[#allocation3 + $0x71c] sm:$0xf] %v3305
      %v3505 = vld [vmem:[#allocation3 + $0x740] sm:$0xf]
      %v3506 = vsel %vm2037, %v3308, %v3505
      %3507 = vst [vmem:[#allocation3 + $0x740] sm:$0xf] %v3506
      %3508 = vst [vmem:[#allocation3 + $0x764] sm:$0xf] %v3314
      %3509 = vst [vmem:[#allocation3 + $0x788] sm:$0xf] %v3319
      %3510 = vst [vmem:[#allocation3 + $0x7ac] sm:$0xf] %v3324
      %v3511 = vld [vmem:[#allocation3 + $0x7d0] sm:$0xf]
      %v3512 = vsel %vm2037, %v3327, %v3511
      %3513 = vst [vmem:[#allocation3 + $0x7d0] sm:$0xf] %v3512
      %3514 = vst [vmem:[#allocation3 + $0x7f4] sm:$0xf] %v3333
      %3515 = vst [vmem:[#allocation3 + $0x818] sm:$0xf] %v3338
      %3516 = vst [vmem:[#allocation3 + $0x83c] sm:$0xf] %v3343
      %v3517 = vld [vmem:[#allocation3 + $0x860] sm:$0xf]
      %v3518 = vsel %vm2037, %v3346, %v3517
      %3519 = vst [vmem:[#allocation3 + $0x860] sm:$0xf] %v3518
      %3520 = vst [vmem:[#allocation3 + $0x884] sm:$0xf] %v3352
      %3521 = vst [vmem:[#allocation3 + $0x8a8] sm:$0xf] %v3357
      %3522 = vst [vmem:[#allocation3 + $0x8cc] sm:$0xf] %v3362
      %v3523 = vld [vmem:[#allocation3 + $0x8f0] sm:$0xf]
      %v3524 = vsel %vm2037, %v3365, %v3523
      %3525 = vst [vmem:[#allocation3 + $0x8f0] sm:$0xf] %v3524
      %v3526 = vld [vmem:[#allocation3 + $0x80] sm:$0x8]
      %v3527 = vsel %vm2133, 0, %v3526
      %3528 = vst [vmem:[#allocation3 + $0x80] sm:$0x8] %v3527
      %v3529 = vld [vmem:[#allocation3 + $0x110] sm:$0x8]
      %v3530 = vsel %vm2133, 0, %v3529
      %3531 = vst [vmem:[#allocation3 + $0x110] sm:$0x8] %v3530
      %v3532 = vld [vmem:[#allocation3 + $0x1a0] sm:$0x8]
      %v3533 = vsel %vm2133, 0, %v3532
      %3534 = vst [vmem:[#allocation3 + $0x1a0] sm:$0x8] %v3533
      %v3535 = vld [vmem:[#allocation3 + $0x230] sm:$0x8]
      %v3536 = vsel %vm2133, 0, %v3535
      %3537 = vst [vmem:[#allocation3 + $0x230] sm:$0x8] %v3536
      %v3538 = vld [vmem:[#allocation3 + $0x2c0] sm:$0x8]
      %v3539 = vsel %vm2133, 0, %v3538
      %3540 = vst [vmem:[#allocation3 + $0x2c0] sm:$0x8] %v3539
      %v3541 = vld [vmem:[#allocation3 + $0x350] sm:$0x8]
      %v3542 = vsel %vm2133, 0, %v3541
      %3543 = vst [vmem:[#allocation3 + $0x350] sm:$0x8] %v3542
      %v3544 = vld [vmem:[#allocation3 + $0x3e0] sm:$0x8]
      %v3545 = vsel %vm2133, 0, %v3544
      %3546 = vst [vmem:[#allocation3 + $0x3e0] sm:$0x8] %v3545
      %v3547 = vld [vmem:[#allocation3 + $0x470] sm:$0x8]
      %v3548 = vsel %vm2133, 0, %v3547
      %3549 = vst [vmem:[#allocation3 + $0x470] sm:$0x8] %v3548
      %v3550 = vld [vmem:[#allocation3 + $0x500] sm:$0x8]
      %v3551 = vsel %vm2133, 0, %v3550
      %3552 = vst [vmem:[#allocation3 + $0x500] sm:$0x8] %v3551
      %v3553 = vld [vmem:[#allocation3 + $0x590] sm:$0x8]
      %v3554 = vsel %vm2133, 0, %v3553
      %3555 = vst [vmem:[#allocation3 + $0x590] sm:$0x8] %v3554
      %v3556 = vld [vmem:[#allocation3 + $0x620] sm:$0x8]
      %v3557 = vsel %vm2133, 0, %v3556
      %3558 = vst [vmem:[#allocation3 + $0x620] sm:$0x8] %v3557
      %v3559 = vld [vmem:[#allocation3 + $0x6b0] sm:$0x8]
      %v3560 = vsel %vm2133, 0, %v3559
      %3561 = vst [vmem:[#allocation3 + $0x6b0] sm:$0x8] %v3560
      %v3562 = vld [vmem:[#allocation3 + $0x740] sm:$0x8]
      %v3563 = vsel %vm2133, 0, %v3562
      %3564 = vst [vmem:[#allocation3 + $0x740] sm:$0x8] %v3563
      %v3565 = vld [vmem:[#allocation3 + $0x7d0] sm:$0x8]
      %v3566 = vsel %vm2133, 0, %v3565
      %3567 = vst [vmem:[#allocation3 + $0x7d0] sm:$0x8] %v3566
      %v3568 = vld [vmem:[#allocation3 + $0x860] sm:$0x8]
      %v3569 = vsel %vm2133, 0, %v3568
      %3570 = vst [vmem:[#allocation3 + $0x860] sm:$0x8] %v3569
      %v3571 = vld [vmem:[#allocation3 + $0x8f0] sm:$0x8]
      %v3572 = vsel %vm2133, 0, %v3571
      %3573 = vst [vmem:[#allocation3 + $0x8f0] sm:$0x8] %v3572
      %s3574 = scalar_lea.vmem [#allocation2], 32
      %v3575 = vld [vmem:[%s3574] sm:$0xf]
      %v3576 = vld [vmem:[%s3574 + $0x4] sm:$0xf]
      %v3577 = vld [vmem:[%s3574 + $0x8] sm:$0xf]
      %v3578 = vld [vmem:[%s3574 + $0xc] sm:$0xf]
      %v3579 = vld [vmem:[%s3574 + $0x10] sm:$0xf]
      %v3580 = vld [vmem:[%s3574 + $0x14] sm:$0xf]
      %v3581 = vld [vmem:[%s3574 + $0x18] sm:$0xf]
      %v3582 = vld [vmem:[%s3574 + $0x1c] sm:$0xf]
      %v3583 = vld [vmem:[%s3574 + $0x20] sm:$0xf]
      %v3584 = vld [vmem:[%s3574 + $0x24] sm:$0xf]
      %v3585 = vld [vmem:[%s3574 + $0x28] sm:$0xf]
      %v3586 = vld [vmem:[%s3574 + $0x2c] sm:$0xf]
      %v3587 = vld [vmem:[%s3574 + $0x30] sm:$0xf]
      %v3588 = vld [vmem:[%s3574 + $0x34] sm:$0xf]
      %v3589 = vld [vmem:[%s3574 + $0x38] sm:$0xf]
      %v3590 = vld [vmem:[%s3574 + $0x3c] sm:$0xf]
      %v3591 = vld [vmem:[%s3574 + $0x40] sm:$0xf]
      %v3592 = vld [vmem:[%s3574 + $0x44] sm:$0xf]
      %v3593 = vld [vmem:[%s3574 + $0x48] sm:$0xf]
      %v3594 = vld [vmem:[%s3574 + $0x4c] sm:$0xf]
      %v3595 = vld [vmem:[%s3574 + $0x50] sm:$0xf]
      %v3596 = vld [vmem:[%s3574 + $0x54] sm:$0xf]
      %v3597 = vld [vmem:[%s3574 + $0x58] sm:$0xf]
      %v3598 = vld [vmem:[%s3574 + $0x5c] sm:$0xf]
      %v3599 = vld [vmem:[%s3574 + $0x60] sm:$0xf]
      %v3600 = vld [vmem:[%s3574 + $0x64] sm:$0xf]
      %v3601 = vld [vmem:[%s3574 + $0x68] sm:$0xf]
      %v3602 = vld [vmem:[%s3574 + $0x6c] sm:$0xf]
      %v3603 = vld [vmem:[%s3574 + $0x70] sm:$0xf]
      %v3604 = vld [vmem:[%s3574 + $0x74] sm:$0xf]
      %v3605 = vld [vmem:[%s3574 + $0x78] sm:$0xf]
      %v3606 = vld [vmem:[%s3574 + $0x7c] sm:$0xf]
      %v3607 = vld [vmem:[%s3574 + $0x80] sm:$0xf]
      %v3608 = vld [vmem:[%s3574 + $0x84] sm:$0xf]
      %v3609 = vld [vmem:[%s3574 + $0x88] sm:$0xf]
      %v3610 = vld [vmem:[%s3574 + $0x8c] sm:$0xf]
      %v3611 = vld [vmem:[%s3574 + $0x90] sm:$0xf]
      %v3612 = vld [vmem:[%s3574 + $0x94] sm:$0xf]
      %v3613 = vld [vmem:[%s3574 + $0x98] sm:$0xf]
      %v3614 = vld [vmem:[%s3574 + $0x9c] sm:$0xf]
      %v3615 = vld [vmem:[%s3574 + $0xa0] sm:$0xf]
      %v3616 = vld [vmem:[%s3574 + $0xa4] sm:$0xf]
      %v3617 = vld [vmem:[%s3574 + $0xa8] sm:$0xf]
      %v3618 = vld [vmem:[%s3574 + $0xac] sm:$0xf]
      %v3619 = vld [vmem:[%s3574 + $0xb0] sm:$0xf]
      %v3620 = vld [vmem:[%s3574 + $0xb4] sm:$0xf]
      %v3621 = vld [vmem:[%s3574 + $0xb8] sm:$0xf]
      %v3622 = vld [vmem:[%s3574 + $0xbc] sm:$0xf]
      %v3623 = vld [vmem:[%s3574 + $0xc0] sm:$0xf]
      %v3624 = vld [vmem:[%s3574 + $0xc4] sm:$0xf]
      %v3625 = vld [vmem:[%s3574 + $0xc8] sm:$0xf]
      %v3626 = vld [vmem:[%s3574 + $0xcc] sm:$0xf]
      %v3627 = vld [vmem:[%s3574 + $0xd0] sm:$0xf]
      %v3628 = vld [vmem:[%s3574 + $0xd4] sm:$0xf]
      %v3629 = vld [vmem:[%s3574 + $0xd8] sm:$0xf]
      %v3630 = vld [vmem:[%s3574 + $0xdc] sm:$0xf]
      %v3631 = vld [vmem:[%s3574 + $0xe0] sm:$0xf]
      %v3632 = vld [vmem:[%s3574 + $0xe4] sm:$0xf]
      %v3633 = vld [vmem:[%s3574 + $0xe8] sm:$0xf]
      %v3634 = vld [vmem:[%s3574 + $0xec] sm:$0xf]
      %v3635 = vld [vmem:[%s3574 + $0xf0] sm:$0xf]
      %v3636 = vld [vmem:[%s3574 + $0xf4] sm:$0xf]
      %v3637 = vld [vmem:[%s3574 + $0xf8] sm:$0xf]
      %v3638 = vld [vmem:[%s3574 + $0xfc] sm:$0xf]
      %v3640 = vshrl.u32 %v3575, 16
      %v3642 = vrot.slane %v3640, 7
      %v3643 = vshll.u32 %v3575, 16
      %v3645 = vor.u32 %v3642, %v3643
      %v3646 = vrot.slane %v3642, 4
      %v3648 = vshrl.u32 %v3576, 16
      %v3650 = vrot.slane %v3648, 7
      %v3651 = vshll.u32 %v3576, 16
      %v3653 = vor.u32 %v3650, %v3651
      %v3654 = vsel %vm841, %v3646, %v3653
      %v3655 = vrot.slane %v3650, 4
      %v3657 = vshrl.u32 %v3577, 16
      %v3659 = vrot.slane %v3657, 7
      %v3660 = vshll.u32 %v3577, 16
      %v3662 = vor.u32 %v3659, %v3660
      %v3663 = vsel %vm841, %v3655, %v3662
      %v3664 = vrot.slane %v3659, 4
      %v3666 = vshrl.u32 %v3578, 16
      %v3668 = vrot.slane %v3666, 7
      %v3669 = vshll.u32 %v3578, 16
      %v3671 = vor.u32 %v3668, %v3669
      %v3672 = vsel %vm841, %v3664, %v3671
      %v3674 = vshrl.u32 %v3579, 16
      %v3676 = vrot.slane %v3674, 7
      %v3677 = vshll.u32 %v3579, 16
      %v3679 = vor.u32 %v3676, %v3677
      %v3680 = vrot.slane %v3676, 4
      %v3682 = vshrl.u32 %v3580, 16
      %v3684 = vrot.slane %v3682, 7
      %v3685 = vshll.u32 %v3580, 16
      %v3687 = vor.u32 %v3684, %v3685
      %v3688 = vsel %vm841, %v3680, %v3687
      %v3689 = vrot.slane %v3684, 4
      %v3691 = vshrl.u32 %v3581, 16
      %v3693 = vrot.slane %v3691, 7
      %v3694 = vshll.u32 %v3581, 16
      %v3696 = vor.u32 %v3693, %v3694
      %v3697 = vsel %vm841, %v3689, %v3696
      %v3698 = vrot.slane %v3693, 4
      %v3700 = vshrl.u32 %v3582, 16
      %v3702 = vrot.slane %v3700, 7
      %v3703 = vshll.u32 %v3582, 16
      %v3705 = vor.u32 %v3702, %v3703
      %v3706 = vsel %vm841, %v3698, %v3705
      %v3708 = vshrl.u32 %v3583, 16
      %v3710 = vrot.slane %v3708, 7
      %v3711 = vshll.u32 %v3583, 16
      %v3713 = vor.u32 %v3710, %v3711
      %v3714 = vrot.slane %v3710, 4
      %v3716 = vshrl.u32 %v3584, 16
      %v3718 = vrot.slane %v3716, 7
      %v3719 = vshll.u32 %v3584, 16
      %v3721 = vor.u32 %v3718, %v3719
      %v3722 = vsel %vm841, %v3714, %v3721
      %v3723 = vrot.slane %v3718, 4
      %v3725 = vshrl.u32 %v3585, 16
      %v3727 = vrot.slane %v3725, 7
      %v3728 = vshll.u32 %v3585, 16
      %v3730 = vor.u32 %v3727, %v3728
      %v3731 = vsel %vm841, %v3723, %v3730
      %v3732 = vrot.slane %v3727, 4
      %v3734 = vshrl.u32 %v3586, 16
      %v3736 = vrot.slane %v3734, 7
      %v3737 = vshll.u32 %v3586, 16
      %v3739 = vor.u32 %v3736, %v3737
      %v3740 = vsel %vm841, %v3732, %v3739
      %v3742 = vshrl.u32 %v3587, 16
      %v3744 = vrot.slane %v3742, 7
      %v3745 = vshll.u32 %v3587, 16
      %v3747 = vor.u32 %v3744, %v3745
      %v3748 = vrot.slane %v3744, 4
      %v3750 = vshrl.u32 %v3588, 16
      %v3752 = vrot.slane %v3750, 7
      %v3753 = vshll.u32 %v3588, 16
      %v3755 = vor.u32 %v3752, %v3753
      %v3756 = vsel %vm841, %v3748, %v3755
      %v3757 = vrot.slane %v3752, 4
      %v3759 = vshrl.u32 %v3589, 16
      %v3761 = vrot.slane %v3759, 7
      %v3762 = vshll.u32 %v3589, 16
      %v3764 = vor.u32 %v3761, %v3762
      %v3765 = vsel %vm841, %v3757, %v3764
      %v3766 = vrot.slane %v3761, 4
      %v3768 = vshrl.u32 %v3590, 16
      %v3770 = vrot.slane %v3768, 7
      %v3771 = vshll.u32 %v3590, 16
      %v3773 = vor.u32 %v3770, %v3771
      %v3774 = vsel %vm841, %v3766, %v3773
      %v3776 = vshrl.u32 %v3591, 16
      %v3778 = vrot.slane %v3776, 7
      %v3779 = vshll.u32 %v3591, 16
      %v3781 = vor.u32 %v3778, %v3779
      %v3782 = vrot.slane %v3778, 4
      %v3784 = vshrl.u32 %v3592, 16
      %v3786 = vrot.slane %v3784, 7
      %v3787 = vshll.u32 %v3592, 16
      %v3789 = vor.u32 %v3786, %v3787
      %v3790 = vsel %vm841, %v3782, %v3789
      %v3791 = vrot.slane %v3786, 4
      %v3793 = vshrl.u32 %v3593, 16
      %v3795 = vrot.slane %v3793, 7
      %v3796 = vshll.u32 %v3593, 16
      %v3798 = vor.u32 %v3795, %v3796
      %v3799 = vsel %vm841, %v3791, %v3798
      %v3800 = vrot.slane %v3795, 4
      %v3802 = vshrl.u32 %v3594, 16
      %v3804 = vrot.slane %v3802, 7
      %v3805 = vshll.u32 %v3594, 16
      %v3807 = vor.u32 %v3804, %v3805
      %v3808 = vsel %vm841, %v3800, %v3807
      %v3810 = vshrl.u32 %v3595, 16
      %v3812 = vrot.slane %v3810, 7
      %v3813 = vshll.u32 %v3595, 16
      %v3815 = vor.u32 %v3812, %v3813
      %v3816 = vrot.slane %v3812, 4
      %v3818 = vshrl.u32 %v3596, 16
      %v3820 = vrot.slane %v3818, 7
      %v3821 = vshll.u32 %v3596, 16
      %v3823 = vor.u32 %v3820, %v3821
      %v3824 = vsel %vm841, %v3816, %v3823
      %v3825 = vrot.slane %v3820, 4
      %v3827 = vshrl.u32 %v3597, 16
      %v3829 = vrot.slane %v3827, 7
      %v3830 = vshll.u32 %v3597, 16
      %v3832 = vor.u32 %v3829, %v3830
      %v3833 = vsel %vm841, %v3825, %v3832
      %v3834 = vrot.slane %v3829, 4
      %v3836 = vshrl.u32 %v3598, 16
      %v3838 = vrot.slane %v3836, 7
      %v3839 = vshll.u32 %v3598, 16
      %v3841 = vor.u32 %v3838, %v3839
      %v3842 = vsel %vm841, %v3834, %v3841
      %v3844 = vshrl.u32 %v3599, 16
      %v3846 = vrot.slane %v3844, 7
      %v3847 = vshll.u32 %v3599, 16
      %v3849 = vor.u32 %v3846, %v3847
      %v3850 = vrot.slane %v3846, 4
      %v3852 = vshrl.u32 %v3600, 16
      %v3854 = vrot.slane %v3852, 7
      %v3855 = vshll.u32 %v3600, 16
      %v3857 = vor.u32 %v3854, %v3855
      %v3858 = vsel %vm841, %v3850, %v3857
      %v3859 = vrot.slane %v3854, 4
      %v3861 = vshrl.u32 %v3601, 16
      %v3863 = vrot.slane %v3861, 7
      %v3864 = vshll.u32 %v3601, 16
      %v3866 = vor.u32 %v3863, %v3864
      %v3867 = vsel %vm841, %v3859, %v3866
      %v3868 = vrot.slane %v3863, 4
      %v3870 = vshrl.u32 %v3602, 16
      %v3872 = vrot.slane %v3870, 7
      %v3873 = vshll.u32 %v3602, 16
      %v3875 = vor.u32 %v3872, %v3873
      %v3876 = vsel %vm841, %v3868, %v3875
      %v3878 = vshrl.u32 %v3603, 16
      %v3880 = vrot.slane %v3878, 7
      %v3881 = vshll.u32 %v3603, 16
      %v3883 = vor.u32 %v3880, %v3881
      %v3884 = vrot.slane %v3880, 4
      %v3886 = vshrl.u32 %v3604, 16
      %v3888 = vrot.slane %v3886, 7
      %v3889 = vshll.u32 %v3604, 16
      %v3891 = vor.u32 %v3888, %v3889
      %v3892 = vsel %vm841, %v3884, %v3891
      %v3893 = vrot.slane %v3888, 4
      %v3895 = vshrl.u32 %v3605, 16
      %v3897 = vrot.slane %v3895, 7
      %v3898 = vshll.u32 %v3605, 16
      %v3900 = vor.u32 %v3897, %v3898
      %v3901 = vsel %vm841, %v3893, %v3900
      %v3902 = vrot.slane %v3897, 4
      %v3904 = vshrl.u32 %v3606, 16
      %v3906 = vrot.slane %v3904, 7
      %v3907 = vshll.u32 %v3606, 16
      %v3909 = vor.u32 %v3906, %v3907
      %v3910 = vsel %vm841, %v3902, %v3909
      %v3912 = vshrl.u32 %v3607, 16
      %v3914 = vrot.slane %v3912, 7
      %v3915 = vshll.u32 %v3607, 16
      %v3917 = vor.u32 %v3914, %v3915
      %v3918 = vrot.slane %v3914, 4
      %v3920 = vshrl.u32 %v3608, 16
      %v3922 = vrot.slane %v3920, 7
      %v3923 = vshll.u32 %v3608, 16
      %v3925 = vor.u32 %v3922, %v3923
      %v3926 = vsel %vm841, %v3918, %v3925
      %v3927 = vrot.slane %v3922, 4
      %v3929 = vshrl.u32 %v3609, 16
      %v3931 = vrot.slane %v3929, 7
      %v3932 = vshll.u32 %v3609, 16
      %v3934 = vor.u32 %v3931, %v3932
      %v3935 = vsel %vm841, %v3927, %v3934
      %v3936 = vrot.slane %v3931, 4
      %v3938 = vshrl.u32 %v3610, 16
      %v3940 = vrot.slane %v3938, 7
      %v3941 = vshll.u32 %v3610, 16
      %v3943 = vor.u32 %v3940, %v3941
      %v3944 = vsel %vm841, %v3936, %v3943
      %v3946 = vshrl.u32 %v3611, 16
      %v3948 = vrot.slane %v3946, 7
      %v3949 = vshll.u32 %v3611, 16
      %v3951 = vor.u32 %v3948, %v3949
      %v3952 = vrot.slane %v3948, 4
      %v3954 = vshrl.u32 %v3612, 16
      %v3956 = vrot.slane %v3954, 7
      %v3957 = vshll.u32 %v3612, 16
      %v3959 = vor.u32 %v3956, %v3957
      %v3960 = vsel %vm841, %v3952, %v3959
      %v3961 = vrot.slane %v3956, 4
      %v3963 = vshrl.u32 %v3613, 16
      %v3965 = vrot.slane %v3963, 7
      %v3966 = vshll.u32 %v3613, 16
      %v3968 = vor.u32 %v3965, %v3966
      %v3969 = vsel %vm841, %v3961, %v3968
      %v3970 = vrot.slane %v3965, 4
      %v3972 = vshrl.u32 %v3614, 16
      %v3974 = vrot.slane %v3972, 7
      %v3975 = vshll.u32 %v3614, 16
      %v3977 = vor.u32 %v3974, %v3975
      %v3978 = vsel %vm841, %v3970, %v3977
      %v3980 = vshrl.u32 %v3615, 16
      %v3982 = vrot.slane %v3980, 7
      %v3983 = vshll.u32 %v3615, 16
      %v3985 = vor.u32 %v3982, %v3983
      %v3986 = vrot.slane %v3982, 4
      %v3988 = vshrl.u32 %v3616, 16
      %v3990 = vrot.slane %v3988, 7
      %v3991 = vshll.u32 %v3616, 16
      %v3993 = vor.u32 %v3990, %v3991
      %v3994 = vsel %vm841, %v3986, %v3993
      %v3995 = vrot.slane %v3990, 4
      %v3997 = vshrl.u32 %v3617, 16
      %v3999 = vrot.slane %v3997, 7
      %v4000 = vshll.u32 %v3617, 16
      %v4002 = vor.u32 %v3999, %v4000
      %v4003 = vsel %vm841, %v3995, %v4002
      %v4004 = vrot.slane %v3999, 4
      %v4006 = vshrl.u32 %v3618, 16
      %v4008 = vrot.slane %v4006, 7
      %v4009 = vshll.u32 %v3618, 16
      %v4011 = vor.u32 %v4008, %v4009
      %v4012 = vsel %vm841, %v4004, %v4011
      %v4014 = vshrl.u32 %v3619, 16
      %v4016 = vrot.slane %v4014, 7
      %v4017 = vshll.u32 %v3619, 16
      %v4019 = vor.u32 %v4016, %v4017
      %v4020 = vrot.slane %v4016, 4
      %v4022 = vshrl.u32 %v3620, 16
      %v4024 = vrot.slane %v4022, 7
      %v4025 = vshll.u32 %v3620, 16
      %v4027 = vor.u32 %v4024, %v4025
      %v4028 = vsel %vm841, %v4020, %v4027
      %v4029 = vrot.slane %v4024, 4
      %v4031 = vshrl.u32 %v3621, 16
      %v4033 = vrot.slane %v4031, 7
      %v4034 = vshll.u32 %v3621, 16
      %v4036 = vor.u32 %v4033, %v4034
      %v4037 = vsel %vm841, %v4029, %v4036
      %v4038 = vrot.slane %v4033, 4
      %v4040 = vshrl.u32 %v3622, 16
      %v4042 = vrot.slane %v4040, 7
      %v4043 = vshll.u32 %v3622, 16
      %v4045 = vor.u32 %v4042, %v4043
      %v4046 = vsel %vm841, %v4038, %v4045
      %v4048 = vshrl.u32 %v3623, 16
      %v4050 = vrot.slane %v4048, 7
      %v4051 = vshll.u32 %v3623, 16
      %v4053 = vor.u32 %v4050, %v4051
      %v4054 = vrot.slane %v4050, 4
      %v4056 = vshrl.u32 %v3624, 16
      %v4058 = vrot.slane %v4056, 7
      %v4059 = vshll.u32 %v3624, 16
      %v4061 = vor.u32 %v4058, %v4059
      %v4062 = vsel %vm841, %v4054, %v4061
      %v4063 = vrot.slane %v4058, 4
      %v4065 = vshrl.u32 %v3625, 16
      %v4067 = vrot.slane %v4065, 7
      %v4068 = vshll.u32 %v3625, 16
      %v4070 = vor.u32 %v4067, %v4068
      %v4071 = vsel %vm841, %v4063, %v4070
      %v4072 = vrot.slane %v4067, 4
      %v4074 = vshrl.u32 %v3626, 16
      %v4076 = vrot.slane %v4074, 7
      %v4077 = vshll.u32 %v3626, 16
      %v4079 = vor.u32 %v4076, %v4077
      %v4080 = vsel %vm841, %v4072, %v4079
      %v4082 = vshrl.u32 %v3627, 16
      %v4084 = vrot.slane %v4082, 7
      %v4085 = vshll.u32 %v3627, 16
      %v4087 = vor.u32 %v4084, %v4085
      %v4088 = vrot.slane %v4084, 4
      %v4090 = vshrl.u32 %v3628, 16
      %v4092 = vrot.slane %v4090, 7
      %v4093 = vshll.u32 %v3628, 16
      %v4095 = vor.u32 %v4092, %v4093
      %v4096 = vsel %vm841, %v4088, %v4095
      %v4097 = vrot.slane %v4092, 4
      %v4099 = vshrl.u32 %v3629, 16
      %v4101 = vrot.slane %v4099, 7
      %v4102 = vshll.u32 %v3629, 16
      %v4104 = vor.u32 %v4101, %v4102
      %v4105 = vsel %vm841, %v4097, %v4104
      %v4106 = vrot.slane %v4101, 4
      %v4108 = vshrl.u32 %v3630, 16
      %v4110 = vrot.slane %v4108, 7
      %v4111 = vshll.u32 %v3630, 16
      %v4113 = vor.u32 %v4110, %v4111
      %v4114 = vsel %vm841, %v4106, %v4113
      %v4116 = vshrl.u32 %v3631, 16
      %v4118 = vrot.slane %v4116, 7
      %v4119 = vshll.u32 %v3631, 16
      %v4121 = vor.u32 %v4118, %v4119
      %v4122 = vrot.slane %v4118, 4
      %v4124 = vshrl.u32 %v3632, 16
      %v4126 = vrot.slane %v4124, 7
      %v4127 = vshll.u32 %v3632, 16
      %v4129 = vor.u32 %v4126, %v4127
      %v4130 = vsel %vm841, %v4122, %v4129
      %v4131 = vrot.slane %v4126, 4
      %v4133 = vshrl.u32 %v3633, 16
      %v4135 = vrot.slane %v4133, 7
      %v4136 = vshll.u32 %v3633, 16
      %v4138 = vor.u32 %v4135, %v4136
      %v4139 = vsel %vm841, %v4131, %v4138
      %v4140 = vrot.slane %v4135, 4
      %v4142 = vshrl.u32 %v3634, 16
      %v4144 = vrot.slane %v4142, 7
      %v4145 = vshll.u32 %v3634, 16
      %v4147 = vor.u32 %v4144, %v4145
      %v4148 = vsel %vm841, %v4140, %v4147
      %v4150 = vshrl.u32 %v3635, 16
      %v4152 = vrot.slane %v4150, 7
      %v4153 = vshll.u32 %v3635, 16
      %v4155 = vor.u32 %v4152, %v4153
      %v4156 = vrot.slane %v4152, 4
      %v4158 = vshrl.u32 %v3636, 16
      %v4160 = vrot.slane %v4158, 7
      %v4161 = vshll.u32 %v3636, 16
      %v4163 = vor.u32 %v4160, %v4161
      %v4164 = vsel %vm841, %v4156, %v4163
      %v4165 = vrot.slane %v4160, 4
      %v4167 = vshrl.u32 %v3637, 16
      %v4169 = vrot.slane %v4167, 7
      %v4170 = vshll.u32 %v3637, 16
      %v4172 = vor.u32 %v4169, %v4170
      %v4173 = vsel %vm841, %v4165, %v4172
      %v4174 = vrot.slane %v4169, 4
      %v4176 = vshrl.u32 %v3638, 16
      %v4178 = vrot.slane %v4176, 7
      %v4179 = vshll.u32 %v3638, 16
      %v4181 = vor.u32 %v4178, %v4179
      %v4182 = vsel %vm841, %v4174, %v4181
      %v4247 = vld [vmem:[#allocation3 + $0x18] sm:$0xf]
      %v4248 = vsel %vm1452, %v3645, %v4247
      %4249 = vst [vmem:[#allocation3 + $0x18] sm:$0xf] %v4248
      %4250 = vst [vmem:[#allocation3 + $0x3c] sm:$0xf] %v3654
      %4251 = vst [vmem:[#allocation3 + $0x60] sm:$0xf] %v3663
      %4252 = vst [vmem:[#allocation3 + $0x84] sm:$0xf] %v3672
      %v4253 = vld [vmem:[#allocation3 + $0xa8] sm:$0xf]
      %v4254 = vsel %vm1452, %v3679, %v4253
      %4255 = vst [vmem:[#allocation3 + $0xa8] sm:$0xf] %v4254
      %4256 = vst [vmem:[#allocation3 + $0xcc] sm:$0xf] %v3688
      %4257 = vst [vmem:[#allocation3 + $0xf0] sm:$0xf] %v3697
      %4258 = vst [vmem:[#allocation3 + $0x114] sm:$0xf] %v3706
      %v4259 = vld [vmem:[#allocation3 + $0x138] sm:$0xf]
      %v4260 = vsel %vm1452, %v3713, %v4259
      %4261 = vst [vmem:[#allocation3 + $0x138] sm:$0xf] %v4260
      %4262 = vst [vmem:[#allocation3 + $0x15c] sm:$0xf] %v3722
      %4263 = vst [vmem:[#allocation3 + $0x180] sm:$0xf] %v3731
      %4264 = vst [vmem:[#allocation3 + $0x1a4] sm:$0xf] %v3740
      %v4265 = vld [vmem:[#allocation3 + $0x1c8] sm:$0xf]
      %v4266 = vsel %vm1452, %v3747, %v4265
      %4267 = vst [vmem:[#allocation3 + $0x1c8] sm:$0xf] %v4266
      %4268 = vst [vmem:[#allocation3 + $0x1ec] sm:$0xf] %v3756
      %4269 = vst [vmem:[#allocation3 + $0x210] sm:$0xf] %v3765
      %4270 = vst [vmem:[#allocation3 + $0x234] sm:$0xf] %v3774
      %v4271 = vld [vmem:[#allocation3 + $0x258] sm:$0xf]
      %v4272 = vsel %vm1452, %v3781, %v4271
      %4273 = vst [vmem:[#allocation3 + $0x258] sm:$0xf] %v4272
      %4274 = vst [vmem:[#allocation3 + $0x27c] sm:$0xf] %v3790
      %4275 = vst [vmem:[#allocation3 + $0x2a0] sm:$0xf] %v3799
      %4276 = vst [vmem:[#allocation3 + $0x2c4] sm:$0xf] %v3808
      %v4277 = vld [vmem:[#allocation3 + $0x2e8] sm:$0xf]
      %v4278 = vsel %vm1452, %v3815, %v4277
      %4279 = vst [vmem:[#allocation3 + $0x2e8] sm:$0xf] %v4278
      %4280 = vst [vmem:[#allocation3 + $0x30c] sm:$0xf] %v3824
      %4281 = vst [vmem:[#allocation3 + $0x330] sm:$0xf] %v3833
      %4282 = vst [vmem:[#allocation3 + $0x354] sm:$0xf] %v3842
      %v4283 = vld [vmem:[#allocation3 + $0x378] sm:$0xf]
      %v4284 = vsel %vm1452, %v3849, %v4283
      %4285 = vst [vmem:[#allocation3 + $0x378] sm:$0xf] %v4284
      %4286 = vst [vmem:[#allocation3 + $0x39c] sm:$0xf] %v3858
      %4287 = vst [vmem:[#allocation3 + $0x3c0] sm:$0xf] %v3867
      %4288 = vst [vmem:[#allocation3 + $0x3e4] sm:$0xf] %v3876
      %v4289 = vld [vmem:[#allocation3 + $0x408] sm:$0xf]
      %v4290 = vsel %vm1452, %v3883, %v4289
      %4291 = vst [vmem:[#allocation3 + $0x408] sm:$0xf] %v4290
      %4292 = vst [vmem:[#allocation3 + $0x42c] sm:$0xf] %v3892
      %4293 = vst [vmem:[#allocation3 + $0x450] sm:$0xf] %v3901
      %4294 = vst [vmem:[#allocation3 + $0x474] sm:$0xf] %v3910
      %v4295 = vld [vmem:[#allocation3 + $0x498] sm:$0xf]
      %v4296 = vsel %vm1452, %v3917, %v4295
      %4297 = vst [vmem:[#allocation3 + $0x498] sm:$0xf] %v4296
      %4298 = vst [vmem:[#allocation3 + $0x4bc] sm:$0xf] %v3926
      %4299 = vst [vmem:[#allocation3 + $0x4e0] sm:$0xf] %v3935
      %4300 = vst [vmem:[#allocation3 + $0x504] sm:$0xf] %v3944
      %v4301 = vld [vmem:[#allocation3 + $0x528] sm:$0xf]
      %v4302 = vsel %vm1452, %v3951, %v4301
      %4303 = vst [vmem:[#allocation3 + $0x528] sm:$0xf] %v4302
      %4304 = vst [vmem:[#allocation3 + $0x54c] sm:$0xf] %v3960
      %4305 = vst [vmem:[#allocation3 + $0x570] sm:$0xf] %v3969
      %4306 = vst [vmem:[#allocation3 + $0x594] sm:$0xf] %v3978
      %v4307 = vld [vmem:[#allocation3 + $0x5b8] sm:$0xf]
      %v4308 = vsel %vm1452, %v3985, %v4307
      %4309 = vst [vmem:[#allocation3 + $0x5b8] sm:$0xf] %v4308
      %4310 = vst [vmem:[#allocation3 + $0x5dc] sm:$0xf] %v3994
      %4311 = vst [vmem:[#allocation3 + $0x600] sm:$0xf] %v4003
      %4312 = vst [vmem:[#allocation3 + $0x624] sm:$0xf] %v4012
      %v4313 = vld [vmem:[#allocation3 + $0x648] sm:$0xf]
      %v4314 = vsel %vm1452, %v4019, %v4313
      %4315 = vst [vmem:[#allocation3 + $0x648] sm:$0xf] %v4314
      %4316 = vst [vmem:[#allocation3 + $0x66c] sm:$0xf] %v4028
      %4317 = vst [vmem:[#allocation3 + $0x690] sm:$0xf] %v4037
      %4318 = vst [vmem:[#allocation3 + $0x6b4] sm:$0xf] %v4046
      %v4319 = vld [vmem:[#allocation3 + $0x6d8] sm:$0xf]
      %v4320 = vsel %vm1452, %v4053, %v4319
      %4321 = vst [vmem:[#allocation3 + $0x6d8] sm:$0xf] %v4320
      %4322 = vst [vmem:[#allocation3 + $0x6fc] sm:$0xf] %v4062
      %4323 = vst [vmem:[#allocation3 + $0x720] sm:$0xf] %v4071
      %4324 = vst [vmem:[#allocation3 + $0x744] sm:$0xf] %v4080
      %v4325 = vld [vmem:[#allocation3 + $0x768] sm:$0xf]
      %v4326 = vsel %vm1452, %v4087, %v4325
      %4327 = vst [vmem:[#allocation3 + $0x768] sm:$0xf] %v4326
      %4328 = vst [vmem:[#allocation3 + $0x78c] sm:$0xf] %v4096
      %4329 = vst [vmem:[#allocation3 + $0x7b0] sm:$0xf] %v4105
      %4330 = vst [vmem:[#allocation3 + $0x7d4] sm:$0xf] %v4114
      %v4331 = vld [vmem:[#allocation3 + $0x7f8] sm:$0xf]
      %v4332 = vsel %vm1452, %v4121, %v4331
      %4333 = vst [vmem:[#allocation3 + $0x7f8] sm:$0xf] %v4332
      %4334 = vst [vmem:[#allocation3 + $0x81c] sm:$0xf] %v4130
      %4335 = vst [vmem:[#allocation3 + $0x840] sm:$0xf] %v4139
      %4336 = vst [vmem:[#allocation3 + $0x864] sm:$0xf] %v4148
      %v4337 = vld [vmem:[#allocation3 + $0x888] sm:$0xf]
      %v4338 = vsel %vm1452, %v4155, %v4337
      %4339 = vst [vmem:[#allocation3 + $0x888] sm:$0xf] %v4338
      %4340 = vst [vmem:[#allocation3 + $0x8ac] sm:$0xf] %v4164
      %4341 = vst [vmem:[#allocation3 + $0x8d0] sm:$0xf] %v4173
      %4342 = vst [vmem:[#allocation3 + $0x8f4] sm:$0xf] %v4182
      %v4343 = vld [vmem:[#allocation3 + $0x18] sm:$0x1]
      %v4344 = vsel %vm1550, 0, %v4343
      %4345 = vst [vmem:[#allocation3 + $0x18] sm:$0x1] %v4344
      %v4346 = vld [vmem:[#allocation3 + $0xa8] sm:$0x1]
      %v4347 = vsel %vm1550, 0, %v4346
      %4348 = vst [vmem:[#allocation3 + $0xa8] sm:$0x1] %v4347
      %v4349 = vld [vmem:[#allocation3 + $0x138] sm:$0x1]
      %v4350 = vsel %vm1550, 0, %v4349
      %4351 = vst [vmem:[#allocation3 + $0x138] sm:$0x1] %v4350
      %v4352 = vld [vmem:[#allocation3 + $0x1c8] sm:$0x1]
      %v4353 = vsel %vm1550, 0, %v4352
      %4354 = vst [vmem:[#allocation3 + $0x1c8] sm:$0x1] %v4353
      %v4355 = vld [vmem:[#allocation3 + $0x258] sm:$0x1]
      %v4356 = vsel %vm1550, 0, %v4355
      %4357 = vst [vmem:[#allocation3 + $0x258] sm:$0x1] %v4356
      %v4358 = vld [vmem:[#allocation3 + $0x2e8] sm:$0x1]
      %v4359 = vsel %vm1550, 0, %v4358
      %4360 = vst [vmem:[#allocation3 + $0x2e8] sm:$0x1] %v4359
      %v4361 = vld [vmem:[#allocation3 + $0x378] sm:$0x1]
      %v4362 = vsel %vm1550, 0, %v4361
      %4363 = vst [vmem:[#allocation3 + $0x378] sm:$0x1] %v4362
      %v4364 = vld [vmem:[#allocation3 + $0x408] sm:$0x1]
      %v4365 = vsel %vm1550, 0, %v4364
      %4366 = vst [vmem:[#allocation3 + $0x408] sm:$0x1] %v4365
      %v4367 = vld [vmem:[#allocation3 + $0x498] sm:$0x1]
      %v4368 = vsel %vm1550, 0, %v4367
      %4369 = vst [vmem:[#allocation3 + $0x498] sm:$0x1] %v4368
      %v4370 = vld [vmem:[#allocation3 + $0x528] sm:$0x1]
      %v4371 = vsel %vm1550, 0, %v4370
      %4372 = vst [vmem:[#allocation3 + $0x528] sm:$0x1] %v4371
      %v4373 = vld [vmem:[#allocation3 + $0x5b8] sm:$0x1]
      %v4374 = vsel %vm1550, 0, %v4373
      %4375 = vst [vmem:[#allocation3 + $0x5b8] sm:$0x1] %v4374
      %v4376 = vld [vmem:[#allocation3 + $0x648] sm:$0x1]
      %v4377 = vsel %vm1550, 0, %v4376
      %4378 = vst [vmem:[#allocation3 + $0x648] sm:$0x1] %v4377
      %v4379 = vld [vmem:[#allocation3 + $0x6d8] sm:$0x1]
      %v4380 = vsel %vm1550, 0, %v4379
      %4381 = vst [vmem:[#allocation3 + $0x6d8] sm:$0x1] %v4380
      %v4382 = vld [vmem:[#allocation3 + $0x768] sm:$0x1]
      %v4383 = vsel %vm1550, 0, %v4382
      %4384 = vst [vmem:[#allocation3 + $0x768] sm:$0x1] %v4383
      %v4385 = vld [vmem:[#allocation3 + $0x7f8] sm:$0x1]
      %v4386 = vsel %vm1550, 0, %v4385
      %4387 = vst [vmem:[#allocation3 + $0x7f8] sm:$0x1] %v4386
      %v4388 = vld [vmem:[#allocation3 + $0x888] sm:$0x1]
      %v4389 = vsel %vm1550, 0, %v4388
      %4390 = vst [vmem:[#allocation3 + $0x888] sm:$0x1] %v4389
      %4391 = vst [vmem:[#allocation3 + $0x1c] sm:$0xf] %v3575
      %4392 = vst [vmem:[#allocation3 + $0x40] sm:$0xf] %v3576
      %4393 = vst [vmem:[#allocation3 + $0x64] sm:$0xf] %v3577
      %4394 = vst [vmem:[#allocation3 + $0x88] sm:$0xf] %v3578
      %4395 = vst [vmem:[#allocation3 + $0xac] sm:$0xf] %v3579
      %4396 = vst [vmem:[#allocation3 + $0xd0] sm:$0xf] %v3580
      %4397 = vst [vmem:[#allocation3 + $0xf4] sm:$0xf] %v3581
      %4398 = vst [vmem:[#allocation3 + $0x118] sm:$0xf] %v3582
      %4399 = vst [vmem:[#allocation3 + $0x13c] sm:$0xf] %v3583
      %4400 = vst [vmem:[#allocation3 + $0x160] sm:$0xf] %v3584
      %4401 = vst [vmem:[#allocation3 + $0x184] sm:$0xf] %v3585
      %4402 = vst [vmem:[#allocation3 + $0x1a8] sm:$0xf] %v3586
      %4403 = vst [vmem:[#allocation3 + $0x1cc] sm:$0xf] %v3587
      %4404 = vst [vmem:[#allocation3 + $0x1f0] sm:$0xf] %v3588
      %4405 = vst [vmem:[#allocation3 + $0x214] sm:$0xf] %v3589
      %4406 = vst [vmem:[#allocation3 + $0x238] sm:$0xf] %v3590
      %4407 = vst [vmem:[#allocation3 + $0x25c] sm:$0xf] %v3591
      %4408 = vst [vmem:[#allocation3 + $0x280] sm:$0xf] %v3592
      %4409 = vst [vmem:[#allocation3 + $0x2a4] sm:$0xf] %v3593
      %4410 = vst [vmem:[#allocation3 + $0x2c8] sm:$0xf] %v3594
      %4411 = vst [vmem:[#allocation3 + $0x2ec] sm:$0xf] %v3595
      %4412 = vst [vmem:[#allocation3 + $0x310] sm:$0xf] %v3596
      %4413 = vst [vmem:[#allocation3 + $0x334] sm:$0xf] %v3597
      %4414 = vst [vmem:[#allocation3 + $0x358] sm:$0xf] %v3598
      %4415 = vst [vmem:[#allocation3 + $0x37c] sm:$0xf] %v3599
      %4416 = vst [vmem:[#allocation3 + $0x3a0] sm:$0xf] %v3600
      %4417 = vst [vmem:[#allocation3 + $0x3c4] sm:$0xf] %v3601
      %4418 = vst [vmem:[#allocation3 + $0x3e8] sm:$0xf] %v3602
      %4419 = vst [vmem:[#allocation3 + $0x40c] sm:$0xf] %v3603
      %4420 = vst [vmem:[#allocation3 + $0x430] sm:$0xf] %v3604
      %4421 = vst [vmem:[#allocation3 + $0x454] sm:$0xf] %v3605
      %4422 = vst [vmem:[#allocation3 + $0x478] sm:$0xf] %v3606
      %4423 = vst [vmem:[#allocation3 + $0x49c] sm:$0xf] %v3607
      %4424 = vst [vmem:[#allocation3 + $0x4c0] sm:$0xf] %v3608
      %4425 = vst [vmem:[#allocation3 + $0x4e4] sm:$0xf] %v3609
      %4426 = vst [vmem:[#allocation3 + $0x508] sm:$0xf] %v3610
      %4427 = vst [vmem:[#allocation3 + $0x52c] sm:$0xf] %v3611
      %4428 = vst [vmem:[#allocation3 + $0x550] sm:$0xf] %v3612
      %4429 = vst [vmem:[#allocation3 + $0x574] sm:$0xf] %v3613
      %4430 = vst [vmem:[#allocation3 + $0x598] sm:$0xf] %v3614
      %4431 = vst [vmem:[#allocation3 + $0x5bc] sm:$0xf] %v3615
      %4432 = vst [vmem:[#allocation3 + $0x5e0] sm:$0xf] %v3616
      %4433 = vst [vmem:[#allocation3 + $0x604] sm:$0xf] %v3617
      %4434 = vst [vmem:[#allocation3 + $0x628] sm:$0xf] %v3618
      %4435 = vst [vmem:[#allocation3 + $0x64c] sm:$0xf] %v3619
      %4436 = vst [vmem:[#allocation3 + $0x670] sm:$0xf] %v3620
      %4437 = vst [vmem:[#allocation3 + $0x694] sm:$0xf] %v3621
      %4438 = vst [vmem:[#allocation3 + $0x6b8] sm:$0xf] %v3622
      %4439 = vst [vmem:[#allocation3 + $0x6dc] sm:$0xf] %v3623
      %4440 = vst [vmem:[#allocation3 + $0x700] sm:$0xf] %v3624
      %4441 = vst [vmem:[#allocation3 + $0x724] sm:$0xf] %v3625
      %4442 = vst [vmem:[#allocation3 + $0x748] sm:$0xf] %v3626
      %4443 = vst [vmem:[#allocation3 + $0x76c] sm:$0xf] %v3627
      %4444 = vst [vmem:[#allocation3 + $0x790] sm:$0xf] %v3628
      %4445 = vst [vmem:[#allocation3 + $0x7b4] sm:$0xf] %v3629
      %4446 = vst [vmem:[#allocation3 + $0x7d8] sm:$0xf] %v3630
      %4447 = vst [vmem:[#allocation3 + $0x7fc] sm:$0xf] %v3631
      %4448 = vst [vmem:[#allocation3 + $0x820] sm:$0xf] %v3632
      %4449 = vst [vmem:[#allocation3 + $0x844] sm:$0xf] %v3633
      %4450 = vst [vmem:[#allocation3 + $0x868] sm:$0xf] %v3634
      %4451 = vst [vmem:[#allocation3 + $0x88c] sm:$0xf] %v3635
      %4452 = vst [vmem:[#allocation3 + $0x8b0] sm:$0xf] %v3636
      %4453 = vst [vmem:[#allocation3 + $0x8d4] sm:$0xf] %v3637
      %4454 = vst [vmem:[#allocation3 + $0x8f8] sm:$0xf] %v3638
      %v4455 = vrot.slane %v3640, 4
      %v4456 = vrot.slane %v3643, 5
      %v4457 = vor.u32 %v4455, %v4456
      %v4458 = vrot.slane %v4457, 4
      %v4459 = vrot.slane %v3651, 5
      %v4460 = vsel %vm1665, %v4458, %v4459
      %v4461 = vrot.slane %v3648, 4
      %v4462 = vor.u32 %v4461, %v4459
      %v4463 = vrot.slane %v4462, 4
      %v4464 = vrot.slane %v3660, 5
      %v4465 = vsel %vm1665, %v4463, %v4464
      %v4466 = vrot.slane %v3657, 4
      %v4467 = vor.u32 %v4466, %v4464
      %v4468 = vrot.slane %v4467, 4
      %v4469 = vrot.slane %v3669, 5
      %v4470 = vsel %vm1665, %v4468, %v4469
      %v4471 = vrot.slane %v3666, 4
      %v4472 = vor.u32 %v4471, %v4469
      %v4473 = vrot.slane %v4472, 4
      %v4474 = vrot.slane %v3674, 4
      %v4475 = vrot.slane %v3677, 5
      %v4476 = vor.u32 %v4474, %v4475
      %v4477 = vrot.slane %v4476, 4
      %v4478 = vrot.slane %v3685, 5
      %v4479 = vsel %vm1665, %v4477, %v4478
      %v4480 = vrot.slane %v3682, 4
      %v4481 = vor.u32 %v4480, %v4478
      %v4482 = vrot.slane %v4481, 4
      %v4483 = vrot.slane %v3694, 5
      %v4484 = vsel %vm1665, %v4482, %v4483
      %v4485 = vrot.slane %v3691, 4
      %v4486 = vor.u32 %v4485, %v4483
      %v4487 = vrot.slane %v4486, 4
      %v4488 = vrot.slane %v3703, 5
      %v4489 = vsel %vm1665, %v4487, %v4488
      %v4490 = vrot.slane %v3700, 4
      %v4491 = vor.u32 %v4490, %v4488
      %v4492 = vrot.slane %v4491, 4
      %v4493 = vrot.slane %v3708, 4
      %v4494 = vrot.slane %v3711, 5
      %v4495 = vor.u32 %v4493, %v4494
      %v4496 = vrot.slane %v4495, 4
      %v4497 = vrot.slane %v3719, 5
      %v4498 = vsel %vm1665, %v4496, %v4497
      %v4499 = vrot.slane %v3716, 4
      %v4500 = vor.u32 %v4499, %v4497
      %v4501 = vrot.slane %v4500, 4
      %v4502 = vrot.slane %v3728, 5
      %v4503 = vsel %vm1665, %v4501, %v4502
      %v4504 = vrot.slane %v3725, 4
      %v4505 = vor.u32 %v4504, %v4502
      %v4506 = vrot.slane %v4505, 4
      %v4507 = vrot.slane %v3737, 5
      %v4508 = vsel %vm1665, %v4506, %v4507
      %v4509 = vrot.slane %v3734, 4
      %v4510 = vor.u32 %v4509, %v4507
      %v4511 = vrot.slane %v4510, 4
      %v4512 = vrot.slane %v3742, 4
      %v4513 = vrot.slane %v3745, 5
      %v4514 = vor.u32 %v4512, %v4513
      %v4515 = vrot.slane %v4514, 4
      %v4516 = vrot.slane %v3753, 5
      %v4517 = vsel %vm1665, %v4515, %v4516
      %v4518 = vrot.slane %v3750, 4
      %v4519 = vor.u32 %v4518, %v4516
      %v4520 = vrot.slane %v4519, 4
      %v4521 = vrot.slane %v3762, 5
      %v4522 = vsel %vm1665, %v4520, %v4521
      %v4523 = vrot.slane %v3759, 4
      %v4524 = vor.u32 %v4523, %v4521
      %v4525 = vrot.slane %v4524, 4
      %v4526 = vrot.slane %v3771, 5
      %v4527 = vsel %vm1665, %v4525, %v4526
      %v4528 = vrot.slane %v3768, 4
      %v4529 = vor.u32 %v4528, %v4526
      %v4530 = vrot.slane %v4529, 4
      %v4531 = vrot.slane %v3776, 4
      %v4532 = vrot.slane %v3779, 5
      %v4533 = vor.u32 %v4531, %v4532
      %v4534 = vrot.slane %v4533, 4
      %v4535 = vrot.slane %v3787, 5
      %v4536 = vsel %vm1665, %v4534, %v4535
      %v4537 = vrot.slane %v3784, 4
      %v4538 = vor.u32 %v4537, %v4535
      %v4539 = vrot.slane %v4538, 4
      %v4540 = vrot.slane %v3796, 5
      %v4541 = vsel %vm1665, %v4539, %v4540
      %v4542 = vrot.slane %v3793, 4
      %v4543 = vor.u32 %v4542, %v4540
      %v4544 = vrot.slane %v4543, 4
      %v4545 = vrot.slane %v3805, 5
      %v4546 = vsel %vm1665, %v4544, %v4545
      %v4547 = vrot.slane %v3802, 4
      %v4548 = vor.u32 %v4547, %v4545
      %v4549 = vrot.slane %v4548, 4
      %v4550 = vrot.slane %v3810, 4
      %v4551 = vrot.slane %v3813, 5
      %v4552 = vor.u32 %v4550, %v4551
      %v4553 = vrot.slane %v4552, 4
      %v4554 = vrot.slane %v3821, 5
      %v4555 = vsel %vm1665, %v4553, %v4554
      %v4556 = vrot.slane %v3818, 4
      %v4557 = vor.u32 %v4556, %v4554
      %v4558 = vrot.slane %v4557, 4
      %v4559 = vrot.slane %v3830, 5
      %v4560 = vsel %vm1665, %v4558, %v4559
      %v4561 = vrot.slane %v3827, 4
      %v4562 = vor.u32 %v4561, %v4559
      %v4563 = vrot.slane %v4562, 4
      %v4564 = vrot.slane %v3839, 5
      %v4565 = vsel %vm1665, %v4563, %v4564
      %v4566 = vrot.slane %v3836, 4
      %v4567 = vor.u32 %v4566, %v4564
      %v4568 = vrot.slane %v4567, 4
      %v4569 = vrot.slane %v3844, 4
      %v4570 = vrot.slane %v3847, 5
      %v4571 = vor.u32 %v4569, %v4570
      %v4572 = vrot.slane %v4571, 4
      %v4573 = vrot.slane %v3855, 5
      %v4574 = vsel %vm1665, %v4572, %v4573
      %v4575 = vrot.slane %v3852, 4
      %v4576 = vor.u32 %v4575, %v4573
      %v4577 = vrot.slane %v4576, 4
      %v4578 = vrot.slane %v3864, 5
      %v4579 = vsel %vm1665, %v4577, %v4578
      %v4580 = vrot.slane %v3861, 4
      %v4581 = vor.u32 %v4580, %v4578
      %v4582 = vrot.slane %v4581, 4
      %v4583 = vrot.slane %v3873, 5
      %v4584 = vsel %vm1665, %v4582, %v4583
      %v4585 = vrot.slane %v3870, 4
      %v4586 = vor.u32 %v4585, %v4583
      %v4587 = vrot.slane %v4586, 4
      %v4588 = vrot.slane %v3878, 4
      %v4589 = vrot.slane %v3881, 5
      %v4590 = vor.u32 %v4588, %v4589
      %v4591 = vrot.slane %v4590, 4
      %v4592 = vrot.slane %v3889, 5
      %v4593 = vsel %vm1665, %v4591, %v4592
      %v4594 = vrot.slane %v3886, 4
      %v4595 = vor.u32 %v4594, %v4592
      %v4596 = vrot.slane %v4595, 4
      %v4597 = vrot.slane %v3898, 5
      %v4598 = vsel %vm1665, %v4596, %v4597
      %v4599 = vrot.slane %v3895, 4
      %v4600 = vor.u32 %v4599, %v4597
      %v4601 = vrot.slane %v4600, 4
      %v4602 = vrot.slane %v3907, 5
      %v4603 = vsel %vm1665, %v4601, %v4602
      %v4604 = vrot.slane %v3904, 4
      %v4605 = vor.u32 %v4604, %v4602
      %v4606 = vrot.slane %v4605, 4
      %v4607 = vrot.slane %v3912, 4
      %v4608 = vrot.slane %v3915, 5
      %v4609 = vor.u32 %v4607, %v4608
      %v4610 = vrot.slane %v4609, 4
      %v4611 = vrot.slane %v3923, 5
      %v4612 = vsel %vm1665, %v4610, %v4611
      %v4613 = vrot.slane %v3920, 4
      %v4614 = vor.u32 %v4613, %v4611
      %v4615 = vrot.slane %v4614, 4
      %v4616 = vrot.slane %v3932, 5
      %v4617 = vsel %vm1665, %v4615, %v4616
      %v4618 = vrot.slane %v3929, 4
      %v4619 = vor.u32 %v4618, %v4616
      %v4620 = vrot.slane %v4619, 4
      %v4621 = vrot.slane %v3941, 5
      %v4622 = vsel %vm1665, %v4620, %v4621
      %v4623 = vrot.slane %v3938, 4
      %v4624 = vor.u32 %v4623, %v4621
      %v4625 = vrot.slane %v4624, 4
      %v4626 = vrot.slane %v3946, 4
      %v4627 = vrot.slane %v3949, 5
      %v4628 = vor.u32 %v4626, %v4627
      %v4629 = vrot.slane %v4628, 4
      %v4630 = vrot.slane %v3957, 5
      %v4631 = vsel %vm1665, %v4629, %v4630
      %v4632 = vrot.slane %v3954, 4
      %v4633 = vor.u32 %v4632, %v4630
      %v4634 = vrot.slane %v4633, 4
      %v4635 = vrot.slane %v3966, 5
      %v4636 = vsel %vm1665, %v4634, %v4635
      %v4637 = vrot.slane %v3963, 4
      %v4638 = vor.u32 %v4637, %v4635
      %v4639 = vrot.slane %v4638, 4
      %v4640 = vrot.slane %v3975, 5
      %v4641 = vsel %vm1665, %v4639, %v4640
      %v4642 = vrot.slane %v3972, 4
      %v4643 = vor.u32 %v4642, %v4640
      %v4644 = vrot.slane %v4643, 4
      %v4645 = vrot.slane %v3980, 4
      %v4646 = vrot.slane %v3983, 5
      %v4647 = vor.u32 %v4645, %v4646
      %v4648 = vrot.slane %v4647, 4
      %v4649 = vrot.slane %v3991, 5
      %v4650 = vsel %vm1665, %v4648, %v4649
      %v4651 = vrot.slane %v3988, 4
      %v4652 = vor.u32 %v4651, %v4649
      %v4653 = vrot.slane %v4652, 4
      %v4654 = vrot.slane %v4000, 5
      %v4655 = vsel %vm1665, %v4653, %v4654
      %v4656 = vrot.slane %v3997, 4
      %v4657 = vor.u32 %v4656, %v4654
      %v4658 = vrot.slane %v4657, 4
      %v4659 = vrot.slane %v4009, 5
      %v4660 = vsel %vm1665, %v4658, %v4659
      %v4661 = vrot.slane %v4006, 4
      %v4662 = vor.u32 %v4661, %v4659
      %v4663 = vrot.slane %v4662, 4
      %v4664 = vrot.slane %v4014, 4
      %v4665 = vrot.slane %v4017, 5
      %v4666 = vor.u32 %v4664, %v4665
      %v4667 = vrot.slane %v4666, 4
      %v4668 = vrot.slane %v4025, 5
      %v4669 = vsel %vm1665, %v4667, %v4668
      %v4670 = vrot.slane %v4022, 4
      %v4671 = vor.u32 %v4670, %v4668
      %v4672 = vrot.slane %v4671, 4
      %v4673 = vrot.slane %v4034, 5
      %v4674 = vsel %vm1665, %v4672, %v4673
      %v4675 = vrot.slane %v4031, 4
      %v4676 = vor.u32 %v4675, %v4673
      %v4677 = vrot.slane %v4676, 4
      %v4678 = vrot.slane %v4043, 5
      %v4679 = vsel %vm1665, %v4677, %v4678
      %v4680 = vrot.slane %v4040, 4
      %v4681 = vor.u32 %v4680, %v4678
      %v4682 = vrot.slane %v4681, 4
      %v4683 = vrot.slane %v4048, 4
      %v4684 = vrot.slane %v4051, 5
      %v4685 = vor.u32 %v4683, %v4684
      %v4686 = vrot.slane %v4685, 4
      %v4687 = vrot.slane %v4059, 5
      %v4688 = vsel %vm1665, %v4686, %v4687
      %v4689 = vrot.slane %v4056, 4
      %v4690 = vor.u32 %v4689, %v4687
      %v4691 = vrot.slane %v4690, 4
      %v4692 = vrot.slane %v4068, 5
      %v4693 = vsel %vm1665, %v4691, %v4692
      %v4694 = vrot.slane %v4065, 4
      %v4695 = vor.u32 %v4694, %v4692
      %v4696 = vrot.slane %v4695, 4
      %v4697 = vrot.slane %v4077, 5
      %v4698 = vsel %vm1665, %v4696, %v4697
      %v4699 = vrot.slane %v4074, 4
      %v4700 = vor.u32 %v4699, %v4697
      %v4701 = vrot.slane %v4700, 4
      %v4702 = vrot.slane %v4082, 4
      %v4703 = vrot.slane %v4085, 5
      %v4704 = vor.u32 %v4702, %v4703
      %v4705 = vrot.slane %v4704, 4
      %v4706 = vrot.slane %v4093, 5
      %v4707 = vsel %vm1665, %v4705, %v4706
      %v4708 = vrot.slane %v4090, 4
      %v4709 = vor.u32 %v4708, %v4706
      %v4710 = vrot.slane %v4709, 4
      %v4711 = vrot.slane %v4102, 5
      %v4712 = vsel %vm1665, %v4710, %v4711
      %v4713 = vrot.slane %v4099, 4
      %v4714 = vor.u32 %v4713, %v4711
      %v4715 = vrot.slane %v4714, 4
      %v4716 = vrot.slane %v4111, 5
      %v4717 = vsel %vm1665, %v4715, %v4716
      %v4718 = vrot.slane %v4108, 4
      %v4719 = vor.u32 %v4718, %v4716
      %v4720 = vrot.slane %v4719, 4
      %v4721 = vrot.slane %v4116, 4
      %v4722 = vrot.slane %v4119, 5
      %v4723 = vor.u32 %v4721, %v4722
      %v4724 = vrot.slane %v4723, 4
      %v4725 = vrot.slane %v4127, 5
      %v4726 = vsel %vm1665, %v4724, %v4725
      %v4727 = vrot.slane %v4124, 4
      %v4728 = vor.u32 %v4727, %v4725
      %v4729 = vrot.slane %v4728, 4
      %v4730 = vrot.slane %v4136, 5
      %v4731 = vsel %vm1665, %v4729, %v4730
      %v4732 = vrot.slane %v4133, 4
      %v4733 = vor.u32 %v4732, %v4730
      %v4734 = vrot.slane %v4733, 4
      %v4735 = vrot.slane %v4145, 5
      %v4736 = vsel %vm1665, %v4734, %v4735
      %v4737 = vrot.slane %v4142, 4
      %v4738 = vor.u32 %v4737, %v4735
      %v4739 = vrot.slane %v4738, 4
      %v4740 = vrot.slane %v4150, 4
      %v4741 = vrot.slane %v4153, 5
      %v4742 = vor.u32 %v4740, %v4741
      %v4743 = vrot.slane %v4742, 4
      %v4744 = vrot.slane %v4161, 5
      %v4745 = vsel %vm1665, %v4743, %v4744
      %v4746 = vrot.slane %v4158, 4
      %v4747 = vor.u32 %v4746, %v4744
      %v4748 = vrot.slane %v4747, 4
      %v4749 = vrot.slane %v4170, 5
      %v4750 = vsel %vm1665, %v4748, %v4749
      %v4751 = vrot.slane %v4167, 4
      %v4752 = vor.u32 %v4751, %v4749
      %v4753 = vrot.slane %v4752, 4
      %v4754 = vrot.slane %v4179, 5
      %v4755 = vsel %vm1665, %v4753, %v4754
      %v4756 = vrot.slane %v4176, 4
      %v4757 = vor.u32 %v4756, %v4754
      %v4758 = vrot.slane %v4757, 4
      %4823 = vst [vmem:[#allocation3 + $0x20] sm:$0xf] %v4460
      %4824 = vst [vmem:[#allocation3 + $0x44] sm:$0xf] %v4465
      %4825 = vst [vmem:[#allocation3 + $0x68] sm:$0xf] %v4470
      %v4826 = vld [vmem:[#allocation3 + $0x8c] sm:$0xf]
      %v4827 = vsel %vm2037, %v4473, %v4826
      %4828 = vst [vmem:[#allocation3 + $0x8c] sm:$0xf] %v4827
      %4829 = vst [vmem:[#allocation3 + $0xb0] sm:$0xf] %v4479
      %4830 = vst [vmem:[#allocation3 + $0xd4] sm:$0xf] %v4484
      %4831 = vst [vmem:[#allocation3 + $0xf8] sm:$0xf] %v4489
      %v4832 = vld [vmem:[#allocation3 + $0x11c] sm:$0xf]
      %v4833 = vsel %vm2037, %v4492, %v4832
      %4834 = vst [vmem:[#allocation3 + $0x11c] sm:$0xf] %v4833
      %4835 = vst [vmem:[#allocation3 + $0x140] sm:$0xf] %v4498
      %4836 = vst [vmem:[#allocation3 + $0x164] sm:$0xf] %v4503
      %4837 = vst [vmem:[#allocation3 + $0x188] sm:$0xf] %v4508
      %v4838 = vld [vmem:[#allocation3 + $0x1ac] sm:$0xf]
      %v4839 = vsel %vm2037, %v4511, %v4838
      %4840 = vst [vmem:[#allocation3 + $0x1ac] sm:$0xf] %v4839
      %4841 = vst [vmem:[#allocation3 + $0x1d0] sm:$0xf] %v4517
      %4842 = vst [vmem:[#allocation3 + $0x1f4] sm:$0xf] %v4522
      %4843 = vst [vmem:[#allocation3 + $0x218] sm:$0xf] %v4527
      %v4844 = vld [vmem:[#allocation3 + $0x23c] sm:$0xf]
      %v4845 = vsel %vm2037, %v4530, %v4844
      %4846 = vst [vmem:[#allocation3 + $0x23c] sm:$0xf] %v4845
      %4847 = vst [vmem:[#allocation3 + $0x260] sm:$0xf] %v4536
      %4848 = vst [vmem:[#allocation3 + $0x284] sm:$0xf] %v4541
      %4849 = vst [vmem:[#allocation3 + $0x2a8] sm:$0xf] %v4546
      %v4850 = vld [vmem:[#allocation3 + $0x2cc] sm:$0xf]
      %v4851 = vsel %vm2037, %v4549, %v4850
      %4852 = vst [vmem:[#allocation3 + $0x2cc] sm:$0xf] %v4851
      %4853 = vst [vmem:[#allocation3 + $0x2f0] sm:$0xf] %v4555
      %4854 = vst [vmem:[#allocation3 + $0x314] sm:$0xf] %v4560
      %4855 = vst [vmem:[#allocation3 + $0x338] sm:$0xf] %v4565
      %v4856 = vld [vmem:[#allocation3 + $0x35c] sm:$0xf]
      %v4857 = vsel %vm2037, %v4568, %v4856
      %4858 = vst [vmem:[#allocation3 + $0x35c] sm:$0xf] %v4857
      %4859 = vst [vmem:[#allocation3 + $0x380] sm:$0xf] %v4574
      %4860 = vst [vmem:[#allocation3 + $0x3a4] sm:$0xf] %v4579
      %4861 = vst [vmem:[#allocation3 + $0x3c8] sm:$0xf] %v4584
      %v4862 = vld [vmem:[#allocation3 + $0x3ec] sm:$0xf]
      %v4863 = vsel %vm2037, %v4587, %v4862
      %4864 = vst [vmem:[#allocation3 + $0x3ec] sm:$0xf] %v4863
      %4865 = vst [vmem:[#allocation3 + $0x410] sm:$0xf] %v4593
      %4866 = vst [vmem:[#allocation3 + $0x434] sm:$0xf] %v4598
      %4867 = vst [vmem:[#allocation3 + $0x458] sm:$0xf] %v4603
      %v4868 = vld [vmem:[#allocation3 + $0x47c] sm:$0xf]
      %v4869 = vsel %vm2037, %v4606, %v4868
      %4870 = vst [vmem:[#allocation3 + $0x47c] sm:$0xf] %v4869
      %4871 = vst [vmem:[#allocation3 + $0x4a0] sm:$0xf] %v4612
      %4872 = vst [vmem:[#allocation3 + $0x4c4] sm:$0xf] %v4617
      %4873 = vst [vmem:[#allocation3 + $0x4e8] sm:$0xf] %v4622
      %v4874 = vld [vmem:[#allocation3 + $0x50c] sm:$0xf]
      %v4875 = vsel %vm2037, %v4625, %v4874
      %4876 = vst [vmem:[#allocation3 + $0x50c] sm:$0xf] %v4875
      %4877 = vst [vmem:[#allocation3 + $0x530] sm:$0xf] %v4631
      %4878 = vst [vmem:[#allocation3 + $0x554] sm:$0xf] %v4636
      %4879 = vst [vmem:[#allocation3 + $0x578] sm:$0xf] %v4641
      %v4880 = vld [vmem:[#allocation3 + $0x59c] sm:$0xf]
      %v4881 = vsel %vm2037, %v4644, %v4880
      %4882 = vst [vmem:[#allocation3 + $0x59c] sm:$0xf] %v4881
      %4883 = vst [vmem:[#allocation3 + $0x5c0] sm:$0xf] %v4650
      %4884 = vst [vmem:[#allocation3 + $0x5e4] sm:$0xf] %v4655
      %4885 = vst [vmem:[#allocation3 + $0x608] sm:$0xf] %v4660
      %v4886 = vld [vmem:[#allocation3 + $0x62c] sm:$0xf]
      %v4887 = vsel %vm2037, %v4663, %v4886
      %4888 = vst [vmem:[#allocation3 + $0x62c] sm:$0xf] %v4887
      %4889 = vst [vmem:[#allocation3 + $0x650] sm:$0xf] %v4669
      %4890 = vst [vmem:[#allocation3 + $0x674] sm:$0xf] %v4674
      %4891 = vst [vmem:[#allocation3 + $0x698] sm:$0xf] %v4679
      %v4892 = vld [vmem:[#allocation3 + $0x6bc] sm:$0xf]
      %v4893 = vsel %vm2037, %v4682, %v4892
      %4894 = vst [vmem:[#allocation3 + $0x6bc] sm:$0xf] %v4893
      %4895 = vst [vmem:[#allocation3 + $0x6e0] sm:$0xf] %v4688
      %4896 = vst [vmem:[#allocation3 + $0x704] sm:$0xf] %v4693
      %4897 = vst [vmem:[#allocation3 + $0x728] sm:$0xf] %v4698
      %v4898 = vld [vmem:[#allocation3 + $0x74c] sm:$0xf]
      %v4899 = vsel %vm2037, %v4701, %v4898
      %4900 = vst [vmem:[#allocation3 + $0x74c] sm:$0xf] %v4899
      %4901 = vst [vmem:[#allocation3 + $0x770] sm:$0xf] %v4707
      %4902 = vst [vmem:[#allocation3 + $0x794] sm:$0xf] %v4712
      %4903 = vst [vmem:[#allocation3 + $0x7b8] sm:$0xf] %v4717
      %v4904 = vld [vmem:[#allocation3 + $0x7dc] sm:$0xf]
      %v4905 = vsel %vm2037, %v4720, %v4904
      %4906 = vst [vmem:[#allocation3 + $0x7dc] sm:$0xf] %v4905
      %4907 = vst [vmem:[#allocation3 + $0x800] sm:$0xf] %v4726
      %4908 = vst [vmem:[#allocation3 + $0x824] sm:$0xf] %v4731
      %4909 = vst [vmem:[#allocation3 + $0x848] sm:$0xf] %v4736
      %v4910 = vld [vmem:[#allocation3 + $0x86c] sm:$0xf]
      %v4911 = vsel %vm2037, %v4739, %v4910
      %4912 = vst [vmem:[#allocation3 + $0x86c] sm:$0xf] %v4911
      %4913 = vst [vmem:[#allocation3 + $0x890] sm:$0xf] %v4745
      %4914 = vst [vmem:[#allocation3 + $0x8b4] sm:$0xf] %v4750
      %4915 = vst [vmem:[#allocation3 + $0x8d8] sm:$0xf] %v4755
      %v4916 = vld [vmem:[#allocation3 + $0x8fc] sm:$0xf]
      %v4917 = vsel %vm2037, %v4758, %v4916
      %4918 = vst [vmem:[#allocation3 + $0x8fc] sm:$0xf] %v4917
      %v4919 = vld [vmem:[#allocation3 + $0x8c] sm:$0x8]
      %v4920 = vsel %vm2133, 0, %v4919
      %4921 = vst [vmem:[#allocation3 + $0x8c] sm:$0x8] %v4920
      %v4922 = vld [vmem:[#allocation3 + $0x11c] sm:$0x8]
      %v4923 = vsel %vm2133, 0, %v4922
      %4924 = vst [vmem:[#allocation3 + $0x11c] sm:$0x8] %v4923
      %v4925 = vld [vmem:[#allocation3 + $0x1ac] sm:$0x8]
      %v4926 = vsel %vm2133, 0, %v4925
      %4927 = vst [vmem:[#allocation3 + $0x1ac] sm:$0x8] %v4926
      %v4928 = vld [vmem:[#allocation3 + $0x23c] sm:$0x8]
      %v4929 = vsel %vm2133, 0, %v4928
      %4930 = vst [vmem:[#allocation3 + $0x23c] sm:$0x8] %v4929
      %v4931 = vld [vmem:[#allocation3 + $0x2cc] sm:$0x8]
      %v4932 = vsel %vm2133, 0, %v4931
      %4933 = vst [vmem:[#allocation3 + $0x2cc] sm:$0x8] %v4932
      %v4934 = vld [vmem:[#allocation3 + $0x35c] sm:$0x8]
      %v4935 = vsel %vm2133, 0, %v4934
      %4936 = vst [vmem:[#allocation3 + $0x35c] sm:$0x8] %v4935
      %v4937 = vld [vmem:[#allocation3 + $0x3ec] sm:$0x8]
      %v4938 = vsel %vm2133, 0, %v4937
      %4939 = vst [vmem:[#allocation3 + $0x3ec] sm:$0x8] %v4938
      %v4940 = vld [vmem:[#allocation3 + $0x47c] sm:$0x8]
      %v4941 = vsel %vm2133, 0, %v4940
      %4942 = vst [vmem:[#allocation3 + $0x47c] sm:$0x8] %v4941
      %v4943 = vld [vmem:[#allocation3 + $0x50c] sm:$0x8]
      %v4944 = vsel %vm2133, 0, %v4943
      %4945 = vst [vmem:[#allocation3 + $0x50c] sm:$0x8] %v4944
      %v4946 = vld [vmem:[#allocation3 + $0x59c] sm:$0x8]
      %v4947 = vsel %vm2133, 0, %v4946
      %4948 = vst [vmem:[#allocation3 + $0x59c] sm:$0x8] %v4947
      %v4949 = vld [vmem:[#allocation3 + $0x62c] sm:$0x8]
      %v4950 = vsel %vm2133, 0, %v4949
      %4951 = vst [vmem:[#allocation3 + $0x62c] sm:$0x8] %v4950
      %v4952 = vld [vmem:[#allocation3 + $0x6bc] sm:$0x8]
      %v4953 = vsel %vm2133, 0, %v4952
      %4954 = vst [vmem:[#allocation3 + $0x6bc] sm:$0x8] %v4953
      %v4955 = vld [vmem:[#allocation3 + $0x74c] sm:$0x8]
      %v4956 = vsel %vm2133, 0, %v4955
      %4957 = vst [vmem:[#allocation3 + $0x74c] sm:$0x8] %v4956
      %v4958 = vld [vmem:[#allocation3 + $0x7dc] sm:$0x8]
      %v4959 = vsel %vm2133, 0, %v4958
      %4960 = vst [vmem:[#allocation3 + $0x7dc] sm:$0x8] %v4959
      %v4961 = vld [vmem:[#allocation3 + $0x86c] sm:$0x8]
      %v4962 = vsel %vm2133, 0, %v4961
      %4963 = vst [vmem:[#allocation3 + $0x86c] sm:$0x8] %v4962
      %v4964 = vld [vmem:[#allocation3 + $0x8fc] sm:$0x8]
      %v4965 = vsel %vm2133, 0, %v4964
      %4966 = vst [vmem:[#allocation3 + $0x8fc] sm:$0x8] %v4965
      %v4967 = vld [vmem:[#allocation3] sm:$0xff]
      %v4968 = vld [vmem:[#allocation3 + $0x8] sm:$0xff]
      %v4969 = vld [vmem:[#allocation3 + $0x10] sm:$0xff]
      %v4970 = vld [vmem:[#allocation3 + $0x18] sm:$0xff]
      %v4971 = vld [vmem:[#allocation3 + $0x20] sm:$0xf]
      %v4972 = vld [vmem:[#allocation3 + $0x24] sm:$0xff]
      %v4973 = vld [vmem:[#allocation3 + $0x2c] sm:$0xff]
      %v4974 = vld [vmem:[#allocation3 + $0x34] sm:$0xff]
      %v4975 = vld [vmem:[#allocation3 + $0x3c] sm:$0xff]
      %v4976 = vld [vmem:[#allocation3 + $0x44] sm:$0xf]
      %v4977 = vld [vmem:[#allocation3 + $0x48] sm:$0xff]
      %v4978 = vld [vmem:[#allocation3 + $0x50] sm:$0xff]
      %v4979 = vld [vmem:[#allocation3 + $0x58] sm:$0xff]
      %v4980 = vld [vmem:[#allocation3 + $0x60] sm:$0xff]
      %v4981 = vld [vmem:[#allocation3 + $0x68] sm:$0xf]
      %v4982 = vld [vmem:[#allocation3 + $0x6c] sm:$0xff]
      %v4983 = vld [vmem:[#allocation3 + $0x74] sm:$0xff]
      %v4984 = vld [vmem:[#allocation3 + $0x7c] sm:$0xff]
      %v4985 = vld [vmem:[#allocation3 + $0x84] sm:$0xff]
      %v4986 = vld [vmem:[#allocation3 + $0x8c] sm:$0xf]
      %v4987 = vld [vmem:[#allocation3 + $0x90] sm:$0xff]
      %v4988 = vld [vmem:[#allocation3 + $0x98] sm:$0xff]
      %v4989 = vld [vmem:[#allocation3 + $0xa0] sm:$0xff]
      %v4990 = vld [vmem:[#allocation3 + $0xa8] sm:$0xff]
      %v4991 = vld [vmem:[#allocation3 + $0xb0] sm:$0xf]
      %v4992 = vld [vmem:[#allocation3 + $0xb4] sm:$0xff]
      %v4993 = vld [vmem:[#allocation3 + $0xbc] sm:$0xff]
      %v4994 = vld [vmem:[#allocation3 + $0xc4] sm:$0xff]
      %v4995 = vld [vmem:[#allocation3 + $0xcc] sm:$0xff]
      %v4996 = vld [vmem:[#allocation3 + $0xd4] sm:$0xf]
      %v4997 = vld [vmem:[#allocation3 + $0xd8] sm:$0xff]
      %v4998 = vld [vmem:[#allocation3 + $0xe0] sm:$0xff]
      %v4999 = vld [vmem:[#allocation3 + $0xe8] sm:$0xff]
      %v5000 = vld [vmem:[#allocation3 + $0xf0] sm:$0xff]
      %v5001 = vld [vmem:[#allocation3 + $0xf8] sm:$0xf]
      %v5002 = vld [vmem:[#allocation3 + $0xfc] sm:$0xff]
      %v5003 = vld [vmem:[#allocation3 + $0x104] sm:$0xff]
      %v5004 = vld [vmem:[#allocation3 + $0x10c] sm:$0xff]
      %v5005 = vld [vmem:[#allocation3 + $0x114] sm:$0xff]
      %v5006 = vld [vmem:[#allocation3 + $0x11c] sm:$0xf]
      %v5007 = vld [vmem:[#allocation3 + $0x120] sm:$0xff]
      %v5008 = vld [vmem:[#allocation3 + $0x128] sm:$0xff]
      %v5009 = vld [vmem:[#allocation3 + $0x130] sm:$0xff]
      %v5010 = vld [vmem:[#allocation3 + $0x138] sm:$0xff]
      %v5011 = vld [vmem:[#allocation3 + $0x140] sm:$0xf]
      %v5012 = vld [vmem:[#allocation3 + $0x144] sm:$0xff]
      %v5013 = vld [vmem:[#allocation3 + $0x14c] sm:$0xff]
      %v5014 = vld [vmem:[#allocation3 + $0x154] sm:$0xff]
      %v5015 = vld [vmem:[#allocation3 + $0x15c] sm:$0xff]
      %v5016 = vld [vmem:[#allocation3 + $0x164] sm:$0xf]
      %v5017 = vld [vmem:[#allocation3 + $0x168] sm:$0xff]
      %v5018 = vld [vmem:[#allocation3 + $0x170] sm:$0xff]
      %v5019 = vld [vmem:[#allocation3 + $0x178] sm:$0xff]
      %v5020 = vld [vmem:[#allocation3 + $0x180] sm:$0xff]
      %v5021 = vld [vmem:[#allocation3 + $0x188] sm:$0xf]
      %v5022 = vld [vmem:[#allocation3 + $0x18c] sm:$0xff]
      %v5023 = vld [vmem:[#allocation3 + $0x194] sm:$0xff]
      %v5024 = vld [vmem:[#allocation3 + $0x19c] sm:$0xff]
      %v5025 = vld [vmem:[#allocation3 + $0x1a4] sm:$0xff]
      %v5026 = vld [vmem:[#allocation3 + $0x1ac] sm:$0xf]
      %v5027 = vld [vmem:[#allocation3 + $0x1b0] sm:$0xff]
      %v5028 = vld [vmem:[#allocation3 + $0x1b8] sm:$0xff]
      %v5029 = vld [vmem:[#allocation3 + $0x1c0] sm:$0xff]
      %v5030 = vld [vmem:[#allocation3 + $0x1c8] sm:$0xff]
      %v5031 = vld [vmem:[#allocation3 + $0x1d0] sm:$0xf]
      %v5032 = vld [vmem:[#allocation3 + $0x1d4] sm:$0xff]
      %v5033 = vld [vmem:[#allocation3 + $0x1dc] sm:$0xff]
      %v5034 = vld [vmem:[#allocation3 + $0x1e4] sm:$0xff]
      %v5035 = vld [vmem:[#allocation3 + $0x1ec] sm:$0xff]
      %v5036 = vld [vmem:[#allocation3 + $0x1f4] sm:$0xf]
      %v5037 = vld [vmem:[#allocation3 + $0x1f8] sm:$0xff]
      %v5038 = vld [vmem:[#allocation3 + $0x200] sm:$0xff]
      %v5039 = vld [vmem:[#allocation3 + $0x208] sm:$0xff]
      %v5040 = vld [vmem:[#allocation3 + $0x210] sm:$0xff]
      %v5041 = vld [vmem:[#allocation3 + $0x218] sm:$0xf]
      %v5042 = vld [vmem:[#allocation3 + $0x21c] sm:$0xff]
      %v5043 = vld [vmem:[#allocation3 + $0x224] sm:$0xff]
      %v5044 = vld [vmem:[#allocation3 + $0x22c] sm:$0xff]
      %v5045 = vld [vmem:[#allocation3 + $0x234] sm:$0xff]
      %v5046 = vld [vmem:[#allocation3 + $0x23c] sm:$0xf]
      %v5047 = vld [vmem:[#allocation3 + $0x240] sm:$0xff]
      %v5048 = vld [vmem:[#allocation3 + $0x248] sm:$0xff]
      %v5049 = vld [vmem:[#allocation3 + $0x250] sm:$0xff]
      %v5050 = vld [vmem:[#allocation3 + $0x258] sm:$0xff]
      %v5051 = vld [vmem:[#allocation3 + $0x260] sm:$0xf]
      %v5052 = vld [vmem:[#allocation3 + $0x264] sm:$0xff]
      %v5053 = vld [vmem:[#allocation3 + $0x26c] sm:$0xff]
      %v5054 = vld [vmem:[#allocation3 + $0x274] sm:$0xff]
      %v5055 = vld [vmem:[#allocation3 + $0x27c] sm:$0xff]
      %v5056 = vld [vmem:[#allocation3 + $0x284] sm:$0xf]
      %v5057 = vld [vmem:[#allocation3 + $0x288] sm:$0xff]
      %v5058 = vld [vmem:[#allocation3 + $0x290] sm:$0xff]
      %v5059 = vld [vmem:[#allocation3 + $0x298] sm:$0xff]
      %v5060 = vld [vmem:[#allocation3 + $0x2a0] sm:$0xff]
      %v5061 = vld [vmem:[#allocation3 + $0x2a8] sm:$0xf]
      %v5062 = vld [vmem:[#allocation3 + $0x2ac] sm:$0xff]
      %v5063 = vld [vmem:[#allocation3 + $0x2b4] sm:$0xff]
      %v5064 = vld [vmem:[#allocation3 + $0x2bc] sm:$0xff]
      %v5065 = vld [vmem:[#allocation3 + $0x2c4] sm:$0xff]
      %v5066 = vld [vmem:[#allocation3 + $0x2cc] sm:$0xf]
      %v5067 = vld [vmem:[#allocation3 + $0x2d0] sm:$0xff]
      %v5068 = vld [vmem:[#allocation3 + $0x2d8] sm:$0xff]
      %v5069 = vld [vmem:[#allocation3 + $0x2e0] sm:$0xff]
      %v5070 = vld [vmem:[#allocation3 + $0x2e8] sm:$0xff]
      %v5071 = vld [vmem:[#allocation3 + $0x2f0] sm:$0xf]
      %v5072 = vld [vmem:[#allocation3 + $0x2f4] sm:$0xff]
      %v5073 = vld [vmem:[#allocation3 + $0x2fc] sm:$0xff]
      %v5074 = vld [vmem:[#allocation3 + $0x304] sm:$0xff]
      %v5075 = vld [vmem:[#allocation3 + $0x30c] sm:$0xff]
      %v5076 = vld [vmem:[#allocation3 + $0x314] sm:$0xf]
      %v5077 = vld [vmem:[#allocation3 + $0x318] sm:$0xff]
      %v5078 = vld [vmem:[#allocation3 + $0x320] sm:$0xff]
      %v5079 = vld [vmem:[#allocation3 + $0x328] sm:$0xff]
      %v5080 = vld [vmem:[#allocation3 + $0x330] sm:$0xff]
      %v5081 = vld [vmem:[#allocation3 + $0x338] sm:$0xf]
      %v5082 = vld [vmem:[#allocation3 + $0x33c] sm:$0xff]
      %v5083 = vld [vmem:[#allocation3 + $0x344] sm:$0xff]
      %v5084 = vld [vmem:[#allocation3 + $0x34c] sm:$0xff]
      %v5085 = vld [vmem:[#allocation3 + $0x354] sm:$0xff]
      %v5086 = vld [vmem:[#allocation3 + $0x35c] sm:$0xf]
      %v5087 = vld [vmem:[#allocation3 + $0x360] sm:$0xff]
      %v5088 = vld [vmem:[#allocation3 + $0x368] sm:$0xff]
      %v5089 = vld [vmem:[#allocation3 + $0x370] sm:$0xff]
      %v5090 = vld [vmem:[#allocation3 + $0x378] sm:$0xff]
      %v5091 = vld [vmem:[#allocation3 + $0x380] sm:$0xf]
      %v5092 = vld [vmem:[#allocation3 + $0x384] sm:$0xff]
      %v5093 = vld [vmem:[#allocation3 + $0x38c] sm:$0xff]
      %v5094 = vld [vmem:[#allocation3 + $0x394] sm:$0xff]
      %v5095 = vld [vmem:[#allocation3 + $0x39c] sm:$0xff]
      %v5096 = vld [vmem:[#allocation3 + $0x3a4] sm:$0xf]
      %v5097 = vld [vmem:[#allocation3 + $0x3a8] sm:$0xff]
      %v5098 = vld [vmem:[#allocation3 + $0x3b0] sm:$0xff]
      %v5099 = vld [vmem:[#allocation3 + $0x3b8] sm:$0xff]
      %v5100 = vld [vmem:[#allocation3 + $0x3c0] sm:$0xff]
      %v5101 = vld [vmem:[#allocation3 + $0x3c8] sm:$0xf]
      %v5102 = vld [vmem:[#allocation3 + $0x3cc] sm:$0xff]
      %v5103 = vld [vmem:[#allocation3 + $0x3d4] sm:$0xff]
      %v5104 = vld [vmem:[#allocation3 + $0x3dc] sm:$0xff]
      %v5105 = vld [vmem:[#allocation3 + $0x3e4] sm:$0xff]
      %v5106 = vld [vmem:[#allocation3 + $0x3ec] sm:$0xf]
      %v5107 = vld [vmem:[#allocation3 + $0x3f0] sm:$0xff]
      %v5108 = vld [vmem:[#allocation3 + $0x3f8] sm:$0xff]
      %v5109 = vld [vmem:[#allocation3 + $0x400] sm:$0xff]
      %v5110 = vld [vmem:[#allocation3 + $0x408] sm:$0xff]
      %v5111 = vld [vmem:[#allocation3 + $0x410] sm:$0xf]
      %v5112 = vld [vmem:[#allocation3 + $0x414] sm:$0xff]
      %v5113 = vld [vmem:[#allocation3 + $0x41c] sm:$0xff]
      %v5114 = vld [vmem:[#allocation3 + $0x424] sm:$0xff]
      %v5115 = vld [vmem:[#allocation3 + $0x42c] sm:$0xff]
      %v5116 = vld [vmem:[#allocation3 + $0x434] sm:$0xf]
      %v5117 = vld [vmem:[#allocation3 + $0x438] sm:$0xff]
      %v5118 = vld [vmem:[#allocation3 + $0x440] sm:$0xff]
      %v5119 = vld [vmem:[#allocation3 + $0x448] sm:$0xff]
      %v5120 = vld [vmem:[#allocation3 + $0x450] sm:$0xff]
      %v5121 = vld [vmem:[#allocation3 + $0x458] sm:$0xf]
      %v5122 = vld [vmem:[#allocation3 + $0x45c] sm:$0xff]
      %v5123 = vld [vmem:[#allocation3 + $0x464] sm:$0xff]
      %v5124 = vld [vmem:[#allocation3 + $0x46c] sm:$0xff]
      %v5125 = vld [vmem:[#allocation3 + $0x474] sm:$0xff]
      %v5126 = vld [vmem:[#allocation3 + $0x47c] sm:$0xf]
      %v5127 = vld [vmem:[#allocation3 + $0x480] sm:$0xff]
      %v5128 = vld [vmem:[#allocation3 + $0x488] sm:$0xff]
      %v5129 = vld [vmem:[#allocation3 + $0x490] sm:$0xff]
      %v5130 = vld [vmem:[#allocation3 + $0x498] sm:$0xff]
      %v5131 = vld [vmem:[#allocation3 + $0x4a0] sm:$0xf]
      %v5132 = vld [vmem:[#allocation3 + $0x4a4] sm:$0xff]
      %v5133 = vld [vmem:[#allocation3 + $0x4ac] sm:$0xff]
      %v5134 = vld [vmem:[#allocation3 + $0x4b4] sm:$0xff]
      %v5135 = vld [vmem:[#allocation3 + $0x4bc] sm:$0xff]
      %v5136 = vld [vmem:[#allocation3 + $0x4c4] sm:$0xf]
      %v5137 = vld [vmem:[#allocation3 + $0x4c8] sm:$0xff]
      %v5138 = vld [vmem:[#allocation3 + $0x4d0] sm:$0xff]
      %v5139 = vld [vmem:[#allocation3 + $0x4d8] sm:$0xff]
      %v5140 = vld [vmem:[#allocation3 + $0x4e0] sm:$0xff]
      %v5141 = vld [vmem:[#allocation3 + $0x4e8] sm:$0xf]
      %v5142 = vld [vmem:[#allocation3 + $0x4ec] sm:$0xff]
      %v5143 = vld [vmem:[#allocation3 + $0x4f4] sm:$0xff]
      %v5144 = vld [vmem:[#allocation3 + $0x4fc] sm:$0xff]
      %v5145 = vld [vmem:[#allocation3 + $0x504] sm:$0xff]
      %v5146 = vld [vmem:[#allocation3 + $0x50c] sm:$0xf]
      %v5147 = vld [vmem:[#allocation3 + $0x510] sm:$0xff]
      %v5148 = vld [vmem:[#allocation3 + $0x518] sm:$0xff]
      %v5149 = vld [vmem:[#allocation3 + $0x520] sm:$0xff]
      %v5150 = vld [vmem:[#allocation3 + $0x528] sm:$0xff]
      %v5151 = vld [vmem:[#allocation3 + $0x530] sm:$0xf]
      %v5152 = vld [vmem:[#allocation3 + $0x534] sm:$0xff]
      %v5153 = vld [vmem:[#allocation3 + $0x53c] sm:$0xff]
      %v5154 = vld [vmem:[#allocation3 + $0x544] sm:$0xff]
      %v5155 = vld [vmem:[#allocation3 + $0x54c] sm:$0xff]
      %v5156 = vld [vmem:[#allocation3 + $0x554] sm:$0xf]
      %v5157 = vld [vmem:[#allocation3 + $0x558] sm:$0xff]
      %v5158 = vld [vmem:[#allocation3 + $0x560] sm:$0xff]
      %v5159 = vld [vmem:[#allocation3 + $0x568] sm:$0xff]
      %v5160 = vld [vmem:[#allocation3 + $0x570] sm:$0xff]
      %v5161 = vld [vmem:[#allocation3 + $0x578] sm:$0xf]
      %v5162 = vld [vmem:[#allocation3 + $0x57c] sm:$0xff]
      %v5163 = vld [vmem:[#allocation3 + $0x584] sm:$0xff]
      %v5164 = vld [vmem:[#allocation3 + $0x58c] sm:$0xff]
      %v5165 = vld [vmem:[#allocation3 + $0x594] sm:$0xff]
      %v5166 = vld [vmem:[#allocation3 + $0x59c] sm:$0xf]
      %v5167 = vld [vmem:[#allocation3 + $0x5a0] sm:$0xff]
      %v5168 = vld [vmem:[#allocation3 + $0x5a8] sm:$0xff]
      %v5169 = vld [vmem:[#allocation3 + $0x5b0] sm:$0xff]
      %v5170 = vld [vmem:[#allocation3 + $0x5b8] sm:$0xff]
      %v5171 = vld [vmem:[#allocation3 + $0x5c0] sm:$0xf]
      %v5172 = vld [vmem:[#allocation3 + $0x5c4] sm:$0xff]
      %v5173 = vld [vmem:[#allocation3 + $0x5cc] sm:$0xff]
      %v5174 = vld [vmem:[#allocation3 + $0x5d4] sm:$0xff]
      %v5175 = vld [vmem:[#allocation3 + $0x5dc] sm:$0xff]
      %v5176 = vld [vmem:[#allocation3 + $0x5e4] sm:$0xf]
      %v5177 = vld [vmem:[#allocation3 + $0x5e8] sm:$0xff]
      %v5178 = vld [vmem:[#allocation3 + $0x5f0] sm:$0xff]
      %v5179 = vld [vmem:[#allocation3 + $0x5f8] sm:$0xff]
      %v5180 = vld [vmem:[#allocation3 + $0x600] sm:$0xff]
      %v5181 = vld [vmem:[#allocation3 + $0x608] sm:$0xf]
      %v5182 = vld [vmem:[#allocation3 + $0x60c] sm:$0xff]
      %v5183 = vld [vmem:[#allocation3 + $0x614] sm:$0xff]
      %v5184 = vld [vmem:[#allocation3 + $0x61c] sm:$0xff]
      %v5185 = vld [vmem:[#allocation3 + $0x624] sm:$0xff]
      %v5186 = vld [vmem:[#allocation3 + $0x62c] sm:$0xf]
      %v5187 = vld [vmem:[#allocation3 + $0x630] sm:$0xff]
      %v5188 = vld [vmem:[#allocation3 + $0x638] sm:$0xff]
      %v5189 = vld [vmem:[#allocation3 + $0x640] sm:$0xff]
      %v5190 = vld [vmem:[#allocation3 + $0x648] sm:$0xff]
      %v5191 = vld [vmem:[#allocation3 + $0x650] sm:$0xf]
      %v5192 = vld [vmem:[#allocation3 + $0x654] sm:$0xff]
      %v5193 = vld [vmem:[#allocation3 + $0x65c] sm:$0xff]
      %v5194 = vld [vmem:[#allocation3 + $0x664] sm:$0xff]
      %v5195 = vld [vmem:[#allocation3 + $0x66c] sm:$0xff]
      %v5196 = vld [vmem:[#allocation3 + $0x674] sm:$0xf]
      %v5197 = vld [vmem:[#allocation3 + $0x678] sm:$0xff]
      %v5198 = vld [vmem:[#allocation3 + $0x680] sm:$0xff]
      %v5199 = vld [vmem:[#allocation3 + $0x688] sm:$0xff]
      %v5200 = vld [vmem:[#allocation3 + $0x690] sm:$0xff]
      %v5201 = vld [vmem:[#allocation3 + $0x698] sm:$0xf]
      %v5202 = vld [vmem:[#allocation3 + $0x69c] sm:$0xff]
      %v5203 = vld [vmem:[#allocation3 + $0x6a4] sm:$0xff]
      %v5204 = vld [vmem:[#allocation3 + $0x6ac] sm:$0xff]
      %v5205 = vld [vmem:[#allocation3 + $0x6b4] sm:$0xff]
      %v5206 = vld [vmem:[#allocation3 + $0x6bc] sm:$0xf]
      %v5207 = vld [vmem:[#allocation3 + $0x6c0] sm:$0xff]
      %v5208 = vld [vmem:[#allocation3 + $0x6c8] sm:$0xff]
      %v5209 = vld [vmem:[#allocation3 + $0x6d0] sm:$0xff]
      %v5210 = vld [vmem:[#allocation3 + $0x6d8] sm:$0xff]
      %v5211 = vld [vmem:[#allocation3 + $0x6e0] sm:$0xf]
      %v5212 = vld [vmem:[#allocation3 + $0x6e4] sm:$0xff]
      %v5213 = vld [vmem:[#allocation3 + $0x6ec] sm:$0xff]
      %v5214 = vld [vmem:[#allocation3 + $0x6f4] sm:$0xff]
      %v5215 = vld [vmem:[#allocation3 + $0x6fc] sm:$0xff]
      %v5216 = vld [vmem:[#allocation3 + $0x704] sm:$0xf]
      %v5217 = vld [vmem:[#allocation3 + $0x708] sm:$0xff]
      %v5218 = vld [vmem:[#allocation3 + $0x710] sm:$0xff]
      %v5219 = vld [vmem:[#allocation3 + $0x718] sm:$0xff]
      %v5220 = vld [vmem:[#allocation3 + $0x720] sm:$0xff]
      %v5221 = vld [vmem:[#allocation3 + $0x728] sm:$0xf]
      %v5222 = vld [vmem:[#allocation3 + $0x72c] sm:$0xff]
      %v5223 = vld [vmem:[#allocation3 + $0x734] sm:$0xff]
      %v5224 = vld [vmem:[#allocation3 + $0x73c] sm:$0xff]
      %v5225 = vld [vmem:[#allocation3 + $0x744] sm:$0xff]
      %v5226 = vld [vmem:[#allocation3 + $0x74c] sm:$0xf]
      %v5227 = vld [vmem:[#allocation3 + $0x750] sm:$0xff]
      %v5228 = vld [vmem:[#allocation3 + $0x758] sm:$0xff]
      %v5229 = vld [vmem:[#allocation3 + $0x760] sm:$0xff]
      %v5230 = vld [vmem:[#allocation3 + $0x768] sm:$0xff]
      %v5231 = vld [vmem:[#allocation3 + $0x770] sm:$0xf]
      %v5232 = vld [vmem:[#allocation3 + $0x774] sm:$0xff]
      %v5233 = vld [vmem:[#allocation3 + $0x77c] sm:$0xff]
      %v5234 = vld [vmem:[#allocation3 + $0x784] sm:$0xff]
      %v5235 = vld [vmem:[#allocation3 + $0x78c] sm:$0xff]
      %v5236 = vld [vmem:[#allocation3 + $0x794] sm:$0xf]
      %v5237 = vld [vmem:[#allocation3 + $0x798] sm:$0xff]
      %v5238 = vld [vmem:[#allocation3 + $0x7a0] sm:$0xff]
      %v5239 = vld [vmem:[#allocation3 + $0x7a8] sm:$0xff]
      %v5240 = vld [vmem:[#allocation3 + $0x7b0] sm:$0xff]
      %v5241 = vld [vmem:[#allocation3 + $0x7b8] sm:$0xf]
      %v5242 = vld [vmem:[#allocation3 + $0x7bc] sm:$0xff]
      %v5243 = vld [vmem:[#allocation3 + $0x7c4] sm:$0xff]
      %v5244 = vld [vmem:[#allocation3 + $0x7cc] sm:$0xff]
      %v5245 = vld [vmem:[#allocation3 + $0x7d4] sm:$0xff]
      %v5246 = vld [vmem:[#allocation3 + $0x7dc] sm:$0xf]
      %v5247 = vld [vmem:[#allocation3 + $0x7e0] sm:$0xff]
      %v5248 = vld [vmem:[#allocation3 + $0x7e8] sm:$0xff]
      %v5249 = vld [vmem:[#allocation3 + $0x7f0] sm:$0xff]
      %v5250 = vld [vmem:[#allocation3 + $0x7f8] sm:$0xff]
      %v5251 = vld [vmem:[#allocation3 + $0x800] sm:$0xf]
      %v5252 = vld [vmem:[#allocation3 + $0x804] sm:$0xff]
      %v5253 = vld [vmem:[#allocation3 + $0x80c] sm:$0xff]
      %v5254 = vld [vmem:[#allocation3 + $0x814] sm:$0xff]
      %v5255 = vld [vmem:[#allocation3 + $0x81c] sm:$0xff]
      %v5256 = vld [vmem:[#allocation3 + $0x824] sm:$0xf]
      %v5257 = vld [vmem:[#allocation3 + $0x828] sm:$0xff]
      %v5258 = vld [vmem:[#allocation3 + $0x830] sm:$0xff]
      %v5259 = vld [vmem:[#allocation3 + $0x838] sm:$0xff]
      %v5260 = vld [vmem:[#allocation3 + $0x840] sm:$0xff]
      %v5261 = vld [vmem:[#allocation3 + $0x848] sm:$0xf]
      %v5262 = vld [vmem:[#allocation3 + $0x84c] sm:$0xff]
      %v5263 = vld [vmem:[#allocation3 + $0x854] sm:$0xff]
      %v5264 = vld [vmem:[#allocation3 + $0x85c] sm:$0xff]
      %v5265 = vld [vmem:[#allocation3 + $0x864] sm:$0xff]
      %v5266 = vld [vmem:[#allocation3 + $0x86c] sm:$0xf]
      %v5267 = vld [vmem:[#allocation3 + $0x870] sm:$0xff]
      %v5268 = vld [vmem:[#allocation3 + $0x878] sm:$0xff]
      %v5269 = vld [vmem:[#allocation3 + $0x880] sm:$0xff]
      %v5270 = vld [vmem:[#allocation3 + $0x888] sm:$0xff]
      %v5271 = vld [vmem:[#allocation3 + $0x890] sm:$0xf]
      %v5272 = vld [vmem:[#allocation3 + $0x894] sm:$0xff]
      %v5273 = vld [vmem:[#allocation3 + $0x89c] sm:$0xff]
      %v5274 = vld [vmem:[#allocation3 + $0x8a4] sm:$0xff]
      %v5275 = vld [vmem:[#allocation3 + $0x8ac] sm:$0xff]
      %v5276 = vld [vmem:[#allocation3 + $0x8b4] sm:$0xf]
      %v5277 = vld [vmem:[#allocation3 + $0x8b8] sm:$0xff]
      %v5278 = vld [vmem:[#allocation3 + $0x8c0] sm:$0xff]
      %v5279 = vld [vmem:[#allocation3 + $0x8c8] sm:$0xff]
      %v5280 = vld [vmem:[#allocation3 + $0x8d0] sm:$0xff]
      %v5281 = vld [vmem:[#allocation3 + $0x8d8] sm:$0xf]
      %v5282 = vld [vmem:[#allocation3 + $0x8dc] sm:$0xff]
      %v5283 = vld [vmem:[#allocation3 + $0x8e4] sm:$0xff]
      %v5284 = vld [vmem:[#allocation3 + $0x8ec] sm:$0xff]
      %v5285 = vld [vmem:[#allocation3 + $0x8f4] sm:$0xff]
      %v5286 = vld [vmem:[#allocation3 + $0x8fc] sm:$0xf]
      %v5287 = vld [vmem:[%s5] sm:$0xf]
      %v5288 = vld [vmem:[%s5 + $0x4] sm:$0xf]
      %v5289 = vld [vmem:[%s5 + $0x8] sm:$0xf]
      %v5290 = vld [vmem:[%s5 + $0xc] sm:$0xf]
      %v5291 = vld [vmem:[%s5 + $0x10] sm:$0xf]
      %v5292 = vld [vmem:[%s5 + $0x14] sm:$0xf]
      %v5293 = vld [vmem:[%s5 + $0x18] sm:$0xf]
      %v5294 = vld [vmem:[%s5 + $0x1c] sm:$0xf]
      %v5295 = vld [vmem:[%s5 + $0x20] sm:$0xf]
      %v5296 = vld [vmem:[%s5 + $0x24] sm:$0xf]
      %v5297 = vld [vmem:[%s5 + $0x28] sm:$0xf]
      %v5298 = vld [vmem:[%s5 + $0x2c] sm:$0xf]
      %v5299 = vld [vmem:[%s5 + $0x30] sm:$0xf]
      %v5300 = vld [vmem:[%s5 + $0x34] sm:$0xf]
      %v5301 = vld [vmem:[%s5 + $0x38] sm:$0xf]
      %v5302 = vld [vmem:[%s5 + $0x3c] sm:$0xf]
      %v5303 = vld [vmem:[%s5 + $0x40] sm:$0xf]
      %v5304 = vld [vmem:[%s5 + $0x44] sm:$0xf]
      %v5305 = vld [vmem:[%s5 + $0x48] sm:$0xf]
      %v5306 = vld [vmem:[%s5 + $0x4c] sm:$0xf]
      %v5307 = vld [vmem:[%s5 + $0x50] sm:$0xf]
      %v5308 = vld [vmem:[%s5 + $0x54] sm:$0xf]
      %v5309 = vld [vmem:[%s5 + $0x58] sm:$0xf]
      %v5310 = vld [vmem:[%s5 + $0x5c] sm:$0xf]
      %v5311 = vld [vmem:[%s5 + $0x60] sm:$0xf]
      %v5312 = vld [vmem:[%s5 + $0x64] sm:$0xf]
      %v5313 = vld [vmem:[%s5 + $0x68] sm:$0xf]
      %v5314 = vld [vmem:[%s5 + $0x6c] sm:$0xf]
      %v5315 = vld [vmem:[%s5 + $0x70] sm:$0xf]
      %v5316 = vld [vmem:[%s5 + $0x74] sm:$0xf]
      %v5317 = vld [vmem:[%s5 + $0x78] sm:$0xf]
      %v5318 = vld [vmem:[%s5 + $0x7c] sm:$0xf]
      %v5319 = vld [vmem:[%s5 + $0x80] sm:$0xf]
      %v5320 = vld [vmem:[%s5 + $0x84] sm:$0xf]
      %v5321 = vld [vmem:[%s5 + $0x88] sm:$0xf]
      %v5322 = vld [vmem:[%s5 + $0x8c] sm:$0xf]
      %v5323 = vld [vmem:[%s5 + $0x90] sm:$0xf]
      %v5324 = vld [vmem:[%s5 + $0x94] sm:$0xf]
      %v5325 = vld [vmem:[%s5 + $0x98] sm:$0xf]
      %v5326 = vld [vmem:[%s5 + $0x9c] sm:$0xf]
      %v5327 = vld [vmem:[%s5 + $0xa0] sm:$0xf]
      %v5328 = vld [vmem:[%s5 + $0xa4] sm:$0xf]
      %v5329 = vld [vmem:[%s5 + $0xa8] sm:$0xf]
      %v5330 = vld [vmem:[%s5 + $0xac] sm:$0xf]
      %v5331 = vld [vmem:[%s5 + $0xb0] sm:$0xf]
      %v5332 = vld [vmem:[%s5 + $0xb4] sm:$0xf]
      %v5333 = vld [vmem:[%s5 + $0xb8] sm:$0xf]
      %v5334 = vld [vmem:[%s5 + $0xbc] sm:$0xf]
      %v5335 = vld [vmem:[%s5 + $0xc0] sm:$0xf]
      %v5336 = vld [vmem:[%s5 + $0xc4] sm:$0xf]
      %v5337 = vld [vmem:[%s5 + $0xc8] sm:$0xf]
      %v5338 = vld [vmem:[%s5 + $0xcc] sm:$0xf]
      %v5339 = vld [vmem:[%s5 + $0xd0] sm:$0xf]
      %v5340 = vld [vmem:[%s5 + $0xd4] sm:$0xf]
      %v5341 = vld [vmem:[%s5 + $0xd8] sm:$0xf]
      %v5342 = vld [vmem:[%s5 + $0xdc] sm:$0xf]
      %v5343 = vld [vmem:[%s5 + $0xe0] sm:$0xf]
      %v5344 = vld [vmem:[%s5 + $0xe4] sm:$0xf]
      %v5345 = vld [vmem:[%s5 + $0xe8] sm:$0xf]
      %v5346 = vld [vmem:[%s5 + $0xec] sm:$0xf]
      %v5347 = vld [vmem:[%s5 + $0xf0] sm:$0xf]
      %v5348 = vld [vmem:[%s5 + $0xf4] sm:$0xf]
      %v5349 = vld [vmem:[%s5 + $0xf8] sm:$0xf]
      %v5350 = vld [vmem:[%s5 + $0xfc] sm:$0xf]
      %v5351 = vld [vmem:[%s5 + $0x100] sm:$0xf]
      %v5352 = vld [vmem:[%s5 + $0x104] sm:$0xf]
      %v5353 = vld [vmem:[%s5 + $0x108] sm:$0xf]
      %v5354 = vld [vmem:[%s5 + $0x10c] sm:$0xf]
      %v5355 = vld [vmem:[%s5 + $0x110] sm:$0xf]
      %v5356 = vld [vmem:[%s5 + $0x114] sm:$0xf]
      %v5357 = vld [vmem:[%s5 + $0x118] sm:$0xf]
      %v5358 = vld [vmem:[%s5 + $0x11c] sm:$0xf]
      %v5359 = vld [vmem:[%s5 + $0x120] sm:$0xf]
      %v5360 = vld [vmem:[%s5 + $0x124] sm:$0xf]
      %v5361 = vld [vmem:[%s5 + $0x128] sm:$0xf]
      %v5362 = vld [vmem:[%s5 + $0x12c] sm:$0xf]
      %v5363 = vld [vmem:[%s5 + $0x130] sm:$0xf]
      %v5364 = vld [vmem:[%s5 + $0x134] sm:$0xf]
      %v5365 = vld [vmem:[%s5 + $0x138] sm:$0xf]
      %v5366 = vld [vmem:[%s5 + $0x13c] sm:$0xf]
      %v5367 = vld [vmem:[%s5 + $0x140] sm:$0xf]
      %v5368 = vld [vmem:[%s5 + $0x144] sm:$0xf]
      %v5369 = vld [vmem:[%s5 + $0x148] sm:$0xf]
      %v5370 = vld [vmem:[%s5 + $0x14c] sm:$0xf]
      %v5371 = vld [vmem:[%s5 + $0x150] sm:$0xf]
      %v5372 = vld [vmem:[%s5 + $0x154] sm:$0xf]
      %v5373 = vld [vmem:[%s5 + $0x158] sm:$0xf]
      %v5374 = vld [vmem:[%s5 + $0x15c] sm:$0xf]
      %v5375 = vld [vmem:[%s5 + $0x160] sm:$0xf]
      %v5376 = vld [vmem:[%s5 + $0x164] sm:$0xf]
      %v5377 = vld [vmem:[%s5 + $0x168] sm:$0xf]
      %v5378 = vld [vmem:[%s5 + $0x16c] sm:$0xf]
      %v5379 = vld [vmem:[%s5 + $0x170] sm:$0xf]
      %v5380 = vld [vmem:[%s5 + $0x174] sm:$0xf]
      %v5381 = vld [vmem:[%s5 + $0x178] sm:$0xf]
      %v5382 = vld [vmem:[%s5 + $0x17c] sm:$0xf]
      %v5383 = vld [vmem:[%s5 + $0x180] sm:$0xf]
      %v5384 = vld [vmem:[%s5 + $0x184] sm:$0xf]
      %v5385 = vld [vmem:[%s5 + $0x188] sm:$0xf]
      %v5386 = vld [vmem:[%s5 + $0x18c] sm:$0xf]
      %v5387 = vld [vmem:[%s5 + $0x190] sm:$0xf]
      %v5388 = vld [vmem:[%s5 + $0x194] sm:$0xf]
      %v5389 = vld [vmem:[%s5 + $0x198] sm:$0xf]
      %v5390 = vld [vmem:[%s5 + $0x19c] sm:$0xf]
      %v5391 = vld [vmem:[%s5 + $0x1a0] sm:$0xf]
      %v5392 = vld [vmem:[%s5 + $0x1a4] sm:$0xf]
      %v5393 = vld [vmem:[%s5 + $0x1a8] sm:$0xf]
      %v5394 = vld [vmem:[%s5 + $0x1ac] sm:$0xf]
      %v5395 = vld [vmem:[%s5 + $0x1b0] sm:$0xf]
      %v5396 = vld [vmem:[%s5 + $0x1b4] sm:$0xf]
      %v5397 = vld [vmem:[%s5 + $0x1b8] sm:$0xf]
      %v5398 = vld [vmem:[%s5 + $0x1bc] sm:$0xf]
      %v5399 = vld [vmem:[%s5 + $0x1c0] sm:$0xf]
      %v5400 = vld [vmem:[%s5 + $0x1c4] sm:$0xf]
      %v5401 = vld [vmem:[%s5 + $0x1c8] sm:$0xf]
      %v5402 = vld [vmem:[%s5 + $0x1cc] sm:$0xf]
      %v5403 = vld [vmem:[%s5 + $0x1d0] sm:$0xf]
      %v5404 = vld [vmem:[%s5 + $0x1d4] sm:$0xf]
      %v5405 = vld [vmem:[%s5 + $0x1d8] sm:$0xf]
      %v5406 = vld [vmem:[%s5 + $0x1dc] sm:$0xf]
      %v5407 = vld [vmem:[%s5 + $0x1e0] sm:$0xf]
      %v5408 = vld [vmem:[%s5 + $0x1e4] sm:$0xf]
      %v5409 = vld [vmem:[%s5 + $0x1e8] sm:$0xf]
      %v5410 = vld [vmem:[%s5 + $0x1ec] sm:$0xf]
      %v5411 = vld [vmem:[%s5 + $0x1f0] sm:$0xf]
      %v5412 = vld [vmem:[%s5 + $0x1f4] sm:$0xf]
      %v5413 = vld [vmem:[%s5 + $0x1f8] sm:$0xf]
      %v5414 = vld [vmem:[%s5 + $0x1fc] sm:$0xf]
      %v5415 = vld [vmem:[%s5 + $0x200] sm:$0xf]
      %v5416 = vld [vmem:[%s5 + $0x204] sm:$0xf]
      %v5417 = vld [vmem:[%s5 + $0x208] sm:$0xf]
      %v5418 = vld [vmem:[%s5 + $0x20c] sm:$0xf]
      %v5419 = vld [vmem:[%s5 + $0x210] sm:$0xf]
      %v5420 = vld [vmem:[%s5 + $0x214] sm:$0xf]
      %v5421 = vld [vmem:[%s5 + $0x218] sm:$0xf]
      %v5422 = vld [vmem:[%s5 + $0x21c] sm:$0xf]
      %v5423 = vld [vmem:[%s5 + $0x220] sm:$0xf]
      %v5424 = vld [vmem:[%s5 + $0x224] sm:$0xf]
      %v5425 = vld [vmem:[%s5 + $0x228] sm:$0xf]
      %v5426 = vld [vmem:[%s5 + $0x22c] sm:$0xf]
      %v5427 = vld [vmem:[%s5 + $0x230] sm:$0xf]
      %v5428 = vld [vmem:[%s5 + $0x234] sm:$0xf]
      %v5429 = vld [vmem:[%s5 + $0x238] sm:$0xf]
      %v5430 = vld [vmem:[%s5 + $0x23c] sm:$0xf]
      %v5751 = vunpack.c.l.b16 %v4967
      %v5752 = vunpack.c.h.b16 %v4967
      %v5753 = vunpack.c.l.b16 %v4968
      %v5754 = vunpack.c.h.b16 %v4968
      %v5755 = vunpack.c.l.b16 %v4969
      %v5756 = vunpack.c.h.b16 %v4969
      %v5757 = vunpack.c.l.b16 %v4970
      %v5758 = vunpack.c.h.b16 %v4970
      %v5759 = vunpack.c.l.b16 %v4971
      %v5760 = vunpack.c.l.b16 %v4972
      %v5761 = vunpack.c.h.b16 %v4972
      %v5762 = vunpack.c.l.b16 %v4973
      %v5763 = vunpack.c.h.b16 %v4973
      %v5764 = vunpack.c.l.b16 %v4974
      %v5765 = vunpack.c.h.b16 %v4974
      %v5766 = vunpack.c.l.b16 %v4975
      %v5767 = vunpack.c.h.b16 %v4975
      %v5768 = vunpack.c.l.b16 %v4976
      %v5769 = vunpack.c.l.b16 %v4977
      %v5770 = vunpack.c.h.b16 %v4977
      %v5771 = vunpack.c.l.b16 %v4978
      %v5772 = vunpack.c.h.b16 %v4978
      %v5773 = vunpack.c.l.b16 %v4979
      %v5774 = vunpack.c.h.b16 %v4979
      %v5775 = vunpack.c.l.b16 %v4980
      %v5776 = vunpack.c.h.b16 %v4980
      %v5777 = vunpack.c.l.b16 %v4981
      %v5778 = vunpack.c.l.b16 %v4982
      %v5779 = vunpack.c.h.b16 %v4982
      %v5780 = vunpack.c.l.b16 %v4983
      %v5781 = vunpack.c.h.b16 %v4983
      %v5782 = vunpack.c.l.b16 %v4984
      %v5783 = vunpack.c.h.b16 %v4984
      %v5784 = vunpack.c.l.b16 %v4985
      %v5785 = vunpack.c.h.b16 %v4985
      %v5786 = vunpack.c.l.b16 %v4986
      %v5787 = vunpack.c.l.b16 %v4987
      %v5788 = vunpack.c.h.b16 %v4987
      %v5789 = vunpack.c.l.b16 %v4988
      %v5790 = vunpack.c.h.b16 %v4988
      %v5791 = vunpack.c.l.b16 %v4989
      %v5792 = vunpack.c.h.b16 %v4989
      %v5793 = vunpack.c.l.b16 %v4990
      %v5794 = vunpack.c.h.b16 %v4990
      %v5795 = vunpack.c.l.b16 %v4991
      %v5796 = vunpack.c.l.b16 %v4992
      %v5797 = vunpack.c.h.b16 %v4992
      %v5798 = vunpack.c.l.b16 %v4993
      %v5799 = vunpack.c.h.b16 %v4993
      %v5800 = vunpack.c.l.b16 %v4994
      %v5801 = vunpack.c.h.b16 %v4994
      %v5802 = vunpack.c.l.b16 %v4995
      %v5803 = vunpack.c.h.b16 %v4995
      %v5804 = vunpack.c.l.b16 %v4996
      %v5805 = vunpack.c.l.b16 %v4997
      %v5806 = vunpack.c.h.b16 %v4997
      %v5807 = vunpack.c.l.b16 %v4998
      %v5808 = vunpack.c.h.b16 %v4998
      %v5809 = vunpack.c.l.b16 %v4999
      %v5810 = vunpack.c.h.b16 %v4999
      %v5811 = vunpack.c.l.b16 %v5000
      %v5812 = vunpack.c.h.b16 %v5000
      %v5813 = vunpack.c.l.b16 %v5001
      %v5814 = vunpack.c.l.b16 %v5002
      %v5815 = vunpack.c.h.b16 %v5002
      %v5816 = vunpack.c.l.b16 %v5003
      %v5817 = vunpack.c.h.b16 %v5003
      %v5818 = vunpack.c.l.b16 %v5004
      %v5819 = vunpack.c.h.b16 %v5004
      %v5820 = vunpack.c.l.b16 %v5005
      %v5821 = vunpack.c.h.b16 %v5005
      %v5822 = vunpack.c.l.b16 %v5006
      %v5823 = vunpack.c.l.b16 %v5007
      %v5824 = vunpack.c.h.b16 %v5007
      %v5825 = vunpack.c.l.b16 %v5008
      %v5826 = vunpack.c.h.b16 %v5008
      %v5827 = vunpack.c.l.b16 %v5009
      %v5828 = vunpack.c.h.b16 %v5009
      %v5829 = vunpack.c.l.b16 %v5010
      %v5830 = vunpack.c.h.b16 %v5010
      %v5831 = vunpack.c.l.b16 %v5011
      %v5832 = vunpack.c.l.b16 %v5012
      %v5833 = vunpack.c.h.b16 %v5012
      %v5834 = vunpack.c.l.b16 %v5013
      %v5835 = vunpack.c.h.b16 %v5013
      %v5836 = vunpack.c.l.b16 %v5014
      %v5837 = vunpack.c.h.b16 %v5014
      %v5838 = vunpack.c.l.b16 %v5015
      %v5839 = vunpack.c.h.b16 %v5015
      %v5840 = vunpack.c.l.b16 %v5016
      %v5841 = vunpack.c.l.b16 %v5017
      %v5842 = vunpack.c.h.b16 %v5017
      %v5843 = vunpack.c.l.b16 %v5018
      %v5844 = vunpack.c.h.b16 %v5018
      %v5845 = vunpack.c.l.b16 %v5019
      %v5846 = vunpack.c.h.b16 %v5019
      %v5847 = vunpack.c.l.b16 %v5020
      %v5848 = vunpack.c.h.b16 %v5020
      %v5849 = vunpack.c.l.b16 %v5021
      %v5850 = vunpack.c.l.b16 %v5022
      %v5851 = vunpack.c.h.b16 %v5022
      %v5852 = vunpack.c.l.b16 %v5023
      %v5853 = vunpack.c.h.b16 %v5023
      %v5854 = vunpack.c.l.b16 %v5024
      %v5855 = vunpack.c.h.b16 %v5024
      %v5856 = vunpack.c.l.b16 %v5025
      %v5857 = vunpack.c.h.b16 %v5025
      %v5858 = vunpack.c.l.b16 %v5026
      %v5859 = vunpack.c.l.b16 %v5027
      %v5860 = vunpack.c.h.b16 %v5027
      %v5861 = vunpack.c.l.b16 %v5028
      %v5862 = vunpack.c.h.b16 %v5028
      %v5863 = vunpack.c.l.b16 %v5029
      %v5864 = vunpack.c.h.b16 %v5029
      %v5865 = vunpack.c.l.b16 %v5030
      %v5866 = vunpack.c.h.b16 %v5030
      %v5867 = vunpack.c.l.b16 %v5031
      %v5868 = vunpack.c.l.b16 %v5032
      %v5869 = vunpack.c.h.b16 %v5032
      %v5870 = vunpack.c.l.b16 %v5033
      %v5871 = vunpack.c.h.b16 %v5033
      %v5872 = vunpack.c.l.b16 %v5034
      %v5873 = vunpack.c.h.b16 %v5034
      %v5874 = vunpack.c.l.b16 %v5035
      %v5875 = vunpack.c.h.b16 %v5035
      %v5876 = vunpack.c.l.b16 %v5036
      %v5877 = vunpack.c.l.b16 %v5037
      %v5878 = vunpack.c.h.b16 %v5037
      %v5879 = vunpack.c.l.b16 %v5038
      %v5880 = vunpack.c.h.b16 %v5038
      %v5881 = vunpack.c.l.b16 %v5039
      %v5882 = vunpack.c.h.b16 %v5039
      %v5883 = vunpack.c.l.b16 %v5040
      %v5884 = vunpack.c.h.b16 %v5040
      %v5885 = vunpack.c.l.b16 %v5041
      %v5886 = vunpack.c.l.b16 %v5042
      %v5887 = vunpack.c.h.b16 %v5042
      %v5888 = vunpack.c.l.b16 %v5043
      %v5889 = vunpack.c.h.b16 %v5043
      %v5890 = vunpack.c.l.b16 %v5044
      %v5891 = vunpack.c.h.b16 %v5044
      %v5892 = vunpack.c.l.b16 %v5045
      %v5893 = vunpack.c.h.b16 %v5045
      %v5894 = vunpack.c.l.b16 %v5046
      %v5895 = vunpack.c.l.b16 %v5047
      %v5896 = vunpack.c.h.b16 %v5047
      %v5897 = vunpack.c.l.b16 %v5048
      %v5898 = vunpack.c.h.b16 %v5048
      %v5899 = vunpack.c.l.b16 %v5049
      %v5900 = vunpack.c.h.b16 %v5049
      %v5901 = vunpack.c.l.b16 %v5050
      %v5902 = vunpack.c.h.b16 %v5050
      %v5903 = vunpack.c.l.b16 %v5051
      %v5904 = vunpack.c.l.b16 %v5052
      %v5905 = vunpack.c.h.b16 %v5052
      %v5906 = vunpack.c.l.b16 %v5053
      %v5907 = vunpack.c.h.b16 %v5053
      %v5908 = vunpack.c.l.b16 %v5054
      %v5909 = vunpack.c.h.b16 %v5054
      %v5910 = vunpack.c.l.b16 %v5055
      %v5911 = vunpack.c.h.b16 %v5055
      %v5912 = vunpack.c.l.b16 %v5056
      %v5913 = vunpack.c.l.b16 %v5057
      %v5914 = vunpack.c.h.b16 %v5057
      %v5915 = vunpack.c.l.b16 %v5058
      %v5916 = vunpack.c.h.b16 %v5058
      %v5917 = vunpack.c.l.b16 %v5059
      %v5918 = vunpack.c.h.b16 %v5059
      %v5919 = vunpack.c.l.b16 %v5060
      %v5920 = vunpack.c.h.b16 %v5060
      %v5921 = vunpack.c.l.b16 %v5061
      %v5922 = vunpack.c.l.b16 %v5062
      %v5923 = vunpack.c.h.b16 %v5062
      %v5924 = vunpack.c.l.b16 %v5063
      %v5925 = vunpack.c.h.b16 %v5063
      %v5926 = vunpack.c.l.b16 %v5064
      %v5927 = vunpack.c.h.b16 %v5064
      %v5928 = vunpack.c.l.b16 %v5065
      %v5929 = vunpack.c.h.b16 %v5065
      %v5930 = vunpack.c.l.b16 %v5066
      %v5931 = vunpack.c.l.b16 %v5067
      %v5932 = vunpack.c.h.b16 %v5067
      %v5933 = vunpack.c.l.b16 %v5068
      %v5934 = vunpack.c.h.b16 %v5068
      %v5935 = vunpack.c.l.b16 %v5069
      %v5936 = vunpack.c.h.b16 %v5069
      %v5937 = vunpack.c.l.b16 %v5070
      %v5938 = vunpack.c.h.b16 %v5070
      %v5939 = vunpack.c.l.b16 %v5071
      %v5940 = vunpack.c.l.b16 %v5072
      %v5941 = vunpack.c.h.b16 %v5072
      %v5942 = vunpack.c.l.b16 %v5073
      %v5943 = vunpack.c.h.b16 %v5073
      %v5944 = vunpack.c.l.b16 %v5074
      %v5945 = vunpack.c.h.b16 %v5074
      %v5946 = vunpack.c.l.b16 %v5075
      %v5947 = vunpack.c.h.b16 %v5075
      %v5948 = vunpack.c.l.b16 %v5076
      %v5949 = vunpack.c.l.b16 %v5077
      %v5950 = vunpack.c.h.b16 %v5077
      %v5951 = vunpack.c.l.b16 %v5078
      %v5952 = vunpack.c.h.b16 %v5078
      %v5953 = vunpack.c.l.b16 %v5079
      %v5954 = vunpack.c.h.b16 %v5079
      %v5955 = vunpack.c.l.b16 %v5080
      %v5956 = vunpack.c.h.b16 %v5080
      %v5957 = vunpack.c.l.b16 %v5081
      %v5958 = vunpack.c.l.b16 %v5082
      %v5959 = vunpack.c.h.b16 %v5082
      %v5960 = vunpack.c.l.b16 %v5083
      %v5961 = vunpack.c.h.b16 %v5083
      %v5962 = vunpack.c.l.b16 %v5084
      %v5963 = vunpack.c.h.b16 %v5084
      %v5964 = vunpack.c.l.b16 %v5085
      %v5965 = vunpack.c.h.b16 %v5085
      %v5966 = vunpack.c.l.b16 %v5086
      %v5967 = vunpack.c.l.b16 %v5087
      %v5968 = vunpack.c.h.b16 %v5087
      %v5969 = vunpack.c.l.b16 %v5088
      %v5970 = vunpack.c.h.b16 %v5088
      %v5971 = vunpack.c.l.b16 %v5089
      %v5972 = vunpack.c.h.b16 %v5089
      %v5973 = vunpack.c.l.b16 %v5090
      %v5974 = vunpack.c.h.b16 %v5090
      %v5975 = vunpack.c.l.b16 %v5091
      %v5976 = vunpack.c.l.b16 %v5092
      %v5977 = vunpack.c.h.b16 %v5092
      %v5978 = vunpack.c.l.b16 %v5093
      %v5979 = vunpack.c.h.b16 %v5093
      %v5980 = vunpack.c.l.b16 %v5094
      %v5981 = vunpack.c.h.b16 %v5094
      %v5982 = vunpack.c.l.b16 %v5095
      %v5983 = vunpack.c.h.b16 %v5095
      %v5984 = vunpack.c.l.b16 %v5096
      %v5985 = vunpack.c.l.b16 %v5097
      %v5986 = vunpack.c.h.b16 %v5097
      %v5987 = vunpack.c.l.b16 %v5098
      %v5988 = vunpack.c.h.b16 %v5098
      %v5989 = vunpack.c.l.b16 %v5099
      %v5990 = vunpack.c.h.b16 %v5099
      %v5991 = vunpack.c.l.b16 %v5100
      %v5992 = vunpack.c.h.b16 %v5100
      %v5993 = vunpack.c.l.b16 %v5101
      %v5994 = vunpack.c.l.b16 %v5102
      %v5995 = vunpack.c.h.b16 %v5102
      %v5996 = vunpack.c.l.b16 %v5103
      %v5997 = vunpack.c.h.b16 %v5103
      %v5998 = vunpack.c.l.b16 %v5104
      %v5999 = vunpack.c.h.b16 %v5104
      %v6000 = vunpack.c.l.b16 %v5105
      %v6001 = vunpack.c.h.b16 %v5105
      %v6002 = vunpack.c.l.b16 %v5106
      %v6003 = vunpack.c.l.b16 %v5107
      %v6004 = vunpack.c.h.b16 %v5107
      %v6005 = vunpack.c.l.b16 %v5108
      %v6006 = vunpack.c.h.b16 %v5108
      %v6007 = vunpack.c.l.b16 %v5109
      %v6008 = vunpack.c.h.b16 %v5109
      %v6009 = vunpack.c.l.b16 %v5110
      %v6010 = vunpack.c.h.b16 %v5110
      %v6011 = vunpack.c.l.b16 %v5111
      %v6012 = vunpack.c.l.b16 %v5112
      %v6013 = vunpack.c.h.b16 %v5112
      %v6014 = vunpack.c.l.b16 %v5113
      %v6015 = vunpack.c.h.b16 %v5113
      %v6016 = vunpack.c.l.b16 %v5114
      %v6017 = vunpack.c.h.b16 %v5114
      %v6018 = vunpack.c.l.b16 %v5115
      %v6019 = vunpack.c.h.b16 %v5115
      %v6020 = vunpack.c.l.b16 %v5116
      %v6021 = vunpack.c.l.b16 %v5117
      %v6022 = vunpack.c.h.b16 %v5117
      %v6023 = vunpack.c.l.b16 %v5118
      %v6024 = vunpack.c.h.b16 %v5118
      %v6025 = vunpack.c.l.b16 %v5119
      %v6026 = vunpack.c.h.b16 %v5119
      %v6027 = vunpack.c.l.b16 %v5120
      %v6028 = vunpack.c.h.b16 %v5120
      %v6029 = vunpack.c.l.b16 %v5121
      %v6030 = vunpack.c.l.b16 %v5122
      %v6031 = vunpack.c.h.b16 %v5122
      %v6032 = vunpack.c.l.b16 %v5123
      %v6033 = vunpack.c.h.b16 %v5123
      %v6034 = vunpack.c.l.b16 %v5124
      %v6035 = vunpack.c.h.b16 %v5124
      %v6036 = vunpack.c.l.b16 %v5125
      %v6037 = vunpack.c.h.b16 %v5125
      %v6038 = vunpack.c.l.b16 %v5126
      %v6039 = vunpack.c.l.b16 %v5127
      %v6040 = vunpack.c.h.b16 %v5127
      %v6041 = vunpack.c.l.b16 %v5128
      %v6042 = vunpack.c.h.b16 %v5128
      %v6043 = vunpack.c.l.b16 %v5129
      %v6044 = vunpack.c.h.b16 %v5129
      %v6045 = vunpack.c.l.b16 %v5130
      %v6046 = vunpack.c.h.b16 %v5130
      %v6047 = vunpack.c.l.b16 %v5131
      %v6048 = vunpack.c.l.b16 %v5132
      %v6049 = vunpack.c.h.b16 %v5132
      %v6050 = vunpack.c.l.b16 %v5133
      %v6051 = vunpack.c.h.b16 %v5133
      %v6052 = vunpack.c.l.b16 %v5134
      %v6053 = vunpack.c.h.b16 %v5134
      %v6054 = vunpack.c.l.b16 %v5135
      %v6055 = vunpack.c.h.b16 %v5135
      %v6056 = vunpack.c.l.b16 %v5136
      %v6057 = vunpack.c.l.b16 %v5137
      %v6058 = vunpack.c.h.b16 %v5137
      %v6059 = vunpack.c.l.b16 %v5138
      %v6060 = vunpack.c.h.b16 %v5138
      %v6061 = vunpack.c.l.b16 %v5139
      %v6062 = vunpack.c.h.b16 %v5139
      %v6063 = vunpack.c.l.b16 %v5140
      %v6064 = vunpack.c.h.b16 %v5140
      %v6065 = vunpack.c.l.b16 %v5141
      %v6066 = vunpack.c.l.b16 %v5142
      %v6067 = vunpack.c.h.b16 %v5142
      %v6068 = vunpack.c.l.b16 %v5143
      %v6069 = vunpack.c.h.b16 %v5143
      %v6070 = vunpack.c.l.b16 %v5144
      %v6071 = vunpack.c.h.b16 %v5144
      %v6072 = vunpack.c.l.b16 %v5145
      %v6073 = vunpack.c.h.b16 %v5145
      %v6074 = vunpack.c.l.b16 %v5146
      %v6075 = vunpack.c.l.b16 %v5147
      %v6076 = vunpack.c.h.b16 %v5147
      %v6077 = vunpack.c.l.b16 %v5148
      %v6078 = vunpack.c.h.b16 %v5148
      %v6079 = vunpack.c.l.b16 %v5149
      %v6080 = vunpack.c.h.b16 %v5149
      %v6081 = vunpack.c.l.b16 %v5150
      %v6082 = vunpack.c.h.b16 %v5150
      %v6083 = vunpack.c.l.b16 %v5151
      %v6084 = vunpack.c.l.b16 %v5152
      %v6085 = vunpack.c.h.b16 %v5152
      %v6086 = vunpack.c.l.b16 %v5153
      %v6087 = vunpack.c.h.b16 %v5153
      %v6088 = vunpack.c.l.b16 %v5154
      %v6089 = vunpack.c.h.b16 %v5154
      %v6090 = vunpack.c.l.b16 %v5155
      %v6091 = vunpack.c.h.b16 %v5155
      %v6092 = vunpack.c.l.b16 %v5156
      %v6093 = vunpack.c.l.b16 %v5157
      %v6094 = vunpack.c.h.b16 %v5157
      %v6095 = vunpack.c.l.b16 %v5158
      %v6096 = vunpack.c.h.b16 %v5158
      %v6097 = vunpack.c.l.b16 %v5159
      %v6098 = vunpack.c.h.b16 %v5159
      %v6099 = vunpack.c.l.b16 %v5160
      %v6100 = vunpack.c.h.b16 %v5160
      %v6101 = vunpack.c.l.b16 %v5161
      %v6102 = vunpack.c.l.b16 %v5162
      %v6103 = vunpack.c.h.b16 %v5162
      %v6104 = vunpack.c.l.b16 %v5163
      %v6105 = vunpack.c.h.b16 %v5163
      %v6106 = vunpack.c.l.b16 %v5164
      %v6107 = vunpack.c.h.b16 %v5164
      %v6108 = vunpack.c.l.b16 %v5165
      %v6109 = vunpack.c.h.b16 %v5165
      %v6110 = vunpack.c.l.b16 %v5166
      %v6111 = vunpack.c.l.b16 %v5167
      %v6112 = vunpack.c.h.b16 %v5167
      %v6113 = vunpack.c.l.b16 %v5168
      %v6114 = vunpack.c.h.b16 %v5168
      %v6115 = vunpack.c.l.b16 %v5169
      %v6116 = vunpack.c.h.b16 %v5169
      %v6117 = vunpack.c.l.b16 %v5170
      %v6118 = vunpack.c.h.b16 %v5170
      %v6119 = vunpack.c.l.b16 %v5171
      %v6120 = vunpack.c.l.b16 %v5172
      %v6121 = vunpack.c.h.b16 %v5172
      %v6122 = vunpack.c.l.b16 %v5173
      %v6123 = vunpack.c.h.b16 %v5173
      %v6124 = vunpack.c.l.b16 %v5174
      %v6125 = vunpack.c.h.b16 %v5174
      %v6126 = vunpack.c.l.b16 %v5175
      %v6127 = vunpack.c.h.b16 %v5175
      %v6128 = vunpack.c.l.b16 %v5176
      %v6129 = vunpack.c.l.b16 %v5177
      %v6130 = vunpack.c.h.b16 %v5177
      %v6131 = vunpack.c.l.b16 %v5178
      %v6132 = vunpack.c.h.b16 %v5178
      %v6133 = vunpack.c.l.b16 %v5179
      %v6134 = vunpack.c.h.b16 %v5179
      %v6135 = vunpack.c.l.b16 %v5180
      %v6136 = vunpack.c.h.b16 %v5180
      %v6137 = vunpack.c.l.b16 %v5181
      %v6138 = vunpack.c.l.b16 %v5182
      %v6139 = vunpack.c.h.b16 %v5182
      %v6140 = vunpack.c.l.b16 %v5183
      %v6141 = vunpack.c.h.b16 %v5183
      %v6142 = vunpack.c.l.b16 %v5184
      %v6143 = vunpack.c.h.b16 %v5184
      %v6144 = vunpack.c.l.b16 %v5185
      %v6145 = vunpack.c.h.b16 %v5185
      %v6146 = vunpack.c.l.b16 %v5186
      %v6147 = vunpack.c.l.b16 %v5187
      %v6148 = vunpack.c.h.b16 %v5187
      %v6149 = vunpack.c.l.b16 %v5188
      %v6150 = vunpack.c.h.b16 %v5188
      %v6151 = vunpack.c.l.b16 %v5189
      %v6152 = vunpack.c.h.b16 %v5189
      %v6153 = vunpack.c.l.b16 %v5190
      %v6154 = vunpack.c.h.b16 %v5190
      %v6155 = vunpack.c.l.b16 %v5191
      %v6156 = vunpack.c.l.b16 %v5192
      %v6157 = vunpack.c.h.b16 %v5192
      %v6158 = vunpack.c.l.b16 %v5193
      %v6159 = vunpack.c.h.b16 %v5193
      %v6160 = vunpack.c.l.b16 %v5194
      %v6161 = vunpack.c.h.b16 %v5194
      %v6162 = vunpack.c.l.b16 %v5195
      %v6163 = vunpack.c.h.b16 %v5195
      %v6164 = vunpack.c.l.b16 %v5196
      %v6165 = vunpack.c.l.b16 %v5197
      %v6166 = vunpack.c.h.b16 %v5197
      %v6167 = vunpack.c.l.b16 %v5198
      %v6168 = vunpack.c.h.b16 %v5198
      %v6169 = vunpack.c.l.b16 %v5199
      %v6170 = vunpack.c.h.b16 %v5199
      %v6171 = vunpack.c.l.b16 %v5200
      %v6172 = vunpack.c.h.b16 %v5200
      %v6173 = vunpack.c.l.b16 %v5201
      %v6174 = vunpack.c.l.b16 %v5202
      %v6175 = vunpack.c.h.b16 %v5202
      %v6176 = vunpack.c.l.b16 %v5203
      %v6177 = vunpack.c.h.b16 %v5203
      %v6178 = vunpack.c.l.b16 %v5204
      %v6179 = vunpack.c.h.b16 %v5204
      %v6180 = vunpack.c.l.b16 %v5205
      %v6181 = vunpack.c.h.b16 %v5205
      %v6182 = vunpack.c.l.b16 %v5206
      %v6183 = vunpack.c.l.b16 %v5207
      %v6184 = vunpack.c.h.b16 %v5207
      %v6185 = vunpack.c.l.b16 %v5208
      %v6186 = vunpack.c.h.b16 %v5208
      %v6187 = vunpack.c.l.b16 %v5209
      %v6188 = vunpack.c.h.b16 %v5209
      %v6189 = vunpack.c.l.b16 %v5210
      %v6190 = vunpack.c.h.b16 %v5210
      %v6191 = vunpack.c.l.b16 %v5211
      %v6192 = vunpack.c.l.b16 %v5212
      %v6193 = vunpack.c.h.b16 %v5212
      %v6194 = vunpack.c.l.b16 %v5213
      %v6195 = vunpack.c.h.b16 %v5213
      %v6196 = vunpack.c.l.b16 %v5214
      %v6197 = vunpack.c.h.b16 %v5214
      %v6198 = vunpack.c.l.b16 %v5215
      %v6199 = vunpack.c.h.b16 %v5215
      %v6200 = vunpack.c.l.b16 %v5216
      %v6201 = vunpack.c.l.b16 %v5217
      %v6202 = vunpack.c.h.b16 %v5217
      %v6203 = vunpack.c.l.b16 %v5218
      %v6204 = vunpack.c.h.b16 %v5218
      %v6205 = vunpack.c.l.b16 %v5219
      %v6206 = vunpack.c.h.b16 %v5219
      %v6207 = vunpack.c.l.b16 %v5220
      %v6208 = vunpack.c.h.b16 %v5220
      %v6209 = vunpack.c.l.b16 %v5221
      %v6210 = vunpack.c.l.b16 %v5222
      %v6211 = vunpack.c.h.b16 %v5222
      %v6212 = vunpack.c.l.b16 %v5223
      %v6213 = vunpack.c.h.b16 %v5223
      %v6214 = vunpack.c.l.b16 %v5224
      %v6215 = vunpack.c.h.b16 %v5224
      %v6216 = vunpack.c.l.b16 %v5225
      %v6217 = vunpack.c.h.b16 %v5225
      %v6218 = vunpack.c.l.b16 %v5226
      %v6219 = vunpack.c.l.b16 %v5227
      %v6220 = vunpack.c.h.b16 %v5227
      %v6221 = vunpack.c.l.b16 %v5228
      %v6222 = vunpack.c.h.b16 %v5228
      %v6223 = vunpack.c.l.b16 %v5229
      %v6224 = vunpack.c.h.b16 %v5229
      %v6225 = vunpack.c.l.b16 %v5230
      %v6226 = vunpack.c.h.b16 %v5230
      %v6227 = vunpack.c.l.b16 %v5231
      %v6228 = vunpack.c.l.b16 %v5232
      %v6229 = vunpack.c.h.b16 %v5232
      %v6230 = vunpack.c.l.b16 %v5233
      %v6231 = vunpack.c.h.b16 %v5233
      %v6232 = vunpack.c.l.b16 %v5234
      %v6233 = vunpack.c.h.b16 %v5234
      %v6234 = vunpack.c.l.b16 %v5235
      %v6235 = vunpack.c.h.b16 %v5235
      %v6236 = vunpack.c.l.b16 %v5236
      %v6237 = vunpack.c.l.b16 %v5237
      %v6238 = vunpack.c.h.b16 %v5237
      %v6239 = vunpack.c.l.b16 %v5238
      %v6240 = vunpack.c.h.b16 %v5238
      %v6241 = vunpack.c.l.b16 %v5239
      %v6242 = vunpack.c.h.b16 %v5239
      %v6243 = vunpack.c.l.b16 %v5240
      %v6244 = vunpack.c.h.b16 %v5240
      %v6245 = vunpack.c.l.b16 %v5241
      %v6246 = vunpack.c.l.b16 %v5242
      %v6247 = vunpack.c.h.b16 %v5242
      %v6248 = vunpack.c.l.b16 %v5243
      %v6249 = vunpack.c.h.b16 %v5243
      %v6250 = vunpack.c.l.b16 %v5244
      %v6251 = vunpack.c.h.b16 %v5244
      %v6252 = vunpack.c.l.b16 %v5245
      %v6253 = vunpack.c.h.b16 %v5245
      %v6254 = vunpack.c.l.b16 %v5246
      %v6255 = vunpack.c.l.b16 %v5247
      %v6256 = vunpack.c.h.b16 %v5247
      %v6257 = vunpack.c.l.b16 %v5248
      %v6258 = vunpack.c.h.b16 %v5248
      %v6259 = vunpack.c.l.b16 %v5249
      %v6260 = vunpack.c.h.b16 %v5249
      %v6261 = vunpack.c.l.b16 %v5250
      %v6262 = vunpack.c.h.b16 %v5250
      %v6263 = vunpack.c.l.b16 %v5251
      %v6264 = vunpack.c.l.b16 %v5252
      %v6265 = vunpack.c.h.b16 %v5252
      %v6266 = vunpack.c.l.b16 %v5253
      %v6267 = vunpack.c.h.b16 %v5253
      %v6268 = vunpack.c.l.b16 %v5254
      %v6269 = vunpack.c.h.b16 %v5254
      %v6270 = vunpack.c.l.b16 %v5255
      %v6271 = vunpack.c.h.b16 %v5255
      %v6272 = vunpack.c.l.b16 %v5256
      %v6273 = vunpack.c.l.b16 %v5257
      %v6274 = vunpack.c.h.b16 %v5257
      %v6275 = vunpack.c.l.b16 %v5258
      %v6276 = vunpack.c.h.b16 %v5258
      %v6277 = vunpack.c.l.b16 %v5259
      %v6278 = vunpack.c.h.b16 %v5259
      %v6279 = vunpack.c.l.b16 %v5260
      %v6280 = vunpack.c.h.b16 %v5260
      %v6281 = vunpack.c.l.b16 %v5261
      %v6282 = vunpack.c.l.b16 %v5262
      %v6283 = vunpack.c.h.b16 %v5262
      %v6284 = vunpack.c.l.b16 %v5263
      %v6285 = vunpack.c.h.b16 %v5263
      %v6286 = vunpack.c.l.b16 %v5264
      %v6287 = vunpack.c.h.b16 %v5264
      %v6288 = vunpack.c.l.b16 %v5265
      %v6289 = vunpack.c.h.b16 %v5265
      %v6290 = vunpack.c.l.b16 %v5266
      %v6291 = vunpack.c.l.b16 %v5267
      %v6292 = vunpack.c.h.b16 %v5267
      %v6293 = vunpack.c.l.b16 %v5268
      %v6294 = vunpack.c.h.b16 %v5268
      %v6295 = vunpack.c.l.b16 %v5269
      %v6296 = vunpack.c.h.b16 %v5269
      %v6297 = vunpack.c.l.b16 %v5270
      %v6298 = vunpack.c.h.b16 %v5270
      %v6299 = vunpack.c.l.b16 %v5271
      %v6300 = vunpack.c.l.b16 %v5272
      %v6301 = vunpack.c.h.b16 %v5272
      %v6302 = vunpack.c.l.b16 %v5273
      %v6303 = vunpack.c.h.b16 %v5273
      %v6304 = vunpack.c.l.b16 %v5274
      %v6305 = vunpack.c.h.b16 %v5274
      %v6306 = vunpack.c.l.b16 %v5275
      %v6307 = vunpack.c.h.b16 %v5275
      %v6308 = vunpack.c.l.b16 %v5276
      %v6309 = vunpack.c.l.b16 %v5277
      %v6310 = vunpack.c.h.b16 %v5277
      %v6311 = vunpack.c.l.b16 %v5278
      %v6312 = vunpack.c.h.b16 %v5278
      %v6313 = vunpack.c.l.b16 %v5279
      %v6314 = vunpack.c.h.b16 %v5279
      %v6315 = vunpack.c.l.b16 %v5280
      %v6316 = vunpack.c.h.b16 %v5280
      %v6317 = vunpack.c.l.b16 %v5281
      %v6318 = vunpack.c.l.b16 %v5282
      %v6319 = vunpack.c.h.b16 %v5282
      %v6320 = vunpack.c.l.b16 %v5283
      %v6321 = vunpack.c.h.b16 %v5283
      %v6322 = vunpack.c.l.b16 %v5284
      %v6323 = vunpack.c.h.b16 %v5284
      %v6324 = vunpack.c.l.b16 %v5285
      %v6325 = vunpack.c.h.b16 %v5285
      %v6326 = vunpack.c.l.b16 %v5286
      %v6327 = vpack.c.b16 %v5760, %v5751
      %v6328 = vpack.c.b16 %v5761, %v5752
      %v6329 = vpack.c.b16 %v5762, %v5753
      %v6330 = vpack.c.b16 %v5763, %v5754
      %v6331 = vpack.c.b16 %v5764, %v5755
      %v6332 = vpack.c.b16 %v5765, %v5756
      %v6333 = vpack.c.b16 %v5766, %v5757
      %v6334 = vpack.c.b16 %v5767, %v5758
      %v6335 = vpack.c.b16 %v5768, %v5759
      %v6336 = vpack.c.b16 %v5778, %v5769
      %v6337 = vpack.c.b16 %v5779, %v5770
      %v6338 = vpack.c.b16 %v5780, %v5771
      %v6339 = vpack.c.b16 %v5781, %v5772
      %v6340 = vpack.c.b16 %v5782, %v5773
      %v6341 = vpack.c.b16 %v5783, %v5774
      %v6342 = vpack.c.b16 %v5784, %v5775
      %v6343 = vpack.c.b16 %v5785, %v5776
      %v6344 = vpack.c.b16 %v5786, %v5777
      %v6345 = vpack.c.b16 %v5796, %v5787
      %v6346 = vpack.c.b16 %v5797, %v5788
      %v6347 = vpack.c.b16 %v5798, %v5789
      %v6348 = vpack.c.b16 %v5799, %v5790
      %v6349 = vpack.c.b16 %v5800, %v5791
      %v6350 = vpack.c.b16 %v5801, %v5792
      %v6351 = vpack.c.b16 %v5802, %v5793
      %v6352 = vpack.c.b16 %v5803, %v5794
      %v6353 = vpack.c.b16 %v5804, %v5795
      %v6354 = vpack.c.b16 %v5814, %v5805
      %v6355 = vpack.c.b16 %v5815, %v5806
      %v6356 = vpack.c.b16 %v5816, %v5807
      %v6357 = vpack.c.b16 %v5817, %v5808
      %v6358 = vpack.c.b16 %v5818, %v5809
      %v6359 = vpack.c.b16 %v5819, %v5810
      %v6360 = vpack.c.b16 %v5820, %v5811
      %v6361 = vpack.c.b16 %v5821, %v5812
      %v6362 = vpack.c.b16 %v5822, %v5813
      %v6363 = vpack.c.b16 %v5832, %v5823
      %v6364 = vpack.c.b16 %v5833, %v5824
      %v6365 = vpack.c.b16 %v5834, %v5825
      %v6366 = vpack.c.b16 %v5835, %v5826
      %v6367 = vpack.c.b16 %v5836, %v5827
      %v6368 = vpack.c.b16 %v5837, %v5828
      %v6369 = vpack.c.b16 %v5838, %v5829
      %v6370 = vpack.c.b16 %v5839, %v5830
      %v6371 = vpack.c.b16 %v5840, %v5831
      %v6372 = vpack.c.b16 %v5850, %v5841
      %v6373 = vpack.c.b16 %v5851, %v5842
      %v6374 = vpack.c.b16 %v5852, %v5843
      %v6375 = vpack.c.b16 %v5853, %v5844
      %v6376 = vpack.c.b16 %v5854, %v5845
      %v6377 = vpack.c.b16 %v5855, %v5846
      %v6378 = vpack.c.b16 %v5856, %v5847
      %v6379 = vpack.c.b16 %v5857, %v5848
      %v6380 = vpack.c.b16 %v5858, %v5849
      %v6381 = vpack.c.b16 %v5868, %v5859
      %v6382 = vpack.c.b16 %v5869, %v5860
      %v6383 = vpack.c.b16 %v5870, %v5861
      %v6384 = vpack.c.b16 %v5871, %v5862
      %v6385 = vpack.c.b16 %v5872, %v5863
      %v6386 = vpack.c.b16 %v5873, %v5864
      %v6387 = vpack.c.b16 %v5874, %v5865
      %v6388 = vpack.c.b16 %v5875, %v5866
      %v6389 = vpack.c.b16 %v5876, %v5867
      %v6390 = vpack.c.b16 %v5886, %v5877
      %v6391 = vpack.c.b16 %v5887, %v5878
      %v6392 = vpack.c.b16 %v5888, %v5879
      %v6393 = vpack.c.b16 %v5889, %v5880
      %v6394 = vpack.c.b16 %v5890, %v5881
      %v6395 = vpack.c.b16 %v5891, %v5882
      %v6396 = vpack.c.b16 %v5892, %v5883
      %v6397 = vpack.c.b16 %v5893, %v5884
      %v6398 = vpack.c.b16 %v5894, %v5885
      %v6399 = vpack.c.b16 %v5904, %v5895
      %v6400 = vpack.c.b16 %v5905, %v5896
      %v6401 = vpack.c.b16 %v5906, %v5897
      %v6402 = vpack.c.b16 %v5907, %v5898
      %v6403 = vpack.c.b16 %v5908, %v5899
      %v6404 = vpack.c.b16 %v5909, %v5900
      %v6405 = vpack.c.b16 %v5910, %v5901
      %v6406 = vpack.c.b16 %v5911, %v5902
      %v6407 = vpack.c.b16 %v5912, %v5903
      %v6408 = vpack.c.b16 %v5922, %v5913
      %v6409 = vpack.c.b16 %v5923, %v5914
      %v6410 = vpack.c.b16 %v5924, %v5915
      %v6411 = vpack.c.b16 %v5925, %v5916
      %v6412 = vpack.c.b16 %v5926, %v5917
      %v6413 = vpack.c.b16 %v5927, %v5918
      %v6414 = vpack.c.b16 %v5928, %v5919
      %v6415 = vpack.c.b16 %v5929, %v5920
      %v6416 = vpack.c.b16 %v5930, %v5921
      %v6417 = vpack.c.b16 %v5940, %v5931
      %v6418 = vpack.c.b16 %v5941, %v5932
      %v6419 = vpack.c.b16 %v5942, %v5933
      %v6420 = vpack.c.b16 %v5943, %v5934
      %v6421 = vpack.c.b16 %v5944, %v5935
      %v6422 = vpack.c.b16 %v5945, %v5936
      %v6423 = vpack.c.b16 %v5946, %v5937
      %v6424 = vpack.c.b16 %v5947, %v5938
      %v6425 = vpack.c.b16 %v5948, %v5939
      %v6426 = vpack.c.b16 %v5958, %v5949
      %v6427 = vpack.c.b16 %v5959, %v5950
      %v6428 = vpack.c.b16 %v5960, %v5951
      %v6429 = vpack.c.b16 %v5961, %v5952
      %v6430 = vpack.c.b16 %v5962, %v5953
      %v6431 = vpack.c.b16 %v5963, %v5954
      %v6432 = vpack.c.b16 %v5964, %v5955
      %v6433 = vpack.c.b16 %v5965, %v5956
      %v6434 = vpack.c.b16 %v5966, %v5957
      %v6435 = vpack.c.b16 %v5976, %v5967
      %v6436 = vpack.c.b16 %v5977, %v5968
      %v6437 = vpack.c.b16 %v5978, %v5969
      %v6438 = vpack.c.b16 %v5979, %v5970
      %v6439 = vpack.c.b16 %v5980, %v5971
      %v6440 = vpack.c.b16 %v5981, %v5972
      %v6441 = vpack.c.b16 %v5982, %v5973
      %v6442 = vpack.c.b16 %v5983, %v5974
      %v6443 = vpack.c.b16 %v5984, %v5975
      %v6444 = vpack.c.b16 %v5994, %v5985
      %v6445 = vpack.c.b16 %v5995, %v5986
      %v6446 = vpack.c.b16 %v5996, %v5987
      %v6447 = vpack.c.b16 %v5997, %v5988
      %v6448 = vpack.c.b16 %v5998, %v5989
      %v6449 = vpack.c.b16 %v5999, %v5990
      %v6450 = vpack.c.b16 %v6000, %v5991
      %v6451 = vpack.c.b16 %v6001, %v5992
      %v6452 = vpack.c.b16 %v6002, %v5993
      %v6453 = vpack.c.b16 %v6012, %v6003
      %v6454 = vpack.c.b16 %v6013, %v6004
      %v6455 = vpack.c.b16 %v6014, %v6005
      %v6456 = vpack.c.b16 %v6015, %v6006
      %v6457 = vpack.c.b16 %v6016, %v6007
      %v6458 = vpack.c.b16 %v6017, %v6008
      %v6459 = vpack.c.b16 %v6018, %v6009
      %v6460 = vpack.c.b16 %v6019, %v6010
      %v6461 = vpack.c.b16 %v6020, %v6011
      %v6462 = vpack.c.b16 %v6030, %v6021
      %v6463 = vpack.c.b16 %v6031, %v6022
      %v6464 = vpack.c.b16 %v6032, %v6023
      %v6465 = vpack.c.b16 %v6033, %v6024
      %v6466 = vpack.c.b16 %v6034, %v6025
      %v6467 = vpack.c.b16 %v6035, %v6026
      %v6468 = vpack.c.b16 %v6036, %v6027
      %v6469 = vpack.c.b16 %v6037, %v6028
      %v6470 = vpack.c.b16 %v6038, %v6029
      %v6471 = vpack.c.b16 %v6048, %v6039
      %v6472 = vpack.c.b16 %v6049, %v6040
      %v6473 = vpack.c.b16 %v6050, %v6041
      %v6474 = vpack.c.b16 %v6051, %v6042
      %v6475 = vpack.c.b16 %v6052, %v6043
      %v6476 = vpack.c.b16 %v6053, %v6044
      %v6477 = vpack.c.b16 %v6054, %v6045
      %v6478 = vpack.c.b16 %v6055, %v6046
      %v6479 = vpack.c.b16 %v6056, %v6047
      %v6480 = vpack.c.b16 %v6066, %v6057
      %v6481 = vpack.c.b16 %v6067, %v6058
      %v6482 = vpack.c.b16 %v6068, %v6059
      %v6483 = vpack.c.b16 %v6069, %v6060
      %v6484 = vpack.c.b16 %v6070, %v6061
      %v6485 = vpack.c.b16 %v6071, %v6062
      %v6486 = vpack.c.b16 %v6072, %v6063
      %v6487 = vpack.c.b16 %v6073, %v6064
      %v6488 = vpack.c.b16 %v6074, %v6065
      %v6489 = vpack.c.b16 %v6084, %v6075
      %v6490 = vpack.c.b16 %v6085, %v6076
      %v6491 = vpack.c.b16 %v6086, %v6077
      %v6492 = vpack.c.b16 %v6087, %v6078
      %v6493 = vpack.c.b16 %v6088, %v6079
      %v6494 = vpack.c.b16 %v6089, %v6080
      %v6495 = vpack.c.b16 %v6090, %v6081
      %v6496 = vpack.c.b16 %v6091, %v6082
      %v6497 = vpack.c.b16 %v6092, %v6083
      %v6498 = vpack.c.b16 %v6102, %v6093
      %v6499 = vpack.c.b16 %v6103, %v6094
      %v6500 = vpack.c.b16 %v6104, %v6095
      %v6501 = vpack.c.b16 %v6105, %v6096
      %v6502 = vpack.c.b16 %v6106, %v6097
      %v6503 = vpack.c.b16 %v6107, %v6098
      %v6504 = vpack.c.b16 %v6108, %v6099
      %v6505 = vpack.c.b16 %v6109, %v6100
      %v6506 = vpack.c.b16 %v6110, %v6101
      %v6507 = vpack.c.b16 %v6120, %v6111
      %v6508 = vpack.c.b16 %v6121, %v6112
      %v6509 = vpack.c.b16 %v6122, %v6113
      %v6510 = vpack.c.b16 %v6123, %v6114
      %v6511 = vpack.c.b16 %v6124, %v6115
      %v6512 = vpack.c.b16 %v6125, %v6116
      %v6513 = vpack.c.b16 %v6126, %v6117
      %v6514 = vpack.c.b16 %v6127, %v6118
      %v6515 = vpack.c.b16 %v6128, %v6119
      %v6516 = vpack.c.b16 %v6138, %v6129
      %v6517 = vpack.c.b16 %v6139, %v6130
      %v6518 = vpack.c.b16 %v6140, %v6131
      %v6519 = vpack.c.b16 %v6141, %v6132
      %v6520 = vpack.c.b16 %v6142, %v6133
      %v6521 = vpack.c.b16 %v6143, %v6134
      %v6522 = vpack.c.b16 %v6144, %v6135
      %v6523 = vpack.c.b16 %v6145, %v6136
      %v6524 = vpack.c.b16 %v6146, %v6137
      %v6525 = vpack.c.b16 %v6156, %v6147
      %v6526 = vpack.c.b16 %v6157, %v6148
      %v6527 = vpack.c.b16 %v6158, %v6149
      %v6528 = vpack.c.b16 %v6159, %v6150
      %v6529 = vpack.c.b16 %v6160, %v6151
      %v6530 = vpack.c.b16 %v6161, %v6152
      %v6531 = vpack.c.b16 %v6162, %v6153
      %v6532 = vpack.c.b16 %v6163, %v6154
      %v6533 = vpack.c.b16 %v6164, %v6155
      %v6534 = vpack.c.b16 %v6174, %v6165
      %v6535 = vpack.c.b16 %v6175, %v6166
      %v6536 = vpack.c.b16 %v6176, %v6167
      %v6537 = vpack.c.b16 %v6177, %v6168
      %v6538 = vpack.c.b16 %v6178, %v6169
      %v6539 = vpack.c.b16 %v6179, %v6170
      %v6540 = vpack.c.b16 %v6180, %v6171
      %v6541 = vpack.c.b16 %v6181, %v6172
      %v6542 = vpack.c.b16 %v6182, %v6173
      %v6543 = vpack.c.b16 %v6192, %v6183
      %v6544 = vpack.c.b16 %v6193, %v6184
      %v6545 = vpack.c.b16 %v6194, %v6185
      %v6546 = vpack.c.b16 %v6195, %v6186
      %v6547 = vpack.c.b16 %v6196, %v6187
      %v6548 = vpack.c.b16 %v6197, %v6188
      %v6549 = vpack.c.b16 %v6198, %v6189
      %v6550 = vpack.c.b16 %v6199, %v6190
      %v6551 = vpack.c.b16 %v6200, %v6191
      %v6552 = vpack.c.b16 %v6210, %v6201
      %v6553 = vpack.c.b16 %v6211, %v6202
      %v6554 = vpack.c.b16 %v6212, %v6203
      %v6555 = vpack.c.b16 %v6213, %v6204
      %v6556 = vpack.c.b16 %v6214, %v6205
      %v6557 = vpack.c.b16 %v6215, %v6206
      %v6558 = vpack.c.b16 %v6216, %v6207
      %v6559 = vpack.c.b16 %v6217, %v6208
      %v6560 = vpack.c.b16 %v6218, %v6209
      %v6561 = vpack.c.b16 %v6228, %v6219
      %v6562 = vpack.c.b16 %v6229, %v6220
      %v6563 = vpack.c.b16 %v6230, %v6221
      %v6564 = vpack.c.b16 %v6231, %v6222
      %v6565 = vpack.c.b16 %v6232, %v6223
      %v6566 = vpack.c.b16 %v6233, %v6224
      %v6567 = vpack.c.b16 %v6234, %v6225
      %v6568 = vpack.c.b16 %v6235, %v6226
      %v6569 = vpack.c.b16 %v6236, %v6227
      %v6570 = vpack.c.b16 %v6246, %v6237
      %v6571 = vpack.c.b16 %v6247, %v6238
      %v6572 = vpack.c.b16 %v6248, %v6239
      %v6573 = vpack.c.b16 %v6249, %v6240
      %v6574 = vpack.c.b16 %v6250, %v6241
      %v6575 = vpack.c.b16 %v6251, %v6242
      %v6576 = vpack.c.b16 %v6252, %v6243
      %v6577 = vpack.c.b16 %v6253, %v6244
      %v6578 = vpack.c.b16 %v6254, %v6245
      %v6579 = vpack.c.b16 %v6264, %v6255
      %v6580 = vpack.c.b16 %v6265, %v6256
      %v6581 = vpack.c.b16 %v6266, %v6257
      %v6582 = vpack.c.b16 %v6267, %v6258
      %v6583 = vpack.c.b16 %v6268, %v6259
      %v6584 = vpack.c.b16 %v6269, %v6260
      %v6585 = vpack.c.b16 %v6270, %v6261
      %v6586 = vpack.c.b16 %v6271, %v6262
      %v6587 = vpack.c.b16 %v6272, %v6263
      %v6588 = vpack.c.b16 %v6282, %v6273
      %v6589 = vpack.c.b16 %v6283, %v6274
      %v6590 = vpack.c.b16 %v6284, %v6275
      %v6591 = vpack.c.b16 %v6285, %v6276
      %v6592 = vpack.c.b16 %v6286, %v6277
      %v6593 = vpack.c.b16 %v6287, %v6278
      %v6594 = vpack.c.b16 %v6288, %v6279
      %v6595 = vpack.c.b16 %v6289, %v6280
      %v6596 = vpack.c.b16 %v6290, %v6281
      %v6597 = vpack.c.b16 %v6300, %v6291
      %v6598 = vpack.c.b16 %v6301, %v6292
      %v6599 = vpack.c.b16 %v6302, %v6293
      %v6600 = vpack.c.b16 %v6303, %v6294
      %v6601 = vpack.c.b16 %v6304, %v6295
      %v6602 = vpack.c.b16 %v6305, %v6296
      %v6603 = vpack.c.b16 %v6306, %v6297
      %v6604 = vpack.c.b16 %v6307, %v6298
      %v6605 = vpack.c.b16 %v6308, %v6299
      %v6606 = vpack.c.b16 %v6318, %v6309
      %v6607 = vpack.c.b16 %v6319, %v6310
      %v6608 = vpack.c.b16 %v6320, %v6311
      %v6609 = vpack.c.b16 %v6321, %v6312
      %v6610 = vpack.c.b16 %v6322, %v6313
      %v6611 = vpack.c.b16 %v6323, %v6314
      %v6612 = vpack.c.b16 %v6324, %v6315
      %v6613 = vpack.c.b16 %v6325, %v6316
      %v6614 = vpack.c.b16 %v6326, %v6317
      %v7047 = vunpack.c.l.b16 %v5287
      %v7048 = vunpack.c.l.b16 %v5288
      %v7049 = vunpack.c.l.b16 %v5289
      %v7050 = vunpack.c.l.b16 %v5290
      %v7051 = vunpack.c.l.b16 %v5291
      %v7052 = vunpack.c.l.b16 %v5292
      %v7053 = vunpack.c.l.b16 %v5293
      %v7054 = vunpack.c.l.b16 %v5294
      %v7055 = vunpack.c.l.b16 %v5295
      %v7056 = vunpack.c.l.b16 %v5296
      %v7057 = vunpack.c.l.b16 %v5297
      %v7058 = vunpack.c.l.b16 %v5298
      %v7059 = vunpack.c.l.b16 %v5299
      %v7060 = vunpack.c.l.b16 %v5300
      %v7061 = vunpack.c.l.b16 %v5301
      %v7062 = vunpack.c.l.b16 %v5302
      %v7063 = vunpack.c.l.b16 %v5303
      %v7064 = vunpack.c.l.b16 %v5304
      %v7065 = vunpack.c.l.b16 %v5305
      %v7066 = vunpack.c.l.b16 %v5306
      %v7067 = vunpack.c.l.b16 %v5307
      %v7068 = vunpack.c.l.b16 %v5308
      %v7069 = vunpack.c.l.b16 %v5309
      %v7070 = vunpack.c.l.b16 %v5310
      %v7071 = vunpack.c.l.b16 %v5311
      %v7072 = vunpack.c.l.b16 %v5312
      %v7073 = vunpack.c.l.b16 %v5313
      %v7074 = vunpack.c.l.b16 %v5314
      %v7075 = vunpack.c.l.b16 %v5315
      %v7076 = vunpack.c.l.b16 %v5316
      %v7077 = vunpack.c.l.b16 %v5317
      %v7078 = vunpack.c.l.b16 %v5318
      %v7079 = vunpack.c.l.b16 %v5319
      %v7080 = vunpack.c.l.b16 %v5320
      %v7081 = vunpack.c.l.b16 %v5321
      %v7082 = vunpack.c.l.b16 %v5322
      %v7083 = vunpack.c.l.b16 %v5323
      %v7084 = vunpack.c.l.b16 %v5324
      %v7085 = vunpack.c.l.b16 %v5325
      %v7086 = vunpack.c.l.b16 %v5326
      %v7087 = vunpack.c.l.b16 %v5327
      %v7088 = vunpack.c.l.b16 %v5328
      %v7089 = vunpack.c.l.b16 %v5329
      %v7090 = vunpack.c.l.b16 %v5330
      %v7091 = vunpack.c.l.b16 %v5331
      %v7092 = vunpack.c.l.b16 %v5332
      %v7093 = vunpack.c.l.b16 %v5333
      %v7094 = vunpack.c.l.b16 %v5334
      %v7095 = vunpack.c.l.b16 %v5335
      %v7096 = vunpack.c.l.b16 %v5336
      %v7097 = vunpack.c.l.b16 %v5337
      %v7098 = vunpack.c.l.b16 %v5338
      %v7099 = vunpack.c.l.b16 %v5339
      %v7100 = vunpack.c.l.b16 %v5340
      %v7101 = vunpack.c.l.b16 %v5341
      %v7102 = vunpack.c.l.b16 %v5342
      %v7103 = vunpack.c.l.b16 %v5343
      %v7104 = vunpack.c.l.b16 %v5344
      %v7105 = vunpack.c.l.b16 %v5345
      %v7106 = vunpack.c.l.b16 %v5346
      %v7107 = vunpack.c.l.b16 %v5347
      %v7108 = vunpack.c.l.b16 %v5348
      %v7109 = vunpack.c.l.b16 %v5349
      %v7110 = vunpack.c.l.b16 %v5350
      %v7111 = vunpack.c.l.b16 %v5351
      %v7112 = vunpack.c.l.b16 %v5352
      %v7113 = vunpack.c.l.b16 %v5353
      %v7114 = vunpack.c.l.b16 %v5354
      %v7115 = vunpack.c.l.b16 %v5355
      %v7116 = vunpack.c.l.b16 %v5356
      %v7117 = vunpack.c.l.b16 %v5357
      %v7118 = vunpack.c.l.b16 %v5358
      %v7119 = vunpack.c.l.b16 %v5359
      %v7120 = vunpack.c.l.b16 %v5360
      %v7121 = vunpack.c.l.b16 %v5361
      %v7122 = vunpack.c.l.b16 %v5362
      %v7123 = vunpack.c.l.b16 %v5363
      %v7124 = vunpack.c.l.b16 %v5364
      %v7125 = vunpack.c.l.b16 %v5365
      %v7126 = vunpack.c.l.b16 %v5366
      %v7127 = vunpack.c.l.b16 %v5367
      %v7128 = vunpack.c.l.b16 %v5368
      %v7129 = vunpack.c.l.b16 %v5369
      %v7130 = vunpack.c.l.b16 %v5370
      %v7131 = vunpack.c.l.b16 %v5371
      %v7132 = vunpack.c.l.b16 %v5372
      %v7133 = vunpack.c.l.b16 %v5373
      %v7134 = vunpack.c.l.b16 %v5374
      %v7135 = vunpack.c.l.b16 %v5375
      %v7136 = vunpack.c.l.b16 %v5376
      %v7137 = vunpack.c.l.b16 %v5377
      %v7138 = vunpack.c.l.b16 %v5378
      %v7139 = vunpack.c.l.b16 %v5379
      %v7140 = vunpack.c.l.b16 %v5380
      %v7141 = vunpack.c.l.b16 %v5381
      %v7142 = vunpack.c.l.b16 %v5382
      %v7143 = vunpack.c.l.b16 %v5383
      %v7144 = vunpack.c.l.b16 %v5384
      %v7145 = vunpack.c.l.b16 %v5385
      %v7146 = vunpack.c.l.b16 %v5386
      %v7147 = vunpack.c.l.b16 %v5387
      %v7148 = vunpack.c.l.b16 %v5388
      %v7149 = vunpack.c.l.b16 %v5389
      %v7150 = vunpack.c.l.b16 %v5390
      %v7151 = vunpack.c.l.b16 %v5391
      %v7152 = vunpack.c.l.b16 %v5392
      %v7153 = vunpack.c.l.b16 %v5393
      %v7154 = vunpack.c.l.b16 %v5394
      %v7155 = vunpack.c.l.b16 %v5395
      %v7156 = vunpack.c.l.b16 %v5396
      %v7157 = vunpack.c.l.b16 %v5397
      %v7158 = vunpack.c.l.b16 %v5398
      %v7159 = vunpack.c.l.b16 %v5399
      %v7160 = vunpack.c.l.b16 %v5400
      %v7161 = vunpack.c.l.b16 %v5401
      %v7162 = vunpack.c.l.b16 %v5402
      %v7163 = vunpack.c.l.b16 %v5403
      %v7164 = vunpack.c.l.b16 %v5404
      %v7165 = vunpack.c.l.b16 %v5405
      %v7166 = vunpack.c.l.b16 %v5406
      %v7167 = vunpack.c.l.b16 %v5407
      %v7168 = vunpack.c.l.b16 %v5408
      %v7169 = vunpack.c.l.b16 %v5409
      %v7170 = vunpack.c.l.b16 %v5410
      %v7171 = vunpack.c.l.b16 %v5411
      %v7172 = vunpack.c.l.b16 %v5412
      %v7173 = vunpack.c.l.b16 %v5413
      %v7174 = vunpack.c.l.b16 %v5414
      %v7175 = vunpack.c.l.b16 %v5415
      %v7176 = vunpack.c.l.b16 %v5416
      %v7177 = vunpack.c.l.b16 %v5417
      %v7178 = vunpack.c.l.b16 %v5418
      %v7179 = vunpack.c.l.b16 %v5419
      %v7180 = vunpack.c.l.b16 %v5420
      %v7181 = vunpack.c.l.b16 %v5421
      %v7182 = vunpack.c.l.b16 %v5422
      %v7183 = vunpack.c.l.b16 %v5423
      %v7184 = vunpack.c.l.b16 %v5424
      %v7185 = vunpack.c.l.b16 %v5425
      %v7186 = vunpack.c.l.b16 %v5426
      %v7187 = vunpack.c.l.b16 %v5427
      %v7188 = vunpack.c.l.b16 %v5428
      %v7189 = vunpack.c.l.b16 %v5429
      %v7190 = vunpack.c.l.b16 %v5430
      %v7191 = vpack.c.b16 %v7048, %v7047
      %v7192 = vpack.c.b16 %v7050, %v7049
      %v7193 = vpack.c.b16 %v7052, %v7051
      %v7194 = vpack.c.b16 %v7054, %v7053
      %v7195 = vpack.c.b16 %v7056, %v7055
      %v7196 = vpack.c.b16 %v7058, %v7057
      %v7197 = vpack.c.b16 %v7060, %v7059
      %v7198 = vpack.c.b16 %v7062, %v7061
      %v7199 = vpack.c.b16 %v7064, %v7063
      %v7200 = vpack.c.b16 %v7066, %v7065
      %v7201 = vpack.c.b16 %v7068, %v7067
      %v7202 = vpack.c.b16 %v7070, %v7069
      %v7203 = vpack.c.b16 %v7072, %v7071
      %v7204 = vpack.c.b16 %v7074, %v7073
      %v7205 = vpack.c.b16 %v7076, %v7075
      %v7206 = vpack.c.b16 %v7078, %v7077
      %v7207 = vpack.c.b16 %v7080, %v7079
      %v7208 = vpack.c.b16 %v7082, %v7081
      %v7209 = vpack.c.b16 %v7084, %v7083
      %v7210 = vpack.c.b16 %v7086, %v7085
      %v7211 = vpack.c.b16 %v7088, %v7087
      %v7212 = vpack.c.b16 %v7090, %v7089
      %v7213 = vpack.c.b16 %v7092, %v7091
      %v7214 = vpack.c.b16 %v7094, %v7093
      %v7215 = vpack.c.b16 %v7096, %v7095
      %v7216 = vpack.c.b16 %v7098, %v7097
      %v7217 = vpack.c.b16 %v7100, %v7099
      %v7218 = vpack.c.b16 %v7102, %v7101
      %v7219 = vpack.c.b16 %v7104, %v7103
      %v7220 = vpack.c.b16 %v7106, %v7105
      %v7221 = vpack.c.b16 %v7108, %v7107
      %v7222 = vpack.c.b16 %v7110, %v7109
      %v7223 = vpack.c.b16 %v7112, %v7111
      %v7224 = vpack.c.b16 %v7114, %v7113
      %v7225 = vpack.c.b16 %v7116, %v7115
      %v7226 = vpack.c.b16 %v7118, %v7117
      %v7227 = vpack.c.b16 %v7120, %v7119
      %v7228 = vpack.c.b16 %v7122, %v7121
      %v7229 = vpack.c.b16 %v7124, %v7123
      %v7230 = vpack.c.b16 %v7126, %v7125
      %v7231 = vpack.c.b16 %v7128, %v7127
      %v7232 = vpack.c.b16 %v7130, %v7129
      %v7233 = vpack.c.b16 %v7132, %v7131
      %v7234 = vpack.c.b16 %v7134, %v7133
      %v7235 = vpack.c.b16 %v7136, %v7135
      %v7236 = vpack.c.b16 %v7138, %v7137
      %v7237 = vpack.c.b16 %v7140, %v7139
      %v7238 = vpack.c.b16 %v7142, %v7141
      %v7239 = vpack.c.b16 %v7144, %v7143
      %v7240 = vpack.c.b16 %v7146, %v7145
      %v7241 = vpack.c.b16 %v7148, %v7147
      %v7242 = vpack.c.b16 %v7150, %v7149
      %v7243 = vpack.c.b16 %v7152, %v7151
      %v7244 = vpack.c.b16 %v7154, %v7153
      %v7245 = vpack.c.b16 %v7156, %v7155
      %v7246 = vpack.c.b16 %v7158, %v7157
      %v7247 = vpack.c.b16 %v7160, %v7159
      %v7248 = vpack.c.b16 %v7162, %v7161
      %v7249 = vpack.c.b16 %v7164, %v7163
      %v7250 = vpack.c.b16 %v7166, %v7165
      %v7251 = vpack.c.b16 %v7168, %v7167
      %v7252 = vpack.c.b16 %v7170, %v7169
      %v7253 = vpack.c.b16 %v7172, %v7171
      %v7254 = vpack.c.b16 %v7174, %v7173
      %v7255 = vpack.c.b16 %v7176, %v7175
      %v7256 = vpack.c.b16 %v7178, %v7177
      %v7257 = vpack.c.b16 %v7180, %v7179
      %v7258 = vpack.c.b16 %v7182, %v7181
      %v7259 = vpack.c.b16 %v7184, %v7183
      %v7260 = vpack.c.b16 %v7186, %v7185
      %v7261 = vpack.c.b16 %v7188, %v7187
      %v7262 = vpack.c.b16 %v7190, %v7189
      %7335 = vmatpush.bf16.msra.mxu0 %v7198
      %7336 = vmatpush.bf16.msra.mxu0 %v7197
      %7337 = vmatpush.bf16.msra.mxu0 %v7196
      %7338 = vmatpush.bf16.msra.mxu0 %v7195
      %7339 = vmatpush.bf16.msra.mxu0 %v7194
      %7340 = vmatpush.bf16.msra.mxu0 %v7193
      %7341 = vmatpush.bf16.msra.mxu0 %v7192
      %7342 = vmatpush.bf16.msra.mxu0 %v7191
      %7343 = vmatmul.bf16.gmra.mxu0 %v6327
      %v7344 = vpop.f32.mrf.mxu0
      %v7345 = vadd.f32 0.0, %v7344
      %v7346 = vpop.f32.mrf.mxu0
      %v7347 = vadd.f32 0.0, %v7346
      %7348 = vmatmul.bf16.gmra.mxu0 %v6336
      %v7349 = vpop.f32.mrf.mxu0
      %v7350 = vadd.f32 0.0, %v7349
      %v7351 = vpop.f32.mrf.mxu0
      %v7352 = vadd.f32 0.0, %v7351
      %7353 = vmatmul.bf16.gmra.mxu0 %v6345
      %v7354 = vpop.f32.mrf.mxu0
      %v7355 = vadd.f32 0.0, %v7354
      %v7356 = vpop.f32.mrf.mxu0
      %v7357 = vadd.f32 0.0, %v7356
      %7358 = vmatmul.bf16.gmra.mxu0 %v6354
      %v7359 = vpop.f32.mrf.mxu0
      %v7360 = vadd.f32 0.0, %v7359
      %v7361 = vpop.f32.mrf.mxu0
      %v7362 = vadd.f32 0.0, %v7361
      %7363 = vmatmul.bf16.gmra.mxu0 %v6363
      %v7364 = vpop.f32.mrf.mxu0
      %v7365 = vadd.f32 0.0, %v7364
      %v7366 = vpop.f32.mrf.mxu0
      %v7367 = vadd.f32 0.0, %v7366
      %7368 = vmatmul.bf16.gmra.mxu0 %v6372
      %v7369 = vpop.f32.mrf.mxu0
      %v7370 = vadd.f32 0.0, %v7369
      %v7371 = vpop.f32.mrf.mxu0
      %v7372 = vadd.f32 0.0, %v7371
      %7373 = vmatmul.bf16.gmra.mxu0 %v6381
      %v7374 = vpop.f32.mrf.mxu0
      %v7375 = vadd.f32 0.0, %v7374
      %v7376 = vpop.f32.mrf.mxu0
      %v7377 = vadd.f32 0.0, %v7376
      %7378 = vmatmul.bf16.gmra.mxu0 %v6390
      %v7379 = vpop.f32.mrf.mxu0
      %v7380 = vadd.f32 0.0, %v7379
      %v7381 = vpop.f32.mrf.mxu0
      %v7382 = vadd.f32 0.0, %v7381
      %7383 = vmatmul.bf16.gmra.mxu0 %v6399
      %v7384 = vpop.f32.mrf.mxu0
      %v7385 = vadd.f32 0.0, %v7384
      %v7386 = vpop.f32.mrf.mxu0
      %v7387 = vadd.f32 0.0, %v7386
      %7388 = vmatmul.bf16.gmra.mxu0 %v6408
      %v7389 = vpop.f32.mrf.mxu0
      %v7390 = vadd.f32 0.0, %v7389
      %v7391 = vpop.f32.mrf.mxu0
      %v7392 = vadd.f32 0.0, %v7391
      %7393 = vmatmul.bf16.gmra.mxu0 %v6417
      %v7394 = vpop.f32.mrf.mxu0
      %v7395 = vadd.f32 0.0, %v7394
      %v7396 = vpop.f32.mrf.mxu0
      %v7397 = vadd.f32 0.0, %v7396
      %7398 = vmatmul.bf16.gmra.mxu0 %v6426
      %v7399 = vpop.f32.mrf.mxu0
      %v7400 = vadd.f32 0.0, %v7399
      %v7401 = vpop.f32.mrf.mxu0
      %v7402 = vadd.f32 0.0, %v7401
      %7403 = vmatmul.bf16.gmra.mxu0 %v6435
      %v7404 = vpop.f32.mrf.mxu0
      %v7405 = vadd.f32 0.0, %v7404
      %v7406 = vpop.f32.mrf.mxu0
      %v7407 = vadd.f32 0.0, %v7406
      %7408 = vmatmul.bf16.gmra.mxu0 %v6444
      %v7409 = vpop.f32.mrf.mxu0
      %v7410 = vadd.f32 0.0, %v7409
      %v7411 = vpop.f32.mrf.mxu0
      %v7412 = vadd.f32 0.0, %v7411
      %7413 = vmatmul.bf16.gmra.mxu0 %v6453
      %v7414 = vpop.f32.mrf.mxu0
      %v7415 = vadd.f32 0.0, %v7414
      %v7416 = vpop.f32.mrf.mxu0
      %v7417 = vadd.f32 0.0, %v7416
      %7418 = vmatmul.bf16.gmra.mxu0 %v6462
      %v7419 = vpop.f32.mrf.mxu0
      %v7420 = vadd.f32 0.0, %v7419
      %v7421 = vpop.f32.mrf.mxu0
      %v7422 = vadd.f32 0.0, %v7421
      %7423 = vmatmul.bf16.gmra.mxu0 %v6471
      %v7424 = vpop.f32.mrf.mxu0
      %v7425 = vadd.f32 0.0, %v7424
      %v7426 = vpop.f32.mrf.mxu0
      %v7427 = vadd.f32 0.0, %v7426
      %7428 = vmatmul.bf16.gmra.mxu0 %v6480
      %v7429 = vpop.f32.mrf.mxu0
      %v7430 = vadd.f32 0.0, %v7429
      %v7431 = vpop.f32.mrf.mxu0
      %v7432 = vadd.f32 0.0, %v7431
      %7433 = vmatmul.bf16.gmra.mxu0 %v6489
      %v7434 = vpop.f32.mrf.mxu0
      %v7435 = vadd.f32 0.0, %v7434
      %v7436 = vpop.f32.mrf.mxu0
      %v7437 = vadd.f32 0.0, %v7436
      %7438 = vmatmul.bf16.gmra.mxu0 %v6498
      %v7439 = vpop.f32.mrf.mxu0
      %v7440 = vadd.f32 0.0, %v7439
      %v7441 = vpop.f32.mrf.mxu0
      %v7442 = vadd.f32 0.0, %v7441
      %7443 = vmatmul.bf16.gmra.mxu0 %v6507
      %v7444 = vpop.f32.mrf.mxu0
      %v7445 = vadd.f32 0.0, %v7444
      %v7446 = vpop.f32.mrf.mxu0
      %v7447 = vadd.f32 0.0, %v7446
      %7448 = vmatmul.bf16.gmra.mxu0 %v6516
      %v7449 = vpop.f32.mrf.mxu0
      %v7450 = vadd.f32 0.0, %v7449
      %v7451 = vpop.f32.mrf.mxu0
      %v7452 = vadd.f32 0.0, %v7451
      %7453 = vmatmul.bf16.gmra.mxu0 %v6525
      %v7454 = vpop.f32.mrf.mxu0
      %v7455 = vadd.f32 0.0, %v7454
      %v7456 = vpop.f32.mrf.mxu0
      %v7457 = vadd.f32 0.0, %v7456
      %7458 = vmatmul.bf16.gmra.mxu0 %v6534
      %v7459 = vpop.f32.mrf.mxu0
      %v7460 = vadd.f32 0.0, %v7459
      %v7461 = vpop.f32.mrf.mxu0
      %v7462 = vadd.f32 0.0, %v7461
      %7463 = vmatmul.bf16.gmra.mxu0 %v6543
      %v7464 = vpop.f32.mrf.mxu0
      %v7465 = vadd.f32 0.0, %v7464
      %v7466 = vpop.f32.mrf.mxu0
      %v7467 = vadd.f32 0.0, %v7466
      %7468 = vmatmul.bf16.gmra.mxu0 %v6552
      %v7469 = vpop.f32.mrf.mxu0
      %v7470 = vadd.f32 0.0, %v7469
      %v7471 = vpop.f32.mrf.mxu0
      %v7472 = vadd.f32 0.0, %v7471
      %7473 = vmatmul.bf16.gmra.mxu0 %v6561
      %v7474 = vpop.f32.mrf.mxu0
      %v7475 = vadd.f32 0.0, %v7474
      %v7476 = vpop.f32.mrf.mxu0
      %v7477 = vadd.f32 0.0, %v7476
      %7478 = vmatmul.bf16.gmra.mxu0 %v6570
      %v7479 = vpop.f32.mrf.mxu0
      %v7480 = vadd.f32 0.0, %v7479
      %v7481 = vpop.f32.mrf.mxu0
      %v7482 = vadd.f32 0.0, %v7481
      %7483 = vmatmul.bf16.gmra.mxu0 %v6579
      %v7484 = vpop.f32.mrf.mxu0
      %v7485 = vadd.f32 0.0, %v7484
      %v7486 = vpop.f32.mrf.mxu0
      %v7487 = vadd.f32 0.0, %v7486
      %7488 = vmatmul.bf16.gmra.mxu0 %v6588
      %v7489 = vpop.f32.mrf.mxu0
      %v7490 = vadd.f32 0.0, %v7489
      %v7491 = vpop.f32.mrf.mxu0
      %v7492 = vadd.f32 0.0, %v7491
      %7493 = vmatmul.bf16.gmra.mxu0 %v6597
      %v7494 = vpop.f32.mrf.mxu0
      %v7495 = vadd.f32 0.0, %v7494
      %v7496 = vpop.f32.mrf.mxu0
      %v7497 = vadd.f32 0.0, %v7496
      %7498 = vmatmul.bf16.gmra.mxu0 %v6606
      %v7499 = vpop.f32.mrf.mxu0
      %v7500 = vadd.f32 0.0, %v7499
      %v7501 = vpop.f32.mrf.mxu0
      %v7502 = vadd.f32 0.0, %v7501
      %7503 = vdwg.mxu0
      %7504 = vmatpush.bf16.msra.mxu0 %v7206
      %7505 = vmatpush.bf16.msra.mxu0 %v7205
      %7506 = vmatpush.bf16.msra.mxu0 %v7204
      %7507 = vmatpush.bf16.msra.mxu0 %v7203
      %7508 = vmatpush.bf16.msra.mxu0 %v7202
      %7509 = vmatpush.bf16.msra.mxu0 %v7201
      %7510 = vmatpush.bf16.msra.mxu0 %v7200
      %7511 = vmatpush.bf16.msra.mxu0 %v7199
      %7512 = vmatmul.bf16.gmra.mxu0 %v6328
      %v7513 = vpop.f32.mrf.mxu0
      %v7514 = vadd.f32 %v7345, %v7513
      %v7515 = vpop.f32.mrf.mxu0
      %v7516 = vadd.f32 %v7347, %v7515
      %7517 = vmatmul.bf16.gmra.mxu0 %v6337
      %v7518 = vpop.f32.mrf.mxu0
      %v7519 = vadd.f32 %v7350, %v7518
      %v7520 = vpop.f32.mrf.mxu0
      %v7521 = vadd.f32 %v7352, %v7520
      %7522 = vmatmul.bf16.gmra.mxu0 %v6346
      %v7523 = vpop.f32.mrf.mxu0
      %v7524 = vadd.f32 %v7355, %v7523
      %v7525 = vpop.f32.mrf.mxu0
      %v7526 = vadd.f32 %v7357, %v7525
      %7527 = vmatmul.bf16.gmra.mxu0 %v6355
      %v7528 = vpop.f32.mrf.mxu0
      %v7529 = vadd.f32 %v7360, %v7528
      %v7530 = vpop.f32.mrf.mxu0
      %v7531 = vadd.f32 %v7362, %v7530
      %7532 = vmatmul.bf16.gmra.mxu0 %v6364
      %v7533 = vpop.f32.mrf.mxu0
      %v7534 = vadd.f32 %v7365, %v7533
      %v7535 = vpop.f32.mrf.mxu0
      %v7536 = vadd.f32 %v7367, %v7535
      %7537 = vmatmul.bf16.gmra.mxu0 %v6373
      %v7538 = vpop.f32.mrf.mxu0
      %v7539 = vadd.f32 %v7370, %v7538
      %v7540 = vpop.f32.mrf.mxu0
      %v7541 = vadd.f32 %v7372, %v7540
      %7542 = vmatmul.bf16.gmra.mxu0 %v6382
      %v7543 = vpop.f32.mrf.mxu0
      %v7544 = vadd.f32 %v7375, %v7543
      %v7545 = vpop.f32.mrf.mxu0
      %v7546 = vadd.f32 %v7377, %v7545
      %7547 = vmatmul.bf16.gmra.mxu0 %v6391
      %v7548 = vpop.f32.mrf.mxu0
      %v7549 = vadd.f32 %v7380, %v7548
      %v7550 = vpop.f32.mrf.mxu0
      %v7551 = vadd.f32 %v7382, %v7550
      %7552 = vmatmul.bf16.gmra.mxu0 %v6400
      %v7553 = vpop.f32.mrf.mxu0
      %v7554 = vadd.f32 %v7385, %v7553
      %v7555 = vpop.f32.mrf.mxu0
      %v7556 = vadd.f32 %v7387, %v7555
      %7557 = vmatmul.bf16.gmra.mxu0 %v6409
      %v7558 = vpop.f32.mrf.mxu0
      %v7559 = vadd.f32 %v7390, %v7558
      %v7560 = vpop.f32.mrf.mxu0
      %v7561 = vadd.f32 %v7392, %v7560
      %7562 = vmatmul.bf16.gmra.mxu0 %v6418
      %v7563 = vpop.f32.mrf.mxu0
      %v7564 = vadd.f32 %v7395, %v7563
      %v7565 = vpop.f32.mrf.mxu0
      %v7566 = vadd.f32 %v7397, %v7565
      %7567 = vmatmul.bf16.gmra.mxu0 %v6427
      %v7568 = vpop.f32.mrf.mxu0
      %v7569 = vadd.f32 %v7400, %v7568
      %v7570 = vpop.f32.mrf.mxu0
      %v7571 = vadd.f32 %v7402, %v7570
      %7572 = vmatmul.bf16.gmra.mxu0 %v6436
      %v7573 = vpop.f32.mrf.mxu0
      %v7574 = vadd.f32 %v7405, %v7573
      %v7575 = vpop.f32.mrf.mxu0
      %v7576 = vadd.f32 %v7407, %v7575
      %7577 = vmatmul.bf16.gmra.mxu0 %v6445
      %v7578 = vpop.f32.mrf.mxu0
      %v7579 = vadd.f32 %v7410, %v7578
      %v7580 = vpop.f32.mrf.mxu0
      %v7581 = vadd.f32 %v7412, %v7580
      %7582 = vmatmul.bf16.gmra.mxu0 %v6454
      %v7583 = vpop.f32.mrf.mxu0
      %v7584 = vadd.f32 %v7415, %v7583
      %v7585 = vpop.f32.mrf.mxu0
      %v7586 = vadd.f32 %v7417, %v7585
      %7587 = vmatmul.bf16.gmra.mxu0 %v6463
      %v7588 = vpop.f32.mrf.mxu0
      %v7589 = vadd.f32 %v7420, %v7588
      %v7590 = vpop.f32.mrf.mxu0
      %v7591 = vadd.f32 %v7422, %v7590
      %7592 = vmatmul.bf16.gmra.mxu0 %v6472
      %v7593 = vpop.f32.mrf.mxu0
      %v7594 = vadd.f32 %v7425, %v7593
      %v7595 = vpop.f32.mrf.mxu0
      %v7596 = vadd.f32 %v7427, %v7595
      %7597 = vmatmul.bf16.gmra.mxu0 %v6481
      %v7598 = vpop.f32.mrf.mxu0
      %v7599 = vadd.f32 %v7430, %v7598
      %v7600 = vpop.f32.mrf.mxu0
      %v7601 = vadd.f32 %v7432, %v7600
      %7602 = vmatmul.bf16.gmra.mxu0 %v6490
      %v7603 = vpop.f32.mrf.mxu0
      %v7604 = vadd.f32 %v7435, %v7603
      %v7605 = vpop.f32.mrf.mxu0
      %v7606 = vadd.f32 %v7437, %v7605
      %7607 = vmatmul.bf16.gmra.mxu0 %v6499
      %v7608 = vpop.f32.mrf.mxu0
      %v7609 = vadd.f32 %v7440, %v7608
      %v7610 = vpop.f32.mrf.mxu0
      %v7611 = vadd.f32 %v7442, %v7610
      %7612 = vmatmul.bf16.gmra.mxu0 %v6508
      %v7613 = vpop.f32.mrf.mxu0
      %v7614 = vadd.f32 %v7445, %v7613
      %v7615 = vpop.f32.mrf.mxu0
      %v7616 = vadd.f32 %v7447, %v7615
      %7617 = vmatmul.bf16.gmra.mxu0 %v6517
      %v7618 = vpop.f32.mrf.mxu0
      %v7619 = vadd.f32 %v7450, %v7618
      %v7620 = vpop.f32.mrf.mxu0
      %v7621 = vadd.f32 %v7452, %v7620
      %7622 = vmatmul.bf16.gmra.mxu0 %v6526
      %v7623 = vpop.f32.mrf.mxu0
      %v7624 = vadd.f32 %v7455, %v7623
      %v7625 = vpop.f32.mrf.mxu0
      %v7626 = vadd.f32 %v7457, %v7625
      %7627 = vmatmul.bf16.gmra.mxu0 %v6535
      %v7628 = vpop.f32.mrf.mxu0
      %v7629 = vadd.f32 %v7460, %v7628
      %v7630 = vpop.f32.mrf.mxu0
      %v7631 = vadd.f32 %v7462, %v7630
      %7632 = vmatmul.bf16.gmra.mxu0 %v6544
      %v7633 = vpop.f32.mrf.mxu0
      %v7634 = vadd.f32 %v7465, %v7633
      %v7635 = vpop.f32.mrf.mxu0
      %v7636 = vadd.f32 %v7467, %v7635
      %7637 = vmatmul.bf16.gmra.mxu0 %v6553
      %v7638 = vpop.f32.mrf.mxu0
      %v7639 = vadd.f32 %v7470, %v7638
      %v7640 = vpop.f32.mrf.mxu0
      %v7641 = vadd.f32 %v7472, %v7640
      %7642 = vmatmul.bf16.gmra.mxu0 %v6562
      %v7643 = vpop.f32.mrf.mxu0
      %v7644 = vadd.f32 %v7475, %v7643
      %v7645 = vpop.f32.mrf.mxu0
      %v7646 = vadd.f32 %v7477, %v7645
      %7647 = vmatmul.bf16.gmra.mxu0 %v6571
      %v7648 = vpop.f32.mrf.mxu0
      %v7649 = vadd.f32 %v7480, %v7648
      %v7650 = vpop.f32.mrf.mxu0
      %v7651 = vadd.f32 %v7482, %v7650
      %7652 = vmatmul.bf16.gmra.mxu0 %v6580
      %v7653 = vpop.f32.mrf.mxu0
      %v7654 = vadd.f32 %v7485, %v7653
      %v7655 = vpop.f32.mrf.mxu0
      %v7656 = vadd.f32 %v7487, %v7655
      %7657 = vmatmul.bf16.gmra.mxu0 %v6589
      %v7658 = vpop.f32.mrf.mxu0
      %v7659 = vadd.f32 %v7490, %v7658
      %v7660 = vpop.f32.mrf.mxu0
      %v7661 = vadd.f32 %v7492, %v7660
      %7662 = vmatmul.bf16.gmra.mxu0 %v6598
      %v7663 = vpop.f32.mrf.mxu0
      %v7664 = vadd.f32 %v7495, %v7663
      %v7665 = vpop.f32.mrf.mxu0
      %v7666 = vadd.f32 %v7497, %v7665
      %7667 = vmatmul.bf16.gmra.mxu0 %v6607
      %v7668 = vpop.f32.mrf.mxu0
      %v7669 = vadd.f32 %v7500, %v7668
      %v7670 = vpop.f32.mrf.mxu0
      %v7671 = vadd.f32 %v7502, %v7670
      %7672 = vdwg.mxu0
      %7673 = vmatpush.bf16.msra.mxu0 %v7214
      %7674 = vmatpush.bf16.msra.mxu0 %v7213
      %7675 = vmatpush.bf16.msra.mxu0 %v7212
      %7676 = vmatpush.bf16.msra.mxu0 %v7211
      %7677 = vmatpush.bf16.msra.mxu0 %v7210
      %7678 = vmatpush.bf16.msra.mxu0 %v7209
      %7679 = vmatpush.bf16.msra.mxu0 %v7208
      %7680 = vmatpush.bf16.msra.mxu0 %v7207
      %7681 = vmatmul.bf16.gmra.mxu0 %v6329
      %v7682 = vpop.f32.mrf.mxu0
      %v7683 = vadd.f32 %v7514, %v7682
      %v7684 = vpop.f32.mrf.mxu0
      %v7685 = vadd.f32 %v7516, %v7684
      %7686 = vmatmul.bf16.gmra.mxu0 %v6338
      %v7687 = vpop.f32.mrf.mxu0
      %v7688 = vadd.f32 %v7519, %v7687
      %v7689 = vpop.f32.mrf.mxu0
      %v7690 = vadd.f32 %v7521, %v7689
      %7691 = vmatmul.bf16.gmra.mxu0 %v6347
      %v7692 = vpop.f32.mrf.mxu0
      %v7693 = vadd.f32 %v7524, %v7692
      %v7694 = vpop.f32.mrf.mxu0
      %v7695 = vadd.f32 %v7526, %v7694
      %7696 = vmatmul.bf16.gmra.mxu0 %v6356
      %v7697 = vpop.f32.mrf.mxu0
      %v7698 = vadd.f32 %v7529, %v7697
      %v7699 = vpop.f32.mrf.mxu0
      %v7700 = vadd.f32 %v7531, %v7699
      %7701 = vmatmul.bf16.gmra.mxu0 %v6365
      %v7702 = vpop.f32.mrf.mxu0
      %v7703 = vadd.f32 %v7534, %v7702
      %v7704 = vpop.f32.mrf.mxu0
      %v7705 = vadd.f32 %v7536, %v7704
      %7706 = vmatmul.bf16.gmra.mxu0 %v6374
      %v7707 = vpop.f32.mrf.mxu0
      %v7708 = vadd.f32 %v7539, %v7707
      %v7709 = vpop.f32.mrf.mxu0
      %v7710 = vadd.f32 %v7541, %v7709
      %7711 = vmatmul.bf16.gmra.mxu0 %v6383
      %v7712 = vpop.f32.mrf.mxu0
      %v7713 = vadd.f32 %v7544, %v7712
      %v7714 = vpop.f32.mrf.mxu0
      %v7715 = vadd.f32 %v7546, %v7714
      %7716 = vmatmul.bf16.gmra.mxu0 %v6392
      %v7717 = vpop.f32.mrf.mxu0
      %v7718 = vadd.f32 %v7549, %v7717
      %v7719 = vpop.f32.mrf.mxu0
      %v7720 = vadd.f32 %v7551, %v7719
      %7721 = vmatmul.bf16.gmra.mxu0 %v6401
      %v7722 = vpop.f32.mrf.mxu0
      %v7723 = vadd.f32 %v7554, %v7722
      %v7724 = vpop.f32.mrf.mxu0
      %v7725 = vadd.f32 %v7556, %v7724
      %7726 = vmatmul.bf16.gmra.mxu0 %v6410
      %v7727 = vpop.f32.mrf.mxu0
      %v7728 = vadd.f32 %v7559, %v7727
      %v7729 = vpop.f32.mrf.mxu0
      %v7730 = vadd.f32 %v7561, %v7729
      %7731 = vmatmul.bf16.gmra.mxu0 %v6419
      %v7732 = vpop.f32.mrf.mxu0
      %v7733 = vadd.f32 %v7564, %v7732
      %v7734 = vpop.f32.mrf.mxu0
      %v7735 = vadd.f32 %v7566, %v7734
      %7736 = vmatmul.bf16.gmra.mxu0 %v6428
      %v7737 = vpop.f32.mrf.mxu0
      %v7738 = vadd.f32 %v7569, %v7737
      %v7739 = vpop.f32.mrf.mxu0
      %v7740 = vadd.f32 %v7571, %v7739
      %7741 = vmatmul.bf16.gmra.mxu0 %v6437
      %v7742 = vpop.f32.mrf.mxu0
      %v7743 = vadd.f32 %v7574, %v7742
      %v7744 = vpop.f32.mrf.mxu0
      %v7745 = vadd.f32 %v7576, %v7744
      %7746 = vmatmul.bf16.gmra.mxu0 %v6446
      %v7747 = vpop.f32.mrf.mxu0
      %v7748 = vadd.f32 %v7579, %v7747
      %v7749 = vpop.f32.mrf.mxu0
      %v7750 = vadd.f32 %v7581, %v7749
      %7751 = vmatmul.bf16.gmra.mxu0 %v6455
      %v7752 = vpop.f32.mrf.mxu0
      %v7753 = vadd.f32 %v7584, %v7752
      %v7754 = vpop.f32.mrf.mxu0
      %v7755 = vadd.f32 %v7586, %v7754
      %7756 = vmatmul.bf16.gmra.mxu0 %v6464
      %v7757 = vpop.f32.mrf.mxu0
      %v7758 = vadd.f32 %v7589, %v7757
      %v7759 = vpop.f32.mrf.mxu0
      %v7760 = vadd.f32 %v7591, %v7759
      %7761 = vmatmul.bf16.gmra.mxu0 %v6473
      %v7762 = vpop.f32.mrf.mxu0
      %v7763 = vadd.f32 %v7594, %v7762
      %v7764 = vpop.f32.mrf.mxu0
      %v7765 = vadd.f32 %v7596, %v7764
      %7766 = vmatmul.bf16.gmra.mxu0 %v6482
      %v7767 = vpop.f32.mrf.mxu0
      %v7768 = vadd.f32 %v7599, %v7767
      %v7769 = vpop.f32.mrf.mxu0
      %v7770 = vadd.f32 %v7601, %v7769
      %7771 = vmatmul.bf16.gmra.mxu0 %v6491
      %v7772 = vpop.f32.mrf.mxu0
      %v7773 = vadd.f32 %v7604, %v7772
      %v7774 = vpop.f32.mrf.mxu0
      %v7775 = vadd.f32 %v7606, %v7774
      %7776 = vmatmul.bf16.gmra.mxu0 %v6500
      %v7777 = vpop.f32.mrf.mxu0
      %v7778 = vadd.f32 %v7609, %v7777
      %v7779 = vpop.f32.mrf.mxu0
      %v7780 = vadd.f32 %v7611, %v7779
      %7781 = vmatmul.bf16.gmra.mxu0 %v6509
      %v7782 = vpop.f32.mrf.mxu0
      %v7783 = vadd.f32 %v7614, %v7782
      %v7784 = vpop.f32.mrf.mxu0
      %v7785 = vadd.f32 %v7616, %v7784
      %7786 = vmatmul.bf16.gmra.mxu0 %v6518
      %v7787 = vpop.f32.mrf.mxu0
      %v7788 = vadd.f32 %v7619, %v7787
      %v7789 = vpop.f32.mrf.mxu0
      %v7790 = vadd.f32 %v7621, %v7789
      %7791 = vmatmul.bf16.gmra.mxu0 %v6527
      %v7792 = vpop.f32.mrf.mxu0
      %v7793 = vadd.f32 %v7624, %v7792
      %v7794 = vpop.f32.mrf.mxu0
      %v7795 = vadd.f32 %v7626, %v7794
      %7796 = vmatmul.bf16.gmra.mxu0 %v6536
      %v7797 = vpop.f32.mrf.mxu0
      %v7798 = vadd.f32 %v7629, %v7797
      %v7799 = vpop.f32.mrf.mxu0
      %v7800 = vadd.f32 %v7631, %v7799
      %7801 = vmatmul.bf16.gmra.mxu0 %v6545
      %v7802 = vpop.f32.mrf.mxu0
      %v7803 = vadd.f32 %v7634, %v7802
      %v7804 = vpop.f32.mrf.mxu0
      %v7805 = vadd.f32 %v7636, %v7804
      %7806 = vmatmul.bf16.gmra.mxu0 %v6554
      %v7807 = vpop.f32.mrf.mxu0
      %v7808 = vadd.f32 %v7639, %v7807
      %v7809 = vpop.f32.mrf.mxu0
      %v7810 = vadd.f32 %v7641, %v7809
      %7811 = vmatmul.bf16.gmra.mxu0 %v6563
      %v7812 = vpop.f32.mrf.mxu0
      %v7813 = vadd.f32 %v7644, %v7812
      %v7814 = vpop.f32.mrf.mxu0
      %v7815 = vadd.f32 %v7646, %v7814
      %7816 = vmatmul.bf16.gmra.mxu0 %v6572
      %v7817 = vpop.f32.mrf.mxu0
      %v7818 = vadd.f32 %v7649, %v7817
      %v7819 = vpop.f32.mrf.mxu0
      %v7820 = vadd.f32 %v7651, %v7819
      %7821 = vmatmul.bf16.gmra.mxu0 %v6581
      %v7822 = vpop.f32.mrf.mxu0
      %v7823 = vadd.f32 %v7654, %v7822
      %v7824 = vpop.f32.mrf.mxu0
      %v7825 = vadd.f32 %v7656, %v7824
      %7826 = vmatmul.bf16.gmra.mxu0 %v6590
      %v7827 = vpop.f32.mrf.mxu0
      %v7828 = vadd.f32 %v7659, %v7827
      %v7829 = vpop.f32.mrf.mxu0
      %v7830 = vadd.f32 %v7661, %v7829
      %7831 = vmatmul.bf16.gmra.mxu0 %v6599
      %v7832 = vpop.f32.mrf.mxu0
      %v7833 = vadd.f32 %v7664, %v7832
      %v7834 = vpop.f32.mrf.mxu0
      %v7835 = vadd.f32 %v7666, %v7834
      %7836 = vmatmul.bf16.gmra.mxu0 %v6608
      %v7837 = vpop.f32.mrf.mxu0
      %v7838 = vadd.f32 %v7669, %v7837
      %v7839 = vpop.f32.mrf.mxu0
      %v7840 = vadd.f32 %v7671, %v7839
      %7841 = vdwg.mxu0
      %7842 = vmatpush.bf16.msra.mxu0 %v7222
      %7843 = vmatpush.bf16.msra.mxu0 %v7221
      %7844 = vmatpush.bf16.msra.mxu0 %v7220
      %7845 = vmatpush.bf16.msra.mxu0 %v7219
      %7846 = vmatpush.bf16.msra.mxu0 %v7218
      %7847 = vmatpush.bf16.msra.mxu0 %v7217
      %7848 = vmatpush.bf16.msra.mxu0 %v7216
      %7849 = vmatpush.bf16.msra.mxu0 %v7215
      %7850 = vmatmul.bf16.gmra.mxu0 %v6330
      %v7851 = vpop.f32.mrf.mxu0
      %v7852 = vadd.f32 %v7683, %v7851
      %v7853 = vpop.f32.mrf.mxu0
      %v7854 = vadd.f32 %v7685, %v7853
      %7855 = vmatmul.bf16.gmra.mxu0 %v6339
      %v7856 = vpop.f32.mrf.mxu0
      %v7857 = vadd.f32 %v7688, %v7856
      %v7858 = vpop.f32.mrf.mxu0
      %v7859 = vadd.f32 %v7690, %v7858
      %7860 = vmatmul.bf16.gmra.mxu0 %v6348
      %v7861 = vpop.f32.mrf.mxu0
      %v7862 = vadd.f32 %v7693, %v7861
      %v7863 = vpop.f32.mrf.mxu0
      %v7864 = vadd.f32 %v7695, %v7863
      %7865 = vmatmul.bf16.gmra.mxu0 %v6357
      %v7866 = vpop.f32.mrf.mxu0
      %v7867 = vadd.f32 %v7698, %v7866
      %v7868 = vpop.f32.mrf.mxu0
      %v7869 = vadd.f32 %v7700, %v7868
      %7870 = vmatmul.bf16.gmra.mxu0 %v6366
      %v7871 = vpop.f32.mrf.mxu0
      %v7872 = vadd.f32 %v7703, %v7871
      %v7873 = vpop.f32.mrf.mxu0
      %v7874 = vadd.f32 %v7705, %v7873
      %7875 = vmatmul.bf16.gmra.mxu0 %v6375
      %v7876 = vpop.f32.mrf.mxu0
      %v7877 = vadd.f32 %v7708, %v7876
      %v7878 = vpop.f32.mrf.mxu0
      %v7879 = vadd.f32 %v7710, %v7878
      %7880 = vmatmul.bf16.gmra.mxu0 %v6384
      %v7881 = vpop.f32.mrf.mxu0
      %v7882 = vadd.f32 %v7713, %v7881
      %v7883 = vpop.f32.mrf.mxu0
      %v7884 = vadd.f32 %v7715, %v7883
      %7885 = vmatmul.bf16.gmra.mxu0 %v6393
      %v7886 = vpop.f32.mrf.mxu0
      %v7887 = vadd.f32 %v7718, %v7886
      %v7888 = vpop.f32.mrf.mxu0
      %v7889 = vadd.f32 %v7720, %v7888
      %7890 = vmatmul.bf16.gmra.mxu0 %v6402
      %v7891 = vpop.f32.mrf.mxu0
      %v7892 = vadd.f32 %v7723, %v7891
      %v7893 = vpop.f32.mrf.mxu0
      %v7894 = vadd.f32 %v7725, %v7893
      %7895 = vmatmul.bf16.gmra.mxu0 %v6411
      %v7896 = vpop.f32.mrf.mxu0
      %v7897 = vadd.f32 %v7728, %v7896
      %v7898 = vpop.f32.mrf.mxu0
      %v7899 = vadd.f32 %v7730, %v7898
      %7900 = vmatmul.bf16.gmra.mxu0 %v6420
      %v7901 = vpop.f32.mrf.mxu0
      %v7902 = vadd.f32 %v7733, %v7901
      %v7903 = vpop.f32.mrf.mxu0
      %v7904 = vadd.f32 %v7735, %v7903
      %7905 = vmatmul.bf16.gmra.mxu0 %v6429
      %v7906 = vpop.f32.mrf.mxu0
      %v7907 = vadd.f32 %v7738, %v7906
      %v7908 = vpop.f32.mrf.mxu0
      %v7909 = vadd.f32 %v7740, %v7908
      %7910 = vmatmul.bf16.gmra.mxu0 %v6438
      %v7911 = vpop.f32.mrf.mxu0
      %v7912 = vadd.f32 %v7743, %v7911
      %v7913 = vpop.f32.mrf.mxu0
      %v7914 = vadd.f32 %v7745, %v7913
      %7915 = vmatmul.bf16.gmra.mxu0 %v6447
      %v7916 = vpop.f32.mrf.mxu0
      %v7917 = vadd.f32 %v7748, %v7916
      %v7918 = vpop.f32.mrf.mxu0
      %v7919 = vadd.f32 %v7750, %v7918
      %7920 = vmatmul.bf16.gmra.mxu0 %v6456
      %v7921 = vpop.f32.mrf.mxu0
      %v7922 = vadd.f32 %v7753, %v7921
      %v7923 = vpop.f32.mrf.mxu0
      %v7924 = vadd.f32 %v7755, %v7923
      %7925 = vmatmul.bf16.gmra.mxu0 %v6465
      %v7926 = vpop.f32.mrf.mxu0
      %v7927 = vadd.f32 %v7758, %v7926
      %v7928 = vpop.f32.mrf.mxu0
      %v7929 = vadd.f32 %v7760, %v7928
      %7930 = vmatmul.bf16.gmra.mxu0 %v6474
      %v7931 = vpop.f32.mrf.mxu0
      %v7932 = vadd.f32 %v7763, %v7931
      %v7933 = vpop.f32.mrf.mxu0
      %v7934 = vadd.f32 %v7765, %v7933
      %7935 = vmatmul.bf16.gmra.mxu0 %v6483
      %v7936 = vpop.f32.mrf.mxu0
      %v7937 = vadd.f32 %v7768, %v7936
      %v7938 = vpop.f32.mrf.mxu0
      %v7939 = vadd.f32 %v7770, %v7938
      %7940 = vmatmul.bf16.gmra.mxu0 %v6492
      %v7941 = vpop.f32.mrf.mxu0
      %v7942 = vadd.f32 %v7773, %v7941
      %v7943 = vpop.f32.mrf.mxu0
      %v7944 = vadd.f32 %v7775, %v7943
      %7945 = vmatmul.bf16.gmra.mxu0 %v6501
      %v7946 = vpop.f32.mrf.mxu0
      %v7947 = vadd.f32 %v7778, %v7946
      %v7948 = vpop.f32.mrf.mxu0
      %v7949 = vadd.f32 %v7780, %v7948
      %7950 = vmatmul.bf16.gmra.mxu0 %v6510
      %v7951 = vpop.f32.mrf.mxu0
      %v7952 = vadd.f32 %v7783, %v7951
      %v7953 = vpop.f32.mrf.mxu0
      %v7954 = vadd.f32 %v7785, %v7953
      %7955 = vmatmul.bf16.gmra.mxu0 %v6519
      %v7956 = vpop.f32.mrf.mxu0
      %v7957 = vadd.f32 %v7788, %v7956
      %v7958 = vpop.f32.mrf.mxu0
      %v7959 = vadd.f32 %v7790, %v7958
      %7960 = vmatmul.bf16.gmra.mxu0 %v6528
      %v7961 = vpop.f32.mrf.mxu0
      %v7962 = vadd.f32 %v7793, %v7961
      %v7963 = vpop.f32.mrf.mxu0
      %v7964 = vadd.f32 %v7795, %v7963
      %7965 = vmatmul.bf16.gmra.mxu0 %v6537
      %v7966 = vpop.f32.mrf.mxu0
      %v7967 = vadd.f32 %v7798, %v7966
      %v7968 = vpop.f32.mrf.mxu0
      %v7969 = vadd.f32 %v7800, %v7968
      %7970 = vmatmul.bf16.gmra.mxu0 %v6546
      %v7971 = vpop.f32.mrf.mxu0
      %v7972 = vadd.f32 %v7803, %v7971
      %v7973 = vpop.f32.mrf.mxu0
      %v7974 = vadd.f32 %v7805, %v7973
      %7975 = vmatmul.bf16.gmra.mxu0 %v6555
      %v7976 = vpop.f32.mrf.mxu0
      %v7977 = vadd.f32 %v7808, %v7976
      %v7978 = vpop.f32.mrf.mxu0
      %v7979 = vadd.f32 %v7810, %v7978
      %7980 = vmatmul.bf16.gmra.mxu0 %v6564
      %v7981 = vpop.f32.mrf.mxu0
      %v7982 = vadd.f32 %v7813, %v7981
      %v7983 = vpop.f32.mrf.mxu0
      %v7984 = vadd.f32 %v7815, %v7983
      %7985 = vmatmul.bf16.gmra.mxu0 %v6573
      %v7986 = vpop.f32.mrf.mxu0
      %v7987 = vadd.f32 %v7818, %v7986
      %v7988 = vpop.f32.mrf.mxu0
      %v7989 = vadd.f32 %v7820, %v7988
      %7990 = vmatmul.bf16.gmra.mxu0 %v6582
      %v7991 = vpop.f32.mrf.mxu0
      %v7992 = vadd.f32 %v7823, %v7991
      %v7993 = vpop.f32.mrf.mxu0
      %v7994 = vadd.f32 %v7825, %v7993
      %7995 = vmatmul.bf16.gmra.mxu0 %v6591
      %v7996 = vpop.f32.mrf.mxu0
      %v7997 = vadd.f32 %v7828, %v7996
      %v7998 = vpop.f32.mrf.mxu0
      %v7999 = vadd.f32 %v7830, %v7998
      %8000 = vmatmul.bf16.gmra.mxu0 %v6600
      %v8001 = vpop.f32.mrf.mxu0
      %v8002 = vadd.f32 %v7833, %v8001
      %v8003 = vpop.f32.mrf.mxu0
      %v8004 = vadd.f32 %v7835, %v8003
      %8005 = vmatmul.bf16.gmra.mxu0 %v6609
      %v8006 = vpop.f32.mrf.mxu0
      %v8007 = vadd.f32 %v7838, %v8006
      %v8008 = vpop.f32.mrf.mxu0
      %v8009 = vadd.f32 %v7840, %v8008
      %8010 = vdwg.mxu0
      %8011 = vmatpush.bf16.msra.mxu0 %v7230
      %8012 = vmatpush.bf16.msra.mxu0 %v7229
      %8013 = vmatpush.bf16.msra.mxu0 %v7228
      %8014 = vmatpush.bf16.msra.mxu0 %v7227
      %8015 = vmatpush.bf16.msra.mxu0 %v7226
      %8016 = vmatpush.bf16.msra.mxu0 %v7225
      %8017 = vmatpush.bf16.msra.mxu0 %v7224
      %8018 = vmatpush.bf16.msra.mxu0 %v7223
      %8019 = vmatmul.bf16.gmra.mxu0 %v6331
      %v8020 = vpop.f32.mrf.mxu0
      %v8021 = vadd.f32 %v7852, %v8020
      %v8022 = vpop.f32.mrf.mxu0
      %v8023 = vadd.f32 %v7854, %v8022
      %8024 = vmatmul.bf16.gmra.mxu0 %v6340
      %v8025 = vpop.f32.mrf.mxu0
      %v8026 = vadd.f32 %v7857, %v8025
      %v8027 = vpop.f32.mrf.mxu0
      %v8028 = vadd.f32 %v7859, %v8027
      %8029 = vmatmul.bf16.gmra.mxu0 %v6349
      %v8030 = vpop.f32.mrf.mxu0
      %v8031 = vadd.f32 %v7862, %v8030
      %v8032 = vpop.f32.mrf.mxu0
      %v8033 = vadd.f32 %v7864, %v8032
      %8034 = vmatmul.bf16.gmra.mxu0 %v6358
      %v8035 = vpop.f32.mrf.mxu0
      %v8036 = vadd.f32 %v7867, %v8035
      %v8037 = vpop.f32.mrf.mxu0
      %v8038 = vadd.f32 %v7869, %v8037
      %8039 = vmatmul.bf16.gmra.mxu0 %v6367
      %v8040 = vpop.f32.mrf.mxu0
      %v8041 = vadd.f32 %v7872, %v8040
      %v8042 = vpop.f32.mrf.mxu0
      %v8043 = vadd.f32 %v7874, %v8042
      %8044 = vmatmul.bf16.gmra.mxu0 %v6376
      %v8045 = vpop.f32.mrf.mxu0
      %v8046 = vadd.f32 %v7877, %v8045
      %v8047 = vpop.f32.mrf.mxu0
      %v8048 = vadd.f32 %v7879, %v8047
      %8049 = vmatmul.bf16.gmra.mxu0 %v6385
      %v8050 = vpop.f32.mrf.mxu0
      %v8051 = vadd.f32 %v7882, %v8050
      %v8052 = vpop.f32.mrf.mxu0
      %v8053 = vadd.f32 %v7884, %v8052
      %8054 = vmatmul.bf16.gmra.mxu0 %v6394
      %v8055 = vpop.f32.mrf.mxu0
      %v8056 = vadd.f32 %v7887, %v8055
      %v8057 = vpop.f32.mrf.mxu0
      %v8058 = vadd.f32 %v7889, %v8057
      %8059 = vmatmul.bf16.gmra.mxu0 %v6403
      %v8060 = vpop.f32.mrf.mxu0
      %v8061 = vadd.f32 %v7892, %v8060
      %v8062 = vpop.f32.mrf.mxu0
      %v8063 = vadd.f32 %v7894, %v8062
      %8064 = vmatmul.bf16.gmra.mxu0 %v6412
      %v8065 = vpop.f32.mrf.mxu0
      %v8066 = vadd.f32 %v7897, %v8065
      %v8067 = vpop.f32.mrf.mxu0
      %v8068 = vadd.f32 %v7899, %v8067
      %8069 = vmatmul.bf16.gmra.mxu0 %v6421
      %v8070 = vpop.f32.mrf.mxu0
      %v8071 = vadd.f32 %v7902, %v8070
      %v8072 = vpop.f32.mrf.mxu0
      %v8073 = vadd.f32 %v7904, %v8072
      %8074 = vmatmul.bf16.gmra.mxu0 %v6430
      %v8075 = vpop.f32.mrf.mxu0
      %v8076 = vadd.f32 %v7907, %v8075
      %v8077 = vpop.f32.mrf.mxu0
      %v8078 = vadd.f32 %v7909, %v8077
      %8079 = vmatmul.bf16.gmra.mxu0 %v6439
      %v8080 = vpop.f32.mrf.mxu0
      %v8081 = vadd.f32 %v7912, %v8080
      %v8082 = vpop.f32.mrf.mxu0
      %v8083 = vadd.f32 %v7914, %v8082
      %8084 = vmatmul.bf16.gmra.mxu0 %v6448
      %v8085 = vpop.f32.mrf.mxu0
      %v8086 = vadd.f32 %v7917, %v8085
      %v8087 = vpop.f32.mrf.mxu0
      %v8088 = vadd.f32 %v7919, %v8087
      %8089 = vmatmul.bf16.gmra.mxu0 %v6457
      %v8090 = vpop.f32.mrf.mxu0
      %v8091 = vadd.f32 %v7922, %v8090
      %v8092 = vpop.f32.mrf.mxu0
      %v8093 = vadd.f32 %v7924, %v8092
      %8094 = vmatmul.bf16.gmra.mxu0 %v6466
      %v8095 = vpop.f32.mrf.mxu0
      %v8096 = vadd.f32 %v7927, %v8095
      %v8097 = vpop.f32.mrf.mxu0
      %v8098 = vadd.f32 %v7929, %v8097
      %8099 = vmatmul.bf16.gmra.mxu0 %v6475
      %v8100 = vpop.f32.mrf.mxu0
      %v8101 = vadd.f32 %v7932, %v8100
      %v8102 = vpop.f32.mrf.mxu0
      %v8103 = vadd.f32 %v7934, %v8102
      %8104 = vmatmul.bf16.gmra.mxu0 %v6484
      %v8105 = vpop.f32.mrf.mxu0
      %v8106 = vadd.f32 %v7937, %v8105
      %v8107 = vpop.f32.mrf.mxu0
      %v8108 = vadd.f32 %v7939, %v8107
      %8109 = vmatmul.bf16.gmra.mxu0 %v6493
      %v8110 = vpop.f32.mrf.mxu0
      %v8111 = vadd.f32 %v7942, %v8110
      %v8112 = vpop.f32.mrf.mxu0
      %v8113 = vadd.f32 %v7944, %v8112
      %8114 = vmatmul.bf16.gmra.mxu0 %v6502
      %v8115 = vpop.f32.mrf.mxu0
      %v8116 = vadd.f32 %v7947, %v8115
      %v8117 = vpop.f32.mrf.mxu0
      %v8118 = vadd.f32 %v7949, %v8117
      %8119 = vmatmul.bf16.gmra.mxu0 %v6511
      %v8120 = vpop.f32.mrf.mxu0
      %v8121 = vadd.f32 %v7952, %v8120
      %v8122 = vpop.f32.mrf.mxu0
      %v8123 = vadd.f32 %v7954, %v8122
      %8124 = vmatmul.bf16.gmra.mxu0 %v6520
      %v8125 = vpop.f32.mrf.mxu0
      %v8126 = vadd.f32 %v7957, %v8125
      %v8127 = vpop.f32.mrf.mxu0
      %v8128 = vadd.f32 %v7959, %v8127
      %8129 = vmatmul.bf16.gmra.mxu0 %v6529
      %v8130 = vpop.f32.mrf.mxu0
      %v8131 = vadd.f32 %v7962, %v8130
      %v8132 = vpop.f32.mrf.mxu0
      %v8133 = vadd.f32 %v7964, %v8132
      %8134 = vmatmul.bf16.gmra.mxu0 %v6538
      %v8135 = vpop.f32.mrf.mxu0
      %v8136 = vadd.f32 %v7967, %v8135
      %v8137 = vpop.f32.mrf.mxu0
      %v8138 = vadd.f32 %v7969, %v8137
      %8139 = vmatmul.bf16.gmra.mxu0 %v6547
      %v8140 = vpop.f32.mrf.mxu0
      %v8141 = vadd.f32 %v7972, %v8140
      %v8142 = vpop.f32.mrf.mxu0
      %v8143 = vadd.f32 %v7974, %v8142
      %8144 = vmatmul.bf16.gmra.mxu0 %v6556
      %v8145 = vpop.f32.mrf.mxu0
      %v8146 = vadd.f32 %v7977, %v8145
      %v8147 = vpop.f32.mrf.mxu0
      %v8148 = vadd.f32 %v7979, %v8147
      %8149 = vmatmul.bf16.gmra.mxu0 %v6565
      %v8150 = vpop.f32.mrf.mxu0
      %v8151 = vadd.f32 %v7982, %v8150
      %v8152 = vpop.f32.mrf.mxu0
      %v8153 = vadd.f32 %v7984, %v8152
      %8154 = vmatmul.bf16.gmra.mxu0 %v6574
      %v8155 = vpop.f32.mrf.mxu0
      %v8156 = vadd.f32 %v7987, %v8155
      %v8157 = vpop.f32.mrf.mxu0
      %v8158 = vadd.f32 %v7989, %v8157
      %8159 = vmatmul.bf16.gmra.mxu0 %v6583
      %v8160 = vpop.f32.mrf.mxu0
      %v8161 = vadd.f32 %v7992, %v8160
      %v8162 = vpop.f32.mrf.mxu0
      %v8163 = vadd.f32 %v7994, %v8162
      %8164 = vmatmul.bf16.gmra.mxu0 %v6592
      %v8165 = vpop.f32.mrf.mxu0
      %v8166 = vadd.f32 %v7997, %v8165
      %v8167 = vpop.f32.mrf.mxu0
      %v8168 = vadd.f32 %v7999, %v8167
      %8169 = vmatmul.bf16.gmra.mxu0 %v6601
      %v8170 = vpop.f32.mrf.mxu0
      %v8171 = vadd.f32 %v8002, %v8170
      %v8172 = vpop.f32.mrf.mxu0
      %v8173 = vadd.f32 %v8004, %v8172
      %8174 = vmatmul.bf16.gmra.mxu0 %v6610
      %v8175 = vpop.f32.mrf.mxu0
      %v8176 = vadd.f32 %v8007, %v8175
      %v8177 = vpop.f32.mrf.mxu0
      %v8178 = vadd.f32 %v8009, %v8177
      %8179 = vdwg.mxu0
      %8180 = vmatpush.bf16.msra.mxu0 %v7238
      %8181 = vmatpush.bf16.msra.mxu0 %v7237
      %8182 = vmatpush.bf16.msra.mxu0 %v7236
      %8183 = vmatpush.bf16.msra.mxu0 %v7235
      %8184 = vmatpush.bf16.msra.mxu0 %v7234
      %8185 = vmatpush.bf16.msra.mxu0 %v7233
      %8186 = vmatpush.bf16.msra.mxu0 %v7232
      %8187 = vmatpush.bf16.msra.mxu0 %v7231
      %8188 = vmatmul.bf16.gmra.mxu0 %v6332
      %v8189 = vpop.f32.mrf.mxu0
      %v8190 = vadd.f32 %v8021, %v8189
      %v8191 = vpop.f32.mrf.mxu0
      %v8192 = vadd.f32 %v8023, %v8191
      %8193 = vmatmul.bf16.gmra.mxu0 %v6341
      %v8194 = vpop.f32.mrf.mxu0
      %v8195 = vadd.f32 %v8026, %v8194
      %v8196 = vpop.f32.mrf.mxu0
      %v8197 = vadd.f32 %v8028, %v8196
      %8198 = vmatmul.bf16.gmra.mxu0 %v6350
      %v8199 = vpop.f32.mrf.mxu0
      %v8200 = vadd.f32 %v8031, %v8199
      %v8201 = vpop.f32.mrf.mxu0
      %v8202 = vadd.f32 %v8033, %v8201
      %8203 = vmatmul.bf16.gmra.mxu0 %v6359
      %v8204 = vpop.f32.mrf.mxu0
      %v8205 = vadd.f32 %v8036, %v8204
      %v8206 = vpop.f32.mrf.mxu0
      %v8207 = vadd.f32 %v8038, %v8206
      %8208 = vmatmul.bf16.gmra.mxu0 %v6368
      %v8209 = vpop.f32.mrf.mxu0
      %v8210 = vadd.f32 %v8041, %v8209
      %v8211 = vpop.f32.mrf.mxu0
      %v8212 = vadd.f32 %v8043, %v8211
      %8213 = vmatmul.bf16.gmra.mxu0 %v6377
      %v8214 = vpop.f32.mrf.mxu0
      %v8215 = vadd.f32 %v8046, %v8214
      %v8216 = vpop.f32.mrf.mxu0
      %v8217 = vadd.f32 %v8048, %v8216
      %8218 = vmatmul.bf16.gmra.mxu0 %v6386
      %v8219 = vpop.f32.mrf.mxu0
      %v8220 = vadd.f32 %v8051, %v8219
      %v8221 = vpop.f32.mrf.mxu0
      %v8222 = vadd.f32 %v8053, %v8221
      %8223 = vmatmul.bf16.gmra.mxu0 %v6395
      %v8224 = vpop.f32.mrf.mxu0
      %v8225 = vadd.f32 %v8056, %v8224
      %v8226 = vpop.f32.mrf.mxu0
      %v8227 = vadd.f32 %v8058, %v8226
      %8228 = vmatmul.bf16.gmra.mxu0 %v6404
      %v8229 = vpop.f32.mrf.mxu0
      %v8230 = vadd.f32 %v8061, %v8229
      %v8231 = vpop.f32.mrf.mxu0
      %v8232 = vadd.f32 %v8063, %v8231
      %8233 = vmatmul.bf16.gmra.mxu0 %v6413
      %v8234 = vpop.f32.mrf.mxu0
      %v8235 = vadd.f32 %v8066, %v8234
      %v8236 = vpop.f32.mrf.mxu0
      %v8237 = vadd.f32 %v8068, %v8236
      %8238 = vmatmul.bf16.gmra.mxu0 %v6422
      %v8239 = vpop.f32.mrf.mxu0
      %v8240 = vadd.f32 %v8071, %v8239
      %v8241 = vpop.f32.mrf.mxu0
      %v8242 = vadd.f32 %v8073, %v8241
      %8243 = vmatmul.bf16.gmra.mxu0 %v6431
      %v8244 = vpop.f32.mrf.mxu0
      %v8245 = vadd.f32 %v8076, %v8244
      %v8246 = vpop.f32.mrf.mxu0
      %v8247 = vadd.f32 %v8078, %v8246
      %8248 = vmatmul.bf16.gmra.mxu0 %v6440
      %v8249 = vpop.f32.mrf.mxu0
      %v8250 = vadd.f32 %v8081, %v8249
      %v8251 = vpop.f32.mrf.mxu0
      %v8252 = vadd.f32 %v8083, %v8251
      %8253 = vmatmul.bf16.gmra.mxu0 %v6449
      %v8254 = vpop.f32.mrf.mxu0
      %v8255 = vadd.f32 %v8086, %v8254
      %v8256 = vpop.f32.mrf.mxu0
      %v8257 = vadd.f32 %v8088, %v8256
      %8258 = vmatmul.bf16.gmra.mxu0 %v6458
      %v8259 = vpop.f32.mrf.mxu0
      %v8260 = vadd.f32 %v8091, %v8259
      %v8261 = vpop.f32.mrf.mxu0
      %v8262 = vadd.f32 %v8093, %v8261
      %8263 = vmatmul.bf16.gmra.mxu0 %v6467
      %v8264 = vpop.f32.mrf.mxu0
      %v8265 = vadd.f32 %v8096, %v8264
      %v8266 = vpop.f32.mrf.mxu0
      %v8267 = vadd.f32 %v8098, %v8266
      %8268 = vmatmul.bf16.gmra.mxu0 %v6476
      %v8269 = vpop.f32.mrf.mxu0
      %v8270 = vadd.f32 %v8101, %v8269
      %v8271 = vpop.f32.mrf.mxu0
      %v8272 = vadd.f32 %v8103, %v8271
      %8273 = vmatmul.bf16.gmra.mxu0 %v6485
      %v8274 = vpop.f32.mrf.mxu0
      %v8275 = vadd.f32 %v8106, %v8274
      %v8276 = vpop.f32.mrf.mxu0
      %v8277 = vadd.f32 %v8108, %v8276
      %8278 = vmatmul.bf16.gmra.mxu0 %v6494
      %v8279 = vpop.f32.mrf.mxu0
      %v8280 = vadd.f32 %v8111, %v8279
      %v8281 = vpop.f32.mrf.mxu0
      %v8282 = vadd.f32 %v8113, %v8281
      %8283 = vmatmul.bf16.gmra.mxu0 %v6503
      %v8284 = vpop.f32.mrf.mxu0
      %v8285 = vadd.f32 %v8116, %v8284
      %v8286 = vpop.f32.mrf.mxu0
      %v8287 = vadd.f32 %v8118, %v8286
      %8288 = vmatmul.bf16.gmra.mxu0 %v6512
      %v8289 = vpop.f32.mrf.mxu0
      %v8290 = vadd.f32 %v8121, %v8289
      %v8291 = vpop.f32.mrf.mxu0
      %v8292 = vadd.f32 %v8123, %v8291
      %8293 = vmatmul.bf16.gmra.mxu0 %v6521
      %v8294 = vpop.f32.mrf.mxu0
      %v8295 = vadd.f32 %v8126, %v8294
      %v8296 = vpop.f32.mrf.mxu0
      %v8297 = vadd.f32 %v8128, %v8296
      %8298 = vmatmul.bf16.gmra.mxu0 %v6530
      %v8299 = vpop.f32.mrf.mxu0
      %v8300 = vadd.f32 %v8131, %v8299
      %v8301 = vpop.f32.mrf.mxu0
      %v8302 = vadd.f32 %v8133, %v8301
      %8303 = vmatmul.bf16.gmra.mxu0 %v6539
      %v8304 = vpop.f32.mrf.mxu0
      %v8305 = vadd.f32 %v8136, %v8304
      %v8306 = vpop.f32.mrf.mxu0
      %v8307 = vadd.f32 %v8138, %v8306
      %8308 = vmatmul.bf16.gmra.mxu0 %v6548
      %v8309 = vpop.f32.mrf.mxu0
      %v8310 = vadd.f32 %v8141, %v8309
      %v8311 = vpop.f32.mrf.mxu0
      %v8312 = vadd.f32 %v8143, %v8311
      %8313 = vmatmul.bf16.gmra.mxu0 %v6557
      %v8314 = vpop.f32.mrf.mxu0
      %v8315 = vadd.f32 %v8146, %v8314
      %v8316 = vpop.f32.mrf.mxu0
      %v8317 = vadd.f32 %v8148, %v8316
      %8318 = vmatmul.bf16.gmra.mxu0 %v6566
      %v8319 = vpop.f32.mrf.mxu0
      %v8320 = vadd.f32 %v8151, %v8319
      %v8321 = vpop.f32.mrf.mxu0
      %v8322 = vadd.f32 %v8153, %v8321
      %8323 = vmatmul.bf16.gmra.mxu0 %v6575
      %v8324 = vpop.f32.mrf.mxu0
      %v8325 = vadd.f32 %v8156, %v8324
      %v8326 = vpop.f32.mrf.mxu0
      %v8327 = vadd.f32 %v8158, %v8326
      %8328 = vmatmul.bf16.gmra.mxu0 %v6584
      %v8329 = vpop.f32.mrf.mxu0
      %v8330 = vadd.f32 %v8161, %v8329
      %v8331 = vpop.f32.mrf.mxu0
      %v8332 = vadd.f32 %v8163, %v8331
      %8333 = vmatmul.bf16.gmra.mxu0 %v6593
      %v8334 = vpop.f32.mrf.mxu0
      %v8335 = vadd.f32 %v8166, %v8334
      %v8336 = vpop.f32.mrf.mxu0
      %v8337 = vadd.f32 %v8168, %v8336
      %8338 = vmatmul.bf16.gmra.mxu0 %v6602
      %v8339 = vpop.f32.mrf.mxu0
      %v8340 = vadd.f32 %v8171, %v8339
      %v8341 = vpop.f32.mrf.mxu0
      %v8342 = vadd.f32 %v8173, %v8341
      %8343 = vmatmul.bf16.gmra.mxu0 %v6611
      %v8344 = vpop.f32.mrf.mxu0
      %v8345 = vadd.f32 %v8176, %v8344
      %v8346 = vpop.f32.mrf.mxu0
      %v8347 = vadd.f32 %v8178, %v8346
      %8348 = vdwg.mxu0
      %8349 = vmatpush.bf16.msra.mxu0 %v7246
      %8350 = vmatpush.bf16.msra.mxu0 %v7245
      %8351 = vmatpush.bf16.msra.mxu0 %v7244
      %8352 = vmatpush.bf16.msra.mxu0 %v7243
      %8353 = vmatpush.bf16.msra.mxu0 %v7242
      %8354 = vmatpush.bf16.msra.mxu0 %v7241
      %8355 = vmatpush.bf16.msra.mxu0 %v7240
      %8356 = vmatpush.bf16.msra.mxu0 %v7239
      %8357 = vmatmul.bf16.gmra.mxu0 %v6333
      %v8358 = vpop.f32.mrf.mxu0
      %v8359 = vadd.f32 %v8190, %v8358
      %v8360 = vpop.f32.mrf.mxu0
      %v8361 = vadd.f32 %v8192, %v8360
      %8362 = vmatmul.bf16.gmra.mxu0 %v6342
      %v8363 = vpop.f32.mrf.mxu0
      %v8364 = vadd.f32 %v8195, %v8363
      %v8365 = vpop.f32.mrf.mxu0
      %v8366 = vadd.f32 %v8197, %v8365
      %8367 = vmatmul.bf16.gmra.mxu0 %v6351
      %v8368 = vpop.f32.mrf.mxu0
      %v8369 = vadd.f32 %v8200, %v8368
      %v8370 = vpop.f32.mrf.mxu0
      %v8371 = vadd.f32 %v8202, %v8370
      %8372 = vmatmul.bf16.gmra.mxu0 %v6360
      %v8373 = vpop.f32.mrf.mxu0
      %v8374 = vadd.f32 %v8205, %v8373
      %v8375 = vpop.f32.mrf.mxu0
      %v8376 = vadd.f32 %v8207, %v8375
      %8377 = vmatmul.bf16.gmra.mxu0 %v6369
      %v8378 = vpop.f32.mrf.mxu0
      %v8379 = vadd.f32 %v8210, %v8378
      %v8380 = vpop.f32.mrf.mxu0
      %v8381 = vadd.f32 %v8212, %v8380
      %8382 = vmatmul.bf16.gmra.mxu0 %v6378
      %v8383 = vpop.f32.mrf.mxu0
      %v8384 = vadd.f32 %v8215, %v8383
      %v8385 = vpop.f32.mrf.mxu0
      %v8386 = vadd.f32 %v8217, %v8385
      %8387 = vmatmul.bf16.gmra.mxu0 %v6387
      %v8388 = vpop.f32.mrf.mxu0
      %v8389 = vadd.f32 %v8220, %v8388
      %v8390 = vpop.f32.mrf.mxu0
      %v8391 = vadd.f32 %v8222, %v8390
      %8392 = vmatmul.bf16.gmra.mxu0 %v6396
      %v8393 = vpop.f32.mrf.mxu0
      %v8394 = vadd.f32 %v8225, %v8393
      %v8395 = vpop.f32.mrf.mxu0
      %v8396 = vadd.f32 %v8227, %v8395
      %8397 = vmatmul.bf16.gmra.mxu0 %v6405
      %v8398 = vpop.f32.mrf.mxu0
      %v8399 = vadd.f32 %v8230, %v8398
      %v8400 = vpop.f32.mrf.mxu0
      %v8401 = vadd.f32 %v8232, %v8400
      %8402 = vmatmul.bf16.gmra.mxu0 %v6414
      %v8403 = vpop.f32.mrf.mxu0
      %v8404 = vadd.f32 %v8235, %v8403
      %v8405 = vpop.f32.mrf.mxu0
      %v8406 = vadd.f32 %v8237, %v8405
      %8407 = vmatmul.bf16.gmra.mxu0 %v6423
      %v8408 = vpop.f32.mrf.mxu0
      %v8409 = vadd.f32 %v8240, %v8408
      %v8410 = vpop.f32.mrf.mxu0
      %v8411 = vadd.f32 %v8242, %v8410
      %8412 = vmatmul.bf16.gmra.mxu0 %v6432
      %v8413 = vpop.f32.mrf.mxu0
      %v8414 = vadd.f32 %v8245, %v8413
      %v8415 = vpop.f32.mrf.mxu0
      %v8416 = vadd.f32 %v8247, %v8415
      %8417 = vmatmul.bf16.gmra.mxu0 %v6441
      %v8418 = vpop.f32.mrf.mxu0
      %v8419 = vadd.f32 %v8250, %v8418
      %v8420 = vpop.f32.mrf.mxu0
      %v8421 = vadd.f32 %v8252, %v8420
      %8422 = vmatmul.bf16.gmra.mxu0 %v6450
      %v8423 = vpop.f32.mrf.mxu0
      %v8424 = vadd.f32 %v8255, %v8423
      %v8425 = vpop.f32.mrf.mxu0
      %v8426 = vadd.f32 %v8257, %v8425
      %8427 = vmatmul.bf16.gmra.mxu0 %v6459
      %v8428 = vpop.f32.mrf.mxu0
      %v8429 = vadd.f32 %v8260, %v8428
      %v8430 = vpop.f32.mrf.mxu0
      %v8431 = vadd.f32 %v8262, %v8430
      %8432 = vmatmul.bf16.gmra.mxu0 %v6468
      %v8433 = vpop.f32.mrf.mxu0
      %v8434 = vadd.f32 %v8265, %v8433
      %v8435 = vpop.f32.mrf.mxu0
      %v8436 = vadd.f32 %v8267, %v8435
      %8437 = vmatmul.bf16.gmra.mxu0 %v6477
      %v8438 = vpop.f32.mrf.mxu0
      %v8439 = vadd.f32 %v8270, %v8438
      %v8440 = vpop.f32.mrf.mxu0
      %v8441 = vadd.f32 %v8272, %v8440
      %8442 = vmatmul.bf16.gmra.mxu0 %v6486
      %v8443 = vpop.f32.mrf.mxu0
      %v8444 = vadd.f32 %v8275, %v8443
      %v8445 = vpop.f32.mrf.mxu0
      %v8446 = vadd.f32 %v8277, %v8445
      %8447 = vmatmul.bf16.gmra.mxu0 %v6495
      %v8448 = vpop.f32.mrf.mxu0
      %v8449 = vadd.f32 %v8280, %v8448
      %v8450 = vpop.f32.mrf.mxu0
      %v8451 = vadd.f32 %v8282, %v8450
      %8452 = vmatmul.bf16.gmra.mxu0 %v6504
      %v8453 = vpop.f32.mrf.mxu0
      %v8454 = vadd.f32 %v8285, %v8453
      %v8455 = vpop.f32.mrf.mxu0
      %v8456 = vadd.f32 %v8287, %v8455
      %8457 = vmatmul.bf16.gmra.mxu0 %v6513
      %v8458 = vpop.f32.mrf.mxu0
      %v8459 = vadd.f32 %v8290, %v8458
      %v8460 = vpop.f32.mrf.mxu0
      %v8461 = vadd.f32 %v8292, %v8460
      %8462 = vmatmul.bf16.gmra.mxu0 %v6522
      %v8463 = vpop.f32.mrf.mxu0
      %v8464 = vadd.f32 %v8295, %v8463
      %v8465 = vpop.f32.mrf.mxu0
      %v8466 = vadd.f32 %v8297, %v8465
      %8467 = vmatmul.bf16.gmra.mxu0 %v6531
      %v8468 = vpop.f32.mrf.mxu0
      %v8469 = vadd.f32 %v8300, %v8468
      %v8470 = vpop.f32.mrf.mxu0
      %v8471 = vadd.f32 %v8302, %v8470
      %8472 = vmatmul.bf16.gmra.mxu0 %v6540
      %v8473 = vpop.f32.mrf.mxu0
      %v8474 = vadd.f32 %v8305, %v8473
      %v8475 = vpop.f32.mrf.mxu0
      %v8476 = vadd.f32 %v8307, %v8475
      %8477 = vmatmul.bf16.gmra.mxu0 %v6549
      %v8478 = vpop.f32.mrf.mxu0
      %v8479 = vadd.f32 %v8310, %v8478
      %v8480 = vpop.f32.mrf.mxu0
      %v8481 = vadd.f32 %v8312, %v8480
      %8482 = vmatmul.bf16.gmra.mxu0 %v6558
      %v8483 = vpop.f32.mrf.mxu0
      %v8484 = vadd.f32 %v8315, %v8483
      %v8485 = vpop.f32.mrf.mxu0
      %v8486 = vadd.f32 %v8317, %v8485
      %8487 = vmatmul.bf16.gmra.mxu0 %v6567
      %v8488 = vpop.f32.mrf.mxu0
      %v8489 = vadd.f32 %v8320, %v8488
      %v8490 = vpop.f32.mrf.mxu0
      %v8491 = vadd.f32 %v8322, %v8490
      %8492 = vmatmul.bf16.gmra.mxu0 %v6576
      %v8493 = vpop.f32.mrf.mxu0
      %v8494 = vadd.f32 %v8325, %v8493
      %v8495 = vpop.f32.mrf.mxu0
      %v8496 = vadd.f32 %v8327, %v8495
      %8497 = vmatmul.bf16.gmra.mxu0 %v6585
      %v8498 = vpop.f32.mrf.mxu0
      %v8499 = vadd.f32 %v8330, %v8498
      %v8500 = vpop.f32.mrf.mxu0
      %v8501 = vadd.f32 %v8332, %v8500
      %8502 = vmatmul.bf16.gmra.mxu0 %v6594
      %v8503 = vpop.f32.mrf.mxu0
      %v8504 = vadd.f32 %v8335, %v8503
      %v8505 = vpop.f32.mrf.mxu0
      %v8506 = vadd.f32 %v8337, %v8505
      %8507 = vmatmul.bf16.gmra.mxu0 %v6603
      %v8508 = vpop.f32.mrf.mxu0
      %v8509 = vadd.f32 %v8340, %v8508
      %v8510 = vpop.f32.mrf.mxu0
      %v8511 = vadd.f32 %v8342, %v8510
      %8512 = vmatmul.bf16.gmra.mxu0 %v6612
      %v8513 = vpop.f32.mrf.mxu0
      %v8514 = vadd.f32 %v8345, %v8513
      %v8515 = vpop.f32.mrf.mxu0
      %v8516 = vadd.f32 %v8347, %v8515
      %8517 = vdwg.mxu0
      %8518 = vmatpush.bf16.msra.mxu0 %v7254
      %8519 = vmatpush.bf16.msra.mxu0 %v7253
      %8520 = vmatpush.bf16.msra.mxu0 %v7252
      %8521 = vmatpush.bf16.msra.mxu0 %v7251
      %8522 = vmatpush.bf16.msra.mxu0 %v7250
      %8523 = vmatpush.bf16.msra.mxu0 %v7249
      %8524 = vmatpush.bf16.msra.mxu0 %v7248
      %8525 = vmatpush.bf16.msra.mxu0 %v7247
      %8526 = vmatmul.bf16.gmra.mxu0 %v6334
      %v8527 = vpop.f32.mrf.mxu0
      %v8528 = vadd.f32 %v8359, %v8527
      %v8529 = vpop.f32.mrf.mxu0
      %v8530 = vadd.f32 %v8361, %v8529
      %8531 = vmatmul.bf16.gmra.mxu0 %v6343
      %v8532 = vpop.f32.mrf.mxu0
      %v8533 = vadd.f32 %v8364, %v8532
      %v8534 = vpop.f32.mrf.mxu0
      %v8535 = vadd.f32 %v8366, %v8534
      %8536 = vmatmul.bf16.gmra.mxu0 %v6352
      %v8537 = vpop.f32.mrf.mxu0
      %v8538 = vadd.f32 %v8369, %v8537
      %v8539 = vpop.f32.mrf.mxu0
      %v8540 = vadd.f32 %v8371, %v8539
      %8541 = vmatmul.bf16.gmra.mxu0 %v6361
      %v8542 = vpop.f32.mrf.mxu0
      %v8543 = vadd.f32 %v8374, %v8542
      %v8544 = vpop.f32.mrf.mxu0
      %v8545 = vadd.f32 %v8376, %v8544
      %8546 = vmatmul.bf16.gmra.mxu0 %v6370
      %v8547 = vpop.f32.mrf.mxu0
      %v8548 = vadd.f32 %v8379, %v8547
      %v8549 = vpop.f32.mrf.mxu0
      %v8550 = vadd.f32 %v8381, %v8549
      %8551 = vmatmul.bf16.gmra.mxu0 %v6379
      %v8552 = vpop.f32.mrf.mxu0
      %v8553 = vadd.f32 %v8384, %v8552
      %v8554 = vpop.f32.mrf.mxu0
      %v8555 = vadd.f32 %v8386, %v8554
      %8556 = vmatmul.bf16.gmra.mxu0 %v6388
      %v8557 = vpop.f32.mrf.mxu0
      %v8558 = vadd.f32 %v8389, %v8557
      %v8559 = vpop.f32.mrf.mxu0
      %v8560 = vadd.f32 %v8391, %v8559
      %8561 = vmatmul.bf16.gmra.mxu0 %v6397
      %v8562 = vpop.f32.mrf.mxu0
      %v8563 = vadd.f32 %v8394, %v8562
      %v8564 = vpop.f32.mrf.mxu0
      %v8565 = vadd.f32 %v8396, %v8564
      %8566 = vmatmul.bf16.gmra.mxu0 %v6406
      %v8567 = vpop.f32.mrf.mxu0
      %v8568 = vadd.f32 %v8399, %v8567
      %v8569 = vpop.f32.mrf.mxu0
      %v8570 = vadd.f32 %v8401, %v8569
      %8571 = vmatmul.bf16.gmra.mxu0 %v6415
      %v8572 = vpop.f32.mrf.mxu0
      %v8573 = vadd.f32 %v8404, %v8572
      %v8574 = vpop.f32.mrf.mxu0
      %v8575 = vadd.f32 %v8406, %v8574
      %8576 = vmatmul.bf16.gmra.mxu0 %v6424
      %v8577 = vpop.f32.mrf.mxu0
      %v8578 = vadd.f32 %v8409, %v8577
      %v8579 = vpop.f32.mrf.mxu0
      %v8580 = vadd.f32 %v8411, %v8579
      %8581 = vmatmul.bf16.gmra.mxu0 %v6433
      %v8582 = vpop.f32.mrf.mxu0
      %v8583 = vadd.f32 %v8414, %v8582
      %v8584 = vpop.f32.mrf.mxu0
      %v8585 = vadd.f32 %v8416, %v8584
      %8586 = vmatmul.bf16.gmra.mxu0 %v6442
      %v8587 = vpop.f32.mrf.mxu0
      %v8588 = vadd.f32 %v8419, %v8587
      %v8589 = vpop.f32.mrf.mxu0
      %v8590 = vadd.f32 %v8421, %v8589
      %8591 = vmatmul.bf16.gmra.mxu0 %v6451
      %v8592 = vpop.f32.mrf.mxu0
      %v8593 = vadd.f32 %v8424, %v8592
      %v8594 = vpop.f32.mrf.mxu0
      %v8595 = vadd.f32 %v8426, %v8594
      %8596 = vmatmul.bf16.gmra.mxu0 %v6460
      %v8597 = vpop.f32.mrf.mxu0
      %v8598 = vadd.f32 %v8429, %v8597
      %v8599 = vpop.f32.mrf.mxu0
      %v8600 = vadd.f32 %v8431, %v8599
      %8601 = vmatmul.bf16.gmra.mxu0 %v6469
      %v8602 = vpop.f32.mrf.mxu0
      %v8603 = vadd.f32 %v8434, %v8602
      %v8604 = vpop.f32.mrf.mxu0
      %v8605 = vadd.f32 %v8436, %v8604
      %8606 = vmatmul.bf16.gmra.mxu0 %v6478
      %v8607 = vpop.f32.mrf.mxu0
      %v8608 = vadd.f32 %v8439, %v8607
      %v8609 = vpop.f32.mrf.mxu0
      %v8610 = vadd.f32 %v8441, %v8609
      %8611 = vmatmul.bf16.gmra.mxu0 %v6487
      %v8612 = vpop.f32.mrf.mxu0
      %v8613 = vadd.f32 %v8444, %v8612
      %v8614 = vpop.f32.mrf.mxu0
      %v8615 = vadd.f32 %v8446, %v8614
      %8616 = vmatmul.bf16.gmra.mxu0 %v6496
      %v8617 = vpop.f32.mrf.mxu0
      %v8618 = vadd.f32 %v8449, %v8617
      %v8619 = vpop.f32.mrf.mxu0
      %v8620 = vadd.f32 %v8451, %v8619
      %8621 = vmatmul.bf16.gmra.mxu0 %v6505
      %v8622 = vpop.f32.mrf.mxu0
      %v8623 = vadd.f32 %v8454, %v8622
      %v8624 = vpop.f32.mrf.mxu0
      %v8625 = vadd.f32 %v8456, %v8624
      %8626 = vmatmul.bf16.gmra.mxu0 %v6514
      %v8627 = vpop.f32.mrf.mxu0
      %v8628 = vadd.f32 %v8459, %v8627
      %v8629 = vpop.f32.mrf.mxu0
      %v8630 = vadd.f32 %v8461, %v8629
      %8631 = vmatmul.bf16.gmra.mxu0 %v6523
      %v8632 = vpop.f32.mrf.mxu0
      %v8633 = vadd.f32 %v8464, %v8632
      %v8634 = vpop.f32.mrf.mxu0
      %v8635 = vadd.f32 %v8466, %v8634
      %8636 = vmatmul.bf16.gmra.mxu0 %v6532
      %v8637 = vpop.f32.mrf.mxu0
      %v8638 = vadd.f32 %v8469, %v8637
      %v8639 = vpop.f32.mrf.mxu0
      %v8640 = vadd.f32 %v8471, %v8639
      %8641 = vmatmul.bf16.gmra.mxu0 %v6541
      %v8642 = vpop.f32.mrf.mxu0
      %v8643 = vadd.f32 %v8474, %v8642
      %v8644 = vpop.f32.mrf.mxu0
      %v8645 = vadd.f32 %v8476, %v8644
      %8646 = vmatmul.bf16.gmra.mxu0 %v6550
      %v8647 = vpop.f32.mrf.mxu0
      %v8648 = vadd.f32 %v8479, %v8647
      %v8649 = vpop.f32.mrf.mxu0
      %v8650 = vadd.f32 %v8481, %v8649
      %8651 = vmatmul.bf16.gmra.mxu0 %v6559
      %v8652 = vpop.f32.mrf.mxu0
      %v8653 = vadd.f32 %v8484, %v8652
      %v8654 = vpop.f32.mrf.mxu0
      %v8655 = vadd.f32 %v8486, %v8654
      %8656 = vmatmul.bf16.gmra.mxu0 %v6568
      %v8657 = vpop.f32.mrf.mxu0
      %v8658 = vadd.f32 %v8489, %v8657
      %v8659 = vpop.f32.mrf.mxu0
      %v8660 = vadd.f32 %v8491, %v8659
      %8661 = vmatmul.bf16.gmra.mxu0 %v6577
      %v8662 = vpop.f32.mrf.mxu0
      %v8663 = vadd.f32 %v8494, %v8662
      %v8664 = vpop.f32.mrf.mxu0
      %v8665 = vadd.f32 %v8496, %v8664
      %8666 = vmatmul.bf16.gmra.mxu0 %v6586
      %v8667 = vpop.f32.mrf.mxu0
      %v8668 = vadd.f32 %v8499, %v8667
      %v8669 = vpop.f32.mrf.mxu0
      %v8670 = vadd.f32 %v8501, %v8669
      %8671 = vmatmul.bf16.gmra.mxu0 %v6595
      %v8672 = vpop.f32.mrf.mxu0
      %v8673 = vadd.f32 %v8504, %v8672
      %v8674 = vpop.f32.mrf.mxu0
      %v8675 = vadd.f32 %v8506, %v8674
      %8676 = vmatmul.bf16.gmra.mxu0 %v6604
      %v8677 = vpop.f32.mrf.mxu0
      %v8678 = vadd.f32 %v8509, %v8677
      %v8679 = vpop.f32.mrf.mxu0
      %v8680 = vadd.f32 %v8511, %v8679
      %8681 = vmatmul.bf16.gmra.mxu0 %v6613
      %v8682 = vpop.f32.mrf.mxu0
      %v8683 = vadd.f32 %v8514, %v8682
      %v8684 = vpop.f32.mrf.mxu0
      %v8685 = vadd.f32 %v8516, %v8684
      %8686 = vdwg.mxu0
      %8687 = vmatpush.bf16.msra.mxu0 %v7262
      %8688 = vmatpush.bf16.msra.mxu0 %v7261
      %8689 = vmatpush.bf16.msra.mxu0 %v7260
      %8690 = vmatpush.bf16.msra.mxu0 %v7259
      %8691 = vmatpush.bf16.msra.mxu0 %v7258
      %8692 = vmatpush.bf16.msra.mxu0 %v7257
      %8693 = vmatpush.bf16.msra.mxu0 %v7256
      %8694 = vmatpush.bf16.msra.mxu0 %v7255
      %8695 = vmatmul.bf16.gmra.mxu0 %v6335
      %v8696 = vpop.f32.mrf.mxu0
      %v8697 = vadd.f32 %v8528, %v8696
      %v8698 = vpop.f32.mrf.mxu0
      %v8699 = vadd.f32 %v8530, %v8698
      %8700 = vmatmul.bf16.gmra.mxu0 %v6344
      %v8701 = vpop.f32.mrf.mxu0
      %v8702 = vadd.f32 %v8533, %v8701
      %v8703 = vpop.f32.mrf.mxu0
      %v8704 = vadd.f32 %v8535, %v8703
      %8705 = vmatmul.bf16.gmra.mxu0 %v6353
      %v8706 = vpop.f32.mrf.mxu0
      %v8707 = vadd.f32 %v8538, %v8706
      %v8708 = vpop.f32.mrf.mxu0
      %v8709 = vadd.f32 %v8540, %v8708
      %8710 = vmatmul.bf16.gmra.mxu0 %v6362
      %v8711 = vpop.f32.mrf.mxu0
      %v8712 = vadd.f32 %v8543, %v8711
      %v8713 = vpop.f32.mrf.mxu0
      %v8714 = vadd.f32 %v8545, %v8713
      %8715 = vmatmul.bf16.gmra.mxu0 %v6371
      %v8716 = vpop.f32.mrf.mxu0
      %v8717 = vadd.f32 %v8548, %v8716
      %v8718 = vpop.f32.mrf.mxu0
      %v8719 = vadd.f32 %v8550, %v8718
      %8720 = vmatmul.bf16.gmra.mxu0 %v6380
      %v8721 = vpop.f32.mrf.mxu0
      %v8722 = vadd.f32 %v8553, %v8721
      %v8723 = vpop.f32.mrf.mxu0
      %v8724 = vadd.f32 %v8555, %v8723
      %8725 = vmatmul.bf16.gmra.mxu0 %v6389
      %v8726 = vpop.f32.mrf.mxu0
      %v8727 = vadd.f32 %v8558, %v8726
      %v8728 = vpop.f32.mrf.mxu0
      %v8729 = vadd.f32 %v8560, %v8728
      %8730 = vmatmul.bf16.gmra.mxu0 %v6398
      %v8731 = vpop.f32.mrf.mxu0
      %v8732 = vadd.f32 %v8563, %v8731
      %v8733 = vpop.f32.mrf.mxu0
      %v8734 = vadd.f32 %v8565, %v8733
      %8735 = vmatmul.bf16.gmra.mxu0 %v6407
      %v8736 = vpop.f32.mrf.mxu0
      %v8737 = vadd.f32 %v8568, %v8736
      %v8738 = vpop.f32.mrf.mxu0
      %v8739 = vadd.f32 %v8570, %v8738
      %8740 = vmatmul.bf16.gmra.mxu0 %v6416
      %v8741 = vpop.f32.mrf.mxu0
      %v8742 = vadd.f32 %v8573, %v8741
      %v8743 = vpop.f32.mrf.mxu0
      %v8744 = vadd.f32 %v8575, %v8743
      %8745 = vmatmul.bf16.gmra.mxu0 %v6425
      %v8746 = vpop.f32.mrf.mxu0
      %v8747 = vadd.f32 %v8578, %v8746
      %v8748 = vpop.f32.mrf.mxu0
      %v8749 = vadd.f32 %v8580, %v8748
      %8750 = vmatmul.bf16.gmra.mxu0 %v6434
      %v8751 = vpop.f32.mrf.mxu0
      %v8752 = vadd.f32 %v8583, %v8751
      %v8753 = vpop.f32.mrf.mxu0
      %v8754 = vadd.f32 %v8585, %v8753
      %8755 = vmatmul.bf16.gmra.mxu0 %v6443
      %v8756 = vpop.f32.mrf.mxu0
      %v8757 = vadd.f32 %v8588, %v8756
      %v8758 = vpop.f32.mrf.mxu0
      %v8759 = vadd.f32 %v8590, %v8758
      %8760 = vmatmul.bf16.gmra.mxu0 %v6452
      %v8761 = vpop.f32.mrf.mxu0
      %v8762 = vadd.f32 %v8593, %v8761
      %v8763 = vpop.f32.mrf.mxu0
      %v8764 = vadd.f32 %v8595, %v8763
      %8765 = vmatmul.bf16.gmra.mxu0 %v6461
      %v8766 = vpop.f32.mrf.mxu0
      %v8767 = vadd.f32 %v8598, %v8766
      %v8768 = vpop.f32.mrf.mxu0
      %v8769 = vadd.f32 %v8600, %v8768
      %8770 = vmatmul.bf16.gmra.mxu0 %v6470
      %v8771 = vpop.f32.mrf.mxu0
      %v8772 = vadd.f32 %v8603, %v8771
      %v8773 = vpop.f32.mrf.mxu0
      %v8774 = vadd.f32 %v8605, %v8773
      %8775 = vmatmul.bf16.gmra.mxu0 %v6479
      %v8776 = vpop.f32.mrf.mxu0
      %v8777 = vadd.f32 %v8608, %v8776
      %v8778 = vpop.f32.mrf.mxu0
      %v8779 = vadd.f32 %v8610, %v8778
      %8780 = vmatmul.bf16.gmra.mxu0 %v6488
      %v8781 = vpop.f32.mrf.mxu0
      %v8782 = vadd.f32 %v8613, %v8781
      %v8783 = vpop.f32.mrf.mxu0
      %v8784 = vadd.f32 %v8615, %v8783
      %8785 = vmatmul.bf16.gmra.mxu0 %v6497
      %v8786 = vpop.f32.mrf.mxu0
      %v8787 = vadd.f32 %v8618, %v8786
      %v8788 = vpop.f32.mrf.mxu0
      %v8789 = vadd.f32 %v8620, %v8788
      %8790 = vmatmul.bf16.gmra.mxu0 %v6506
      %v8791 = vpop.f32.mrf.mxu0
      %v8792 = vadd.f32 %v8623, %v8791
      %v8793 = vpop.f32.mrf.mxu0
      %v8794 = vadd.f32 %v8625, %v8793
      %8795 = vmatmul.bf16.gmra.mxu0 %v6515
      %v8796 = vpop.f32.mrf.mxu0
      %v8797 = vadd.f32 %v8628, %v8796
      %v8798 = vpop.f32.mrf.mxu0
      %v8799 = vadd.f32 %v8630, %v8798
      %8800 = vmatmul.bf16.gmra.mxu0 %v6524
      %v8801 = vpop.f32.mrf.mxu0
      %v8802 = vadd.f32 %v8633, %v8801
      %v8803 = vpop.f32.mrf.mxu0
      %v8804 = vadd.f32 %v8635, %v8803
      %8805 = vmatmul.bf16.gmra.mxu0 %v6533
      %v8806 = vpop.f32.mrf.mxu0
      %v8807 = vadd.f32 %v8638, %v8806
      %v8808 = vpop.f32.mrf.mxu0
      %v8809 = vadd.f32 %v8640, %v8808
      %8810 = vmatmul.bf16.gmra.mxu0 %v6542
      %v8811 = vpop.f32.mrf.mxu0
      %v8812 = vadd.f32 %v8643, %v8811
      %v8813 = vpop.f32.mrf.mxu0
      %v8814 = vadd.f32 %v8645, %v8813
      %8815 = vmatmul.bf16.gmra.mxu0 %v6551
      %v8816 = vpop.f32.mrf.mxu0
      %v8817 = vadd.f32 %v8648, %v8816
      %v8818 = vpop.f32.mrf.mxu0
      %v8819 = vadd.f32 %v8650, %v8818
      %8820 = vmatmul.bf16.gmra.mxu0 %v6560
      %v8821 = vpop.f32.mrf.mxu0
      %v8822 = vadd.f32 %v8653, %v8821
      %v8823 = vpop.f32.mrf.mxu0
      %v8824 = vadd.f32 %v8655, %v8823
      %8825 = vmatmul.bf16.gmra.mxu0 %v6569
      %v8826 = vpop.f32.mrf.mxu0
      %v8827 = vadd.f32 %v8658, %v8826
      %v8828 = vpop.f32.mrf.mxu0
      %v8829 = vadd.f32 %v8660, %v8828
      %8830 = vmatmul.bf16.gmra.mxu0 %v6578
      %v8831 = vpop.f32.mrf.mxu0
      %v8832 = vadd.f32 %v8663, %v8831
      %v8833 = vpop.f32.mrf.mxu0
      %v8834 = vadd.f32 %v8665, %v8833
      %8835 = vmatmul.bf16.gmra.mxu0 %v6587
      %v8836 = vpop.f32.mrf.mxu0
      %v8837 = vadd.f32 %v8668, %v8836
      %v8838 = vpop.f32.mrf.mxu0
      %v8839 = vadd.f32 %v8670, %v8838
      %8840 = vmatmul.bf16.gmra.mxu0 %v6596
      %v8841 = vpop.f32.mrf.mxu0
      %v8842 = vadd.f32 %v8673, %v8841
      %v8843 = vpop.f32.mrf.mxu0
      %v8844 = vadd.f32 %v8675, %v8843
      %8845 = vmatmul.bf16.gmra.mxu0 %v6605
      %v8846 = vpop.f32.mrf.mxu0
      %v8847 = vadd.f32 %v8678, %v8846
      %v8848 = vpop.f32.mrf.mxu0
      %v8849 = vadd.f32 %v8680, %v8848
      %8850 = vmatmul.bf16.gmra.mxu0 %v6614
      %v8851 = vpop.f32.mrf.mxu0
      %v8852 = vadd.f32 %v8683, %v8851
      %v8853 = vpop.f32.mrf.mxu0
      %v8854 = vadd.f32 %v8685, %v8853
      %8855 = vdwg.mxu0
      %vm8856 = vcmask 261120
      %8857 = vst.msk [vmem:[%s362] sm:$0xff] %vm8856, %v8697
      %8858 = vst.msk [vmem:[%s362 + $0x8] sm:$0xff] %vm8856, %v8699
      %8859 = vst.msk [vmem:[%s362 + $0x10] sm:$0xff] %vm8856, %v8702
      %8860 = vst.msk [vmem:[%s362 + $0x18] sm:$0xff] %vm8856, %v8704
      %8861 = vst.msk [vmem:[%s362 + $0x20] sm:$0xff] %vm8856, %v8707
      %8862 = vst.msk [vmem:[%s362 + $0x28] sm:$0xff] %vm8856, %v8709
      %8863 = vst.msk [vmem:[%s362 + $0x30] sm:$0xff] %vm8856, %v8712
      %8864 = vst.msk [vmem:[%s362 + $0x38] sm:$0xff] %vm8856, %v8714
      %8865 = vst.msk [vmem:[%s362 + $0x40] sm:$0xff] %vm8856, %v8717
      %8866 = vst.msk [vmem:[%s362 + $0x48] sm:$0xff] %vm8856, %v8719
      %8867 = vst.msk [vmem:[%s362 + $0x50] sm:$0xff] %vm8856, %v8722
      %8868 = vst.msk [vmem:[%s362 + $0x58] sm:$0xff] %vm8856, %v8724
      %8869 = vst.msk [vmem:[%s362 + $0x60] sm:$0xff] %vm8856, %v8727
      %8870 = vst.msk [vmem:[%s362 + $0x68] sm:$0xff] %vm8856, %v8729
      %8871 = vst.msk [vmem:[%s362 + $0x70] sm:$0xff] %vm8856, %v8732
      %8872 = vst.msk [vmem:[%s362 + $0x78] sm:$0xff] %vm8856, %v8734
      %8873 = vst.msk [vmem:[%s362 + $0x80] sm:$0xff] %vm8856, %v8737
      %8874 = vst.msk [vmem:[%s362 + $0x88] sm:$0xff] %vm8856, %v8739
      %8875 = vst.msk [vmem:[%s362 + $0x90] sm:$0xff] %vm8856, %v8742
      %8876 = vst.msk [vmem:[%s362 + $0x98] sm:$0xff] %vm8856, %v8744
      %8877 = vst.msk [vmem:[%s362 + $0xa0] sm:$0xff] %vm8856, %v8747
      %8878 = vst.msk [vmem:[%s362 + $0xa8] sm:$0xff] %vm8856, %v8749
      %8879 = vst.msk [vmem:[%s362 + $0xb0] sm:$0xff] %vm8856, %v8752
      %8880 = vst.msk [vmem:[%s362 + $0xb8] sm:$0xff] %vm8856, %v8754
      %8881 = vst.msk [vmem:[%s362 + $0xc0] sm:$0xff] %vm8856, %v8757
      %8882 = vst.msk [vmem:[%s362 + $0xc8] sm:$0xff] %vm8856, %v8759
      %8883 = vst.msk [vmem:[%s362 + $0xd0] sm:$0xff] %vm8856, %v8762
      %8884 = vst.msk [vmem:[%s362 + $0xd8] sm:$0xff] %vm8856, %v8764
      %8885 = vst.msk [vmem:[%s362 + $0xe0] sm:$0xff] %vm8856, %v8767
      %8886 = vst.msk [vmem:[%s362 + $0xe8] sm:$0xff] %vm8856, %v8769
      %8887 = vst.msk [vmem:[%s362 + $0xf0] sm:$0xff] %vm8856, %v8772
      %8888 = vst.msk [vmem:[%s362 + $0xf8] sm:$0xff] %vm8856, %v8774
      %8889 = vst.msk [vmem:[%s362 + $0x100] sm:$0xff] %vm8856, %v8777
      %8890 = vst.msk [vmem:[%s362 + $0x108] sm:$0xff] %vm8856, %v8779
      %8891 = vst.msk [vmem:[%s362 + $0x110] sm:$0xff] %vm8856, %v8782
      %8892 = vst.msk [vmem:[%s362 + $0x118] sm:$0xff] %vm8856, %v8784
      %8893 = vst.msk [vmem:[%s362 + $0x120] sm:$0xff] %vm8856, %v8787
      %8894 = vst.msk [vmem:[%s362 + $0x128] sm:$0xff] %vm8856, %v8789
      %8895 = vst.msk [vmem:[%s362 + $0x130] sm:$0xff] %vm8856, %v8792
      %8896 = vst.msk [vmem:[%s362 + $0x138] sm:$0xff] %vm8856, %v8794
      %8897 = vst.msk [vmem:[%s362 + $0x140] sm:$0xff] %vm8856, %v8797
      %8898 = vst.msk [vmem:[%s362 + $0x148] sm:$0xff] %vm8856, %v8799
      %8899 = vst.msk [vmem:[%s362 + $0x150] sm:$0xff] %vm8856, %v8802
      %8900 = vst.msk [vmem:[%s362 + $0x158] sm:$0xff] %vm8856, %v8804
      %8901 = vst.msk [vmem:[%s362 + $0x160] sm:$0xff] %vm8856, %v8807
      %8902 = vst.msk [vmem:[%s362 + $0x168] sm:$0xff] %vm8856, %v8809
      %8903 = vst.msk [vmem:[%s362 + $0x170] sm:$0xff] %vm8856, %v8812
      %8904 = vst.msk [vmem:[%s362 + $0x178] sm:$0xff] %vm8856, %v8814
      %8905 = vst.msk [vmem:[%s362 + $0x180] sm:$0xff] %vm8856, %v8817
      %8906 = vst.msk [vmem:[%s362 + $0x188] sm:$0xff] %vm8856, %v8819
      %8907 = vst.msk [vmem:[%s362 + $0x190] sm:$0xff] %vm8856, %v8822
      %8908 = vst.msk [vmem:[%s362 + $0x198] sm:$0xff] %vm8856, %v8824
      %8909 = vst.msk [vmem:[%s362 + $0x1a0] sm:$0xff] %vm8856, %v8827
      %8910 = vst.msk [vmem:[%s362 + $0x1a8] sm:$0xff] %vm8856, %v8829
      %8911 = vst.msk [vmem:[%s362 + $0x1b0] sm:$0xff] %vm8856, %v8832
      %8912 = vst.msk [vmem:[%s362 + $0x1b8] sm:$0xff] %vm8856, %v8834
      %8913 = vst.msk [vmem:[%s362 + $0x1c0] sm:$0xff] %vm8856, %v8837
      %8914 = vst.msk [vmem:[%s362 + $0x1c8] sm:$0xff] %vm8856, %v8839
      %8915 = vst.msk [vmem:[%s362 + $0x1d0] sm:$0xff] %vm8856, %v8842
      %8916 = vst.msk [vmem:[%s362 + $0x1d8] sm:$0xff] %vm8856, %v8844
      %8917 = vst.msk [vmem:[%s362 + $0x1e0] sm:$0xff] %vm8856, %v8847
      %8918 = vst.msk [vmem:[%s362 + $0x1e8] sm:$0xff] %vm8856, %v8849
      %8919 = vst.msk [vmem:[%s362 + $0x1f0] sm:$0xff] %vm8856, %v8852
      %8920 = vst.msk [vmem:[%s362 + $0x1f8] sm:$0xff] %vm8856, %v8854
      %s8921 = smul.u32 16, %s22
      %p8922 = scmp.lt.s32.totalorder %s21, 1
      %s8923 = scalar_select %p8922, %s21, 1
      %p8924 = scmp.lt.s32.totalorder %s8921, 31
      %s8925 = scalar_select %p8924, %s8921, 31
      %s8926 = smul.addr %s8925, 4
      %s8927 = smul.addr %s8923, 128
      %s8928 = sadd.s32 %s8926, %s8927
      %s8929 = smul.addr %s8928, 8
      %s8930 = scalar_lea.vmem %s6, %s8929
      // Predicated region
      $region45: #{forward.3} parent=43 // pred_check
        %p8931 = pneg %p196
      $region46: #{forward.3} parent=43 // pred_check_branch
        %8933 = sbr.rel (%p8931) target = $region48
      $region47: #{forward.3} parent=43 // pred_region
        %s8934 = smul.u32 16, %s22
      $region48: #{forward.3} parent=43 // pred_fallthru
        _
    $region44: #{forward.3} parent=5 // pred_fallthru
      _
    %p8935 = scmp.le.s32.totalorder 2, %s12
    // Predicated region
    $region49: #{forward.3} parent=5 // pred_check
      %p8936 = pneg %p8935
    $region50: #{forward.3} parent=5 // pred_check_branch
      %8938 = sbr.rel (%p8936) target = $region52
    $region51: #{forward.3} parent=5 // pred_region
      %s8939 = ssub.s32 %s12, 2
      // Predicated region
      $region53: #{forward.3} parent=51 // pred_check
        %p8940 = pneg %p202
      $region54: #{forward.3} parent=51 // pred_check_branch
        %8942 = sbr.rel (%p8940) target = $region56
      $region55: #{forward.3} parent=51 // pred_region
        %s8943 = smul.u32 16, %s24
        %p8944 = scmp.lt.s32.totalorder %s23, 1
        %s8945 = scalar_select %p8944, %s23, 1
        %p8946 = scmp.lt.s32.totalorder %s8943, 31
        %s8947 = scalar_select %p8946, %s8943, 31
        %s8948 = smul.addr %s8947, 4
        %s8949 = smul.addr %s8945, 128
        %s8950 = sadd.s32 %s8948, %s8949
        %s8951 = smul.addr %s8950, 8
        %s8952 = scalar_lea.vmem %s6, %s8951
      $region56: #{forward.3} parent=51 // pred_fallthru
        _
    $region52: #{forward.3} parent=5 // pred_fallthru
      _
  $region6: #{forward.3} parent=0 // loop_footer
    %s16 = sadd.s32 1, %s12
  $region7: #{forward.3} parent=0 // loop_footer_branch
    %11 = sbr.rel target = $region3
  $region8: #{forward.3} parent=0 // loop_exit
    _

</llo_original>
